<compile_context>
chip_gen: v5e
topology: v5e:2x2
jax: 0.10.0
libtpu: 0.0.40
codegen_flags: <defaults>
</compile_context>

<pallas_src>
import functools
import math

import jax
import jax.numpy as jnp
from jax.experimental import pallas as pl
from jax.experimental.pallas import tpu as pltpu


# ----------------------------------------------------------------------------
# shared frame-pool helper (mirrors the PyTorch F.avg_pool1d branches)
# ----------------------------------------------------------------------------

def _pool_frames(v, frame_rate, T):
    """Average-pool axis 1 of v (frames), in f32.  v: (BB, T, ...)."""
    BB = v.shape[0]
    tail = v.shape[2:]
    v = v.astype(jnp.float32)
    if T % 2 == 1:
        # keep the first frame, pool the rest with kernel=stride=frame_rate
        n_rest = ((T - 1) // frame_rate) * frame_rate
        first = v[:, 0:1]
        if n_rest > 0:
            rest = v[:, 1:1 + n_rest]
            rest = jnp.mean(
                rest.reshape((BB, n_rest // frame_rate, frame_rate) + tail), axis=2)
            v = jnp.concatenate([first, rest], axis=1)
        else:
            v = first
    else:
        # even frame count: PyTorch always pools with kernel=2, stride=2
        v = jnp.mean(v.reshape((BB, T // 2, 2) + tail), axis=2)
    return v


# ----------------------------------------------------------------------------
# kernels
# ----------------------------------------------------------------------------

def _downsample_im2col_kernel(x_ref, w_ref, b_ref, out_ref, *,
                              frame_rate, joint_stride, T, J, Cin, Cout,
                              T_out, J_out, compute_dtype, mxu_precision):
    """im2col path (large channels).

    x_ref  : (BB, T, J+2, Cin)   joint axis pre-padded with the conv halo
    w_ref  : (3*Cin, Cout)       im2col-flattened Conv1d weight (compute dtype)
    b_ref  : (1, Cout)           f32
    out_ref: (BB, T_out, J_out, Cout)
    """
    BB = out_ref.shape[0]
    K3 = 3 * Cin

    if joint_stride > 1:
        # strided joint gather straight from the halo-padded ref (HW strided load),
        # then frame-pool the gathered patches (pool-first would need a strided
        # slice of a VMEM value here).
        taps = [x_ref[:, :, pl.ds(k, J_out, stride=joint_stride), :]
                for k in range(3)]
        patches = jnp.concatenate(taps, axis=-1)           # (BB, T, J_out, 3*Cin)
        if frame_rate > 1:
            patches = _pool_frames(patches, frame_rate, T)  # f32, T_out rows
        patches = patches.astype(compute_dtype)
    else:
        x = x_ref[...]                                      # (BB, T, J+2, Cin)
        if frame_rate > 1:
            # pool BEFORE the tap gather: 1/3 of the VPU adds (Cin vs 3*Cin lanes)
            x = _pool_frames(x, frame_rate, T)
        x = x.astype(compute_dtype)                          # single cast, Cin lanes
        taps = [x[:, :, k:k + J_out, :] for k in range(3)]   # contiguous slices
        patches = jnp.concatenate(taps, axis=-1)            # (BB, T_out, J_out, 3*Cin)

    lhs = patches.reshape(BB * T_out * J_out, K3)
    y = jnp.dot(lhs, w_ref[...], preferred_element_type=jnp.float32,
                precision=mxu_precision)
    y = y + b_ref[...].astype(jnp.float32)
    out_ref[...] = y.reshape(BB, T_out, J_out, Cout).astype(out_ref.dtype)


def _downsample_folded_kernel(x_ref, w_ref, b_ref, out_ref, *,
                              frame_rate, T, T_out, L_in, L_out,
                              compute_dtype, mxu_precision):
    """Lane-dense folded path (small channels): joints folded into lanes and the
    whole conv (3 taps, stride, halo) expressed as one matmul against a
    block-banded weight.

    x_ref  : (BB, T, L_in)   L_in = (J+2)*Cin, halo pre-folded into lanes
    w_ref  : (L_in, L_out)   L_out = J_out*Cout, block-banded (compute dtype)
    b_ref  : (1, L_out)      f32 (bias tiled per output joint)
    out_ref: (BB, T_out, L_out)
    """
    BB = out_ref.shape[0]
    x = x_ref[...]
    if frame_rate > 1:
        x = _pool_frames(x, frame_rate, T)                   # f32, (BB, T_out, L_in)
    x = x.astype(compute_dtype)
    lhs = x.reshape(BB * T_out, L_in)
    y = jnp.dot(lhs, w_ref[...], preferred_element_type=jnp.float32,
                precision=mxu_precision)
    y = y + b_ref[...].astype(jnp.float32)
    out_ref[...] = y.reshape(BB, T_out, L_out).astype(out_ref.dtype)


# ----------------------------------------------------------------------------
# wrapper
# ----------------------------------------------------------------------------

def _auto_batch_block(B, rows_per_batch, per_batch_bytes, fixed_bytes,
                      target_rows=512, vmem_budget=20 << 20):
    """Batch elements per grid step.

    Goals: (a) per-step matmul M >= target_rows so the MXU's M dim is filled and
    the ~0.35us/step overhead is amortized, (b) stay inside a conservative VMEM
    budget (safe on v7x's 64 MiB / 32 MiB scoped default), (c) keep >= 2 grid
    steps (batch_block=1 is NOT required for megacore — just an even-ish grid).
    """
    bb = max(1, -(-target_rows // max(1, rows_per_batch)))
    avail = max(per_batch_bytes, vmem_budget - fixed_bytes)
    bb = min(bb, max(1, avail // max(1, per_batch_bytes)))
    if B >= 2:
        bb = min(bb, B // 2)          # both v7x TensorCores get work
    bb = int(max(1, min(bb, B)))
    divs = [d for d in range(1, bb + 1) if B % d == 0]
    even = [d for d in divs if (B // d) % 2 == 0]
    return max(even) if even else max(divs)


def downsample(x, w, b, frame_downsample_rate=1, joint_downsample_rate=1,
               *, batch_block=None, precision="bf16"):
    """Downsample forward.

    x: (B, C, frames, joints) — PyTorch NCHW layout, like the nn.Module.
    w: (3, Cin, Cout)         — Conv1d weight (PyTorch weight.permute(2, 1, 0)).
    b: (Cout,)                — Conv1d bias.
    precision: "bf16" (default, MXU-native bf16 with f32 accumulation),
               "f32" (single-pass MXU), "f32_highest" (multi-pass fp32-faithful).
    Returns (B, Cout, frames_out, joints_out), matching the nn.Module output.
    """
    B, Cin, T, J = x.shape
    assert w.shape[0] == 3 and w.shape[1] == Cin, w.shape
    Cout = w.shape[2]
    ft, js = frame_downsample_rate, joint_downsample_rate
    if js > 1:
        # TODO(synk): joint counts not divisible by a joint stride > 1 need a
        # ragged tail (not used by the model configs).
        assert J % js == 0, (J, js)

    if ft > 1:
        T_out = 1 + (T - 1) // ft if (T % 2 == 1) else T // 2
    else:
        T_out = T
    J_out = (J - 1) // js + 1

    if precision == "bf16":
        compute_dtype, mxu_precision = jnp.bfloat16, jax.lax.Precision.DEFAULT
    elif precision == "f32":
        compute_dtype, mxu_precision = jnp.float32, jax.lax.Precision.DEFAULT
    elif precision == "f32_highest":
        compute_dtype, mxu_precision = jnp.float32, jax.lax.Precision.HIGHEST
    else:
        raise ValueError(f"unknown precision {precision!r}")

    # NCHW -> channels-last + joint-axis conv halo, fused in one XLA copy.
    # TODO(synk): if upstream activations can stay channels-last, accept
    # (B, T, J, C) directly and drop this extra HBM pass.
    x_nhwc = jnp.pad(jnp.transpose(x, (0, 2, 3, 1)),
                     ((0, 0), (0, 0), (1, 1), (0, 0)))         # (B, T, J+2, Cin)

    xb = x.dtype.itemsize
    cb = jnp.dtype(compute_dtype).itemsize
    cparams = dict(dimension_semantics=("parallel",),          # batch axis -> 2 TCs
                   vmem_limit_bytes=32 * 1024 * 1024)          # lift v5e's 16MiB default

    # Small-channel configs: fold joints into lanes so loads / stores / DMAs are
    # lane-dense and the whole conv is a single well-shaped matmul against a
    # block-banded weight; the ~(J+2)/3 redundant FLOPs are free (MXU idle here).
    use_folded = (Cout < 128 and Cin <= 128
                  and (J + 2) * Cin <= 4096 and J_out * Cout <= 4096)

    if use_folded:
        L_in, L_out = (J + 2) * Cin, J_out * Cout
        x_in = x_nhwc.reshape(B, T, L_in)          # free: folds the two minor dims
        w_c = w.astype(compute_dtype)
        W_big = jnp.zeros((L_in, L_out), compute_dtype)
        for p in range(J_out):                      # block-banded conv weight
            for k in range(3):
                jp = js * p + k
                W_big = W_big.at[jp * Cin:(jp + 1) * Cin,
                                 p * Cout:(p + 1) * Cout].set(w_c[k])
        b_big = jnp.tile(b.astype(jnp.float32), J_out).reshape(1, L_out)

        per_b = (2 * T * L_in * xb + 2 * T_out * L_out * xb
                 + T * L_in * 4 + T_out * L_out * 4)
        fixed = 2 * (L_in * L_out * cb + L_out * 4)
        bb = batch_block or _auto_batch_block(B, T_out, per_b, fixed)
        assert B % bb == 0, (B, bb)

        kern = functools.partial(
            _downsample_folded_kernel, frame_rate=ft, T=T, T_out=T_out,
            L_in=L_in, L_out=L_out, compute_dtype=compute_dtype,
            mxu_precision=mxu_precision)
        out = pl.pallas_call(
            kern,
            grid=(B // bb,),
            out_shape=jax.ShapeDtypeStruct((B, T_out, L_out), x.dtype),
            in_specs=[
                pl.BlockSpec((bb, T, L_in), lambda i: (i, 0, 0)),
                pl.BlockSpec((L_in, L_out), lambda i: (0, 0)),
                pl.BlockSpec((1, L_out), lambda i: (0, 0)),
            ],
            out_specs=pl.BlockSpec((bb, T_out, L_out), lambda i: (i, 0, 0)),
            compiler_params=pltpu.CompilerParams(**cparams),
        )(x_in, W_big, b_big)
        out = out.reshape(B, T_out, J_out, Cout)
    else:
        w_flat = w.reshape(3 * Cin, Cout).astype(compute_dtype)  # cast once, wrapper
        b_row = b.astype(jnp.float32).reshape(1, Cout)

        per_b = (2 * T * (J + 2) * Cin * xb + 2 * T_out * J_out * Cout * xb
                 + T_out * (J + 2) * Cin * 4
                 + T_out * J_out * 3 * Cin * cb + T_out * J_out * Cout * 4)
        fixed = 2 * (3 * Cin * Cout * cb + Cout * 4)
        bb = batch_block or _auto_batch_block(B, T_out * J_out, per_b, fixed)
        assert B % bb == 0, (B, bb)
        # TODO(synk): for extreme shapes where even bb=1 overflows the budget,
        # chunk the im2col+dot over T_out with an inner pl.loop.

        kern = functools.partial(
            _downsample_im2col_kernel, frame_rate=ft, joint_stride=js, T=T, J=J,
            Cin=Cin, Cout=Cout, T_out=T_out, J_out=J_out,
            compute_dtype=compute_dtype, mxu_precision=mxu_precision)
        out = pl.pallas_call(
            kern,
            grid=(B // bb,),
            out_shape=jax.ShapeDtypeStruct((B, T_out, J_out, Cout), x.dtype),
            in_specs=[
                pl.BlockSpec((bb, T, J + 2, Cin), lambda i: (i, 0, 0, 0)),
                pl.BlockSpec((3 * Cin, Cout), lambda i: (0, 0)),
                pl.BlockSpec((1, Cout), lambda i: (0, 0)),
            ],
            out_specs=pl.BlockSpec((bb, T_out, J_out, Cout),
                                   lambda i: (i, 0, 0, 0)),
            compiler_params=pltpu.CompilerParams(**cparams),
        )(x_nhwc, w_flat, b_row)

    # back to the module's NCHW output layout
    return jnp.transpose(out, (0, 3, 1, 2))


# ----------------------------------------------------------------------------
# Pure-JAX reference (follows the PyTorch forward literally, NCHW in/out)
# ----------------------------------------------------------------------------

def _ref_downsample(x, w, b, frame_downsample_rate, joint_downsample_rate):
    B, C, T, J = x.shape
    ft, js = frame_downsample_rate, joint_downsample_rate
    if ft > 1:
        if T % 2 == 1:
            x_first = x[:, :, :1, :]
            n_rest = ((T - 1) // ft) * ft
            if n_rest > 0:
                x_rest = x[:, :, 1:1 + n_rest, :]
                x_rest = jnp.mean(x_rest.reshape(B, C, n_rest // ft, ft, J), axis=3)
                x = jnp.concatenate([x_first, x_rest], axis=2)
            else:
                x = x_first
        else:
            x = jnp.mean(x.reshape(B, C, T // 2, 2, J), axis=3)
    B, C, T2, J2 = x.shape
    xl = jnp.transpose(x, (0, 2, 3, 1)).reshape(B * T2, J2, C)
    y = jax.lax.conv_general_dilated(
        xl, w, window_strides=(js,), padding=((1, 1),),
        dimension_numbers=('NWC', 'WIO', 'NWC'),
        precision=jax.lax.Precision.HIGHEST)
    y = y + b
    y = y.reshape(B, T2, y.shape[1], y.shape[2])
    return jnp.transpose(y, (0, 3, 1, 2))


# ----------------------------------------------------------------------------

if __name__ == "__main__":
    key = jax.random.PRNGKey(0)

    # (B, Cin, Cout, frames, joints, frame_rate, joint_rate)
    # Cout=32 configs hit the folded lane-dense path; Cout=128 the im2col path.
    configs = [
        (2, 32, 32, 8, 16, 1, 1),    # module defaults (encoder), folded path
        (2, 32, 32, 8, 16, 2, 2),    # folded: even-frame pool + stride-2 conv
        (2, 32, 32, 9, 16, 2, 2),    # folded: odd-frame pool branch
        (2, 32, 128, 8, 16, 1, 1),   # im2col: no downsampling
        (2, 32, 128, 9, 16, 2, 1),   # im2col: pool-before-gather branch
        (2, 32, 128, 8, 16, 2, 2),   # im2col: strided ref gather + pool
    ]

    for idx, (B, Cin, Cout, T, J, ft, js) in enumerate(configs):
        kk = jax.random.fold_in(key, idx)
        k1, k2, k3 = jax.random.split(kk, 3)
        w = jax.random.normal(k1, (3, Cin, Cout), jnp.float32) / math.sqrt(3 * Cin)
        b = 0.02 * jax.random.normal(k2, (Cout,), jnp.float32)
        x = jax.random.normal(k3, (B, Cin, T, J), jnp.float32)

        ref = jax.block_until_ready(_ref_downsample(x, w, b, ft, js))

        # fp32-faithful path — strict check of the gather/pool/conv logic.
        out = jax.block_until_ready(
            downsample(x, w, b, ft, js, precision="f32_highest"))
        assert out.shape == ref.shape, (out.shape, ref.shape)
        if not bool(jnp.allclose(out, ref, atol=2e-3, rtol=2e-3)):
            err = float(jnp.max(jnp.abs(out - ref)))
            raise AssertionError(f"f32 config {configs[idx]}: max abs err = {err}")

        # default fast path (bf16 MXU, f32 accumulation) — looser tolerance.
        if idx in (1, 5):
            out_bf = jax.block_until_ready(downsample(x, w, b, ft, js))
            if not bool(jnp.allclose(out_bf, ref, atol=6e-2, rtol=6e-2)):
                err = float(jnp.max(jnp.abs(out_bf - ref)))
                raise AssertionError(
                    f"bf16 config {configs[idx]}: max abs err = {err}")

    print("KERNEL_OK")
</pallas_src>

<mosaic_0001>
module attributes {stable_mosaic.version = 11 : i64} {
  func.func @_downsample_folded_kernel(%arg0: i32, %arg1: memref<1x8x576xf32, #tpu.memory_space<vmem>>, %arg2: memref<576x512xf32, #tpu.memory_space<vmem>>, %arg3: memref<1x512xf32, #tpu.memory_space<vmem>>, %arg4: memref<1x8x512xf32, #tpu.memory_space<vmem>>) attributes {dimension_semantics = [#tpu.dimension_semantics<parallel>], iteration_bounds = array<i64: 2>, scalar_prefetch = 0 : i64, scratch_operands = 0 : i64, tpu.core_type = #tpu.core_type<tc>, window_params = [{transform_indices = @transform_0, window_bounds = array<i64: 1, 8, 576>}, {pipeline_mode = #tpu.pipeline_mode<synchronous>, transform_indices = @transform_1, window_bounds = array<i64: 576, 512>}, {pipeline_mode = #tpu.pipeline_mode<synchronous>, transform_indices = @transform_2, window_bounds = array<i64: 1, 512>}, {transform_indices = @transform_3, window_bounds = array<i64: 1, 8, 512>}]} {
    %c0 = arith.constant 0 : index
    %c0_0 = arith.constant 0 : index
    %c0_1 = arith.constant 0 : index
    %0 = vector.load %arg1[%c0, %c0_0, %c0_1] : memref<1x8x576xf32, #tpu.memory_space<vmem>>, vector<1x8x576xf32>
    %1 = vector.shape_cast %0 : vector<1x8x576xf32> to vector<8x576xf32>
    %c0_2 = arith.constant 0 : index
    %c0_3 = arith.constant 0 : index
    %2 = vector.load %arg2[%c0_2, %c0_3] : memref<576x512xf32, #tpu.memory_space<vmem>>, vector<576x512xf32>
    %cst = arith.constant dense<0.000000e+00> : vector<8x512xf32>
    %3 = tpu.matmul %1, %2, %cst {dimension_numbers = #tpu.dot_dimension_numbers<[1], [0], [0], [1], [0, 0, 1, 1], [], []>, precision = #tpu.contract_precision<fp32>} : vector<8x576xf32>, vector<576x512xf32>, vector<8x512xf32> -> vector<8x512xf32>
    %c0_4 = arith.constant 0 : index
    %c0_5 = arith.constant 0 : index
    %4 = vector.load %arg3[%c0_4, %c0_5] : memref<1x512xf32, #tpu.memory_space<vmem>>, vector<1x512xf32>
    %5 = vector.broadcast %4 : vector<1x512xf32> to vector<8x512xf32>
    %6 = arith.addf %3, %5 : vector<8x512xf32>
    %7 = vector.shape_cast %6 : vector<8x512xf32> to vector<1x8x512xf32>
    %c0_6 = arith.constant 0 : index
    %c0_7 = arith.constant 0 : index
    %c0_8 = arith.constant 0 : index
    %8 = vector.load %arg4[%c0_6, %c0_7, %c0_8] : memref<1x8x512xf32, #tpu.memory_space<vmem>>, vector<1x8x512xf32>
    tpu.vector_store %arg4[%c0_6, %c0_7, %c0_8], %7 {strides = array<i32>} : memref<1x8x512xf32, #tpu.memory_space<vmem>>, vector<1x8x512xf32>,
    return
  }
  func.func @transform_0(%arg0: i32) -> (i32, i32, i32) {
    %c0_i32 = arith.constant 0 : i32
    %c0_i32_0 = arith.constant 0 : i32
    %c0_i32_1 = arith.constant 0 : i32
    return %arg0, %c0_i32, %c0_i32_0 : i32, i32, i32
  }
  func.func @transform_1(%arg0: i32) -> (i32, i32) {
    %c0_i32 = arith.constant 0 : i32
    %c0_i32_0 = arith.constant 0 : i32
    %c0_i32_1 = arith.constant 0 : i32
    return %c0_i32, %c0_i32_0 : i32, i32
  }
  func.func @transform_2(%arg0: i32) -> (i32, i32) {
    %c0_i32 = arith.constant 0 : i32
    %c0_i32_0 = arith.constant 0 : i32
    %c0_i32_1 = arith.constant 0 : i32
    return %c0_i32, %c0_i32_0 : i32, i32
  }
  func.func @transform_3(%arg0: i32) -> (i32, i32, i32) {
    %c0_i32 = arith.constant 0 : i32
    %c0_i32_0 = arith.constant 0 : i32
    %c0_i32_1 = arith.constant 0 : i32
    return %arg0, %c0_i32, %c0_i32_0 : i32, i32, i32
  }
}

</mosaic_0001>

<llo_original>
// kernel: tpu_custom_call.1
$region0: #{tpu_custom_call.1}
  #allocation0 [shape = 'u32[]', space=smem, size = 0x4, offset = 0x4, fixed_abs, tag = 'smem constant byte address 0x4 - core index']
  #allocation1 [shape = 'u32[72,128]{1,0:T(1,128)}', space=vmem, size = 0x9000, scoped, tag = 'internal scratch']
  %s0 = inlined_call_operand.hbm [shape: f32[2,8,576], index: 0, kind: input, shape index: {}]
  %s1 = inlined_call_operand.hbm [shape: f32[576,512], index: 1, kind: input, shape index: {}]
  %s2 = inlined_call_operand.hbm [shape: f32[1,512], index: 2, kind: input, shape index: {}]
  %s3 = inlined_call_operand.hbm [shape: f32[2,8,512], index: 3, kind: output, shape index: {}]
  %s4 = sld [smem:[#allocation0]]
  $region57: #{tpu_custom_call.1} parent=0
    _
  %s6 = ssub.s32 1, %s4
  %s7 = scalar_select 0, %s6, %s4
  $region1: #{tpu_custom_call.1} parent=0
    #allocation2 [shape = 'u8[40960]{0}', space=vmem, size = 0xa000, scoped, tag = 'input window, operand 0']
    #allocation3 [shape = 's32[2]{0}', space=sflag, size = 0x8, scoped, tag = 'scoped memory for tpu_custom_call.1']
    #allocation4 [shape = 's32[2]{0}', space=sflag, size = 0x8, scoped, tag = 'scoped memory for tpu_custom_call.1']
    #allocation5 [shape = 'u8[1179648]{0}', space=vmem, size = 0x120000, scoped, tag = 'input window, operand 1, single buffered']
    #allocation6 [shape = 's32[1]{0}', space=sflag, size = 0x4, scoped, tag = 'scoped memory for tpu_custom_call.1']
    #allocation7 [shape = 'u8[2048]{0}', space=vmem, size = 0x800, scoped, tag = 'input window, operand 2, single buffered']
    #allocation8 [shape = 'u8[32768]{0}', space=vmem, size = 0x8000, scoped, tag = 'output window, operand 0']
    %8 = vsyncpa [#allocation3], 0
    %s9 = scalar_lea.sflag [#allocation3], 1
    %10 = vsyncpa %s9, 0
    %11 = vsyncpa [#allocation6], 0
    %12 = vsyncpa [#allocation4], 0
    %s13 = scalar_lea.sflag [#allocation4], 1
    %14 = vsyncpa %s13, 0
    loop: start=0, step=1, limit=4
    $region2: #{tpu_custom_call.1} parent=1 // loop_pre_header
      _
    $region3: #{tpu_custom_call.1} parent=1 // loop_header
      %s16 = sphi 0, %s20
      %p17 = scmp.ge.s32.totalorder %s16, 4
      %s26 = sphi 0, %s28
      %s29 = sphi 0, %s26
      %s30 = sphi 0, %s29
      %s46 = sphi 0, %s30
      %s50 = sphi 0, %s50
      %s52 = sphi 0, %s50
      %s53 = sphi 0, %s52
      %s67 = sphi 0, %s53
      %s71 = sphi 0, %s71
      %s73 = sphi 0, %s71
      %s74 = sphi 0, %s73
      %s88 = sphi 0, %s74
      %s94 = sphi 0, %s96
      %s97 = sphi 0, %s94
      %s98 = sphi 0, %s97
      %s114 = sphi 0, %s98
    $region4: #{tpu_custom_call.1} parent=1 // loop_header_branch
      %19 = sbr.rel (%p17) target = $region8
    $region5: #{tpu_custom_call.1} parent=1 // loop_body
      %s21 = ssub.s32 %s16, 1
      %s22 = ssub.s32 %s16, 2
      %s23 = sadd.s32 %s16, 1
      %s24 = ssub.s32 %s16, %s23
      %p25 = scmp.eq.s32.totalorder %s24, 0
      %s27 = sadd.s32 %s26, 1
      %s28 = scalar_select %p25, %s26, %s27
      %p31 = pneg %p25
      %p32 = scmp.eq.s32.totalorder %s16, 1
      %p33 = por %p31, %p32
      %p34 = scmp.ne.s32.totalorder %s26, %s29
      %p35 = scmp.eq.s32.totalorder %s16, 0
      %p36 = por %p34, %p35
      %p37 = scmp.ne.s32.totalorder %s26, %s29
      %p38 = scmp.eq.s32.totalorder %s21, 1
      %p39 = por %p37, %p38
      %p40 = scmp.ne.s32.totalorder %s29, %s30
      %p41 = scmp.eq.s32.totalorder %s21, 0
      %p42 = por %p40, %p41
      %p43 = scmp.ne.s32.totalorder %s29, %s30
      %p44 = scmp.eq.s32.totalorder %s22, 1
      %p45 = por %p43, %p44
      %p47 = scmp.ne.s32.totalorder %s30, %s46
      %p48 = scmp.eq.s32.totalorder %s22, 0
      %p49 = por %p47, %p48
      %s51 = sadd.s32 %s50, 1
      %p54 = scmp.eq.s32.totalorder %s16, 1
      %p55 = scmp.ne.s32.totalorder %s50, %s52
      %p56 = scmp.eq.s32.totalorder %s16, 0
      %p57 = por %p55, %p56
      %p58 = scmp.ne.s32.totalorder %s50, %s52
      %p59 = scmp.eq.s32.totalorder %s21, 1
      %p60 = por %p58, %p59
      %p61 = scmp.ne.s32.totalorder %s52, %s53
      %p62 = scmp.eq.s32.totalorder %s21, 0
      %p63 = por %p61, %p62
      %p64 = scmp.ne.s32.totalorder %s52, %s53
      %p65 = scmp.eq.s32.totalorder %s22, 1
      %p66 = por %p64, %p65
      %p68 = scmp.ne.s32.totalorder %s53, %s67
      %p69 = scmp.eq.s32.totalorder %s22, 0
      %p70 = por %p68, %p69
      %s72 = sadd.s32 %s71, 1
      %p75 = scmp.eq.s32.totalorder %s16, 1
      %p76 = scmp.ne.s32.totalorder %s71, %s73
      %p77 = scmp.eq.s32.totalorder %s16, 0
      %p78 = por %p76, %p77
      %p79 = scmp.ne.s32.totalorder %s71, %s73
      %p80 = scmp.eq.s32.totalorder %s21, 1
      %p81 = por %p79, %p80
      %p82 = scmp.ne.s32.totalorder %s73, %s74
      %p83 = scmp.eq.s32.totalorder %s21, 0
      %p84 = por %p82, %p83
      %p85 = scmp.ne.s32.totalorder %s73, %s74
      %p86 = scmp.eq.s32.totalorder %s22, 1
      %p87 = por %p85, %p86
      %p89 = scmp.ne.s32.totalorder %s74, %s88
      %p90 = scmp.eq.s32.totalorder %s22, 0
      %p91 = por %p89, %p90
      %s92 = ssub.s32 %s16, %s23
      %p93 = scmp.eq.s32.totalorder %s92, 0
      %s95 = sadd.s32 %s94, 1
      %s96 = scalar_select %p93, %s94, %s95
      %p99 = pneg %p93
      %p100 = scmp.eq.s32.totalorder %s16, 1
      %p101 = por %p99, %p100
      %p102 = scmp.ne.s32.totalorder %s94, %s97
      %p103 = scmp.eq.s32.totalorder %s16, 0
      %p104 = por %p102, %p103
      %p105 = scmp.ne.s32.totalorder %s94, %s97
      %p106 = scmp.eq.s32.totalorder %s21, 1
      %p107 = por %p105, %p106
      %p108 = scmp.ne.s32.totalorder %s97, %s98
      %p109 = scmp.eq.s32.totalorder %s21, 0
      %p110 = por %p108, %p109
      %p111 = scmp.ne.s32.totalorder %s97, %s98
      %p112 = scmp.eq.s32.totalorder %s22, 1
      %p113 = por %p111, %p112
      %p115 = scmp.ne.s32.totalorder %s98, %s114
      %p116 = scmp.eq.s32.totalorder %s22, 0
      %p117 = por %p115, %p116
      %p118 = scmp.le.s32.totalorder 1, %s16
      %p119 = scmp.lt.s32.totalorder %s16, 3
      %p120 = pnand %p118, %p119
      %p121 = pneg %p120
      // Predicated region
      $region9: #{tpu_custom_call.1} parent=5 // pred_check
        _
      $region10: #{tpu_custom_call.1} parent=5 // pred_check_branch
        %123 = sbr.rel (%p120) target = $region12
      $region11: #{tpu_custom_call.1} parent=5 // pred_region
        %s124 = ssub.s32 %s16, 1
        // Predicated region
        $region13: #{tpu_custom_call.1} parent=11 // pred_check
          %p125 = pneg %p63
        $region14: #{tpu_custom_call.1} parent=11 // pred_check_branch
          %127 = sbr.rel (%p125) target = $region16
        $region15: #{tpu_custom_call.1} parent=11 // pred_region
          %129 = vsyncadd [#allocation6], 0
          %s130 = sshll.u32 %s1, 4
          %s131 = int_to_ptr.hbm [resolvable:$true] %s130
          %s132 = sshll.u32 [#allocation5], 4
          %s133 = int_to_ptr.vmem [resolvable:$true] %s132
          %138 = dma.hbm_to_vmem [thread:$0]  %s131, 36864, %s133, [#allocation6], 512, 512, 32
        $region16: #{tpu_custom_call.1} parent=11 // pred_fallthru
          _
        // Predicated region
        $region17: #{tpu_custom_call.1} parent=11 // pred_check
          %p139 = pneg %p84
        $region18: #{tpu_custom_call.1} parent=11 // pred_check_branch
          %141 = sbr.rel (%p139) target = $region20
        $region19: #{tpu_custom_call.1} parent=11 // pred_region
          %143 = vsyncadd [#allocation6], 0
          %s145 = sshll.u32 %s2, 4
          %s146 = int_to_ptr.hbm [resolvable:$true] %s145
          %s147 = sshll.u32 [#allocation7], 4
          %s148 = int_to_ptr.vmem [resolvable:$true] %s147
          %150 = dma.hbm_to_vmem [thread:$0]  %s146, 64, %s148, [#allocation6]
        $region20: #{tpu_custom_call.1} parent=11 // pred_fallthru
          _
      $region12: #{tpu_custom_call.1} parent=5 // pred_fallthru
        _
      %p151 = scmp.lt.s32.totalorder %s16, 2
      // Predicated region
      $region21: #{tpu_custom_call.1} parent=5 // pred_check
        %p152 = pneg %p151
      $region22: #{tpu_custom_call.1} parent=5 // pred_check_branch
        %154 = sbr.rel (%p152) target = $region24
      $region23: #{tpu_custom_call.1} parent=5 // pred_region
        // Predicated region
        $region25: #{tpu_custom_call.1} parent=23 // pred_check
          %p155 = pneg %p36
        $region26: #{tpu_custom_call.1} parent=23 // pred_check_branch
          %157 = sbr.rel (%p155) target = $region28
        $region27: #{tpu_custom_call.1} parent=23 // pred_region
          %s158 = sand.u32 %s26, 1
          %s159 = scalar_lea.sflag [#allocation3], %s158
          %s160 = sand.u32 %s26, 1
          %s161 = smul.addr %s160, 40
          %s162 = scalar_lea.vmem [#allocation2], %s161
          %164 = vsyncadd %s159, 0
          %s165 = smul.addr %s16, 5
          %s166 = smul.addr %s165, 8
          %s167 = scalar_lea.hbm %s0, %s166
          %s169 = sshll.u32 %s167, 4
          %s170 = int_to_ptr.hbm [resolvable:$true] %s169
          %s171 = sshll.u32 %s162, 4
          %s172 = int_to_ptr.vmem [resolvable:$true] %s171
          %174 = dma.hbm_to_vmem [thread:$0]  %s170, 640, %s172, %s159
        $region28: #{tpu_custom_call.1} parent=23 // pred_fallthru
          _
      $region24: #{tpu_custom_call.1} parent=5 // pred_fallthru
        _
      %p175 = scmp.le.s32.totalorder 1, %s16
      %p176 = scmp.lt.s32.totalorder %s16, 3
      %p177 = pnand %p175, %p176
      %p178 = pneg %p177
      // Predicated region
      $region29: #{tpu_custom_call.1} parent=5 // pred_check
        _
      $region30: #{tpu_custom_call.1} parent=5 // pred_check_branch
        %180 = sbr.rel (%p177) target = $region32
      $region31: #{tpu_custom_call.1} parent=5 // pred_region
        %s181 = ssub.s32 %s16, 1
        %s182 = sand.u32 %s29, 1
        %s183 = scalar_lea.sflag [#allocation3], %s182
        %s184 = sand.u32 %s29, 1
        %s185 = smul.addr %s184, 40
        %s186 = scalar_lea.vmem [#allocation2], %s185
        // Predicated region
        $region33: #{tpu_custom_call.1} parent=31 // pred_check
          %p187 = pneg %p42
        $region34: #{tpu_custom_call.1} parent=31 // pred_check_branch
          %189 = sbr.rel (%p187) target = $region36
        $region35: #{tpu_custom_call.1} parent=31 // pred_region
          %191 = dma.done %s183, 640
        $region36: #{tpu_custom_call.1} parent=31 // pred_fallthru
          _
        // Predicated region
        $region37: #{tpu_custom_call.1} parent=31 // pred_check
          %p192 = pneg %p63
        $region38: #{tpu_custom_call.1} parent=31 // pred_check_branch
          %194 = sbr.rel (%p192) target = $region40
        $region39: #{tpu_custom_call.1} parent=31 // pred_region
          %196 = dma.done [#allocation6], 36864
        $region40: #{tpu_custom_call.1} parent=31 // pred_fallthru
          _
        // Predicated region
        $region41: #{tpu_custom_call.1} parent=31 // pred_check
          %p197 = pneg %p84
        $region42: #{tpu_custom_call.1} parent=31 // pred_check_branch
          %199 = sbr.rel (%p197) target = $region44
        $region43: #{tpu_custom_call.1} parent=31 // pred_region
          %201 = dma.done [#allocation6], 64
        $region44: #{tpu_custom_call.1} parent=31 // pred_fallthru
          _
        %s202 = sand.u32 %s29, 1
        %s203 = scalar_lea.sflag [#allocation3], %s202
        %s204 = sand.u32 %s29, 1
        %s205 = smul.addr %s204, 40
        %s206 = scalar_lea.vmem [#allocation2], %s205
        %p207 = pneg %p42
        %p208 = pneg %p39
        %p209 = pneg %p63
        %p210 = pneg %p60
        %p211 = pneg %p84
        %p212 = pneg %p81
        %p213 = pneg %p110
        %p214 = pneg %p107
        %s215 = sand.u32 %s97, 1
        %s216 = scalar_lea.sflag [#allocation4], %s215
        %s217 = sand.u32 %s97, 1
        %s218 = smul.addr %s217, 32
        %s219 = scalar_lea.vmem [#allocation8], %s218
        %v220 = vld [vmem:[%s186] sm:$0xff]
        %v221 = vld [vmem:[%s186 + $0x8] sm:$0xff]
        %v222 = vld [vmem:[%s186 + $0x10] sm:$0xff]
        %v223 = vld [vmem:[%s186 + $0x18] sm:$0xff]
        %v224 = vld [vmem:[%s186 + $0x20] sm:$0xff]
        %v225 = vld [vmem:[#allocation5] sm:$0xff]
        %v226 = vld [vmem:[#allocation5 + $0x8] sm:$0xff]
        %v227 = vld [vmem:[#allocation5 + $0x10] sm:$0xff]
        %v228 = vld [vmem:[#allocation5 + $0x18] sm:$0xff]
        %v229 = vld [vmem:[#allocation5 + $0x20] sm:$0xff]
        %v230 = vld [vmem:[#allocation5 + $0x28] sm:$0xff]
        %v231 = vld [vmem:[#allocation5 + $0x30] sm:$0xff]
        %v232 = vld [vmem:[#allocation5 + $0x38] sm:$0xff]
        %v233 = vld [vmem:[#allocation5 + $0x40] sm:$0xff]
        %v234 = vld [vmem:[#allocation5 + $0x48] sm:$0xff]
        %v235 = vld [vmem:[#allocation5 + $0x50] sm:$0xff]
        %v236 = vld [vmem:[#allocation5 + $0x58] sm:$0xff]
        %v237 = vld [vmem:[#allocation5 + $0x60] sm:$0xff]
        %v238 = vld [vmem:[#allocation5 + $0x68] sm:$0xff]
        %v239 = vld [vmem:[#allocation5 + $0x70] sm:$0xff]
        %v240 = vld [vmem:[#allocation5 + $0x78] sm:$0xff]
        %v241 = vld [vmem:[#allocation5 + $0x80] sm:$0xff]
        %v242 = vld [vmem:[#allocation5 + $0x88] sm:$0xff]
        %v243 = vld [vmem:[#allocation5 + $0x90] sm:$0xff]
        %v244 = vld [vmem:[#allocation5 + $0x98] sm:$0xff]
        %v245 = vld [vmem:[#allocation5 + $0xa0] sm:$0xff]
        %v246 = vld [vmem:[#allocation5 + $0xa8] sm:$0xff]
        %v247 = vld [vmem:[#allocation5 + $0xb0] sm:$0xff]
        %v248 = vld [vmem:[#allocation5 + $0xb8] sm:$0xff]
        %v249 = vld [vmem:[#allocation5 + $0xc0] sm:$0xff]
        %v250 = vld [vmem:[#allocation5 + $0xc8] sm:$0xff]
        %v251 = vld [vmem:[#allocation5 + $0xd0] sm:$0xff]
        %v252 = vld [vmem:[#allocation5 + $0xd8] sm:$0xff]
        %v253 = vld [vmem:[#allocation5 + $0xe0] sm:$0xff]
        %v254 = vld [vmem:[#allocation5 + $0xe8] sm:$0xff]
        %v255 = vld [vmem:[#allocation5 + $0xf0] sm:$0xff]
        %v256 = vld [vmem:[#allocation5 + $0xf8] sm:$0xff]
        %v257 = vld [vmem:[#allocation5 + $0x100] sm:$0xff]
        %v258 = vld [vmem:[#allocation5 + $0x108] sm:$0xff]
        %v259 = vld [vmem:[#allocation5 + $0x110] sm:$0xff]
        %v260 = vld [vmem:[#allocation5 + $0x118] sm:$0xff]
        %v261 = vld [vmem:[#allocation5 + $0x120] sm:$0xff]
        %v262 = vld [vmem:[#allocation5 + $0x128] sm:$0xff]
        %v263 = vld [vmem:[#allocation5 + $0x130] sm:$0xff]
        %v264 = vld [vmem:[#allocation5 + $0x138] sm:$0xff]
        %v265 = vld [vmem:[#allocation5 + $0x140] sm:$0xff]
        %v266 = vld [vmem:[#allocation5 + $0x148] sm:$0xff]
        %v267 = vld [vmem:[#allocation5 + $0x150] sm:$0xff]
        %v268 = vld [vmem:[#allocation5 + $0x158] sm:$0xff]
        %v269 = vld [vmem:[#allocation5 + $0x160] sm:$0xff]
        %v270 = vld [vmem:[#allocation5 + $0x168] sm:$0xff]
        %v271 = vld [vmem:[#allocation5 + $0x170] sm:$0xff]
        %v272 = vld [vmem:[#allocation5 + $0x178] sm:$0xff]
        %v273 = vld [vmem:[#allocation5 + $0x180] sm:$0xff]
        %v274 = vld [vmem:[#allocation5 + $0x188] sm:$0xff]
        %v275 = vld [vmem:[#allocation5 + $0x190] sm:$0xff]
        %v276 = vld [vmem:[#allocation5 + $0x198] sm:$0xff]
        %v277 = vld [vmem:[#allocation5 + $0x1a0] sm:$0xff]
        %v278 = vld [vmem:[#allocation5 + $0x1a8] sm:$0xff]
        %v279 = vld [vmem:[#allocation5 + $0x1b0] sm:$0xff]
        %v280 = vld [vmem:[#allocation5 + $0x1b8] sm:$0xff]
        %v281 = vld [vmem:[#allocation5 + $0x1c0] sm:$0xff]
        %v282 = vld [vmem:[#allocation5 + $0x1c8] sm:$0xff]
        %v283 = vld [vmem:[#allocation5 + $0x1d0] sm:$0xff]
        %v284 = vld [vmem:[#allocation5 + $0x1d8] sm:$0xff]
        %v285 = vld [vmem:[#allocation5 + $0x1e0] sm:$0xff]
        %v286 = vld [vmem:[#allocation5 + $0x1e8] sm:$0xff]
        %v287 = vld [vmem:[#allocation5 + $0x1f0] sm:$0xff]
        %v288 = vld [vmem:[#allocation5 + $0x1f8] sm:$0xff]
        %v289 = vld [vmem:[#allocation5 + $0x200] sm:$0xff]
        %v290 = vld [vmem:[#allocation5 + $0x208] sm:$0xff]
        %v291 = vld [vmem:[#allocation5 + $0x210] sm:$0xff]
        %v292 = vld [vmem:[#allocation5 + $0x218] sm:$0xff]
        %v293 = vld [vmem:[#allocation5 + $0x220] sm:$0xff]
        %v294 = vld [vmem:[#allocation5 + $0x228] sm:$0xff]
        %v295 = vld [vmem:[#allocation5 + $0x230] sm:$0xff]
        %v296 = vld [vmem:[#allocation5 + $0x238] sm:$0xff]
        %v297 = vld [vmem:[#allocation5 + $0x240] sm:$0xff]
        %v298 = vld [vmem:[#allocation5 + $0x248] sm:$0xff]
        %v299 = vld [vmem:[#allocation5 + $0x250] sm:$0xff]
        %v300 = vld [vmem:[#allocation5 + $0x258] sm:$0xff]
        %v301 = vld [vmem:[#allocation5 + $0x260] sm:$0xff]
        %v302 = vld [vmem:[#allocation5 + $0x268] sm:$0xff]
        %v303 = vld [vmem:[#allocation5 + $0x270] sm:$0xff]
        %v304 = vld [vmem:[#allocation5 + $0x278] sm:$0xff]
        %v305 = vld [vmem:[#allocation5 + $0x280] sm:$0xff]
        %v306 = vld [vmem:[#allocation5 + $0x288] sm:$0xff]
        %v307 = vld [vmem:[#allocation5 + $0x290] sm:$0xff]
        %v308 = vld [vmem:[#allocation5 + $0x298] sm:$0xff]
        %v309 = vld [vmem:[#allocation5 + $0x2a0] sm:$0xff]
        %v310 = vld [vmem:[#allocation5 + $0x2a8] sm:$0xff]
        %v311 = vld [vmem:[#allocation5 + $0x2b0] sm:$0xff]
        %v312 = vld [vmem:[#allocation5 + $0x2b8] sm:$0xff]
        %v313 = vld [vmem:[#allocation5 + $0x2c0] sm:$0xff]
        %v314 = vld [vmem:[#allocation5 + $0x2c8] sm:$0xff]
        %v315 = vld [vmem:[#allocation5 + $0x2d0] sm:$0xff]
        %v316 = vld [vmem:[#allocation5 + $0x2d8] sm:$0xff]
        %v317 = vld [vmem:[#allocation5 + $0x2e0] sm:$0xff]
        %v318 = vld [vmem:[#allocation5 + $0x2e8] sm:$0xff]
        %v319 = vld [vmem:[#allocation5 + $0x2f0] sm:$0xff]
        %v320 = vld [vmem:[#allocation5 + $0x2f8] sm:$0xff]
        %v321 = vld [vmem:[#allocation5 + $0x300] sm:$0xff]
        %v322 = vld [vmem:[#allocation5 + $0x308] sm:$0xff]
        %v323 = vld [vmem:[#allocation5 + $0x310] sm:$0xff]
        %v324 = vld [vmem:[#allocation5 + $0x318] sm:$0xff]
        %v325 = vld [vmem:[#allocation5 + $0x320] sm:$0xff]
        %v326 = vld [vmem:[#allocation5 + $0x328] sm:$0xff]
        %v327 = vld [vmem:[#allocation5 + $0x330] sm:$0xff]
        %v328 = vld [vmem:[#allocation5 + $0x338] sm:$0xff]
        %v329 = vld [vmem:[#allocation5 + $0x340] sm:$0xff]
        %v330 = vld [vmem:[#allocation5 + $0x348] sm:$0xff]
        %v331 = vld [vmem:[#allocation5 + $0x350] sm:$0xff]
        %v332 = vld [vmem:[#allocation5 + $0x358] sm:$0xff]
        %v333 = vld [vmem:[#allocation5 + $0x360] sm:$0xff]
        %v334 = vld [vmem:[#allocation5 + $0x368] sm:$0xff]
        %v335 = vld [vmem:[#allocation5 + $0x370] sm:$0xff]
        %v336 = vld [vmem:[#allocation5 + $0x378] sm:$0xff]
        %v337 = vld [vmem:[#allocation5 + $0x380] sm:$0xff]
        %v338 = vld [vmem:[#allocation5 + $0x388] sm:$0xff]
        %v339 = vld [vmem:[#allocation5 + $0x390] sm:$0xff]
        %v340 = vld [vmem:[#allocation5 + $0x398] sm:$0xff]
        %v341 = vld [vmem:[#allocation5 + $0x3a0] sm:$0xff]
        %v342 = vld [vmem:[#allocation5 + $0x3a8] sm:$0xff]
        %v343 = vld [vmem:[#allocation5 + $0x3b0] sm:$0xff]
        %v344 = vld [vmem:[#allocation5 + $0x3b8] sm:$0xff]
        %v345 = vld [vmem:[#allocation5 + $0x3c0] sm:$0xff]
        %v346 = vld [vmem:[#allocation5 + $0x3c8] sm:$0xff]
        %v347 = vld [vmem:[#allocation5 + $0x3d0] sm:$0xff]
        %v348 = vld [vmem:[#allocation5 + $0x3d8] sm:$0xff]
        %v349 = vld [vmem:[#allocation5 + $0x3e0] sm:$0xff]
        %v350 = vld [vmem:[#allocation5 + $0x3e8] sm:$0xff]
        %v351 = vld [vmem:[#allocation5 + $0x3f0] sm:$0xff]
        %v352 = vld [vmem:[#allocation5 + $0x3f8] sm:$0xff]
        %v353 = vld [vmem:[#allocation5 + $0x400] sm:$0xff]
        %v354 = vld [vmem:[#allocation5 + $0x408] sm:$0xff]
        %v355 = vld [vmem:[#allocation5 + $0x410] sm:$0xff]
        %v356 = vld [vmem:[#allocation5 + $0x418] sm:$0xff]
        %v357 = vld [vmem:[#allocation5 + $0x420] sm:$0xff]
        %v358 = vld [vmem:[#allocation5 + $0x428] sm:$0xff]
        %v359 = vld [vmem:[#allocation5 + $0x430] sm:$0xff]
        %v360 = vld [vmem:[#allocation5 + $0x438] sm:$0xff]
        %v361 = vld [vmem:[#allocation5 + $0x440] sm:$0xff]
        %v362 = vld [vmem:[#allocation5 + $0x448] sm:$0xff]
        %v363 = vld [vmem:[#allocation5 + $0x450] sm:$0xff]
        %v364 = vld [vmem:[#allocation5 + $0x458] sm:$0xff]
        %v365 = vld [vmem:[#allocation5 + $0x460] sm:$0xff]
        %v366 = vld [vmem:[#allocation5 + $0x468] sm:$0xff]
        %v367 = vld [vmem:[#allocation5 + $0x470] sm:$0xff]
        %v368 = vld [vmem:[#allocation5 + $0x478] sm:$0xff]
        %v369 = vld [vmem:[#allocation5 + $0x480] sm:$0xff]
        %v370 = vld [vmem:[#allocation5 + $0x488] sm:$0xff]
        %v371 = vld [vmem:[#allocation5 + $0x490] sm:$0xff]
        %v372 = vld [vmem:[#allocation5 + $0x498] sm:$0xff]
        %v373 = vld [vmem:[#allocation5 + $0x4a0] sm:$0xff]
        %v374 = vld [vmem:[#allocation5 + $0x4a8] sm:$0xff]
        %v375 = vld [vmem:[#allocation5 + $0x4b0] sm:$0xff]
        %v376 = vld [vmem:[#allocation5 + $0x4b8] sm:$0xff]
        %v377 = vld [vmem:[#allocation5 + $0x4c0] sm:$0xff]
        %v378 = vld [vmem:[#allocation5 + $0x4c8] sm:$0xff]
        %v379 = vld [vmem:[#allocation5 + $0x4d0] sm:$0xff]
        %v380 = vld [vmem:[#allocation5 + $0x4d8] sm:$0xff]
        %v381 = vld [vmem:[#allocation5 + $0x4e0] sm:$0xff]
        %v382 = vld [vmem:[#allocation5 + $0x4e8] sm:$0xff]
        %v383 = vld [vmem:[#allocation5 + $0x4f0] sm:$0xff]
        %v384 = vld [vmem:[#allocation5 + $0x4f8] sm:$0xff]
        %v385 = vld [vmem:[#allocation5 + $0x500] sm:$0xff]
        %v386 = vld [vmem:[#allocation5 + $0x508] sm:$0xff]
        %v387 = vld [vmem:[#allocation5 + $0x510] sm:$0xff]
        %v388 = vld [vmem:[#allocation5 + $0x518] sm:$0xff]
        %v389 = vld [vmem:[#allocation5 + $0x520] sm:$0xff]
        %v390 = vld [vmem:[#allocation5 + $0x528] sm:$0xff]
        %v391 = vld [vmem:[#allocation5 + $0x530] sm:$0xff]
        %v392 = vld [vmem:[#allocation5 + $0x538] sm:$0xff]
        %v393 = vld [vmem:[#allocation5 + $0x540] sm:$0xff]
        %v394 = vld [vmem:[#allocation5 + $0x548] sm:$0xff]
        %v395 = vld [vmem:[#allocation5 + $0x550] sm:$0xff]
        %v396 = vld [vmem:[#allocation5 + $0x558] sm:$0xff]
        %v397 = vld [vmem:[#allocation5 + $0x560] sm:$0xff]
        %v398 = vld [vmem:[#allocation5 + $0x568] sm:$0xff]
        %v399 = vld [vmem:[#allocation5 + $0x570] sm:$0xff]
        %v400 = vld [vmem:[#allocation5 + $0x578] sm:$0xff]
        %v401 = vld [vmem:[#allocation5 + $0x580] sm:$0xff]
        %v402 = vld [vmem:[#allocation5 + $0x588] sm:$0xff]
        %v403 = vld [vmem:[#allocation5 + $0x590] sm:$0xff]
        %v404 = vld [vmem:[#allocation5 + $0x598] sm:$0xff]
        %v405 = vld [vmem:[#allocation5 + $0x5a0] sm:$0xff]
        %v406 = vld [vmem:[#allocation5 + $0x5a8] sm:$0xff]
        %v407 = vld [vmem:[#allocation5 + $0x5b0] sm:$0xff]
        %v408 = vld [vmem:[#allocation5 + $0x5b8] sm:$0xff]
        %v409 = vld [vmem:[#allocation5 + $0x5c0] sm:$0xff]
        %v410 = vld [vmem:[#allocation5 + $0x5c8] sm:$0xff]
        %v411 = vld [vmem:[#allocation5 + $0x5d0] sm:$0xff]
        %v412 = vld [vmem:[#allocation5 + $0x5d8] sm:$0xff]
        %v413 = vld [vmem:[#allocation5 + $0x5e0] sm:$0xff]
        %v414 = vld [vmem:[#allocation5 + $0x5e8] sm:$0xff]
        %v415 = vld [vmem:[#allocation5 + $0x5f0] sm:$0xff]
        %v416 = vld [vmem:[#allocation5 + $0x5f8] sm:$0xff]
        %v417 = vld [vmem:[#allocation5 + $0x600] sm:$0xff]
        %v418 = vld [vmem:[#allocation5 + $0x608] sm:$0xff]
        %v419 = vld [vmem:[#allocation5 + $0x610] sm:$0xff]
        %v420 = vld [vmem:[#allocation5 + $0x618] sm:$0xff]
        %v421 = vld [vmem:[#allocation5 + $0x620] sm:$0xff]
        %v422 = vld [vmem:[#allocation5 + $0x628] sm:$0xff]
        %v423 = vld [vmem:[#allocation5 + $0x630] sm:$0xff]
        %v424 = vld [vmem:[#allocation5 + $0x638] sm:$0xff]
        %v425 = vld [vmem:[#allocation5 + $0x640] sm:$0xff]
        %v426 = vld [vmem:[#allocation5 + $0x648] sm:$0xff]
        %v427 = vld [vmem:[#allocation5 + $0x650] sm:$0xff]
        %v428 = vld [vmem:[#allocation5 + $0x658] sm:$0xff]
        %v429 = vld [vmem:[#allocation5 + $0x660] sm:$0xff]
        %v430 = vld [vmem:[#allocation5 + $0x668] sm:$0xff]
        %v431 = vld [vmem:[#allocation5 + $0x670] sm:$0xff]
        %v432 = vld [vmem:[#allocation5 + $0x678] sm:$0xff]
        %v433 = vld [vmem:[#allocation5 + $0x680] sm:$0xff]
        %v434 = vld [vmem:[#allocation5 + $0x688] sm:$0xff]
        %v435 = vld [vmem:[#allocation5 + $0x690] sm:$0xff]
        %v436 = vld [vmem:[#allocation5 + $0x698] sm:$0xff]
        %v437 = vld [vmem:[#allocation5 + $0x6a0] sm:$0xff]
        %v438 = vld [vmem:[#allocation5 + $0x6a8] sm:$0xff]
        %v439 = vld [vmem:[#allocation5 + $0x6b0] sm:$0xff]
        %v440 = vld [vmem:[#allocation5 + $0x6b8] sm:$0xff]
        %v441 = vld [vmem:[#allocation5 + $0x6c0] sm:$0xff]
        %v442 = vld [vmem:[#allocation5 + $0x6c8] sm:$0xff]
        %v443 = vld [vmem:[#allocation5 + $0x6d0] sm:$0xff]
        %v444 = vld [vmem:[#allocation5 + $0x6d8] sm:$0xff]
        %v445 = vld [vmem:[#allocation5 + $0x6e0] sm:$0xff]
        %v446 = vld [vmem:[#allocation5 + $0x6e8] sm:$0xff]
        %v447 = vld [vmem:[#allocation5 + $0x6f0] sm:$0xff]
        %v448 = vld [vmem:[#allocation5 + $0x6f8] sm:$0xff]
        %v449 = vld [vmem:[#allocation5 + $0x700] sm:$0xff]
        %v450 = vld [vmem:[#allocation5 + $0x708] sm:$0xff]
        %v451 = vld [vmem:[#allocation5 + $0x710] sm:$0xff]
        %v452 = vld [vmem:[#allocation5 + $0x718] sm:$0xff]
        %v453 = vld [vmem:[#allocation5 + $0x720] sm:$0xff]
        %v454 = vld [vmem:[#allocation5 + $0x728] sm:$0xff]
        %v455 = vld [vmem:[#allocation5 + $0x730] sm:$0xff]
        %v456 = vld [vmem:[#allocation5 + $0x738] sm:$0xff]
        %v457 = vld [vmem:[#allocation5 + $0x740] sm:$0xff]
        %v458 = vld [vmem:[#allocation5 + $0x748] sm:$0xff]
        %v459 = vld [vmem:[#allocation5 + $0x750] sm:$0xff]
        %v460 = vld [vmem:[#allocation5 + $0x758] sm:$0xff]
        %v461 = vld [vmem:[#allocation5 + $0x760] sm:$0xff]
        %v462 = vld [vmem:[#allocation5 + $0x768] sm:$0xff]
        %v463 = vld [vmem:[#allocation5 + $0x770] sm:$0xff]
        %v464 = vld [vmem:[#allocation5 + $0x778] sm:$0xff]
        %v465 = vld [vmem:[#allocation5 + $0x780] sm:$0xff]
        %v466 = vld [vmem:[#allocation5 + $0x788] sm:$0xff]
        %v467 = vld [vmem:[#allocation5 + $0x790] sm:$0xff]
        %v468 = vld [vmem:[#allocation5 + $0x798] sm:$0xff]
        %v469 = vld [vmem:[#allocation5 + $0x7a0] sm:$0xff]
        %v470 = vld [vmem:[#allocation5 + $0x7a8] sm:$0xff]
        %v471 = vld [vmem:[#allocation5 + $0x7b0] sm:$0xff]
        %v472 = vld [vmem:[#allocation5 + $0x7b8] sm:$0xff]
        %v473 = vld [vmem:[#allocation5 + $0x7c0] sm:$0xff]
        %v474 = vld [vmem:[#allocation5 + $0x7c8] sm:$0xff]
        %v475 = vld [vmem:[#allocation5 + $0x7d0] sm:$0xff]
        %v476 = vld [vmem:[#allocation5 + $0x7d8] sm:$0xff]
        %v477 = vld [vmem:[#allocation5 + $0x7e0] sm:$0xff]
        %v478 = vld [vmem:[#allocation5 + $0x7e8] sm:$0xff]
        %v479 = vld [vmem:[#allocation5 + $0x7f0] sm:$0xff]
        %v480 = vld [vmem:[#allocation5 + $0x7f8] sm:$0xff]
        %v481 = vld [vmem:[#allocation5 + $0x800] sm:$0xff]
        %v482 = vld [vmem:[#allocation5 + $0x808] sm:$0xff]
        %v483 = vld [vmem:[#allocation5 + $0x810] sm:$0xff]
        %v484 = vld [vmem:[#allocation5 + $0x818] sm:$0xff]
        %v485 = vld [vmem:[#allocation5 + $0x820] sm:$0xff]
        %v486 = vld [vmem:[#allocation5 + $0x828] sm:$0xff]
        %v487 = vld [vmem:[#allocation5 + $0x830] sm:$0xff]
        %v488 = vld [vmem:[#allocation5 + $0x838] sm:$0xff]
        %v489 = vld [vmem:[#allocation5 + $0x840] sm:$0xff]
        %v490 = vld [vmem:[#allocation5 + $0x848] sm:$0xff]
        %v491 = vld [vmem:[#allocation5 + $0x850] sm:$0xff]
        %v492 = vld [vmem:[#allocation5 + $0x858] sm:$0xff]
        %v493 = vld [vmem:[#allocation5 + $0x860] sm:$0xff]
        %v494 = vld [vmem:[#allocation5 + $0x868] sm:$0xff]
        %v495 = vld [vmem:[#allocation5 + $0x870] sm:$0xff]
        %v496 = vld [vmem:[#allocation5 + $0x878] sm:$0xff]
        %v497 = vld [vmem:[#allocation5 + $0x880] sm:$0xff]
        %v498 = vld [vmem:[#allocation5 + $0x888] sm:$0xff]
        %v499 = vld [vmem:[#allocation5 + $0x890] sm:$0xff]
        %v500 = vld [vmem:[#allocation5 + $0x898] sm:$0xff]
        %v501 = vld [vmem:[#allocation5 + $0x8a0] sm:$0xff]
        %v502 = vld [vmem:[#allocation5 + $0x8a8] sm:$0xff]
        %v503 = vld [vmem:[#allocation5 + $0x8b0] sm:$0xff]
        %v504 = vld [vmem:[#allocation5 + $0x8b8] sm:$0xff]
        %v505 = vld [vmem:[#allocation5 + $0x8c0] sm:$0xff]
        %v506 = vld [vmem:[#allocation5 + $0x8c8] sm:$0xff]
        %v507 = vld [vmem:[#allocation5 + $0x8d0] sm:$0xff]
        %v508 = vld [vmem:[#allocation5 + $0x8d8] sm:$0xff]
        %v509 = vld [vmem:[#allocation5 + $0x8e0] sm:$0xff]
        %v510 = vld [vmem:[#allocation5 + $0x8e8] sm:$0xff]
        %v511 = vld [vmem:[#allocation5 + $0x8f0] sm:$0xff]
        %v512 = vld [vmem:[#allocation5 + $0x8f8] sm:$0xff]
        %v513 = vld [vmem:[#allocation7] sm:$0xf]
        %v515 = vperm.slane %v513, 0
        %v516 = vperm.slane %v513, 1
        %v517 = vperm.slane %v513, 2
        %v518 = vperm.slane %v513, 3
        %vm523 = vcmask 523264
        %v525 = vsel %vm523, %v224, 0
        %v527 = vand.u32 %v285, 4294901760
        %528 = vmatpush.msra.mxu0 %v527
        %v529 = vand.u32 %v281, 4294901760
        %530 = vmatpush.msra.mxu0 %v529
        %v531 = vand.u32 %v277, 4294901760
        %532 = vmatpush.msra.mxu0 %v531
        %v533 = vand.u32 %v273, 4294901760
        %534 = vmatpush.msra.mxu0 %v533
        %v535 = vand.u32 %v269, 4294901760
        %536 = vmatpush.msra.mxu0 %v535
        %v537 = vand.u32 %v265, 4294901760
        %538 = vmatpush.msra.mxu0 %v537
        %v539 = vand.u32 %v261, 4294901760
        %540 = vmatpush.msra.mxu0 %v539
        %v541 = vand.u32 %v257, 4294901760
        %542 = vmatpush.msra.mxu0 %v541
        %v543 = vand.u32 %v253, 4294901760
        %544 = vmatpush.msra.mxu0 %v543
        %v545 = vand.u32 %v249, 4294901760
        %546 = vmatpush.msra.mxu0 %v545
        %v547 = vand.u32 %v245, 4294901760
        %548 = vmatpush.msra.mxu0 %v547
        %v549 = vand.u32 %v241, 4294901760
        %550 = vmatpush.msra.mxu0 %v549
        %v551 = vand.u32 %v237, 4294901760
        %552 = vmatpush.msra.mxu0 %v551
        %v553 = vand.u32 %v233, 4294901760
        %554 = vmatpush.msra.mxu0 %v553
        %v555 = vand.u32 %v229, 4294901760
        %556 = vmatpush.msra.mxu0 %v555
        %v557 = vand.u32 %v225, 4294901760
        %558 = vmatpush.msra.mxu0 %v557
        %v559 = vand.u32 %v220, 4294901760
        %v560 = vsub.f32 %v220, %v559
        %v561 = vand.u32 %v560, 4294901760
        %v562 = vsub.f32 %v560, %v561
        %v563 = vand.u32 %v562, 4294901760
        %564 = vmatmul.f32.gmra.mxu0 %v563
        %v565 = vpop.f32.mrf.mxu0
        %v566 = vadd.f32 %v515, %v565
        %567 = vdwg.mxu0
        %v568 = vand.u32 %v285, 4294901760
        %v569 = vsub.f32 %v285, %v568
        %v570 = vand.u32 %v569, 4294901760
        %v571 = vsub.f32 %v569, %v570
        %v572 = vand.u32 %v571, 4294901760
        %573 = vmatpush.msra.mxu0 %v572
        %v574 = vand.u32 %v281, 4294901760
        %v575 = vsub.f32 %v281, %v574
        %v576 = vand.u32 %v575, 4294901760
        %v577 = vsub.f32 %v575, %v576
        %v578 = vand.u32 %v577, 4294901760
        %579 = vmatpush.msra.mxu0 %v578
        %v580 = vand.u32 %v277, 4294901760
        %v581 = vsub.f32 %v277, %v580
        %v582 = vand.u32 %v581, 4294901760
        %v583 = vsub.f32 %v581, %v582
        %v584 = vand.u32 %v583, 4294901760
        %585 = vmatpush.msra.mxu0 %v584
        %v586 = vand.u32 %v273, 4294901760
        %v587 = vsub.f32 %v273, %v586
        %v588 = vand.u32 %v587, 4294901760
        %v589 = vsub.f32 %v587, %v588
        %v590 = vand.u32 %v589, 4294901760
        %591 = vmatpush.msra.mxu0 %v590
        %v592 = vand.u32 %v269, 4294901760
        %v593 = vsub.f32 %v269, %v592
        %v594 = vand.u32 %v593, 4294901760
        %v595 = vsub.f32 %v593, %v594
        %v596 = vand.u32 %v595, 4294901760
        %597 = vmatpush.msra.mxu0 %v596
        %v598 = vand.u32 %v265, 4294901760
        %v599 = vsub.f32 %v265, %v598
        %v600 = vand.u32 %v599, 4294901760
        %v601 = vsub.f32 %v599, %v600
        %v602 = vand.u32 %v601, 4294901760
        %603 = vmatpush.msra.mxu0 %v602
        %v604 = vand.u32 %v261, 4294901760
        %v605 = vsub.f32 %v261, %v604
        %v606 = vand.u32 %v605, 4294901760
        %v607 = vsub.f32 %v605, %v606
        %v608 = vand.u32 %v607, 4294901760
        %609 = vmatpush.msra.mxu0 %v608
        %v610 = vand.u32 %v257, 4294901760
        %v611 = vsub.f32 %v257, %v610
        %v612 = vand.u32 %v611, 4294901760
        %v613 = vsub.f32 %v611, %v612
        %v614 = vand.u32 %v613, 4294901760
        %615 = vmatpush.msra.mxu0 %v614
        %v616 = vand.u32 %v253, 4294901760
        %v617 = vsub.f32 %v253, %v616
        %v618 = vand.u32 %v617, 4294901760
        %v619 = vsub.f32 %v617, %v618
        %v620 = vand.u32 %v619, 4294901760
        %621 = vmatpush.msra.mxu0 %v620
        %v622 = vand.u32 %v249, 4294901760
        %v623 = vsub.f32 %v249, %v622
        %v624 = vand.u32 %v623, 4294901760
        %v625 = vsub.f32 %v623, %v624
        %v626 = vand.u32 %v625, 4294901760
        %627 = vmatpush.msra.mxu0 %v626
        %v628 = vand.u32 %v245, 4294901760
        %v629 = vsub.f32 %v245, %v628
        %v630 = vand.u32 %v629, 4294901760
        %v631 = vsub.f32 %v629, %v630
        %v632 = vand.u32 %v631, 4294901760
        %633 = vmatpush.msra.mxu0 %v632
        %v634 = vand.u32 %v241, 4294901760
        %v635 = vsub.f32 %v241, %v634
        %v636 = vand.u32 %v635, 4294901760
        %v637 = vsub.f32 %v635, %v636
        %v638 = vand.u32 %v637, 4294901760
        %639 = vmatpush.msra.mxu0 %v638
        %v640 = vand.u32 %v237, 4294901760
        %v641 = vsub.f32 %v237, %v640
        %v642 = vand.u32 %v641, 4294901760
        %v643 = vsub.f32 %v641, %v642
        %v644 = vand.u32 %v643, 4294901760
        %645 = vmatpush.msra.mxu0 %v644
        %v646 = vand.u32 %v233, 4294901760
        %v647 = vsub.f32 %v233, %v646
        %v648 = vand.u32 %v647, 4294901760
        %v649 = vsub.f32 %v647, %v648
        %v650 = vand.u32 %v649, 4294901760
        %651 = vmatpush.msra.mxu0 %v650
        %v652 = vand.u32 %v229, 4294901760
        %v653 = vsub.f32 %v229, %v652
        %v654 = vand.u32 %v653, 4294901760
        %v655 = vsub.f32 %v653, %v654
        %v656 = vand.u32 %v655, 4294901760
        %657 = vmatpush.msra.mxu0 %v656
        %v658 = vand.u32 %v225, 4294901760
        %v659 = vsub.f32 %v225, %v658
        %v660 = vand.u32 %v659, 4294901760
        %v661 = vsub.f32 %v659, %v660
        %v662 = vand.u32 %v661, 4294901760
        %663 = vmatpush.msra.mxu0 %v662
        %v664 = vand.u32 %v220, 4294901760
        %665 = vmatmul.f32.gmra.mxu0 %v664
        %v666 = vpop.f32.mrf.mxu0
        %v667 = vadd.f32 %v566, %v666
        %668 = vdwg.mxu0
        %v669 = vand.u32 %v285, 4294901760
        %v670 = vsub.f32 %v285, %v669
        %671 = vmatpush.msra.mxu0 %v670
        %v672 = vand.u32 %v281, 4294901760
        %v673 = vsub.f32 %v281, %v672
        %674 = vmatpush.msra.mxu0 %v673
        %v675 = vand.u32 %v277, 4294901760
        %v676 = vsub.f32 %v277, %v675
        %677 = vmatpush.msra.mxu0 %v676
        %v678 = vand.u32 %v273, 4294901760
        %v679 = vsub.f32 %v273, %v678
        %680 = vmatpush.msra.mxu0 %v679
        %v681 = vand.u32 %v269, 4294901760
        %v682 = vsub.f32 %v269, %v681
        %683 = vmatpush.msra.mxu0 %v682
        %v684 = vand.u32 %v265, 4294901760
        %v685 = vsub.f32 %v265, %v684
        %686 = vmatpush.msra.mxu0 %v685
        %v687 = vand.u32 %v261, 4294901760
        %v688 = vsub.f32 %v261, %v687
        %689 = vmatpush.msra.mxu0 %v688
        %v690 = vand.u32 %v257, 4294901760
        %v691 = vsub.f32 %v257, %v690
        %692 = vmatpush.msra.mxu0 %v691
        %v693 = vand.u32 %v253, 4294901760
        %v694 = vsub.f32 %v253, %v693
        %695 = vmatpush.msra.mxu0 %v694
        %v696 = vand.u32 %v249, 4294901760
        %v697 = vsub.f32 %v249, %v696
        %698 = vmatpush.msra.mxu0 %v697
        %v699 = vand.u32 %v245, 4294901760
        %v700 = vsub.f32 %v245, %v699
        %701 = vmatpush.msra.mxu0 %v700
        %v702 = vand.u32 %v241, 4294901760
        %v703 = vsub.f32 %v241, %v702
        %704 = vmatpush.msra.mxu0 %v703
        %v705 = vand.u32 %v237, 4294901760
        %v706 = vsub.f32 %v237, %v705
        %707 = vmatpush.msra.mxu0 %v706
        %v708 = vand.u32 %v233, 4294901760
        %v709 = vsub.f32 %v233, %v708
        %710 = vmatpush.msra.mxu0 %v709
        %v711 = vand.u32 %v229, 4294901760
        %v712 = vsub.f32 %v229, %v711
        %713 = vmatpush.msra.mxu0 %v712
        %v714 = vand.u32 %v225, 4294901760
        %v715 = vsub.f32 %v225, %v714
        %716 = vmatpush.msra.mxu0 %v715
        %v717 = vand.u32 %v220, 4294901760
        %v718 = vsub.f32 %v220, %v717
        %719 = vmatmul.f32.gmra.mxu0 %v718
        %v720 = vpop.f32.mrf.mxu0
        %v721 = vadd.f32 %v667, %v720
        %722 = vdwg.mxu0
        %v723 = vand.u32 %v285, 4294901760
        %724 = vmatpush.msra.mxu0 %v723
        %v725 = vand.u32 %v281, 4294901760
        %726 = vmatpush.msra.mxu0 %v725
        %v727 = vand.u32 %v277, 4294901760
        %728 = vmatpush.msra.mxu0 %v727
        %v729 = vand.u32 %v273, 4294901760
        %730 = vmatpush.msra.mxu0 %v729
        %v731 = vand.u32 %v269, 4294901760
        %732 = vmatpush.msra.mxu0 %v731
        %v733 = vand.u32 %v265, 4294901760
        %734 = vmatpush.msra.mxu0 %v733
        %v735 = vand.u32 %v261, 4294901760
        %736 = vmatpush.msra.mxu0 %v735
        %v737 = vand.u32 %v257, 4294901760
        %738 = vmatpush.msra.mxu0 %v737
        %v739 = vand.u32 %v253, 4294901760
        %740 = vmatpush.msra.mxu0 %v739
        %v741 = vand.u32 %v249, 4294901760
        %742 = vmatpush.msra.mxu0 %v741
        %v743 = vand.u32 %v245, 4294901760
        %744 = vmatpush.msra.mxu0 %v743
        %v745 = vand.u32 %v241, 4294901760
        %746 = vmatpush.msra.mxu0 %v745
        %v747 = vand.u32 %v237, 4294901760
        %748 = vmatpush.msra.mxu0 %v747
        %v749 = vand.u32 %v233, 4294901760
        %750 = vmatpush.msra.mxu0 %v749
        %v751 = vand.u32 %v229, 4294901760
        %752 = vmatpush.msra.mxu0 %v751
        %v753 = vand.u32 %v225, 4294901760
        %754 = vmatpush.msra.mxu0 %v753
        %v755 = vand.u32 %v220, 4294901760
        %v756 = vsub.f32 %v220, %v755
        %v757 = vand.u32 %v756, 4294901760
        %758 = vmatmul.f32.gmra.mxu0 %v757
        %v759 = vpop.f32.mrf.mxu0
        %v760 = vadd.f32 %v721, %v759
        %761 = vdwg.mxu0
        %v762 = vand.u32 %v285, 4294901760
        %v763 = vsub.f32 %v285, %v762
        %v764 = vand.u32 %v763, 4294901760
        %765 = vmatpush.msra.mxu0 %v764
        %v766 = vand.u32 %v281, 4294901760
        %v767 = vsub.f32 %v281, %v766
        %v768 = vand.u32 %v767, 4294901760
        %769 = vmatpush.msra.mxu0 %v768
        %v770 = vand.u32 %v277, 4294901760
        %v771 = vsub.f32 %v277, %v770
        %v772 = vand.u32 %v771, 4294901760
        %773 = vmatpush.msra.mxu0 %v772
        %v774 = vand.u32 %v273, 4294901760
        %v775 = vsub.f32 %v273, %v774
        %v776 = vand.u32 %v775, 4294901760
        %777 = vmatpush.msra.mxu0 %v776
        %v778 = vand.u32 %v269, 4294901760
        %v779 = vsub.f32 %v269, %v778
        %v780 = vand.u32 %v779, 4294901760
        %781 = vmatpush.msra.mxu0 %v780
        %v782 = vand.u32 %v265, 4294901760
        %v783 = vsub.f32 %v265, %v782
        %v784 = vand.u32 %v783, 4294901760
        %785 = vmatpush.msra.mxu0 %v784
        %v786 = vand.u32 %v261, 4294901760
        %v787 = vsub.f32 %v261, %v786
        %v788 = vand.u32 %v787, 4294901760
        %789 = vmatpush.msra.mxu0 %v788
        %v790 = vand.u32 %v257, 4294901760
        %v791 = vsub.f32 %v257, %v790
        %v792 = vand.u32 %v791, 4294901760
        %793 = vmatpush.msra.mxu0 %v792
        %v794 = vand.u32 %v253, 4294901760
        %v795 = vsub.f32 %v253, %v794
        %v796 = vand.u32 %v795, 4294901760
        %797 = vmatpush.msra.mxu0 %v796
        %v798 = vand.u32 %v249, 4294901760
        %v799 = vsub.f32 %v249, %v798
        %v800 = vand.u32 %v799, 4294901760
        %801 = vmatpush.msra.mxu0 %v800
        %v802 = vand.u32 %v245, 4294901760
        %v803 = vsub.f32 %v245, %v802
        %v804 = vand.u32 %v803, 4294901760
        %805 = vmatpush.msra.mxu0 %v804
        %v806 = vand.u32 %v241, 4294901760
        %v807 = vsub.f32 %v241, %v806
        %v808 = vand.u32 %v807, 4294901760
        %809 = vmatpush.msra.mxu0 %v808
        %v810 = vand.u32 %v237, 4294901760
        %v811 = vsub.f32 %v237, %v810
        %v812 = vand.u32 %v811, 4294901760
        %813 = vmatpush.msra.mxu0 %v812
        %v814 = vand.u32 %v233, 4294901760
        %v815 = vsub.f32 %v233, %v814
        %v816 = vand.u32 %v815, 4294901760
        %817 = vmatpush.msra.mxu0 %v816
        %v818 = vand.u32 %v229, 4294901760
        %v819 = vsub.f32 %v229, %v818
        %v820 = vand.u32 %v819, 4294901760
        %821 = vmatpush.msra.mxu0 %v820
        %v822 = vand.u32 %v225, 4294901760
        %v823 = vsub.f32 %v225, %v822
        %v824 = vand.u32 %v823, 4294901760
        %825 = vmatpush.msra.mxu0 %v824
        %v826 = vand.u32 %v220, 4294901760
        %827 = vmatmul.f32.gmra.mxu0 %v826
        %v828 = vpop.f32.mrf.mxu0
        %v829 = vadd.f32 %v760, %v828
        %830 = vdwg.mxu0
        %v831 = vand.u32 %v285, 4294901760
        %832 = vmatpush.msra.mxu0 %v831
        %v833 = vand.u32 %v281, 4294901760
        %834 = vmatpush.msra.mxu0 %v833
        %v835 = vand.u32 %v277, 4294901760
        %836 = vmatpush.msra.mxu0 %v835
        %v837 = vand.u32 %v273, 4294901760
        %838 = vmatpush.msra.mxu0 %v837
        %v839 = vand.u32 %v269, 4294901760
        %840 = vmatpush.msra.mxu0 %v839
        %v841 = vand.u32 %v265, 4294901760
        %842 = vmatpush.msra.mxu0 %v841
        %v843 = vand.u32 %v261, 4294901760
        %844 = vmatpush.msra.mxu0 %v843
        %v845 = vand.u32 %v257, 4294901760
        %846 = vmatpush.msra.mxu0 %v845
        %v847 = vand.u32 %v253, 4294901760
        %848 = vmatpush.msra.mxu0 %v847
        %v849 = vand.u32 %v249, 4294901760
        %850 = vmatpush.msra.mxu0 %v849
        %v851 = vand.u32 %v245, 4294901760
        %852 = vmatpush.msra.mxu0 %v851
        %v853 = vand.u32 %v241, 4294901760
        %854 = vmatpush.msra.mxu0 %v853
        %v855 = vand.u32 %v237, 4294901760
        %856 = vmatpush.msra.mxu0 %v855
        %v857 = vand.u32 %v233, 4294901760
        %858 = vmatpush.msra.mxu0 %v857
        %v859 = vand.u32 %v229, 4294901760
        %860 = vmatpush.msra.mxu0 %v859
        %v861 = vand.u32 %v225, 4294901760
        %862 = vmatpush.msra.mxu0 %v861
        %v863 = vand.u32 %v220, 4294901760
        %864 = vmatmul.f32.gmra.mxu0 %v863
        %v865 = vpop.f32.mrf.mxu0
        %v866 = vadd.f32 %v829, %v865
        %867 = vdwg.mxu0
        %v868 = vand.u32 %v349, 4294901760
        %869 = vmatpush.msra.mxu0 %v868
        %v870 = vand.u32 %v345, 4294901760
        %871 = vmatpush.msra.mxu0 %v870
        %v872 = vand.u32 %v341, 4294901760
        %873 = vmatpush.msra.mxu0 %v872
        %v874 = vand.u32 %v337, 4294901760
        %875 = vmatpush.msra.mxu0 %v874
        %v876 = vand.u32 %v333, 4294901760
        %877 = vmatpush.msra.mxu0 %v876
        %v878 = vand.u32 %v329, 4294901760
        %879 = vmatpush.msra.mxu0 %v878
        %v880 = vand.u32 %v325, 4294901760
        %881 = vmatpush.msra.mxu0 %v880
        %v882 = vand.u32 %v321, 4294901760
        %883 = vmatpush.msra.mxu0 %v882
        %v884 = vand.u32 %v317, 4294901760
        %885 = vmatpush.msra.mxu0 %v884
        %v886 = vand.u32 %v313, 4294901760
        %887 = vmatpush.msra.mxu0 %v886
        %v888 = vand.u32 %v309, 4294901760
        %889 = vmatpush.msra.mxu0 %v888
        %v890 = vand.u32 %v305, 4294901760
        %891 = vmatpush.msra.mxu0 %v890
        %v892 = vand.u32 %v301, 4294901760
        %893 = vmatpush.msra.mxu0 %v892
        %v894 = vand.u32 %v297, 4294901760
        %895 = vmatpush.msra.mxu0 %v894
        %v896 = vand.u32 %v293, 4294901760
        %897 = vmatpush.msra.mxu0 %v896
        %v898 = vand.u32 %v289, 4294901760
        %899 = vmatpush.msra.mxu0 %v898
        %v900 = vand.u32 %v221, 4294901760
        %v901 = vsub.f32 %v221, %v900
        %v902 = vand.u32 %v901, 4294901760
        %v903 = vsub.f32 %v901, %v902
        %v904 = vand.u32 %v903, 4294901760
        %905 = vmatmul.f32.gmra.mxu0 %v904
        %v906 = vpop.f32.mrf.mxu0
        %v907 = vadd.f32 %v866, %v906
        %908 = vdwg.mxu0
        %v909 = vand.u32 %v349, 4294901760
        %v910 = vsub.f32 %v349, %v909
        %v911 = vand.u32 %v910, 4294901760
        %v912 = vsub.f32 %v910, %v911
        %v913 = vand.u32 %v912, 4294901760
        %914 = vmatpush.msra.mxu0 %v913
        %v915 = vand.u32 %v345, 4294901760
        %v916 = vsub.f32 %v345, %v915
        %v917 = vand.u32 %v916, 4294901760
        %v918 = vsub.f32 %v916, %v917
        %v919 = vand.u32 %v918, 4294901760
        %920 = vmatpush.msra.mxu0 %v919
        %v921 = vand.u32 %v341, 4294901760
        %v922 = vsub.f32 %v341, %v921
        %v923 = vand.u32 %v922, 4294901760
        %v924 = vsub.f32 %v922, %v923
        %v925 = vand.u32 %v924, 4294901760
        %926 = vmatpush.msra.mxu0 %v925
        %v927 = vand.u32 %v337, 4294901760
        %v928 = vsub.f32 %v337, %v927
        %v929 = vand.u32 %v928, 4294901760
        %v930 = vsub.f32 %v928, %v929
        %v931 = vand.u32 %v930, 4294901760
        %932 = vmatpush.msra.mxu0 %v931
        %v933 = vand.u32 %v333, 4294901760
        %v934 = vsub.f32 %v333, %v933
        %v935 = vand.u32 %v934, 4294901760
        %v936 = vsub.f32 %v934, %v935
        %v937 = vand.u32 %v936, 4294901760
        %938 = vmatpush.msra.mxu0 %v937
        %v939 = vand.u32 %v329, 4294901760
        %v940 = vsub.f32 %v329, %v939
        %v941 = vand.u32 %v940, 4294901760
        %v942 = vsub.f32 %v940, %v941
        %v943 = vand.u32 %v942, 4294901760
        %944 = vmatpush.msra.mxu0 %v943
        %v945 = vand.u32 %v325, 4294901760
        %v946 = vsub.f32 %v325, %v945
        %v947 = vand.u32 %v946, 4294901760
        %v948 = vsub.f32 %v946, %v947
        %v949 = vand.u32 %v948, 4294901760
        %950 = vmatpush.msra.mxu0 %v949
        %v951 = vand.u32 %v321, 4294901760
        %v952 = vsub.f32 %v321, %v951
        %v953 = vand.u32 %v952, 4294901760
        %v954 = vsub.f32 %v952, %v953
        %v955 = vand.u32 %v954, 4294901760
        %956 = vmatpush.msra.mxu0 %v955
        %v957 = vand.u32 %v317, 4294901760
        %v958 = vsub.f32 %v317, %v957
        %v959 = vand.u32 %v958, 4294901760
        %v960 = vsub.f32 %v958, %v959
        %v961 = vand.u32 %v960, 4294901760
        %962 = vmatpush.msra.mxu0 %v961
        %v963 = vand.u32 %v313, 4294901760
        %v964 = vsub.f32 %v313, %v963
        %v965 = vand.u32 %v964, 4294901760
        %v966 = vsub.f32 %v964, %v965
        %v967 = vand.u32 %v966, 4294901760
        %968 = vmatpush.msra.mxu0 %v967
        %v969 = vand.u32 %v309, 4294901760
        %v970 = vsub.f32 %v309, %v969
        %v971 = vand.u32 %v970, 4294901760
        %v972 = vsub.f32 %v970, %v971
        %v973 = vand.u32 %v972, 4294901760
        %974 = vmatpush.msra.mxu0 %v973
        %v975 = vand.u32 %v305, 4294901760
        %v976 = vsub.f32 %v305, %v975
        %v977 = vand.u32 %v976, 4294901760
        %v978 = vsub.f32 %v976, %v977
        %v979 = vand.u32 %v978, 4294901760
        %980 = vmatpush.msra.mxu0 %v979
        %v981 = vand.u32 %v301, 4294901760
        %v982 = vsub.f32 %v301, %v981
        %v983 = vand.u32 %v982, 4294901760
        %v984 = vsub.f32 %v982, %v983
        %v985 = vand.u32 %v984, 4294901760
        %986 = vmatpush.msra.mxu0 %v985
        %v987 = vand.u32 %v297, 4294901760
        %v988 = vsub.f32 %v297, %v987
        %v989 = vand.u32 %v988, 4294901760
        %v990 = vsub.f32 %v988, %v989
        %v991 = vand.u32 %v990, 4294901760
        %992 = vmatpush.msra.mxu0 %v991
        %v993 = vand.u32 %v293, 4294901760
        %v994 = vsub.f32 %v293, %v993
        %v995 = vand.u32 %v994, 4294901760
        %v996 = vsub.f32 %v994, %v995
        %v997 = vand.u32 %v996, 4294901760
        %998 = vmatpush.msra.mxu0 %v997
        %v999 = vand.u32 %v289, 4294901760
        %v1000 = vsub.f32 %v289, %v999
        %v1001 = vand.u32 %v1000, 4294901760
        %v1002 = vsub.f32 %v1000, %v1001
        %v1003 = vand.u32 %v1002, 4294901760
        %1004 = vmatpush.msra.mxu0 %v1003
        %v1005 = vand.u32 %v221, 4294901760
        %1006 = vmatmul.f32.gmra.mxu0 %v1005
        %v1007 = vpop.f32.mrf.mxu0
        %v1008 = vadd.f32 %v907, %v1007
        %1009 = vdwg.mxu0
        %v1010 = vand.u32 %v349, 4294901760
        %v1011 = vsub.f32 %v349, %v1010
        %1012 = vmatpush.msra.mxu0 %v1011
        %v1013 = vand.u32 %v345, 4294901760
        %v1014 = vsub.f32 %v345, %v1013
        %1015 = vmatpush.msra.mxu0 %v1014
        %v1016 = vand.u32 %v341, 4294901760
        %v1017 = vsub.f32 %v341, %v1016
        %1018 = vmatpush.msra.mxu0 %v1017
        %v1019 = vand.u32 %v337, 4294901760
        %v1020 = vsub.f32 %v337, %v1019
        %1021 = vmatpush.msra.mxu0 %v1020
        %v1022 = vand.u32 %v333, 4294901760
        %v1023 = vsub.f32 %v333, %v1022
        %1024 = vmatpush.msra.mxu0 %v1023
        %v1025 = vand.u32 %v329, 4294901760
        %v1026 = vsub.f32 %v329, %v1025
        %1027 = vmatpush.msra.mxu0 %v1026
        %v1028 = vand.u32 %v325, 4294901760
        %v1029 = vsub.f32 %v325, %v1028
        %1030 = vmatpush.msra.mxu0 %v1029
        %v1031 = vand.u32 %v321, 4294901760
        %v1032 = vsub.f32 %v321, %v1031
        %1033 = vmatpush.msra.mxu0 %v1032
        %v1034 = vand.u32 %v317, 4294901760
        %v1035 = vsub.f32 %v317, %v1034
        %1036 = vmatpush.msra.mxu0 %v1035
        %v1037 = vand.u32 %v313, 4294901760
        %v1038 = vsub.f32 %v313, %v1037
        %1039 = vmatpush.msra.mxu0 %v1038
        %v1040 = vand.u32 %v309, 4294901760
        %v1041 = vsub.f32 %v309, %v1040
        %1042 = vmatpush.msra.mxu0 %v1041
        %v1043 = vand.u32 %v305, 4294901760
        %v1044 = vsub.f32 %v305, %v1043
        %1045 = vmatpush.msra.mxu0 %v1044
        %v1046 = vand.u32 %v301, 4294901760
        %v1047 = vsub.f32 %v301, %v1046
        %1048 = vmatpush.msra.mxu0 %v1047
        %v1049 = vand.u32 %v297, 4294901760
        %v1050 = vsub.f32 %v297, %v1049
        %1051 = vmatpush.msra.mxu0 %v1050
        %v1052 = vand.u32 %v293, 4294901760
        %v1053 = vsub.f32 %v293, %v1052
        %1054 = vmatpush.msra.mxu0 %v1053
        %v1055 = vand.u32 %v289, 4294901760
        %v1056 = vsub.f32 %v289, %v1055
        %1057 = vmatpush.msra.mxu0 %v1056
        %v1058 = vand.u32 %v221, 4294901760
        %v1059 = vsub.f32 %v221, %v1058
        %1060 = vmatmul.f32.gmra.mxu0 %v1059
        %v1061 = vpop.f32.mrf.mxu0
        %v1062 = vadd.f32 %v1008, %v1061
        %1063 = vdwg.mxu0
        %v1064 = vand.u32 %v349, 4294901760
        %1065 = vmatpush.msra.mxu0 %v1064
        %v1066 = vand.u32 %v345, 4294901760
        %1067 = vmatpush.msra.mxu0 %v1066
        %v1068 = vand.u32 %v341, 4294901760
        %1069 = vmatpush.msra.mxu0 %v1068
        %v1070 = vand.u32 %v337, 4294901760
        %1071 = vmatpush.msra.mxu0 %v1070
        %v1072 = vand.u32 %v333, 4294901760
        %1073 = vmatpush.msra.mxu0 %v1072
        %v1074 = vand.u32 %v329, 4294901760
        %1075 = vmatpush.msra.mxu0 %v1074
        %v1076 = vand.u32 %v325, 4294901760
        %1077 = vmatpush.msra.mxu0 %v1076
        %v1078 = vand.u32 %v321, 4294901760
        %1079 = vmatpush.msra.mxu0 %v1078
        %v1080 = vand.u32 %v317, 4294901760
        %1081 = vmatpush.msra.mxu0 %v1080
        %v1082 = vand.u32 %v313, 4294901760
        %1083 = vmatpush.msra.mxu0 %v1082
        %v1084 = vand.u32 %v309, 4294901760
        %1085 = vmatpush.msra.mxu0 %v1084
        %v1086 = vand.u32 %v305, 4294901760
        %1087 = vmatpush.msra.mxu0 %v1086
        %v1088 = vand.u32 %v301, 4294901760
        %1089 = vmatpush.msra.mxu0 %v1088
        %v1090 = vand.u32 %v297, 4294901760
        %1091 = vmatpush.msra.mxu0 %v1090
        %v1092 = vand.u32 %v293, 4294901760
        %1093 = vmatpush.msra.mxu0 %v1092
        %v1094 = vand.u32 %v289, 4294901760
        %1095 = vmatpush.msra.mxu0 %v1094
        %v1096 = vand.u32 %v221, 4294901760
        %v1097 = vsub.f32 %v221, %v1096
        %v1098 = vand.u32 %v1097, 4294901760
        %1099 = vmatmul.f32.gmra.mxu0 %v1098
        %v1100 = vpop.f32.mrf.mxu0
        %v1101 = vadd.f32 %v1062, %v1100
        %1102 = vdwg.mxu0
        %v1103 = vand.u32 %v349, 4294901760
        %v1104 = vsub.f32 %v349, %v1103
        %v1105 = vand.u32 %v1104, 4294901760
        %1106 = vmatpush.msra.mxu0 %v1105
        %v1107 = vand.u32 %v345, 4294901760
        %v1108 = vsub.f32 %v345, %v1107
        %v1109 = vand.u32 %v1108, 4294901760
        %1110 = vmatpush.msra.mxu0 %v1109
        %v1111 = vand.u32 %v341, 4294901760
        %v1112 = vsub.f32 %v341, %v1111
        %v1113 = vand.u32 %v1112, 4294901760
        %1114 = vmatpush.msra.mxu0 %v1113
        %v1115 = vand.u32 %v337, 4294901760
        %v1116 = vsub.f32 %v337, %v1115
        %v1117 = vand.u32 %v1116, 4294901760
        %1118 = vmatpush.msra.mxu0 %v1117
        %v1119 = vand.u32 %v333, 4294901760
        %v1120 = vsub.f32 %v333, %v1119
        %v1121 = vand.u32 %v1120, 4294901760
        %1122 = vmatpush.msra.mxu0 %v1121
        %v1123 = vand.u32 %v329, 4294901760
        %v1124 = vsub.f32 %v329, %v1123
        %v1125 = vand.u32 %v1124, 4294901760
        %1126 = vmatpush.msra.mxu0 %v1125
        %v1127 = vand.u32 %v325, 4294901760
        %v1128 = vsub.f32 %v325, %v1127
        %v1129 = vand.u32 %v1128, 4294901760
        %1130 = vmatpush.msra.mxu0 %v1129
        %v1131 = vand.u32 %v321, 4294901760
        %v1132 = vsub.f32 %v321, %v1131
        %v1133 = vand.u32 %v1132, 4294901760
        %1134 = vmatpush.msra.mxu0 %v1133
        %v1135 = vand.u32 %v317, 4294901760
        %v1136 = vsub.f32 %v317, %v1135
        %v1137 = vand.u32 %v1136, 4294901760
        %1138 = vmatpush.msra.mxu0 %v1137
        %v1139 = vand.u32 %v313, 4294901760
        %v1140 = vsub.f32 %v313, %v1139
        %v1141 = vand.u32 %v1140, 4294901760
        %1142 = vmatpush.msra.mxu0 %v1141
        %v1143 = vand.u32 %v309, 4294901760
        %v1144 = vsub.f32 %v309, %v1143
        %v1145 = vand.u32 %v1144, 4294901760
        %1146 = vmatpush.msra.mxu0 %v1145
        %v1147 = vand.u32 %v305, 4294901760
        %v1148 = vsub.f32 %v305, %v1147
        %v1149 = vand.u32 %v1148, 4294901760
        %1150 = vmatpush.msra.mxu0 %v1149
        %v1151 = vand.u32 %v301, 4294901760
        %v1152 = vsub.f32 %v301, %v1151
        %v1153 = vand.u32 %v1152, 4294901760
        %1154 = vmatpush.msra.mxu0 %v1153
        %v1155 = vand.u32 %v297, 4294901760
        %v1156 = vsub.f32 %v297, %v1155
        %v1157 = vand.u32 %v1156, 4294901760
        %1158 = vmatpush.msra.mxu0 %v1157
        %v1159 = vand.u32 %v293, 4294901760
        %v1160 = vsub.f32 %v293, %v1159
        %v1161 = vand.u32 %v1160, 4294901760
        %1162 = vmatpush.msra.mxu0 %v1161
        %v1163 = vand.u32 %v289, 4294901760
        %v1164 = vsub.f32 %v289, %v1163
        %v1165 = vand.u32 %v1164, 4294901760
        %1166 = vmatpush.msra.mxu0 %v1165
        %v1167 = vand.u32 %v221, 4294901760
        %1168 = vmatmul.f32.gmra.mxu0 %v1167
        %v1169 = vpop.f32.mrf.mxu0
        %v1170 = vadd.f32 %v1101, %v1169
        %1171 = vdwg.mxu0
        %v1172 = vand.u32 %v349, 4294901760
        %1173 = vmatpush.msra.mxu0 %v1172
        %v1174 = vand.u32 %v345, 4294901760
        %1175 = vmatpush.msra.mxu0 %v1174
        %v1176 = vand.u32 %v341, 4294901760
        %1177 = vmatpush.msra.mxu0 %v1176
        %v1178 = vand.u32 %v337, 4294901760
        %1179 = vmatpush.msra.mxu0 %v1178
        %v1180 = vand.u32 %v333, 4294901760
        %1181 = vmatpush.msra.mxu0 %v1180
        %v1182 = vand.u32 %v329, 4294901760
        %1183 = vmatpush.msra.mxu0 %v1182
        %v1184 = vand.u32 %v325, 4294901760
        %1185 = vmatpush.msra.mxu0 %v1184
        %v1186 = vand.u32 %v321, 4294901760
        %1187 = vmatpush.msra.mxu0 %v1186
        %v1188 = vand.u32 %v317, 4294901760
        %1189 = vmatpush.msra.mxu0 %v1188
        %v1190 = vand.u32 %v313, 4294901760
        %1191 = vmatpush.msra.mxu0 %v1190
        %v1192 = vand.u32 %v309, 4294901760
        %1193 = vmatpush.msra.mxu0 %v1192
        %v1194 = vand.u32 %v305, 4294901760
        %1195 = vmatpush.msra.mxu0 %v1194
        %v1196 = vand.u32 %v301, 4294901760
        %1197 = vmatpush.msra.mxu0 %v1196
        %v1198 = vand.u32 %v297, 4294901760
        %1199 = vmatpush.msra.mxu0 %v1198
        %v1200 = vand.u32 %v293, 4294901760
        %1201 = vmatpush.msra.mxu0 %v1200
        %v1202 = vand.u32 %v289, 4294901760
        %1203 = vmatpush.msra.mxu0 %v1202
        %v1204 = vand.u32 %v221, 4294901760
        %1205 = vmatmul.f32.gmra.mxu0 %v1204
        %v1206 = vpop.f32.mrf.mxu0
        %v1207 = vadd.f32 %v1170, %v1206
        %1208 = vdwg.mxu0
        %v1209 = vand.u32 %v413, 4294901760
        %1210 = vmatpush.msra.mxu0 %v1209
        %v1211 = vand.u32 %v409, 4294901760
        %1212 = vmatpush.msra.mxu0 %v1211
        %v1213 = vand.u32 %v405, 4294901760
        %1214 = vmatpush.msra.mxu0 %v1213
        %v1215 = vand.u32 %v401, 4294901760
        %1216 = vmatpush.msra.mxu0 %v1215
        %v1217 = vand.u32 %v397, 4294901760
        %1218 = vmatpush.msra.mxu0 %v1217
        %v1219 = vand.u32 %v393, 4294901760
        %1220 = vmatpush.msra.mxu0 %v1219
        %v1221 = vand.u32 %v389, 4294901760
        %1222 = vmatpush.msra.mxu0 %v1221
        %v1223 = vand.u32 %v385, 4294901760
        %1224 = vmatpush.msra.mxu0 %v1223
        %v1225 = vand.u32 %v381, 4294901760
        %1226 = vmatpush.msra.mxu0 %v1225
        %v1227 = vand.u32 %v377, 4294901760
        %1228 = vmatpush.msra.mxu0 %v1227
        %v1229 = vand.u32 %v373, 4294901760
        %1230 = vmatpush.msra.mxu0 %v1229
        %v1231 = vand.u32 %v369, 4294901760
        %1232 = vmatpush.msra.mxu0 %v1231
        %v1233 = vand.u32 %v365, 4294901760
        %1234 = vmatpush.msra.mxu0 %v1233
        %v1235 = vand.u32 %v361, 4294901760
        %1236 = vmatpush.msra.mxu0 %v1235
        %v1237 = vand.u32 %v357, 4294901760
        %1238 = vmatpush.msra.mxu0 %v1237
        %v1239 = vand.u32 %v353, 4294901760
        %1240 = vmatpush.msra.mxu0 %v1239
        %v1241 = vand.u32 %v222, 4294901760
        %v1242 = vsub.f32 %v222, %v1241
        %v1243 = vand.u32 %v1242, 4294901760
        %v1244 = vsub.f32 %v1242, %v1243
        %v1245 = vand.u32 %v1244, 4294901760
        %1246 = vmatmul.f32.gmra.mxu0 %v1245
        %v1247 = vpop.f32.mrf.mxu0
        %v1248 = vadd.f32 %v1207, %v1247
        %1249 = vdwg.mxu0
        %v1250 = vand.u32 %v413, 4294901760
        %v1251 = vsub.f32 %v413, %v1250
        %v1252 = vand.u32 %v1251, 4294901760
        %v1253 = vsub.f32 %v1251, %v1252
        %v1254 = vand.u32 %v1253, 4294901760
        %1255 = vmatpush.msra.mxu0 %v1254
        %v1256 = vand.u32 %v409, 4294901760
        %v1257 = vsub.f32 %v409, %v1256
        %v1258 = vand.u32 %v1257, 4294901760
        %v1259 = vsub.f32 %v1257, %v1258
        %v1260 = vand.u32 %v1259, 4294901760
        %1261 = vmatpush.msra.mxu0 %v1260
        %v1262 = vand.u32 %v405, 4294901760
        %v1263 = vsub.f32 %v405, %v1262
        %v1264 = vand.u32 %v1263, 4294901760
        %v1265 = vsub.f32 %v1263, %v1264
        %v1266 = vand.u32 %v1265, 4294901760
        %1267 = vmatpush.msra.mxu0 %v1266
        %v1268 = vand.u32 %v401, 4294901760
        %v1269 = vsub.f32 %v401, %v1268
        %v1270 = vand.u32 %v1269, 4294901760
        %v1271 = vsub.f32 %v1269, %v1270
        %v1272 = vand.u32 %v1271, 4294901760
        %1273 = vmatpush.msra.mxu0 %v1272
        %v1274 = vand.u32 %v397, 4294901760
        %v1275 = vsub.f32 %v397, %v1274
        %v1276 = vand.u32 %v1275, 4294901760
        %v1277 = vsub.f32 %v1275, %v1276
        %v1278 = vand.u32 %v1277, 4294901760
        %1279 = vmatpush.msra.mxu0 %v1278
        %v1280 = vand.u32 %v393, 4294901760
        %v1281 = vsub.f32 %v393, %v1280
        %v1282 = vand.u32 %v1281, 4294901760
        %v1283 = vsub.f32 %v1281, %v1282
        %v1284 = vand.u32 %v1283, 4294901760
        %1285 = vmatpush.msra.mxu0 %v1284
        %v1286 = vand.u32 %v389, 4294901760
        %v1287 = vsub.f32 %v389, %v1286
        %v1288 = vand.u32 %v1287, 4294901760
        %v1289 = vsub.f32 %v1287, %v1288
        %v1290 = vand.u32 %v1289, 4294901760
        %1291 = vmatpush.msra.mxu0 %v1290
        %v1292 = vand.u32 %v385, 4294901760
        %v1293 = vsub.f32 %v385, %v1292
        %v1294 = vand.u32 %v1293, 4294901760
        %v1295 = vsub.f32 %v1293, %v1294
        %v1296 = vand.u32 %v1295, 4294901760
        %1297 = vmatpush.msra.mxu0 %v1296
        %v1298 = vand.u32 %v381, 4294901760
        %v1299 = vsub.f32 %v381, %v1298
        %v1300 = vand.u32 %v1299, 4294901760
        %v1301 = vsub.f32 %v1299, %v1300
        %v1302 = vand.u32 %v1301, 4294901760
        %1303 = vmatpush.msra.mxu0 %v1302
        %v1304 = vand.u32 %v377, 4294901760
        %v1305 = vsub.f32 %v377, %v1304
        %v1306 = vand.u32 %v1305, 4294901760
        %v1307 = vsub.f32 %v1305, %v1306
        %v1308 = vand.u32 %v1307, 4294901760
        %1309 = vmatpush.msra.mxu0 %v1308
        %v1310 = vand.u32 %v373, 4294901760
        %v1311 = vsub.f32 %v373, %v1310
        %v1312 = vand.u32 %v1311, 4294901760
        %v1313 = vsub.f32 %v1311, %v1312
        %v1314 = vand.u32 %v1313, 4294901760
        %1315 = vmatpush.msra.mxu0 %v1314
        %v1316 = vand.u32 %v369, 4294901760
        %v1317 = vsub.f32 %v369, %v1316
        %v1318 = vand.u32 %v1317, 4294901760
        %v1319 = vsub.f32 %v1317, %v1318
        %v1320 = vand.u32 %v1319, 4294901760
        %1321 = vmatpush.msra.mxu0 %v1320
        %v1322 = vand.u32 %v365, 4294901760
        %v1323 = vsub.f32 %v365, %v1322
        %v1324 = vand.u32 %v1323, 4294901760
        %v1325 = vsub.f32 %v1323, %v1324
        %v1326 = vand.u32 %v1325, 4294901760
        %1327 = vmatpush.msra.mxu0 %v1326
        %v1328 = vand.u32 %v361, 4294901760
        %v1329 = vsub.f32 %v361, %v1328
        %v1330 = vand.u32 %v1329, 4294901760
        %v1331 = vsub.f32 %v1329, %v1330
        %v1332 = vand.u32 %v1331, 4294901760
        %1333 = vmatpush.msra.mxu0 %v1332
        %v1334 = vand.u32 %v357, 4294901760
        %v1335 = vsub.f32 %v357, %v1334
        %v1336 = vand.u32 %v1335, 4294901760
        %v1337 = vsub.f32 %v1335, %v1336
        %v1338 = vand.u32 %v1337, 4294901760
        %1339 = vmatpush.msra.mxu0 %v1338
        %v1340 = vand.u32 %v353, 4294901760
        %v1341 = vsub.f32 %v353, %v1340
        %v1342 = vand.u32 %v1341, 4294901760
        %v1343 = vsub.f32 %v1341, %v1342
        %v1344 = vand.u32 %v1343, 4294901760
        %1345 = vmatpush.msra.mxu0 %v1344
        %v1346 = vand.u32 %v222, 4294901760
        %1347 = vmatmul.f32.gmra.mxu0 %v1346
        %v1348 = vpop.f32.mrf.mxu0
        %v1349 = vadd.f32 %v1248, %v1348
        %1350 = vdwg.mxu0
        %v1351 = vand.u32 %v413, 4294901760
        %v1352 = vsub.f32 %v413, %v1351
        %1353 = vmatpush.msra.mxu0 %v1352
        %v1354 = vand.u32 %v409, 4294901760
        %v1355 = vsub.f32 %v409, %v1354
        %1356 = vmatpush.msra.mxu0 %v1355
        %v1357 = vand.u32 %v405, 4294901760
        %v1358 = vsub.f32 %v405, %v1357
        %1359 = vmatpush.msra.mxu0 %v1358
        %v1360 = vand.u32 %v401, 4294901760
        %v1361 = vsub.f32 %v401, %v1360
        %1362 = vmatpush.msra.mxu0 %v1361
        %v1363 = vand.u32 %v397, 4294901760
        %v1364 = vsub.f32 %v397, %v1363
        %1365 = vmatpush.msra.mxu0 %v1364
        %v1366 = vand.u32 %v393, 4294901760
        %v1367 = vsub.f32 %v393, %v1366
        %1368 = vmatpush.msra.mxu0 %v1367
        %v1369 = vand.u32 %v389, 4294901760
        %v1370 = vsub.f32 %v389, %v1369
        %1371 = vmatpush.msra.mxu0 %v1370
        %v1372 = vand.u32 %v385, 4294901760
        %v1373 = vsub.f32 %v385, %v1372
        %1374 = vmatpush.msra.mxu0 %v1373
        %v1375 = vand.u32 %v381, 4294901760
        %v1376 = vsub.f32 %v381, %v1375
        %1377 = vmatpush.msra.mxu0 %v1376
        %v1378 = vand.u32 %v377, 4294901760
        %v1379 = vsub.f32 %v377, %v1378
        %1380 = vmatpush.msra.mxu0 %v1379
        %v1381 = vand.u32 %v373, 4294901760
        %v1382 = vsub.f32 %v373, %v1381
        %1383 = vmatpush.msra.mxu0 %v1382
        %v1384 = vand.u32 %v369, 4294901760
        %v1385 = vsub.f32 %v369, %v1384
        %1386 = vmatpush.msra.mxu0 %v1385
        %v1387 = vand.u32 %v365, 4294901760
        %v1388 = vsub.f32 %v365, %v1387
        %1389 = vmatpush.msra.mxu0 %v1388
        %v1390 = vand.u32 %v361, 4294901760
        %v1391 = vsub.f32 %v361, %v1390
        %1392 = vmatpush.msra.mxu0 %v1391
        %v1393 = vand.u32 %v357, 4294901760
        %v1394 = vsub.f32 %v357, %v1393
        %1395 = vmatpush.msra.mxu0 %v1394
        %v1396 = vand.u32 %v353, 4294901760
        %v1397 = vsub.f32 %v353, %v1396
        %1398 = vmatpush.msra.mxu0 %v1397
        %v1399 = vand.u32 %v222, 4294901760
        %v1400 = vsub.f32 %v222, %v1399
        %1401 = vmatmul.f32.gmra.mxu0 %v1400
        %v1402 = vpop.f32.mrf.mxu0
        %v1403 = vadd.f32 %v1349, %v1402
        %1404 = vdwg.mxu0
        %v1405 = vand.u32 %v413, 4294901760
        %1406 = vmatpush.msra.mxu0 %v1405
        %v1407 = vand.u32 %v409, 4294901760
        %1408 = vmatpush.msra.mxu0 %v1407
        %v1409 = vand.u32 %v405, 4294901760
        %1410 = vmatpush.msra.mxu0 %v1409
        %v1411 = vand.u32 %v401, 4294901760
        %1412 = vmatpush.msra.mxu0 %v1411
        %v1413 = vand.u32 %v397, 4294901760
        %1414 = vmatpush.msra.mxu0 %v1413
        %v1415 = vand.u32 %v393, 4294901760
        %1416 = vmatpush.msra.mxu0 %v1415
        %v1417 = vand.u32 %v389, 4294901760
        %1418 = vmatpush.msra.mxu0 %v1417
        %v1419 = vand.u32 %v385, 4294901760
        %1420 = vmatpush.msra.mxu0 %v1419
        %v1421 = vand.u32 %v381, 4294901760
        %1422 = vmatpush.msra.mxu0 %v1421
        %v1423 = vand.u32 %v377, 4294901760
        %1424 = vmatpush.msra.mxu0 %v1423
        %v1425 = vand.u32 %v373, 4294901760
        %1426 = vmatpush.msra.mxu0 %v1425
        %v1427 = vand.u32 %v369, 4294901760
        %1428 = vmatpush.msra.mxu0 %v1427
        %v1429 = vand.u32 %v365, 4294901760
        %1430 = vmatpush.msra.mxu0 %v1429
        %v1431 = vand.u32 %v361, 4294901760
        %1432 = vmatpush.msra.mxu0 %v1431
        %v1433 = vand.u32 %v357, 4294901760
        %1434 = vmatpush.msra.mxu0 %v1433
        %v1435 = vand.u32 %v353, 4294901760
        %1436 = vmatpush.msra.mxu0 %v1435
        %v1437 = vand.u32 %v222, 4294901760
        %v1438 = vsub.f32 %v222, %v1437
        %v1439 = vand.u32 %v1438, 4294901760
        %1440 = vmatmul.f32.gmra.mxu0 %v1439
        %v1441 = vpop.f32.mrf.mxu0
        %v1442 = vadd.f32 %v1403, %v1441
        %1443 = vdwg.mxu0
        %v1444 = vand.u32 %v413, 4294901760
        %v1445 = vsub.f32 %v413, %v1444
        %v1446 = vand.u32 %v1445, 4294901760
        %1447 = vmatpush.msra.mxu0 %v1446
        %v1448 = vand.u32 %v409, 4294901760
        %v1449 = vsub.f32 %v409, %v1448
        %v1450 = vand.u32 %v1449, 4294901760
        %1451 = vmatpush.msra.mxu0 %v1450
        %v1452 = vand.u32 %v405, 4294901760
        %v1453 = vsub.f32 %v405, %v1452
        %v1454 = vand.u32 %v1453, 4294901760
        %1455 = vmatpush.msra.mxu0 %v1454
        %v1456 = vand.u32 %v401, 4294901760
        %v1457 = vsub.f32 %v401, %v1456
        %v1458 = vand.u32 %v1457, 4294901760
        %1459 = vmatpush.msra.mxu0 %v1458
        %v1460 = vand.u32 %v397, 4294901760
        %v1461 = vsub.f32 %v397, %v1460
        %v1462 = vand.u32 %v1461, 4294901760
        %1463 = vmatpush.msra.mxu0 %v1462
        %v1464 = vand.u32 %v393, 4294901760
        %v1465 = vsub.f32 %v393, %v1464
        %v1466 = vand.u32 %v1465, 4294901760
        %1467 = vmatpush.msra.mxu0 %v1466
        %v1468 = vand.u32 %v389, 4294901760
        %v1469 = vsub.f32 %v389, %v1468
        %v1470 = vand.u32 %v1469, 4294901760
        %1471 = vmatpush.msra.mxu0 %v1470
        %v1472 = vand.u32 %v385, 4294901760
        %v1473 = vsub.f32 %v385, %v1472
        %v1474 = vand.u32 %v1473, 4294901760
        %1475 = vmatpush.msra.mxu0 %v1474
        %v1476 = vand.u32 %v381, 4294901760
        %v1477 = vsub.f32 %v381, %v1476
        %v1478 = vand.u32 %v1477, 4294901760
        %1479 = vmatpush.msra.mxu0 %v1478
        %v1480 = vand.u32 %v377, 4294901760
        %v1481 = vsub.f32 %v377, %v1480
        %v1482 = vand.u32 %v1481, 4294901760
        %1483 = vmatpush.msra.mxu0 %v1482
        %v1484 = vand.u32 %v373, 4294901760
        %v1485 = vsub.f32 %v373, %v1484
        %v1486 = vand.u32 %v1485, 4294901760
        %1487 = vmatpush.msra.mxu0 %v1486
        %v1488 = vand.u32 %v369, 4294901760
        %v1489 = vsub.f32 %v369, %v1488
        %v1490 = vand.u32 %v1489, 4294901760
        %1491 = vmatpush.msra.mxu0 %v1490
        %v1492 = vand.u32 %v365, 4294901760
        %v1493 = vsub.f32 %v365, %v1492
        %v1494 = vand.u32 %v1493, 4294901760
        %1495 = vmatpush.msra.mxu0 %v1494
        %v1496 = vand.u32 %v361, 4294901760
        %v1497 = vsub.f32 %v361, %v1496
        %v1498 = vand.u32 %v1497, 4294901760
        %1499 = vmatpush.msra.mxu0 %v1498
        %v1500 = vand.u32 %v357, 4294901760
        %v1501 = vsub.f32 %v357, %v1500
        %v1502 = vand.u32 %v1501, 4294901760
        %1503 = vmatpush.msra.mxu0 %v1502
        %v1504 = vand.u32 %v353, 4294901760
        %v1505 = vsub.f32 %v353, %v1504
        %v1506 = vand.u32 %v1505, 4294901760
        %1507 = vmatpush.msra.mxu0 %v1506
        %v1508 = vand.u32 %v222, 4294901760
        %1509 = vmatmul.f32.gmra.mxu0 %v1508
        %v1510 = vpop.f32.mrf.mxu0
        %v1511 = vadd.f32 %v1442, %v1510
        %1512 = vdwg.mxu0
        %v1513 = vand.u32 %v413, 4294901760
        %1514 = vmatpush.msra.mxu0 %v1513
        %v1515 = vand.u32 %v409, 4294901760
        %1516 = vmatpush.msra.mxu0 %v1515
        %v1517 = vand.u32 %v405, 4294901760
        %1518 = vmatpush.msra.mxu0 %v1517
        %v1519 = vand.u32 %v401, 4294901760
        %1520 = vmatpush.msra.mxu0 %v1519
        %v1521 = vand.u32 %v397, 4294901760
        %1522 = vmatpush.msra.mxu0 %v1521
        %v1523 = vand.u32 %v393, 4294901760
        %1524 = vmatpush.msra.mxu0 %v1523
        %v1525 = vand.u32 %v389, 4294901760
        %1526 = vmatpush.msra.mxu0 %v1525
        %v1527 = vand.u32 %v385, 4294901760
        %1528 = vmatpush.msra.mxu0 %v1527
        %v1529 = vand.u32 %v381, 4294901760
        %1530 = vmatpush.msra.mxu0 %v1529
        %v1531 = vand.u32 %v377, 4294901760
        %1532 = vmatpush.msra.mxu0 %v1531
        %v1533 = vand.u32 %v373, 4294901760
        %1534 = vmatpush.msra.mxu0 %v1533
        %v1535 = vand.u32 %v369, 4294901760
        %1536 = vmatpush.msra.mxu0 %v1535
        %v1537 = vand.u32 %v365, 4294901760
        %1538 = vmatpush.msra.mxu0 %v1537
        %v1539 = vand.u32 %v361, 4294901760
        %1540 = vmatpush.msra.mxu0 %v1539
        %v1541 = vand.u32 %v357, 4294901760
        %1542 = vmatpush.msra.mxu0 %v1541
        %v1543 = vand.u32 %v353, 4294901760
        %1544 = vmatpush.msra.mxu0 %v1543
        %v1545 = vand.u32 %v222, 4294901760
        %1546 = vmatmul.f32.gmra.mxu0 %v1545
        %v1547 = vpop.f32.mrf.mxu0
        %v1548 = vadd.f32 %v1511, %v1547
        %1549 = vdwg.mxu0
        %v1550 = vand.u32 %v477, 4294901760
        %1551 = vmatpush.msra.mxu0 %v1550
        %v1552 = vand.u32 %v473, 4294901760
        %1553 = vmatpush.msra.mxu0 %v1552
        %v1554 = vand.u32 %v469, 4294901760
        %1555 = vmatpush.msra.mxu0 %v1554
        %v1556 = vand.u32 %v465, 4294901760
        %1557 = vmatpush.msra.mxu0 %v1556
        %v1558 = vand.u32 %v461, 4294901760
        %1559 = vmatpush.msra.mxu0 %v1558
        %v1560 = vand.u32 %v457, 4294901760
        %1561 = vmatpush.msra.mxu0 %v1560
        %v1562 = vand.u32 %v453, 4294901760
        %1563 = vmatpush.msra.mxu0 %v1562
        %v1564 = vand.u32 %v449, 4294901760
        %1565 = vmatpush.msra.mxu0 %v1564
        %v1566 = vand.u32 %v445, 4294901760
        %1567 = vmatpush.msra.mxu0 %v1566
        %v1568 = vand.u32 %v441, 4294901760
        %1569 = vmatpush.msra.mxu0 %v1568
        %v1570 = vand.u32 %v437, 4294901760
        %1571 = vmatpush.msra.mxu0 %v1570
        %v1572 = vand.u32 %v433, 4294901760
        %1573 = vmatpush.msra.mxu0 %v1572
        %v1574 = vand.u32 %v429, 4294901760
        %1575 = vmatpush.msra.mxu0 %v1574
        %v1576 = vand.u32 %v425, 4294901760
        %1577 = vmatpush.msra.mxu0 %v1576
        %v1578 = vand.u32 %v421, 4294901760
        %1579 = vmatpush.msra.mxu0 %v1578
        %v1580 = vand.u32 %v417, 4294901760
        %1581 = vmatpush.msra.mxu0 %v1580
        %v1582 = vand.u32 %v223, 4294901760
        %v1583 = vsub.f32 %v223, %v1582
        %v1584 = vand.u32 %v1583, 4294901760
        %v1585 = vsub.f32 %v1583, %v1584
        %v1586 = vand.u32 %v1585, 4294901760
        %1587 = vmatmul.f32.gmra.mxu0 %v1586
        %v1588 = vpop.f32.mrf.mxu0
        %v1589 = vadd.f32 %v1548, %v1588
        %1590 = vdwg.mxu0
        %v1591 = vand.u32 %v477, 4294901760
        %v1592 = vsub.f32 %v477, %v1591
        %v1593 = vand.u32 %v1592, 4294901760
        %v1594 = vsub.f32 %v1592, %v1593
        %v1595 = vand.u32 %v1594, 4294901760
        %1596 = vmatpush.msra.mxu0 %v1595
        %v1597 = vand.u32 %v473, 4294901760
        %v1598 = vsub.f32 %v473, %v1597
        %v1599 = vand.u32 %v1598, 4294901760
        %v1600 = vsub.f32 %v1598, %v1599
        %v1601 = vand.u32 %v1600, 4294901760
        %1602 = vmatpush.msra.mxu0 %v1601
        %v1603 = vand.u32 %v469, 4294901760
        %v1604 = vsub.f32 %v469, %v1603
        %v1605 = vand.u32 %v1604, 4294901760
        %v1606 = vsub.f32 %v1604, %v1605
        %v1607 = vand.u32 %v1606, 4294901760
        %1608 = vmatpush.msra.mxu0 %v1607
        %v1609 = vand.u32 %v465, 4294901760
        %v1610 = vsub.f32 %v465, %v1609
        %v1611 = vand.u32 %v1610, 4294901760
        %v1612 = vsub.f32 %v1610, %v1611
        %v1613 = vand.u32 %v1612, 4294901760
        %1614 = vmatpush.msra.mxu0 %v1613
        %v1615 = vand.u32 %v461, 4294901760
        %v1616 = vsub.f32 %v461, %v1615
        %v1617 = vand.u32 %v1616, 4294901760
        %v1618 = vsub.f32 %v1616, %v1617
        %v1619 = vand.u32 %v1618, 4294901760
        %1620 = vmatpush.msra.mxu0 %v1619
        %v1621 = vand.u32 %v457, 4294901760
        %v1622 = vsub.f32 %v457, %v1621
        %v1623 = vand.u32 %v1622, 4294901760
        %v1624 = vsub.f32 %v1622, %v1623
        %v1625 = vand.u32 %v1624, 4294901760
        %1626 = vmatpush.msra.mxu0 %v1625
        %v1627 = vand.u32 %v453, 4294901760
        %v1628 = vsub.f32 %v453, %v1627
        %v1629 = vand.u32 %v1628, 4294901760
        %v1630 = vsub.f32 %v1628, %v1629
        %v1631 = vand.u32 %v1630, 4294901760
        %1632 = vmatpush.msra.mxu0 %v1631
        %v1633 = vand.u32 %v449, 4294901760
        %v1634 = vsub.f32 %v449, %v1633
        %v1635 = vand.u32 %v1634, 4294901760
        %v1636 = vsub.f32 %v1634, %v1635
        %v1637 = vand.u32 %v1636, 4294901760
        %1638 = vmatpush.msra.mxu0 %v1637
        %v1639 = vand.u32 %v445, 4294901760
        %v1640 = vsub.f32 %v445, %v1639
        %v1641 = vand.u32 %v1640, 4294901760
        %v1642 = vsub.f32 %v1640, %v1641
        %v1643 = vand.u32 %v1642, 4294901760
        %1644 = vmatpush.msra.mxu0 %v1643
        %v1645 = vand.u32 %v441, 4294901760
        %v1646 = vsub.f32 %v441, %v1645
        %v1647 = vand.u32 %v1646, 4294901760
        %v1648 = vsub.f32 %v1646, %v1647
        %v1649 = vand.u32 %v1648, 4294901760
        %1650 = vmatpush.msra.mxu0 %v1649
        %v1651 = vand.u32 %v437, 4294901760
        %v1652 = vsub.f32 %v437, %v1651
        %v1653 = vand.u32 %v1652, 4294901760
        %v1654 = vsub.f32 %v1652, %v1653
        %v1655 = vand.u32 %v1654, 4294901760
        %1656 = vmatpush.msra.mxu0 %v1655
        %v1657 = vand.u32 %v433, 4294901760
        %v1658 = vsub.f32 %v433, %v1657
        %v1659 = vand.u32 %v1658, 4294901760
        %v1660 = vsub.f32 %v1658, %v1659
        %v1661 = vand.u32 %v1660, 4294901760
        %1662 = vmatpush.msra.mxu0 %v1661
        %v1663 = vand.u32 %v429, 4294901760
        %v1664 = vsub.f32 %v429, %v1663
        %v1665 = vand.u32 %v1664, 4294901760
        %v1666 = vsub.f32 %v1664, %v1665
        %v1667 = vand.u32 %v1666, 4294901760
        %1668 = vmatpush.msra.mxu0 %v1667
        %v1669 = vand.u32 %v425, 4294901760
        %v1670 = vsub.f32 %v425, %v1669
        %v1671 = vand.u32 %v1670, 4294901760
        %v1672 = vsub.f32 %v1670, %v1671
        %v1673 = vand.u32 %v1672, 4294901760
        %1674 = vmatpush.msra.mxu0 %v1673
        %v1675 = vand.u32 %v421, 4294901760
        %v1676 = vsub.f32 %v421, %v1675
        %v1677 = vand.u32 %v1676, 4294901760
        %v1678 = vsub.f32 %v1676, %v1677
        %v1679 = vand.u32 %v1678, 4294901760
        %1680 = vmatpush.msra.mxu0 %v1679
        %v1681 = vand.u32 %v417, 4294901760
        %v1682 = vsub.f32 %v417, %v1681
        %v1683 = vand.u32 %v1682, 4294901760
        %v1684 = vsub.f32 %v1682, %v1683
        %v1685 = vand.u32 %v1684, 4294901760
        %1686 = vmatpush.msra.mxu0 %v1685
        %v1687 = vand.u32 %v223, 4294901760
        %1688 = vmatmul.f32.gmra.mxu0 %v1687
        %v1689 = vpop.f32.mrf.mxu0
        %v1690 = vadd.f32 %v1589, %v1689
        %1691 = vdwg.mxu0
        %v1692 = vand.u32 %v477, 4294901760
        %v1693 = vsub.f32 %v477, %v1692
        %1694 = vmatpush.msra.mxu0 %v1693
        %v1695 = vand.u32 %v473, 4294901760
        %v1696 = vsub.f32 %v473, %v1695
        %1697 = vmatpush.msra.mxu0 %v1696
        %v1698 = vand.u32 %v469, 4294901760
        %v1699 = vsub.f32 %v469, %v1698
        %1700 = vmatpush.msra.mxu0 %v1699
        %v1701 = vand.u32 %v465, 4294901760
        %v1702 = vsub.f32 %v465, %v1701
        %1703 = vmatpush.msra.mxu0 %v1702
        %v1704 = vand.u32 %v461, 4294901760
        %v1705 = vsub.f32 %v461, %v1704
        %1706 = vmatpush.msra.mxu0 %v1705
        %v1707 = vand.u32 %v457, 4294901760
        %v1708 = vsub.f32 %v457, %v1707
        %1709 = vmatpush.msra.mxu0 %v1708
        %v1710 = vand.u32 %v453, 4294901760
        %v1711 = vsub.f32 %v453, %v1710
        %1712 = vmatpush.msra.mxu0 %v1711
        %v1713 = vand.u32 %v449, 4294901760
        %v1714 = vsub.f32 %v449, %v1713
        %1715 = vmatpush.msra.mxu0 %v1714
        %v1716 = vand.u32 %v445, 4294901760
        %v1717 = vsub.f32 %v445, %v1716
        %1718 = vmatpush.msra.mxu0 %v1717
        %v1719 = vand.u32 %v441, 4294901760
        %v1720 = vsub.f32 %v441, %v1719
        %1721 = vmatpush.msra.mxu0 %v1720
        %v1722 = vand.u32 %v437, 4294901760
        %v1723 = vsub.f32 %v437, %v1722
        %1724 = vmatpush.msra.mxu0 %v1723
        %v1725 = vand.u32 %v433, 4294901760
        %v1726 = vsub.f32 %v433, %v1725
        %1727 = vmatpush.msra.mxu0 %v1726
        %v1728 = vand.u32 %v429, 4294901760
        %v1729 = vsub.f32 %v429, %v1728
        %1730 = vmatpush.msra.mxu0 %v1729
        %v1731 = vand.u32 %v425, 4294901760
        %v1732 = vsub.f32 %v425, %v1731
        %1733 = vmatpush.msra.mxu0 %v1732
        %v1734 = vand.u32 %v421, 4294901760
        %v1735 = vsub.f32 %v421, %v1734
        %1736 = vmatpush.msra.mxu0 %v1735
        %v1737 = vand.u32 %v417, 4294901760
        %v1738 = vsub.f32 %v417, %v1737
        %1739 = vmatpush.msra.mxu0 %v1738
        %v1740 = vand.u32 %v223, 4294901760
        %v1741 = vsub.f32 %v223, %v1740
        %1742 = vmatmul.f32.gmra.mxu0 %v1741
        %v1743 = vpop.f32.mrf.mxu0
        %v1744 = vadd.f32 %v1690, %v1743
        %1745 = vdwg.mxu0
        %v1746 = vand.u32 %v477, 4294901760
        %1747 = vmatpush.msra.mxu0 %v1746
        %v1748 = vand.u32 %v473, 4294901760
        %1749 = vmatpush.msra.mxu0 %v1748
        %v1750 = vand.u32 %v469, 4294901760
        %1751 = vmatpush.msra.mxu0 %v1750
        %v1752 = vand.u32 %v465, 4294901760
        %1753 = vmatpush.msra.mxu0 %v1752
        %v1754 = vand.u32 %v461, 4294901760
        %1755 = vmatpush.msra.mxu0 %v1754
        %v1756 = vand.u32 %v457, 4294901760
        %1757 = vmatpush.msra.mxu0 %v1756
        %v1758 = vand.u32 %v453, 4294901760
        %1759 = vmatpush.msra.mxu0 %v1758
        %v1760 = vand.u32 %v449, 4294901760
        %1761 = vmatpush.msra.mxu0 %v1760
        %v1762 = vand.u32 %v445, 4294901760
        %1763 = vmatpush.msra.mxu0 %v1762
        %v1764 = vand.u32 %v441, 4294901760
        %1765 = vmatpush.msra.mxu0 %v1764
        %v1766 = vand.u32 %v437, 4294901760
        %1767 = vmatpush.msra.mxu0 %v1766
        %v1768 = vand.u32 %v433, 4294901760
        %1769 = vmatpush.msra.mxu0 %v1768
        %v1770 = vand.u32 %v429, 4294901760
        %1771 = vmatpush.msra.mxu0 %v1770
        %v1772 = vand.u32 %v425, 4294901760
        %1773 = vmatpush.msra.mxu0 %v1772
        %v1774 = vand.u32 %v421, 4294901760
        %1775 = vmatpush.msra.mxu0 %v1774
        %v1776 = vand.u32 %v417, 4294901760
        %1777 = vmatpush.msra.mxu0 %v1776
        %v1778 = vand.u32 %v223, 4294901760
        %v1779 = vsub.f32 %v223, %v1778
        %v1780 = vand.u32 %v1779, 4294901760
        %1781 = vmatmul.f32.gmra.mxu0 %v1780
        %v1782 = vpop.f32.mrf.mxu0
        %v1783 = vadd.f32 %v1744, %v1782
        %1784 = vdwg.mxu0
        %v1785 = vand.u32 %v477, 4294901760
        %v1786 = vsub.f32 %v477, %v1785
        %v1787 = vand.u32 %v1786, 4294901760
        %1788 = vmatpush.msra.mxu0 %v1787
        %v1789 = vand.u32 %v473, 4294901760
        %v1790 = vsub.f32 %v473, %v1789
        %v1791 = vand.u32 %v1790, 4294901760
        %1792 = vmatpush.msra.mxu0 %v1791
        %v1793 = vand.u32 %v469, 4294901760
        %v1794 = vsub.f32 %v469, %v1793
        %v1795 = vand.u32 %v1794, 4294901760
        %1796 = vmatpush.msra.mxu0 %v1795
        %v1797 = vand.u32 %v465, 4294901760
        %v1798 = vsub.f32 %v465, %v1797
        %v1799 = vand.u32 %v1798, 4294901760
        %1800 = vmatpush.msra.mxu0 %v1799
        %v1801 = vand.u32 %v461, 4294901760
        %v1802 = vsub.f32 %v461, %v1801
        %v1803 = vand.u32 %v1802, 4294901760
        %1804 = vmatpush.msra.mxu0 %v1803
        %v1805 = vand.u32 %v457, 4294901760
        %v1806 = vsub.f32 %v457, %v1805
        %v1807 = vand.u32 %v1806, 4294901760
        %1808 = vmatpush.msra.mxu0 %v1807
        %v1809 = vand.u32 %v453, 4294901760
        %v1810 = vsub.f32 %v453, %v1809
        %v1811 = vand.u32 %v1810, 4294901760
        %1812 = vmatpush.msra.mxu0 %v1811
        %v1813 = vand.u32 %v449, 4294901760
        %v1814 = vsub.f32 %v449, %v1813
        %v1815 = vand.u32 %v1814, 4294901760
        %1816 = vmatpush.msra.mxu0 %v1815
        %v1817 = vand.u32 %v445, 4294901760
        %v1818 = vsub.f32 %v445, %v1817
        %v1819 = vand.u32 %v1818, 4294901760
        %1820 = vmatpush.msra.mxu0 %v1819
        %v1821 = vand.u32 %v441, 4294901760
        %v1822 = vsub.f32 %v441, %v1821
        %v1823 = vand.u32 %v1822, 4294901760
        %1824 = vmatpush.msra.mxu0 %v1823
        %v1825 = vand.u32 %v437, 4294901760
        %v1826 = vsub.f32 %v437, %v1825
        %v1827 = vand.u32 %v1826, 4294901760
        %1828 = vmatpush.msra.mxu0 %v1827
        %v1829 = vand.u32 %v433, 4294901760
        %v1830 = vsub.f32 %v433, %v1829
        %v1831 = vand.u32 %v1830, 4294901760
        %1832 = vmatpush.msra.mxu0 %v1831
        %v1833 = vand.u32 %v429, 4294901760
        %v1834 = vsub.f32 %v429, %v1833
        %v1835 = vand.u32 %v1834, 4294901760
        %1836 = vmatpush.msra.mxu0 %v1835
        %v1837 = vand.u32 %v425, 4294901760
        %v1838 = vsub.f32 %v425, %v1837
        %v1839 = vand.u32 %v1838, 4294901760
        %1840 = vmatpush.msra.mxu0 %v1839
        %v1841 = vand.u32 %v421, 4294901760
        %v1842 = vsub.f32 %v421, %v1841
        %v1843 = vand.u32 %v1842, 4294901760
        %1844 = vmatpush.msra.mxu0 %v1843
        %v1845 = vand.u32 %v417, 4294901760
        %v1846 = vsub.f32 %v417, %v1845
        %v1847 = vand.u32 %v1846, 4294901760
        %1848 = vmatpush.msra.mxu0 %v1847
        %v1849 = vand.u32 %v223, 4294901760
        %1850 = vmatmul.f32.gmra.mxu0 %v1849
        %v1851 = vpop.f32.mrf.mxu0
        %v1852 = vadd.f32 %v1783, %v1851
        %1853 = vdwg.mxu0
        %v1854 = vand.u32 %v477, 4294901760
        %1855 = vmatpush.msra.mxu0 %v1854
        %v1856 = vand.u32 %v473, 4294901760
        %1857 = vmatpush.msra.mxu0 %v1856
        %v1858 = vand.u32 %v469, 4294901760
        %1859 = vmatpush.msra.mxu0 %v1858
        %v1860 = vand.u32 %v465, 4294901760
        %1861 = vmatpush.msra.mxu0 %v1860
        %v1862 = vand.u32 %v461, 4294901760
        %1863 = vmatpush.msra.mxu0 %v1862
        %v1864 = vand.u32 %v457, 4294901760
        %1865 = vmatpush.msra.mxu0 %v1864
        %v1866 = vand.u32 %v453, 4294901760
        %1867 = vmatpush.msra.mxu0 %v1866
        %v1868 = vand.u32 %v449, 4294901760
        %1869 = vmatpush.msra.mxu0 %v1868
        %v1870 = vand.u32 %v445, 4294901760
        %1871 = vmatpush.msra.mxu0 %v1870
        %v1872 = vand.u32 %v441, 4294901760
        %1873 = vmatpush.msra.mxu0 %v1872
        %v1874 = vand.u32 %v437, 4294901760
        %1875 = vmatpush.msra.mxu0 %v1874
        %v1876 = vand.u32 %v433, 4294901760
        %1877 = vmatpush.msra.mxu0 %v1876
        %v1878 = vand.u32 %v429, 4294901760
        %1879 = vmatpush.msra.mxu0 %v1878
        %v1880 = vand.u32 %v425, 4294901760
        %1881 = vmatpush.msra.mxu0 %v1880
        %v1882 = vand.u32 %v421, 4294901760
        %1883 = vmatpush.msra.mxu0 %v1882
        %v1884 = vand.u32 %v417, 4294901760
        %1885 = vmatpush.msra.mxu0 %v1884
        %v1886 = vand.u32 %v223, 4294901760
        %1887 = vmatmul.f32.gmra.mxu0 %v1886
        %v1888 = vpop.f32.mrf.mxu0
        %v1889 = vadd.f32 %v1852, %v1888
        %1890 = vdwg.mxu0
        %1891 = vmatpush.msra.mxu0 0.0
        %1892 = vmatpush.msra.mxu0 0.0
        %1893 = vmatpush.msra.mxu0 0.0
        %1894 = vmatpush.msra.mxu0 0.0
        %1895 = vmatpush.msra.mxu0 0.0
        %1896 = vmatpush.msra.mxu0 0.0
        %1897 = vmatpush.msra.mxu0 0.0
        %1898 = vmatpush.msra.mxu0 0.0
        %v1899 = vand.u32 %v509, 4294901760
        %1900 = vmatpush.msra.mxu0 %v1899
        %v1901 = vand.u32 %v505, 4294901760
        %1902 = vmatpush.msra.mxu0 %v1901
        %v1903 = vand.u32 %v501, 4294901760
        %1904 = vmatpush.msra.mxu0 %v1903
        %v1905 = vand.u32 %v497, 4294901760
        %1906 = vmatpush.msra.mxu0 %v1905
        %v1907 = vand.u32 %v493, 4294901760
        %1908 = vmatpush.msra.mxu0 %v1907
        %v1909 = vand.u32 %v489, 4294901760
        %1910 = vmatpush.msra.mxu0 %v1909
        %v1911 = vand.u32 %v485, 4294901760
        %1912 = vmatpush.msra.mxu0 %v1911
        %v1913 = vand.u32 %v481, 4294901760
        %1914 = vmatpush.msra.mxu0 %v1913
        %v1915 = vand.u32 %v525, 4294901760
        %v1916 = vsub.f32 %v525, %v1915
        %v1917 = vand.u32 %v1916, 4294901760
        %v1918 = vsub.f32 %v1916, %v1917
        %v1919 = vand.u32 %v1918, 4294901760
        %1920 = vmatmul.f32.gmra.mxu0 %v1919
        %v1921 = vpop.f32.mrf.mxu0
        %v1922 = vadd.f32 %v1889, %v1921
        %1923 = vdwg.mxu0
        %1924 = vmatpush.msra.mxu0 0.0
        %1925 = vmatpush.msra.mxu0 0.0
        %1926 = vmatpush.msra.mxu0 0.0
        %1927 = vmatpush.msra.mxu0 0.0
        %1928 = vmatpush.msra.mxu0 0.0
        %1929 = vmatpush.msra.mxu0 0.0
        %1930 = vmatpush.msra.mxu0 0.0
        %1931 = vmatpush.msra.mxu0 0.0
        %v1932 = vand.u32 %v509, 4294901760
        %v1933 = vsub.f32 %v509, %v1932
        %v1934 = vand.u32 %v1933, 4294901760
        %v1935 = vsub.f32 %v1933, %v1934
        %v1936 = vand.u32 %v1935, 4294901760
        %1937 = vmatpush.msra.mxu0 %v1936
        %v1938 = vand.u32 %v505, 4294901760
        %v1939 = vsub.f32 %v505, %v1938
        %v1940 = vand.u32 %v1939, 4294901760
        %v1941 = vsub.f32 %v1939, %v1940
        %v1942 = vand.u32 %v1941, 4294901760
        %1943 = vmatpush.msra.mxu0 %v1942
        %v1944 = vand.u32 %v501, 4294901760
        %v1945 = vsub.f32 %v501, %v1944
        %v1946 = vand.u32 %v1945, 4294901760
        %v1947 = vsub.f32 %v1945, %v1946
        %v1948 = vand.u32 %v1947, 4294901760
        %1949 = vmatpush.msra.mxu0 %v1948
        %v1950 = vand.u32 %v497, 4294901760
        %v1951 = vsub.f32 %v497, %v1950
        %v1952 = vand.u32 %v1951, 4294901760
        %v1953 = vsub.f32 %v1951, %v1952
        %v1954 = vand.u32 %v1953, 4294901760
        %1955 = vmatpush.msra.mxu0 %v1954
        %v1956 = vand.u32 %v493, 4294901760
        %v1957 = vsub.f32 %v493, %v1956
        %v1958 = vand.u32 %v1957, 4294901760
        %v1959 = vsub.f32 %v1957, %v1958
        %v1960 = vand.u32 %v1959, 4294901760
        %1961 = vmatpush.msra.mxu0 %v1960
        %v1962 = vand.u32 %v489, 4294901760
        %v1963 = vsub.f32 %v489, %v1962
        %v1964 = vand.u32 %v1963, 4294901760
        %v1965 = vsub.f32 %v1963, %v1964
        %v1966 = vand.u32 %v1965, 4294901760
        %1967 = vmatpush.msra.mxu0 %v1966
        %v1968 = vand.u32 %v485, 4294901760
        %v1969 = vsub.f32 %v485, %v1968
        %v1970 = vand.u32 %v1969, 4294901760
        %v1971 = vsub.f32 %v1969, %v1970
        %v1972 = vand.u32 %v1971, 4294901760
        %1973 = vmatpush.msra.mxu0 %v1972
        %v1974 = vand.u32 %v481, 4294901760
        %v1975 = vsub.f32 %v481, %v1974
        %v1976 = vand.u32 %v1975, 4294901760
        %v1977 = vsub.f32 %v1975, %v1976
        %v1978 = vand.u32 %v1977, 4294901760
        %1979 = vmatpush.msra.mxu0 %v1978
        %v1980 = vand.u32 %v525, 4294901760
        %1981 = vmatmul.f32.gmra.mxu0 %v1980
        %v1982 = vpop.f32.mrf.mxu0
        %v1983 = vadd.f32 %v1922, %v1982
        %1984 = vdwg.mxu0
        %1985 = vmatpush.msra.mxu0 0.0
        %1986 = vmatpush.msra.mxu0 0.0
        %1987 = vmatpush.msra.mxu0 0.0
        %1988 = vmatpush.msra.mxu0 0.0
        %1989 = vmatpush.msra.mxu0 0.0
        %1990 = vmatpush.msra.mxu0 0.0
        %1991 = vmatpush.msra.mxu0 0.0
        %1992 = vmatpush.msra.mxu0 0.0
        %v1993 = vand.u32 %v509, 4294901760
        %v1994 = vsub.f32 %v509, %v1993
        %1995 = vmatpush.msra.mxu0 %v1994
        %v1996 = vand.u32 %v505, 4294901760
        %v1997 = vsub.f32 %v505, %v1996
        %1998 = vmatpush.msra.mxu0 %v1997
        %v1999 = vand.u32 %v501, 4294901760
        %v2000 = vsub.f32 %v501, %v1999
        %2001 = vmatpush.msra.mxu0 %v2000
        %v2002 = vand.u32 %v497, 4294901760
        %v2003 = vsub.f32 %v497, %v2002
        %2004 = vmatpush.msra.mxu0 %v2003
        %v2005 = vand.u32 %v493, 4294901760
        %v2006 = vsub.f32 %v493, %v2005
        %2007 = vmatpush.msra.mxu0 %v2006
        %v2008 = vand.u32 %v489, 4294901760
        %v2009 = vsub.f32 %v489, %v2008
        %2010 = vmatpush.msra.mxu0 %v2009
        %v2011 = vand.u32 %v485, 4294901760
        %v2012 = vsub.f32 %v485, %v2011
        %2013 = vmatpush.msra.mxu0 %v2012
        %v2014 = vand.u32 %v481, 4294901760
        %v2015 = vsub.f32 %v481, %v2014
        %2016 = vmatpush.msra.mxu0 %v2015
        %v2017 = vand.u32 %v525, 4294901760
        %v2018 = vsub.f32 %v525, %v2017
        %2019 = vmatmul.f32.gmra.mxu0 %v2018
        %v2020 = vpop.f32.mrf.mxu0
        %v2021 = vadd.f32 %v1983, %v2020
        %2022 = vdwg.mxu0
        %2023 = vmatpush.msra.mxu0 0.0
        %2024 = vmatpush.msra.mxu0 0.0
        %2025 = vmatpush.msra.mxu0 0.0
        %2026 = vmatpush.msra.mxu0 0.0
        %2027 = vmatpush.msra.mxu0 0.0
        %2028 = vmatpush.msra.mxu0 0.0
        %2029 = vmatpush.msra.mxu0 0.0
        %2030 = vmatpush.msra.mxu0 0.0
        %v2031 = vand.u32 %v509, 4294901760
        %2032 = vmatpush.msra.mxu0 %v2031
        %v2033 = vand.u32 %v505, 4294901760
        %2034 = vmatpush.msra.mxu0 %v2033
        %v2035 = vand.u32 %v501, 4294901760
        %2036 = vmatpush.msra.mxu0 %v2035
        %v2037 = vand.u32 %v497, 4294901760
        %2038 = vmatpush.msra.mxu0 %v2037
        %v2039 = vand.u32 %v493, 4294901760
        %2040 = vmatpush.msra.mxu0 %v2039
        %v2041 = vand.u32 %v489, 4294901760
        %2042 = vmatpush.msra.mxu0 %v2041
        %v2043 = vand.u32 %v485, 4294901760
        %2044 = vmatpush.msra.mxu0 %v2043
        %v2045 = vand.u32 %v481, 4294901760
        %2046 = vmatpush.msra.mxu0 %v2045
        %v2047 = vand.u32 %v525, 4294901760
        %v2048 = vsub.f32 %v525, %v2047
        %v2049 = vand.u32 %v2048, 4294901760
        %2050 = vmatmul.f32.gmra.mxu0 %v2049
        %v2051 = vpop.f32.mrf.mxu0
        %v2052 = vadd.f32 %v2021, %v2051
        %2053 = vdwg.mxu0
        %2054 = vmatpush.msra.mxu0 0.0
        %2055 = vmatpush.msra.mxu0 0.0
        %2056 = vmatpush.msra.mxu0 0.0
        %2057 = vmatpush.msra.mxu0 0.0
        %2058 = vmatpush.msra.mxu0 0.0
        %2059 = vmatpush.msra.mxu0 0.0
        %2060 = vmatpush.msra.mxu0 0.0
        %2061 = vmatpush.msra.mxu0 0.0
        %v2062 = vand.u32 %v509, 4294901760
        %v2063 = vsub.f32 %v509, %v2062
        %v2064 = vand.u32 %v2063, 4294901760
        %2065 = vmatpush.msra.mxu0 %v2064
        %v2066 = vand.u32 %v505, 4294901760
        %v2067 = vsub.f32 %v505, %v2066
        %v2068 = vand.u32 %v2067, 4294901760
        %2069 = vmatpush.msra.mxu0 %v2068
        %v2070 = vand.u32 %v501, 4294901760
        %v2071 = vsub.f32 %v501, %v2070
        %v2072 = vand.u32 %v2071, 4294901760
        %2073 = vmatpush.msra.mxu0 %v2072
        %v2074 = vand.u32 %v497, 4294901760
        %v2075 = vsub.f32 %v497, %v2074
        %v2076 = vand.u32 %v2075, 4294901760
        %2077 = vmatpush.msra.mxu0 %v2076
        %v2078 = vand.u32 %v493, 4294901760
        %v2079 = vsub.f32 %v493, %v2078
        %v2080 = vand.u32 %v2079, 4294901760
        %2081 = vmatpush.msra.mxu0 %v2080
        %v2082 = vand.u32 %v489, 4294901760
        %v2083 = vsub.f32 %v489, %v2082
        %v2084 = vand.u32 %v2083, 4294901760
        %2085 = vmatpush.msra.mxu0 %v2084
        %v2086 = vand.u32 %v485, 4294901760
        %v2087 = vsub.f32 %v485, %v2086
        %v2088 = vand.u32 %v2087, 4294901760
        %2089 = vmatpush.msra.mxu0 %v2088
        %v2090 = vand.u32 %v481, 4294901760
        %v2091 = vsub.f32 %v481, %v2090
        %v2092 = vand.u32 %v2091, 4294901760
        %2093 = vmatpush.msra.mxu0 %v2092
        %v2094 = vand.u32 %v525, 4294901760
        %2095 = vmatmul.f32.gmra.mxu0 %v2094
        %v2096 = vpop.f32.mrf.mxu0
        %v2097 = vadd.f32 %v2052, %v2096
        %2098 = vdwg.mxu0
        %2099 = vmatpush.msra.mxu0 0.0
        %2100 = vmatpush.msra.mxu0 0.0
        %2101 = vmatpush.msra.mxu0 0.0
        %2102 = vmatpush.msra.mxu0 0.0
        %2103 = vmatpush.msra.mxu0 0.0
        %2104 = vmatpush.msra.mxu0 0.0
        %2105 = vmatpush.msra.mxu0 0.0
        %2106 = vmatpush.msra.mxu0 0.0
        %v2107 = vand.u32 %v509, 4294901760
        %2108 = vmatpush.msra.mxu0 %v2107
        %v2109 = vand.u32 %v505, 4294901760
        %2110 = vmatpush.msra.mxu0 %v2109
        %v2111 = vand.u32 %v501, 4294901760
        %2112 = vmatpush.msra.mxu0 %v2111
        %v2113 = vand.u32 %v497, 4294901760
        %2114 = vmatpush.msra.mxu0 %v2113
        %v2115 = vand.u32 %v493, 4294901760
        %2116 = vmatpush.msra.mxu0 %v2115
        %v2117 = vand.u32 %v489, 4294901760
        %2118 = vmatpush.msra.mxu0 %v2117
        %v2119 = vand.u32 %v485, 4294901760
        %2120 = vmatpush.msra.mxu0 %v2119
        %v2121 = vand.u32 %v481, 4294901760
        %2122 = vmatpush.msra.mxu0 %v2121
        %v2123 = vand.u32 %v525, 4294901760
        %2124 = vmatmul.f32.gmra.mxu0 %v2123
        %v2125 = vpop.f32.mrf.mxu0
        %v2126 = vadd.f32 %v2097, %v2125
        %2127 = vdwg.mxu0
        %v2128 = vand.u32 %v286, 4294901760
        %2129 = vmatpush.msra.mxu0 %v2128
        %v2130 = vand.u32 %v282, 4294901760
        %2131 = vmatpush.msra.mxu0 %v2130
        %v2132 = vand.u32 %v278, 4294901760
        %2133 = vmatpush.msra.mxu0 %v2132
        %v2134 = vand.u32 %v274, 4294901760
        %2135 = vmatpush.msra.mxu0 %v2134
        %v2136 = vand.u32 %v270, 4294901760
        %2137 = vmatpush.msra.mxu0 %v2136
        %v2138 = vand.u32 %v266, 4294901760
        %2139 = vmatpush.msra.mxu0 %v2138
        %v2140 = vand.u32 %v262, 4294901760
        %2141 = vmatpush.msra.mxu0 %v2140
        %v2142 = vand.u32 %v258, 4294901760
        %2143 = vmatpush.msra.mxu0 %v2142
        %v2144 = vand.u32 %v254, 4294901760
        %2145 = vmatpush.msra.mxu0 %v2144
        %v2146 = vand.u32 %v250, 4294901760
        %2147 = vmatpush.msra.mxu0 %v2146
        %v2148 = vand.u32 %v246, 4294901760
        %2149 = vmatpush.msra.mxu0 %v2148
        %v2150 = vand.u32 %v242, 4294901760
        %2151 = vmatpush.msra.mxu0 %v2150
        %v2152 = vand.u32 %v238, 4294901760
        %2153 = vmatpush.msra.mxu0 %v2152
        %v2154 = vand.u32 %v234, 4294901760
        %2155 = vmatpush.msra.mxu0 %v2154
        %v2156 = vand.u32 %v230, 4294901760
        %2157 = vmatpush.msra.mxu0 %v2156
        %v2158 = vand.u32 %v226, 4294901760
        %2159 = vmatpush.msra.mxu0 %v2158
        %v2160 = vand.u32 %v220, 4294901760
        %v2161 = vsub.f32 %v220, %v2160
        %v2162 = vand.u32 %v2161, 4294901760
        %v2163 = vsub.f32 %v2161, %v2162
        %v2164 = vand.u32 %v2163, 4294901760
        %2165 = vmatmul.f32.gmra.mxu0 %v2164
        %v2166 = vpop.f32.mrf.mxu0
        %v2167 = vadd.f32 %v516, %v2166
        %2168 = vdwg.mxu0
        %v2169 = vand.u32 %v286, 4294901760
        %v2170 = vsub.f32 %v286, %v2169
        %v2171 = vand.u32 %v2170, 4294901760
        %v2172 = vsub.f32 %v2170, %v2171
        %v2173 = vand.u32 %v2172, 4294901760
        %2174 = vmatpush.msra.mxu0 %v2173
        %v2175 = vand.u32 %v282, 4294901760
        %v2176 = vsub.f32 %v282, %v2175
        %v2177 = vand.u32 %v2176, 4294901760
        %v2178 = vsub.f32 %v2176, %v2177
        %v2179 = vand.u32 %v2178, 4294901760
        %2180 = vmatpush.msra.mxu0 %v2179
        %v2181 = vand.u32 %v278, 4294901760
        %v2182 = vsub.f32 %v278, %v2181
        %v2183 = vand.u32 %v2182, 4294901760
        %v2184 = vsub.f32 %v2182, %v2183
        %v2185 = vand.u32 %v2184, 4294901760
        %2186 = vmatpush.msra.mxu0 %v2185
        %v2187 = vand.u32 %v274, 4294901760
        %v2188 = vsub.f32 %v274, %v2187
        %v2189 = vand.u32 %v2188, 4294901760
        %v2190 = vsub.f32 %v2188, %v2189
        %v2191 = vand.u32 %v2190, 4294901760
        %2192 = vmatpush.msra.mxu0 %v2191
        %v2193 = vand.u32 %v270, 4294901760
        %v2194 = vsub.f32 %v270, %v2193
        %v2195 = vand.u32 %v2194, 4294901760
        %v2196 = vsub.f32 %v2194, %v2195
        %v2197 = vand.u32 %v2196, 4294901760
        %2198 = vmatpush.msra.mxu0 %v2197
        %v2199 = vand.u32 %v266, 4294901760
        %v2200 = vsub.f32 %v266, %v2199
        %v2201 = vand.u32 %v2200, 4294901760
        %v2202 = vsub.f32 %v2200, %v2201
        %v2203 = vand.u32 %v2202, 4294901760
        %2204 = vmatpush.msra.mxu0 %v2203
        %v2205 = vand.u32 %v262, 4294901760
        %v2206 = vsub.f32 %v262, %v2205
        %v2207 = vand.u32 %v2206, 4294901760
        %v2208 = vsub.f32 %v2206, %v2207
        %v2209 = vand.u32 %v2208, 4294901760
        %2210 = vmatpush.msra.mxu0 %v2209
        %v2211 = vand.u32 %v258, 4294901760
        %v2212 = vsub.f32 %v258, %v2211
        %v2213 = vand.u32 %v2212, 4294901760
        %v2214 = vsub.f32 %v2212, %v2213
        %v2215 = vand.u32 %v2214, 4294901760
        %2216 = vmatpush.msra.mxu0 %v2215
        %v2217 = vand.u32 %v254, 4294901760
        %v2218 = vsub.f32 %v254, %v2217
        %v2219 = vand.u32 %v2218, 4294901760
        %v2220 = vsub.f32 %v2218, %v2219
        %v2221 = vand.u32 %v2220, 4294901760
        %2222 = vmatpush.msra.mxu0 %v2221
        %v2223 = vand.u32 %v250, 4294901760
        %v2224 = vsub.f32 %v250, %v2223
        %v2225 = vand.u32 %v2224, 4294901760
        %v2226 = vsub.f32 %v2224, %v2225
        %v2227 = vand.u32 %v2226, 4294901760
        %2228 = vmatpush.msra.mxu0 %v2227
        %v2229 = vand.u32 %v246, 4294901760
        %v2230 = vsub.f32 %v246, %v2229
        %v2231 = vand.u32 %v2230, 4294901760
        %v2232 = vsub.f32 %v2230, %v2231
        %v2233 = vand.u32 %v2232, 4294901760
        %2234 = vmatpush.msra.mxu0 %v2233
        %v2235 = vand.u32 %v242, 4294901760
        %v2236 = vsub.f32 %v242, %v2235
        %v2237 = vand.u32 %v2236, 4294901760
        %v2238 = vsub.f32 %v2236, %v2237
        %v2239 = vand.u32 %v2238, 4294901760
        %2240 = vmatpush.msra.mxu0 %v2239
        %v2241 = vand.u32 %v238, 4294901760
        %v2242 = vsub.f32 %v238, %v2241
        %v2243 = vand.u32 %v2242, 4294901760
        %v2244 = vsub.f32 %v2242, %v2243
        %v2245 = vand.u32 %v2244, 4294901760
        %2246 = vmatpush.msra.mxu0 %v2245
        %v2247 = vand.u32 %v234, 4294901760
        %v2248 = vsub.f32 %v234, %v2247
        %v2249 = vand.u32 %v2248, 4294901760
        %v2250 = vsub.f32 %v2248, %v2249
        %v2251 = vand.u32 %v2250, 4294901760
        %2252 = vmatpush.msra.mxu0 %v2251
        %v2253 = vand.u32 %v230, 4294901760
        %v2254 = vsub.f32 %v230, %v2253
        %v2255 = vand.u32 %v2254, 4294901760
        %v2256 = vsub.f32 %v2254, %v2255
        %v2257 = vand.u32 %v2256, 4294901760
        %2258 = vmatpush.msra.mxu0 %v2257
        %v2259 = vand.u32 %v226, 4294901760
        %v2260 = vsub.f32 %v226, %v2259
        %v2261 = vand.u32 %v2260, 4294901760
        %v2262 = vsub.f32 %v2260, %v2261
        %v2263 = vand.u32 %v2262, 4294901760
        %2264 = vmatpush.msra.mxu0 %v2263
        %v2265 = vand.u32 %v220, 4294901760
        %2266 = vmatmul.f32.gmra.mxu0 %v2265
        %v2267 = vpop.f32.mrf.mxu0
        %v2268 = vadd.f32 %v2167, %v2267
        %2269 = vdwg.mxu0
        %v2270 = vand.u32 %v286, 4294901760
        %v2271 = vsub.f32 %v286, %v2270
        %2272 = vmatpush.msra.mxu0 %v2271
        %v2273 = vand.u32 %v282, 4294901760
        %v2274 = vsub.f32 %v282, %v2273
        %2275 = vmatpush.msra.mxu0 %v2274
        %v2276 = vand.u32 %v278, 4294901760
        %v2277 = vsub.f32 %v278, %v2276
        %2278 = vmatpush.msra.mxu0 %v2277
        %v2279 = vand.u32 %v274, 4294901760
        %v2280 = vsub.f32 %v274, %v2279
        %2281 = vmatpush.msra.mxu0 %v2280
        %v2282 = vand.u32 %v270, 4294901760
        %v2283 = vsub.f32 %v270, %v2282
        %2284 = vmatpush.msra.mxu0 %v2283
        %v2285 = vand.u32 %v266, 4294901760
        %v2286 = vsub.f32 %v266, %v2285
        %2287 = vmatpush.msra.mxu0 %v2286
        %v2288 = vand.u32 %v262, 4294901760
        %v2289 = vsub.f32 %v262, %v2288
        %2290 = vmatpush.msra.mxu0 %v2289
        %v2291 = vand.u32 %v258, 4294901760
        %v2292 = vsub.f32 %v258, %v2291
        %2293 = vmatpush.msra.mxu0 %v2292
        %v2294 = vand.u32 %v254, 4294901760
        %v2295 = vsub.f32 %v254, %v2294
        %2296 = vmatpush.msra.mxu0 %v2295
        %v2297 = vand.u32 %v250, 4294901760
        %v2298 = vsub.f32 %v250, %v2297
        %2299 = vmatpush.msra.mxu0 %v2298
        %v2300 = vand.u32 %v246, 4294901760
        %v2301 = vsub.f32 %v246, %v2300
        %2302 = vmatpush.msra.mxu0 %v2301
        %v2303 = vand.u32 %v242, 4294901760
        %v2304 = vsub.f32 %v242, %v2303
        %2305 = vmatpush.msra.mxu0 %v2304
        %v2306 = vand.u32 %v238, 4294901760
        %v2307 = vsub.f32 %v238, %v2306
        %2308 = vmatpush.msra.mxu0 %v2307
        %v2309 = vand.u32 %v234, 4294901760
        %v2310 = vsub.f32 %v234, %v2309
        %2311 = vmatpush.msra.mxu0 %v2310
        %v2312 = vand.u32 %v230, 4294901760
        %v2313 = vsub.f32 %v230, %v2312
        %2314 = vmatpush.msra.mxu0 %v2313
        %v2315 = vand.u32 %v226, 4294901760
        %v2316 = vsub.f32 %v226, %v2315
        %2317 = vmatpush.msra.mxu0 %v2316
        %v2318 = vand.u32 %v220, 4294901760
        %v2319 = vsub.f32 %v220, %v2318
        %2320 = vmatmul.f32.gmra.mxu0 %v2319
        %v2321 = vpop.f32.mrf.mxu0
        %v2322 = vadd.f32 %v2268, %v2321
        %2323 = vdwg.mxu0
        %v2324 = vand.u32 %v286, 4294901760
        %2325 = vmatpush.msra.mxu0 %v2324
        %v2326 = vand.u32 %v282, 4294901760
        %2327 = vmatpush.msra.mxu0 %v2326
        %v2328 = vand.u32 %v278, 4294901760
        %2329 = vmatpush.msra.mxu0 %v2328
        %v2330 = vand.u32 %v274, 4294901760
        %2331 = vmatpush.msra.mxu0 %v2330
        %v2332 = vand.u32 %v270, 4294901760
        %2333 = vmatpush.msra.mxu0 %v2332
        %v2334 = vand.u32 %v266, 4294901760
        %2335 = vmatpush.msra.mxu0 %v2334
        %v2336 = vand.u32 %v262, 4294901760
        %2337 = vmatpush.msra.mxu0 %v2336
        %v2338 = vand.u32 %v258, 4294901760
        %2339 = vmatpush.msra.mxu0 %v2338
        %v2340 = vand.u32 %v254, 4294901760
        %2341 = vmatpush.msra.mxu0 %v2340
        %v2342 = vand.u32 %v250, 4294901760
        %2343 = vmatpush.msra.mxu0 %v2342
        %v2344 = vand.u32 %v246, 4294901760
        %2345 = vmatpush.msra.mxu0 %v2344
        %v2346 = vand.u32 %v242, 4294901760
        %2347 = vmatpush.msra.mxu0 %v2346
        %v2348 = vand.u32 %v238, 4294901760
        %2349 = vmatpush.msra.mxu0 %v2348
        %v2350 = vand.u32 %v234, 4294901760
        %2351 = vmatpush.msra.mxu0 %v2350
        %v2352 = vand.u32 %v230, 4294901760
        %2353 = vmatpush.msra.mxu0 %v2352
        %v2354 = vand.u32 %v226, 4294901760
        %2355 = vmatpush.msra.mxu0 %v2354
        %v2356 = vand.u32 %v220, 4294901760
        %v2357 = vsub.f32 %v220, %v2356
        %v2358 = vand.u32 %v2357, 4294901760
        %2359 = vmatmul.f32.gmra.mxu0 %v2358
        %v2360 = vpop.f32.mrf.mxu0
        %v2361 = vadd.f32 %v2322, %v2360
        %2362 = vdwg.mxu0
        %v2363 = vand.u32 %v286, 4294901760
        %v2364 = vsub.f32 %v286, %v2363
        %v2365 = vand.u32 %v2364, 4294901760
        %2366 = vmatpush.msra.mxu0 %v2365
        %v2367 = vand.u32 %v282, 4294901760
        %v2368 = vsub.f32 %v282, %v2367
        %v2369 = vand.u32 %v2368, 4294901760
        %2370 = vmatpush.msra.mxu0 %v2369
        %v2371 = vand.u32 %v278, 4294901760
        %v2372 = vsub.f32 %v278, %v2371
        %v2373 = vand.u32 %v2372, 4294901760
        %2374 = vmatpush.msra.mxu0 %v2373
        %v2375 = vand.u32 %v274, 4294901760
        %v2376 = vsub.f32 %v274, %v2375
        %v2377 = vand.u32 %v2376, 4294901760
        %2378 = vmatpush.msra.mxu0 %v2377
        %v2379 = vand.u32 %v270, 4294901760
        %v2380 = vsub.f32 %v270, %v2379
        %v2381 = vand.u32 %v2380, 4294901760
        %2382 = vmatpush.msra.mxu0 %v2381
        %v2383 = vand.u32 %v266, 4294901760
        %v2384 = vsub.f32 %v266, %v2383
        %v2385 = vand.u32 %v2384, 4294901760
        %2386 = vmatpush.msra.mxu0 %v2385
        %v2387 = vand.u32 %v262, 4294901760
        %v2388 = vsub.f32 %v262, %v2387
        %v2389 = vand.u32 %v2388, 4294901760
        %2390 = vmatpush.msra.mxu0 %v2389
        %v2391 = vand.u32 %v258, 4294901760
        %v2392 = vsub.f32 %v258, %v2391
        %v2393 = vand.u32 %v2392, 4294901760
        %2394 = vmatpush.msra.mxu0 %v2393
        %v2395 = vand.u32 %v254, 4294901760
        %v2396 = vsub.f32 %v254, %v2395
        %v2397 = vand.u32 %v2396, 4294901760
        %2398 = vmatpush.msra.mxu0 %v2397
        %v2399 = vand.u32 %v250, 4294901760
        %v2400 = vsub.f32 %v250, %v2399
        %v2401 = vand.u32 %v2400, 4294901760
        %2402 = vmatpush.msra.mxu0 %v2401
        %v2403 = vand.u32 %v246, 4294901760
        %v2404 = vsub.f32 %v246, %v2403
        %v2405 = vand.u32 %v2404, 4294901760
        %2406 = vmatpush.msra.mxu0 %v2405
        %v2407 = vand.u32 %v242, 4294901760
        %v2408 = vsub.f32 %v242, %v2407
        %v2409 = vand.u32 %v2408, 4294901760
        %2410 = vmatpush.msra.mxu0 %v2409
        %v2411 = vand.u32 %v238, 4294901760
        %v2412 = vsub.f32 %v238, %v2411
        %v2413 = vand.u32 %v2412, 4294901760
        %2414 = vmatpush.msra.mxu0 %v2413
        %v2415 = vand.u32 %v234, 4294901760
        %v2416 = vsub.f32 %v234, %v2415
        %v2417 = vand.u32 %v2416, 4294901760
        %2418 = vmatpush.msra.mxu0 %v2417
        %v2419 = vand.u32 %v230, 4294901760
        %v2420 = vsub.f32 %v230, %v2419
        %v2421 = vand.u32 %v2420, 4294901760
        %2422 = vmatpush.msra.mxu0 %v2421
        %v2423 = vand.u32 %v226, 4294901760
        %v2424 = vsub.f32 %v226, %v2423
        %v2425 = vand.u32 %v2424, 4294901760
        %2426 = vmatpush.msra.mxu0 %v2425
        %v2427 = vand.u32 %v220, 4294901760
        %2428 = vmatmul.f32.gmra.mxu0 %v2427
        %v2429 = vpop.f32.mrf.mxu0
        %v2430 = vadd.f32 %v2361, %v2429
        %2431 = vdwg.mxu0
        %v2432 = vand.u32 %v286, 4294901760
        %2433 = vmatpush.msra.mxu0 %v2432
        %v2434 = vand.u32 %v282, 4294901760
        %2435 = vmatpush.msra.mxu0 %v2434
        %v2436 = vand.u32 %v278, 4294901760
        %2437 = vmatpush.msra.mxu0 %v2436
        %v2438 = vand.u32 %v274, 4294901760
        %2439 = vmatpush.msra.mxu0 %v2438
        %v2440 = vand.u32 %v270, 4294901760
        %2441 = vmatpush.msra.mxu0 %v2440
        %v2442 = vand.u32 %v266, 4294901760
        %2443 = vmatpush.msra.mxu0 %v2442
        %v2444 = vand.u32 %v262, 4294901760
        %2445 = vmatpush.msra.mxu0 %v2444
        %v2446 = vand.u32 %v258, 4294901760
        %2447 = vmatpush.msra.mxu0 %v2446
        %v2448 = vand.u32 %v254, 4294901760
        %2449 = vmatpush.msra.mxu0 %v2448
        %v2450 = vand.u32 %v250, 4294901760
        %2451 = vmatpush.msra.mxu0 %v2450
        %v2452 = vand.u32 %v246, 4294901760
        %2453 = vmatpush.msra.mxu0 %v2452
        %v2454 = vand.u32 %v242, 4294901760
        %2455 = vmatpush.msra.mxu0 %v2454
        %v2456 = vand.u32 %v238, 4294901760
        %2457 = vmatpush.msra.mxu0 %v2456
        %v2458 = vand.u32 %v234, 4294901760
        %2459 = vmatpush.msra.mxu0 %v2458
        %v2460 = vand.u32 %v230, 4294901760
        %2461 = vmatpush.msra.mxu0 %v2460
        %v2462 = vand.u32 %v226, 4294901760
        %2463 = vmatpush.msra.mxu0 %v2462
        %v2464 = vand.u32 %v220, 4294901760
        %2465 = vmatmul.f32.gmra.mxu0 %v2464
        %v2466 = vpop.f32.mrf.mxu0
        %v2467 = vadd.f32 %v2430, %v2466
        %2468 = vdwg.mxu0
        %v2469 = vand.u32 %v350, 4294901760
        %2470 = vmatpush.msra.mxu0 %v2469
        %v2471 = vand.u32 %v346, 4294901760
        %2472 = vmatpush.msra.mxu0 %v2471
        %v2473 = vand.u32 %v342, 4294901760
        %2474 = vmatpush.msra.mxu0 %v2473
        %v2475 = vand.u32 %v338, 4294901760
        %2476 = vmatpush.msra.mxu0 %v2475
        %v2477 = vand.u32 %v334, 4294901760
        %2478 = vmatpush.msra.mxu0 %v2477
        %v2479 = vand.u32 %v330, 4294901760
        %2480 = vmatpush.msra.mxu0 %v2479
        %v2481 = vand.u32 %v326, 4294901760
        %2482 = vmatpush.msra.mxu0 %v2481
        %v2483 = vand.u32 %v322, 4294901760
        %2484 = vmatpush.msra.mxu0 %v2483
        %v2485 = vand.u32 %v318, 4294901760
        %2486 = vmatpush.msra.mxu0 %v2485
        %v2487 = vand.u32 %v314, 4294901760
        %2488 = vmatpush.msra.mxu0 %v2487
        %v2489 = vand.u32 %v310, 4294901760
        %2490 = vmatpush.msra.mxu0 %v2489
        %v2491 = vand.u32 %v306, 4294901760
        %2492 = vmatpush.msra.mxu0 %v2491
        %v2493 = vand.u32 %v302, 4294901760
        %2494 = vmatpush.msra.mxu0 %v2493
        %v2495 = vand.u32 %v298, 4294901760
        %2496 = vmatpush.msra.mxu0 %v2495
        %v2497 = vand.u32 %v294, 4294901760
        %2498 = vmatpush.msra.mxu0 %v2497
        %v2499 = vand.u32 %v290, 4294901760
        %2500 = vmatpush.msra.mxu0 %v2499
        %v2501 = vand.u32 %v221, 4294901760
        %v2502 = vsub.f32 %v221, %v2501
        %v2503 = vand.u32 %v2502, 4294901760
        %v2504 = vsub.f32 %v2502, %v2503
        %v2505 = vand.u32 %v2504, 4294901760
        %2506 = vmatmul.f32.gmra.mxu0 %v2505
        %v2507 = vpop.f32.mrf.mxu0
        %v2508 = vadd.f32 %v2467, %v2507
        %2509 = vdwg.mxu0
        %v2510 = vand.u32 %v350, 4294901760
        %v2511 = vsub.f32 %v350, %v2510
        %v2512 = vand.u32 %v2511, 4294901760
        %v2513 = vsub.f32 %v2511, %v2512
        %v2514 = vand.u32 %v2513, 4294901760
        %2515 = vmatpush.msra.mxu0 %v2514
        %v2516 = vand.u32 %v346, 4294901760
        %v2517 = vsub.f32 %v346, %v2516
        %v2518 = vand.u32 %v2517, 4294901760
        %v2519 = vsub.f32 %v2517, %v2518
        %v2520 = vand.u32 %v2519, 4294901760
        %2521 = vmatpush.msra.mxu0 %v2520
        %v2522 = vand.u32 %v342, 4294901760
        %v2523 = vsub.f32 %v342, %v2522
        %v2524 = vand.u32 %v2523, 4294901760
        %v2525 = vsub.f32 %v2523, %v2524
        %v2526 = vand.u32 %v2525, 4294901760
        %2527 = vmatpush.msra.mxu0 %v2526
        %v2528 = vand.u32 %v338, 4294901760
        %v2529 = vsub.f32 %v338, %v2528
        %v2530 = vand.u32 %v2529, 4294901760
        %v2531 = vsub.f32 %v2529, %v2530
        %v2532 = vand.u32 %v2531, 4294901760
        %2533 = vmatpush.msra.mxu0 %v2532
        %v2534 = vand.u32 %v334, 4294901760
        %v2535 = vsub.f32 %v334, %v2534
        %v2536 = vand.u32 %v2535, 4294901760
        %v2537 = vsub.f32 %v2535, %v2536
        %v2538 = vand.u32 %v2537, 4294901760
        %2539 = vmatpush.msra.mxu0 %v2538
        %v2540 = vand.u32 %v330, 4294901760
        %v2541 = vsub.f32 %v330, %v2540
        %v2542 = vand.u32 %v2541, 4294901760
        %v2543 = vsub.f32 %v2541, %v2542
        %v2544 = vand.u32 %v2543, 4294901760
        %2545 = vmatpush.msra.mxu0 %v2544
        %v2546 = vand.u32 %v326, 4294901760
        %v2547 = vsub.f32 %v326, %v2546
        %v2548 = vand.u32 %v2547, 4294901760
        %v2549 = vsub.f32 %v2547, %v2548
        %v2550 = vand.u32 %v2549, 4294901760
        %2551 = vmatpush.msra.mxu0 %v2550
        %v2552 = vand.u32 %v322, 4294901760
        %v2553 = vsub.f32 %v322, %v2552
        %v2554 = vand.u32 %v2553, 4294901760
        %v2555 = vsub.f32 %v2553, %v2554
        %v2556 = vand.u32 %v2555, 4294901760
        %2557 = vmatpush.msra.mxu0 %v2556
        %v2558 = vand.u32 %v318, 4294901760
        %v2559 = vsub.f32 %v318, %v2558
        %v2560 = vand.u32 %v2559, 4294901760
        %v2561 = vsub.f32 %v2559, %v2560
        %v2562 = vand.u32 %v2561, 4294901760
        %2563 = vmatpush.msra.mxu0 %v2562
        %v2564 = vand.u32 %v314, 4294901760
        %v2565 = vsub.f32 %v314, %v2564
        %v2566 = vand.u32 %v2565, 4294901760
        %v2567 = vsub.f32 %v2565, %v2566
        %v2568 = vand.u32 %v2567, 4294901760
        %2569 = vmatpush.msra.mxu0 %v2568
        %v2570 = vand.u32 %v310, 4294901760
        %v2571 = vsub.f32 %v310, %v2570
        %v2572 = vand.u32 %v2571, 4294901760
        %v2573 = vsub.f32 %v2571, %v2572
        %v2574 = vand.u32 %v2573, 4294901760
        %2575 = vmatpush.msra.mxu0 %v2574
        %v2576 = vand.u32 %v306, 4294901760
        %v2577 = vsub.f32 %v306, %v2576
        %v2578 = vand.u32 %v2577, 4294901760
        %v2579 = vsub.f32 %v2577, %v2578
        %v2580 = vand.u32 %v2579, 4294901760
        %2581 = vmatpush.msra.mxu0 %v2580
        %v2582 = vand.u32 %v302, 4294901760
        %v2583 = vsub.f32 %v302, %v2582
        %v2584 = vand.u32 %v2583, 4294901760
        %v2585 = vsub.f32 %v2583, %v2584
        %v2586 = vand.u32 %v2585, 4294901760
        %2587 = vmatpush.msra.mxu0 %v2586
        %v2588 = vand.u32 %v298, 4294901760
        %v2589 = vsub.f32 %v298, %v2588
        %v2590 = vand.u32 %v2589, 4294901760
        %v2591 = vsub.f32 %v2589, %v2590
        %v2592 = vand.u32 %v2591, 4294901760
        %2593 = vmatpush.msra.mxu0 %v2592
        %v2594 = vand.u32 %v294, 4294901760
        %v2595 = vsub.f32 %v294, %v2594
        %v2596 = vand.u32 %v2595, 4294901760
        %v2597 = vsub.f32 %v2595, %v2596
        %v2598 = vand.u32 %v2597, 4294901760
        %2599 = vmatpush.msra.mxu0 %v2598
        %v2600 = vand.u32 %v290, 4294901760
        %v2601 = vsub.f32 %v290, %v2600
        %v2602 = vand.u32 %v2601, 4294901760
        %v2603 = vsub.f32 %v2601, %v2602
        %v2604 = vand.u32 %v2603, 4294901760
        %2605 = vmatpush.msra.mxu0 %v2604
        %v2606 = vand.u32 %v221, 4294901760
        %2607 = vmatmul.f32.gmra.mxu0 %v2606
        %v2608 = vpop.f32.mrf.mxu0
        %v2609 = vadd.f32 %v2508, %v2608
        %2610 = vdwg.mxu0
        %v2611 = vand.u32 %v350, 4294901760
        %v2612 = vsub.f32 %v350, %v2611
        %2613 = vmatpush.msra.mxu0 %v2612
        %v2614 = vand.u32 %v346, 4294901760
        %v2615 = vsub.f32 %v346, %v2614
        %2616 = vmatpush.msra.mxu0 %v2615
        %v2617 = vand.u32 %v342, 4294901760
        %v2618 = vsub.f32 %v342, %v2617
        %2619 = vmatpush.msra.mxu0 %v2618
        %v2620 = vand.u32 %v338, 4294901760
        %v2621 = vsub.f32 %v338, %v2620
        %2622 = vmatpush.msra.mxu0 %v2621
        %v2623 = vand.u32 %v334, 4294901760
        %v2624 = vsub.f32 %v334, %v2623
        %2625 = vmatpush.msra.mxu0 %v2624
        %v2626 = vand.u32 %v330, 4294901760
        %v2627 = vsub.f32 %v330, %v2626
        %2628 = vmatpush.msra.mxu0 %v2627
        %v2629 = vand.u32 %v326, 4294901760
        %v2630 = vsub.f32 %v326, %v2629
        %2631 = vmatpush.msra.mxu0 %v2630
        %v2632 = vand.u32 %v322, 4294901760
        %v2633 = vsub.f32 %v322, %v2632
        %2634 = vmatpush.msra.mxu0 %v2633
        %v2635 = vand.u32 %v318, 4294901760
        %v2636 = vsub.f32 %v318, %v2635
        %2637 = vmatpush.msra.mxu0 %v2636
        %v2638 = vand.u32 %v314, 4294901760
        %v2639 = vsub.f32 %v314, %v2638
        %2640 = vmatpush.msra.mxu0 %v2639
        %v2641 = vand.u32 %v310, 4294901760
        %v2642 = vsub.f32 %v310, %v2641
        %2643 = vmatpush.msra.mxu0 %v2642
        %v2644 = vand.u32 %v306, 4294901760
        %v2645 = vsub.f32 %v306, %v2644
        %2646 = vmatpush.msra.mxu0 %v2645
        %v2647 = vand.u32 %v302, 4294901760
        %v2648 = vsub.f32 %v302, %v2647
        %2649 = vmatpush.msra.mxu0 %v2648
        %v2650 = vand.u32 %v298, 4294901760
        %v2651 = vsub.f32 %v298, %v2650
        %2652 = vmatpush.msra.mxu0 %v2651
        %v2653 = vand.u32 %v294, 4294901760
        %v2654 = vsub.f32 %v294, %v2653
        %2655 = vmatpush.msra.mxu0 %v2654
        %v2656 = vand.u32 %v290, 4294901760
        %v2657 = vsub.f32 %v290, %v2656
        %2658 = vmatpush.msra.mxu0 %v2657
        %v2659 = vand.u32 %v221, 4294901760
        %v2660 = vsub.f32 %v221, %v2659
        %2661 = vmatmul.f32.gmra.mxu0 %v2660
        %v2662 = vpop.f32.mrf.mxu0
        %v2663 = vadd.f32 %v2609, %v2662
        %2664 = vdwg.mxu0
        %v2665 = vand.u32 %v350, 4294901760
        %2666 = vmatpush.msra.mxu0 %v2665
        %v2667 = vand.u32 %v346, 4294901760
        %2668 = vmatpush.msra.mxu0 %v2667
        %v2669 = vand.u32 %v342, 4294901760
        %2670 = vmatpush.msra.mxu0 %v2669
        %v2671 = vand.u32 %v338, 4294901760
        %2672 = vmatpush.msra.mxu0 %v2671
        %v2673 = vand.u32 %v334, 4294901760
        %2674 = vmatpush.msra.mxu0 %v2673
        %v2675 = vand.u32 %v330, 4294901760
        %2676 = vmatpush.msra.mxu0 %v2675
        %v2677 = vand.u32 %v326, 4294901760
        %2678 = vmatpush.msra.mxu0 %v2677
        %v2679 = vand.u32 %v322, 4294901760
        %2680 = vmatpush.msra.mxu0 %v2679
        %v2681 = vand.u32 %v318, 4294901760
        %2682 = vmatpush.msra.mxu0 %v2681
        %v2683 = vand.u32 %v314, 4294901760
        %2684 = vmatpush.msra.mxu0 %v2683
        %v2685 = vand.u32 %v310, 4294901760
        %2686 = vmatpush.msra.mxu0 %v2685
        %v2687 = vand.u32 %v306, 4294901760
        %2688 = vmatpush.msra.mxu0 %v2687
        %v2689 = vand.u32 %v302, 4294901760
        %2690 = vmatpush.msra.mxu0 %v2689
        %v2691 = vand.u32 %v298, 4294901760
        %2692 = vmatpush.msra.mxu0 %v2691
        %v2693 = vand.u32 %v294, 4294901760
        %2694 = vmatpush.msra.mxu0 %v2693
        %v2695 = vand.u32 %v290, 4294901760
        %2696 = vmatpush.msra.mxu0 %v2695
        %v2697 = vand.u32 %v221, 4294901760
        %v2698 = vsub.f32 %v221, %v2697
        %v2699 = vand.u32 %v2698, 4294901760
        %2700 = vmatmul.f32.gmra.mxu0 %v2699
        %v2701 = vpop.f32.mrf.mxu0
        %v2702 = vadd.f32 %v2663, %v2701
        %2703 = vdwg.mxu0
        %v2704 = vand.u32 %v350, 4294901760
        %v2705 = vsub.f32 %v350, %v2704
        %v2706 = vand.u32 %v2705, 4294901760
        %2707 = vmatpush.msra.mxu0 %v2706
        %v2708 = vand.u32 %v346, 4294901760
        %v2709 = vsub.f32 %v346, %v2708
        %v2710 = vand.u32 %v2709, 4294901760
        %2711 = vmatpush.msra.mxu0 %v2710
        %v2712 = vand.u32 %v342, 4294901760
        %v2713 = vsub.f32 %v342, %v2712
        %v2714 = vand.u32 %v2713, 4294901760
        %2715 = vmatpush.msra.mxu0 %v2714
        %v2716 = vand.u32 %v338, 4294901760
        %v2717 = vsub.f32 %v338, %v2716
        %v2718 = vand.u32 %v2717, 4294901760
        %2719 = vmatpush.msra.mxu0 %v2718
        %v2720 = vand.u32 %v334, 4294901760
        %v2721 = vsub.f32 %v334, %v2720
        %v2722 = vand.u32 %v2721, 4294901760
        %2723 = vmatpush.msra.mxu0 %v2722
        %v2724 = vand.u32 %v330, 4294901760
        %v2725 = vsub.f32 %v330, %v2724
        %v2726 = vand.u32 %v2725, 4294901760
        %2727 = vmatpush.msra.mxu0 %v2726
        %v2728 = vand.u32 %v326, 4294901760
        %v2729 = vsub.f32 %v326, %v2728
        %v2730 = vand.u32 %v2729, 4294901760
        %2731 = vmatpush.msra.mxu0 %v2730
        %v2732 = vand.u32 %v322, 4294901760
        %v2733 = vsub.f32 %v322, %v2732
        %v2734 = vand.u32 %v2733, 4294901760
        %2735 = vmatpush.msra.mxu0 %v2734
        %v2736 = vand.u32 %v318, 4294901760
        %v2737 = vsub.f32 %v318, %v2736
        %v2738 = vand.u32 %v2737, 4294901760
        %2739 = vmatpush.msra.mxu0 %v2738
        %v2740 = vand.u32 %v314, 4294901760
        %v2741 = vsub.f32 %v314, %v2740
        %v2742 = vand.u32 %v2741, 4294901760
        %2743 = vmatpush.msra.mxu0 %v2742
        %v2744 = vand.u32 %v310, 4294901760
        %v2745 = vsub.f32 %v310, %v2744
        %v2746 = vand.u32 %v2745, 4294901760
        %2747 = vmatpush.msra.mxu0 %v2746
        %v2748 = vand.u32 %v306, 4294901760
        %v2749 = vsub.f32 %v306, %v2748
        %v2750 = vand.u32 %v2749, 4294901760
        %2751 = vmatpush.msra.mxu0 %v2750
        %v2752 = vand.u32 %v302, 4294901760
        %v2753 = vsub.f32 %v302, %v2752
        %v2754 = vand.u32 %v2753, 4294901760
        %2755 = vmatpush.msra.mxu0 %v2754
        %v2756 = vand.u32 %v298, 4294901760
        %v2757 = vsub.f32 %v298, %v2756
        %v2758 = vand.u32 %v2757, 4294901760
        %2759 = vmatpush.msra.mxu0 %v2758
        %v2760 = vand.u32 %v294, 4294901760
        %v2761 = vsub.f32 %v294, %v2760
        %v2762 = vand.u32 %v2761, 4294901760
        %2763 = vmatpush.msra.mxu0 %v2762
        %v2764 = vand.u32 %v290, 4294901760
        %v2765 = vsub.f32 %v290, %v2764
        %v2766 = vand.u32 %v2765, 4294901760
        %2767 = vmatpush.msra.mxu0 %v2766
        %v2768 = vand.u32 %v221, 4294901760
        %2769 = vmatmul.f32.gmra.mxu0 %v2768
        %v2770 = vpop.f32.mrf.mxu0
        %v2771 = vadd.f32 %v2702, %v2770
        %2772 = vdwg.mxu0
        %v2773 = vand.u32 %v350, 4294901760
        %2774 = vmatpush.msra.mxu0 %v2773
        %v2775 = vand.u32 %v346, 4294901760
        %2776 = vmatpush.msra.mxu0 %v2775
        %v2777 = vand.u32 %v342, 4294901760
        %2778 = vmatpush.msra.mxu0 %v2777
        %v2779 = vand.u32 %v338, 4294901760
        %2780 = vmatpush.msra.mxu0 %v2779
        %v2781 = vand.u32 %v334, 4294901760
        %2782 = vmatpush.msra.mxu0 %v2781
        %v2783 = vand.u32 %v330, 4294901760
        %2784 = vmatpush.msra.mxu0 %v2783
        %v2785 = vand.u32 %v326, 4294901760
        %2786 = vmatpush.msra.mxu0 %v2785
        %v2787 = vand.u32 %v322, 4294901760
        %2788 = vmatpush.msra.mxu0 %v2787
        %v2789 = vand.u32 %v318, 4294901760
        %2790 = vmatpush.msra.mxu0 %v2789
        %v2791 = vand.u32 %v314, 4294901760
        %2792 = vmatpush.msra.mxu0 %v2791
        %v2793 = vand.u32 %v310, 4294901760
        %2794 = vmatpush.msra.mxu0 %v2793
        %v2795 = vand.u32 %v306, 4294901760
        %2796 = vmatpush.msra.mxu0 %v2795
        %v2797 = vand.u32 %v302, 4294901760
        %2798 = vmatpush.msra.mxu0 %v2797
        %v2799 = vand.u32 %v298, 4294901760
        %2800 = vmatpush.msra.mxu0 %v2799
        %v2801 = vand.u32 %v294, 4294901760
        %2802 = vmatpush.msra.mxu0 %v2801
        %v2803 = vand.u32 %v290, 4294901760
        %2804 = vmatpush.msra.mxu0 %v2803
        %v2805 = vand.u32 %v221, 4294901760
        %2806 = vmatmul.f32.gmra.mxu0 %v2805
        %v2807 = vpop.f32.mrf.mxu0
        %v2808 = vadd.f32 %v2771, %v2807
        %2809 = vdwg.mxu0
        %v2810 = vand.u32 %v414, 4294901760
        %2811 = vmatpush.msra.mxu0 %v2810
        %v2812 = vand.u32 %v410, 4294901760
        %2813 = vmatpush.msra.mxu0 %v2812
        %v2814 = vand.u32 %v406, 4294901760
        %2815 = vmatpush.msra.mxu0 %v2814
        %v2816 = vand.u32 %v402, 4294901760
        %2817 = vmatpush.msra.mxu0 %v2816
        %v2818 = vand.u32 %v398, 4294901760
        %2819 = vmatpush.msra.mxu0 %v2818
        %v2820 = vand.u32 %v394, 4294901760
        %2821 = vmatpush.msra.mxu0 %v2820
        %v2822 = vand.u32 %v390, 4294901760
        %2823 = vmatpush.msra.mxu0 %v2822
        %v2824 = vand.u32 %v386, 4294901760
        %2825 = vmatpush.msra.mxu0 %v2824
        %v2826 = vand.u32 %v382, 4294901760
        %2827 = vmatpush.msra.mxu0 %v2826
        %v2828 = vand.u32 %v378, 4294901760
        %2829 = vmatpush.msra.mxu0 %v2828
        %v2830 = vand.u32 %v374, 4294901760
        %2831 = vmatpush.msra.mxu0 %v2830
        %v2832 = vand.u32 %v370, 4294901760
        %2833 = vmatpush.msra.mxu0 %v2832
        %v2834 = vand.u32 %v366, 4294901760
        %2835 = vmatpush.msra.mxu0 %v2834
        %v2836 = vand.u32 %v362, 4294901760
        %2837 = vmatpush.msra.mxu0 %v2836
        %v2838 = vand.u32 %v358, 4294901760
        %2839 = vmatpush.msra.mxu0 %v2838
        %v2840 = vand.u32 %v354, 4294901760
        %2841 = vmatpush.msra.mxu0 %v2840
        %v2842 = vand.u32 %v222, 4294901760
        %v2843 = vsub.f32 %v222, %v2842
        %v2844 = vand.u32 %v2843, 4294901760
        %v2845 = vsub.f32 %v2843, %v2844
        %v2846 = vand.u32 %v2845, 4294901760
        %2847 = vmatmul.f32.gmra.mxu0 %v2846
        %v2848 = vpop.f32.mrf.mxu0
        %v2849 = vadd.f32 %v2808, %v2848
        %2850 = vdwg.mxu0
        %v2851 = vand.u32 %v414, 4294901760
        %v2852 = vsub.f32 %v414, %v2851
        %v2853 = vand.u32 %v2852, 4294901760
        %v2854 = vsub.f32 %v2852, %v2853
        %v2855 = vand.u32 %v2854, 4294901760
        %2856 = vmatpush.msra.mxu0 %v2855
        %v2857 = vand.u32 %v410, 4294901760
        %v2858 = vsub.f32 %v410, %v2857
        %v2859 = vand.u32 %v2858, 4294901760
        %v2860 = vsub.f32 %v2858, %v2859
        %v2861 = vand.u32 %v2860, 4294901760
        %2862 = vmatpush.msra.mxu0 %v2861
        %v2863 = vand.u32 %v406, 4294901760
        %v2864 = vsub.f32 %v406, %v2863
        %v2865 = vand.u32 %v2864, 4294901760
        %v2866 = vsub.f32 %v2864, %v2865
        %v2867 = vand.u32 %v2866, 4294901760
        %2868 = vmatpush.msra.mxu0 %v2867
        %v2869 = vand.u32 %v402, 4294901760
        %v2870 = vsub.f32 %v402, %v2869
        %v2871 = vand.u32 %v2870, 4294901760
        %v2872 = vsub.f32 %v2870, %v2871
        %v2873 = vand.u32 %v2872, 4294901760
        %2874 = vmatpush.msra.mxu0 %v2873
        %v2875 = vand.u32 %v398, 4294901760
        %v2876 = vsub.f32 %v398, %v2875
        %v2877 = vand.u32 %v2876, 4294901760
        %v2878 = vsub.f32 %v2876, %v2877
        %v2879 = vand.u32 %v2878, 4294901760
        %2880 = vmatpush.msra.mxu0 %v2879
        %v2881 = vand.u32 %v394, 4294901760
        %v2882 = vsub.f32 %v394, %v2881
        %v2883 = vand.u32 %v2882, 4294901760
        %v2884 = vsub.f32 %v2882, %v2883
        %v2885 = vand.u32 %v2884, 4294901760
        %2886 = vmatpush.msra.mxu0 %v2885
        %v2887 = vand.u32 %v390, 4294901760
        %v2888 = vsub.f32 %v390, %v2887
        %v2889 = vand.u32 %v2888, 4294901760
        %v2890 = vsub.f32 %v2888, %v2889
        %v2891 = vand.u32 %v2890, 4294901760
        %2892 = vmatpush.msra.mxu0 %v2891
        %v2893 = vand.u32 %v386, 4294901760
        %v2894 = vsub.f32 %v386, %v2893
        %v2895 = vand.u32 %v2894, 4294901760
        %v2896 = vsub.f32 %v2894, %v2895
        %v2897 = vand.u32 %v2896, 4294901760
        %2898 = vmatpush.msra.mxu0 %v2897
        %v2899 = vand.u32 %v382, 4294901760
        %v2900 = vsub.f32 %v382, %v2899
        %v2901 = vand.u32 %v2900, 4294901760
        %v2902 = vsub.f32 %v2900, %v2901
        %v2903 = vand.u32 %v2902, 4294901760
        %2904 = vmatpush.msra.mxu0 %v2903
        %v2905 = vand.u32 %v378, 4294901760
        %v2906 = vsub.f32 %v378, %v2905
        %v2907 = vand.u32 %v2906, 4294901760
        %v2908 = vsub.f32 %v2906, %v2907
        %v2909 = vand.u32 %v2908, 4294901760
        %2910 = vmatpush.msra.mxu0 %v2909
        %v2911 = vand.u32 %v374, 4294901760
        %v2912 = vsub.f32 %v374, %v2911
        %v2913 = vand.u32 %v2912, 4294901760
        %v2914 = vsub.f32 %v2912, %v2913
        %v2915 = vand.u32 %v2914, 4294901760
        %2916 = vmatpush.msra.mxu0 %v2915
        %v2917 = vand.u32 %v370, 4294901760
        %v2918 = vsub.f32 %v370, %v2917
        %v2919 = vand.u32 %v2918, 4294901760
        %v2920 = vsub.f32 %v2918, %v2919
        %v2921 = vand.u32 %v2920, 4294901760
        %2922 = vmatpush.msra.mxu0 %v2921
        %v2923 = vand.u32 %v366, 4294901760
        %v2924 = vsub.f32 %v366, %v2923
        %v2925 = vand.u32 %v2924, 4294901760
        %v2926 = vsub.f32 %v2924, %v2925
        %v2927 = vand.u32 %v2926, 4294901760
        %2928 = vmatpush.msra.mxu0 %v2927
        %v2929 = vand.u32 %v362, 4294901760
        %v2930 = vsub.f32 %v362, %v2929
        %v2931 = vand.u32 %v2930, 4294901760
        %v2932 = vsub.f32 %v2930, %v2931
        %v2933 = vand.u32 %v2932, 4294901760
        %2934 = vmatpush.msra.mxu0 %v2933
        %v2935 = vand.u32 %v358, 4294901760
        %v2936 = vsub.f32 %v358, %v2935
        %v2937 = vand.u32 %v2936, 4294901760
        %v2938 = vsub.f32 %v2936, %v2937
        %v2939 = vand.u32 %v2938, 4294901760
        %2940 = vmatpush.msra.mxu0 %v2939
        %v2941 = vand.u32 %v354, 4294901760
        %v2942 = vsub.f32 %v354, %v2941
        %v2943 = vand.u32 %v2942, 4294901760
        %v2944 = vsub.f32 %v2942, %v2943
        %v2945 = vand.u32 %v2944, 4294901760
        %2946 = vmatpush.msra.mxu0 %v2945
        %v2947 = vand.u32 %v222, 4294901760
        %2948 = vmatmul.f32.gmra.mxu0 %v2947
        %v2949 = vpop.f32.mrf.mxu0
        %v2950 = vadd.f32 %v2849, %v2949
        %2951 = vdwg.mxu0
        %v2952 = vand.u32 %v414, 4294901760
        %v2953 = vsub.f32 %v414, %v2952
        %2954 = vmatpush.msra.mxu0 %v2953
        %v2955 = vand.u32 %v410, 4294901760
        %v2956 = vsub.f32 %v410, %v2955
        %2957 = vmatpush.msra.mxu0 %v2956
        %v2958 = vand.u32 %v406, 4294901760
        %v2959 = vsub.f32 %v406, %v2958
        %2960 = vmatpush.msra.mxu0 %v2959
        %v2961 = vand.u32 %v402, 4294901760
        %v2962 = vsub.f32 %v402, %v2961
        %2963 = vmatpush.msra.mxu0 %v2962
        %v2964 = vand.u32 %v398, 4294901760
        %v2965 = vsub.f32 %v398, %v2964
        %2966 = vmatpush.msra.mxu0 %v2965
        %v2967 = vand.u32 %v394, 4294901760
        %v2968 = vsub.f32 %v394, %v2967
        %2969 = vmatpush.msra.mxu0 %v2968
        %v2970 = vand.u32 %v390, 4294901760
        %v2971 = vsub.f32 %v390, %v2970
        %2972 = vmatpush.msra.mxu0 %v2971
        %v2973 = vand.u32 %v386, 4294901760
        %v2974 = vsub.f32 %v386, %v2973
        %2975 = vmatpush.msra.mxu0 %v2974
        %v2976 = vand.u32 %v382, 4294901760
        %v2977 = vsub.f32 %v382, %v2976
        %2978 = vmatpush.msra.mxu0 %v2977
        %v2979 = vand.u32 %v378, 4294901760
        %v2980 = vsub.f32 %v378, %v2979
        %2981 = vmatpush.msra.mxu0 %v2980
        %v2982 = vand.u32 %v374, 4294901760
        %v2983 = vsub.f32 %v374, %v2982
        %2984 = vmatpush.msra.mxu0 %v2983
        %v2985 = vand.u32 %v370, 4294901760
        %v2986 = vsub.f32 %v370, %v2985
        %2987 = vmatpush.msra.mxu0 %v2986
        %v2988 = vand.u32 %v366, 4294901760
        %v2989 = vsub.f32 %v366, %v2988
        %2990 = vmatpush.msra.mxu0 %v2989
        %v2991 = vand.u32 %v362, 4294901760
        %v2992 = vsub.f32 %v362, %v2991
        %2993 = vmatpush.msra.mxu0 %v2992
        %v2994 = vand.u32 %v358, 4294901760
        %v2995 = vsub.f32 %v358, %v2994
        %2996 = vmatpush.msra.mxu0 %v2995
        %v2997 = vand.u32 %v354, 4294901760
        %v2998 = vsub.f32 %v354, %v2997
        %2999 = vmatpush.msra.mxu0 %v2998
        %v3000 = vand.u32 %v222, 4294901760
        %v3001 = vsub.f32 %v222, %v3000
        %3002 = vmatmul.f32.gmra.mxu0 %v3001
        %v3003 = vpop.f32.mrf.mxu0
        %v3004 = vadd.f32 %v2950, %v3003
        %3005 = vdwg.mxu0
        %v3006 = vand.u32 %v414, 4294901760
        %3007 = vmatpush.msra.mxu0 %v3006
        %v3008 = vand.u32 %v410, 4294901760
        %3009 = vmatpush.msra.mxu0 %v3008
        %v3010 = vand.u32 %v406, 4294901760
        %3011 = vmatpush.msra.mxu0 %v3010
        %v3012 = vand.u32 %v402, 4294901760
        %3013 = vmatpush.msra.mxu0 %v3012
        %v3014 = vand.u32 %v398, 4294901760
        %3015 = vmatpush.msra.mxu0 %v3014
        %v3016 = vand.u32 %v394, 4294901760
        %3017 = vmatpush.msra.mxu0 %v3016
        %v3018 = vand.u32 %v390, 4294901760
        %3019 = vmatpush.msra.mxu0 %v3018
        %v3020 = vand.u32 %v386, 4294901760
        %3021 = vmatpush.msra.mxu0 %v3020
        %v3022 = vand.u32 %v382, 4294901760
        %3023 = vmatpush.msra.mxu0 %v3022
        %v3024 = vand.u32 %v378, 4294901760
        %3025 = vmatpush.msra.mxu0 %v3024
        %v3026 = vand.u32 %v374, 4294901760
        %3027 = vmatpush.msra.mxu0 %v3026
        %v3028 = vand.u32 %v370, 4294901760
        %3029 = vmatpush.msra.mxu0 %v3028
        %v3030 = vand.u32 %v366, 4294901760
        %3031 = vmatpush.msra.mxu0 %v3030
        %v3032 = vand.u32 %v362, 4294901760
        %3033 = vmatpush.msra.mxu0 %v3032
        %v3034 = vand.u32 %v358, 4294901760
        %3035 = vmatpush.msra.mxu0 %v3034
        %v3036 = vand.u32 %v354, 4294901760
        %3037 = vmatpush.msra.mxu0 %v3036
        %v3038 = vand.u32 %v222, 4294901760
        %v3039 = vsub.f32 %v222, %v3038
        %v3040 = vand.u32 %v3039, 4294901760
        %3041 = vmatmul.f32.gmra.mxu0 %v3040
        %v3042 = vpop.f32.mrf.mxu0
        %v3043 = vadd.f32 %v3004, %v3042
        %3044 = vdwg.mxu0
        %v3045 = vand.u32 %v414, 4294901760
        %v3046 = vsub.f32 %v414, %v3045
        %v3047 = vand.u32 %v3046, 4294901760
        %3048 = vmatpush.msra.mxu0 %v3047
        %v3049 = vand.u32 %v410, 4294901760
        %v3050 = vsub.f32 %v410, %v3049
        %v3051 = vand.u32 %v3050, 4294901760
        %3052 = vmatpush.msra.mxu0 %v3051
        %v3053 = vand.u32 %v406, 4294901760
        %v3054 = vsub.f32 %v406, %v3053
        %v3055 = vand.u32 %v3054, 4294901760
        %3056 = vmatpush.msra.mxu0 %v3055
        %v3057 = vand.u32 %v402, 4294901760
        %v3058 = vsub.f32 %v402, %v3057
        %v3059 = vand.u32 %v3058, 4294901760
        %3060 = vmatpush.msra.mxu0 %v3059
        %v3061 = vand.u32 %v398, 4294901760
        %v3062 = vsub.f32 %v398, %v3061
        %v3063 = vand.u32 %v3062, 4294901760
        %3064 = vmatpush.msra.mxu0 %v3063
        %v3065 = vand.u32 %v394, 4294901760
        %v3066 = vsub.f32 %v394, %v3065
        %v3067 = vand.u32 %v3066, 4294901760
        %3068 = vmatpush.msra.mxu0 %v3067
        %v3069 = vand.u32 %v390, 4294901760
        %v3070 = vsub.f32 %v390, %v3069
        %v3071 = vand.u32 %v3070, 4294901760
        %3072 = vmatpush.msra.mxu0 %v3071
        %v3073 = vand.u32 %v386, 4294901760
        %v3074 = vsub.f32 %v386, %v3073
        %v3075 = vand.u32 %v3074, 4294901760
        %3076 = vmatpush.msra.mxu0 %v3075
        %v3077 = vand.u32 %v382, 4294901760
        %v3078 = vsub.f32 %v382, %v3077
        %v3079 = vand.u32 %v3078, 4294901760
        %3080 = vmatpush.msra.mxu0 %v3079
        %v3081 = vand.u32 %v378, 4294901760
        %v3082 = vsub.f32 %v378, %v3081
        %v3083 = vand.u32 %v3082, 4294901760
        %3084 = vmatpush.msra.mxu0 %v3083
        %v3085 = vand.u32 %v374, 4294901760
        %v3086 = vsub.f32 %v374, %v3085
        %v3087 = vand.u32 %v3086, 4294901760
        %3088 = vmatpush.msra.mxu0 %v3087
        %v3089 = vand.u32 %v370, 4294901760
        %v3090 = vsub.f32 %v370, %v3089
        %v3091 = vand.u32 %v3090, 4294901760
        %3092 = vmatpush.msra.mxu0 %v3091
        %v3093 = vand.u32 %v366, 4294901760
        %v3094 = vsub.f32 %v366, %v3093
        %v3095 = vand.u32 %v3094, 4294901760
        %3096 = vmatpush.msra.mxu0 %v3095
        %v3097 = vand.u32 %v362, 4294901760
        %v3098 = vsub.f32 %v362, %v3097
        %v3099 = vand.u32 %v3098, 4294901760
        %3100 = vmatpush.msra.mxu0 %v3099
        %v3101 = vand.u32 %v358, 4294901760
        %v3102 = vsub.f32 %v358, %v3101
        %v3103 = vand.u32 %v3102, 4294901760
        %3104 = vmatpush.msra.mxu0 %v3103
        %v3105 = vand.u32 %v354, 4294901760
        %v3106 = vsub.f32 %v354, %v3105
        %v3107 = vand.u32 %v3106, 4294901760
        %3108 = vmatpush.msra.mxu0 %v3107
        %v3109 = vand.u32 %v222, 4294901760
        %3110 = vmatmul.f32.gmra.mxu0 %v3109
        %v3111 = vpop.f32.mrf.mxu0
        %v3112 = vadd.f32 %v3043, %v3111
        %3113 = vdwg.mxu0
        %v3114 = vand.u32 %v414, 4294901760
        %3115 = vmatpush.msra.mxu0 %v3114
        %v3116 = vand.u32 %v410, 4294901760
        %3117 = vmatpush.msra.mxu0 %v3116
        %v3118 = vand.u32 %v406, 4294901760
        %3119 = vmatpush.msra.mxu0 %v3118
        %v3120 = vand.u32 %v402, 4294901760
        %3121 = vmatpush.msra.mxu0 %v3120
        %v3122 = vand.u32 %v398, 4294901760
        %3123 = vmatpush.msra.mxu0 %v3122
        %v3124 = vand.u32 %v394, 4294901760
        %3125 = vmatpush.msra.mxu0 %v3124
        %v3126 = vand.u32 %v390, 4294901760
        %3127 = vmatpush.msra.mxu0 %v3126
        %v3128 = vand.u32 %v386, 4294901760
        %3129 = vmatpush.msra.mxu0 %v3128
        %v3130 = vand.u32 %v382, 4294901760
        %3131 = vmatpush.msra.mxu0 %v3130
        %v3132 = vand.u32 %v378, 4294901760
        %3133 = vmatpush.msra.mxu0 %v3132
        %v3134 = vand.u32 %v374, 4294901760
        %3135 = vmatpush.msra.mxu0 %v3134
        %v3136 = vand.u32 %v370, 4294901760
        %3137 = vmatpush.msra.mxu0 %v3136
        %v3138 = vand.u32 %v366, 4294901760
        %3139 = vmatpush.msra.mxu0 %v3138
        %v3140 = vand.u32 %v362, 4294901760
        %3141 = vmatpush.msra.mxu0 %v3140
        %v3142 = vand.u32 %v358, 4294901760
        %3143 = vmatpush.msra.mxu0 %v3142
        %v3144 = vand.u32 %v354, 4294901760
        %3145 = vmatpush.msra.mxu0 %v3144
        %v3146 = vand.u32 %v222, 4294901760
        %3147 = vmatmul.f32.gmra.mxu0 %v3146
        %v3148 = vpop.f32.mrf.mxu0
        %v3149 = vadd.f32 %v3112, %v3148
        %3150 = vdwg.mxu0
        %v3151 = vand.u32 %v478, 4294901760
        %3152 = vmatpush.msra.mxu0 %v3151
        %v3153 = vand.u32 %v474, 4294901760
        %3154 = vmatpush.msra.mxu0 %v3153
        %v3155 = vand.u32 %v470, 4294901760
        %3156 = vmatpush.msra.mxu0 %v3155
        %v3157 = vand.u32 %v466, 4294901760
        %3158 = vmatpush.msra.mxu0 %v3157
        %v3159 = vand.u32 %v462, 4294901760
        %3160 = vmatpush.msra.mxu0 %v3159
        %v3161 = vand.u32 %v458, 4294901760
        %3162 = vmatpush.msra.mxu0 %v3161
        %v3163 = vand.u32 %v454, 4294901760
        %3164 = vmatpush.msra.mxu0 %v3163
        %v3165 = vand.u32 %v450, 4294901760
        %3166 = vmatpush.msra.mxu0 %v3165
        %v3167 = vand.u32 %v446, 4294901760
        %3168 = vmatpush.msra.mxu0 %v3167
        %v3169 = vand.u32 %v442, 4294901760
        %3170 = vmatpush.msra.mxu0 %v3169
        %v3171 = vand.u32 %v438, 4294901760
        %3172 = vmatpush.msra.mxu0 %v3171
        %v3173 = vand.u32 %v434, 4294901760
        %3174 = vmatpush.msra.mxu0 %v3173
        %v3175 = vand.u32 %v430, 4294901760
        %3176 = vmatpush.msra.mxu0 %v3175
        %v3177 = vand.u32 %v426, 4294901760
        %3178 = vmatpush.msra.mxu0 %v3177
        %v3179 = vand.u32 %v422, 4294901760
        %3180 = vmatpush.msra.mxu0 %v3179
        %v3181 = vand.u32 %v418, 4294901760
        %3182 = vmatpush.msra.mxu0 %v3181
        %v3183 = vand.u32 %v223, 4294901760
        %v3184 = vsub.f32 %v223, %v3183
        %v3185 = vand.u32 %v3184, 4294901760
        %v3186 = vsub.f32 %v3184, %v3185
        %v3187 = vand.u32 %v3186, 4294901760
        %3188 = vmatmul.f32.gmra.mxu0 %v3187
        %v3189 = vpop.f32.mrf.mxu0
        %v3190 = vadd.f32 %v3149, %v3189
        %3191 = vdwg.mxu0
        %v3192 = vand.u32 %v478, 4294901760
        %v3193 = vsub.f32 %v478, %v3192
        %v3194 = vand.u32 %v3193, 4294901760
        %v3195 = vsub.f32 %v3193, %v3194
        %v3196 = vand.u32 %v3195, 4294901760
        %3197 = vmatpush.msra.mxu0 %v3196
        %v3198 = vand.u32 %v474, 4294901760
        %v3199 = vsub.f32 %v474, %v3198
        %v3200 = vand.u32 %v3199, 4294901760
        %v3201 = vsub.f32 %v3199, %v3200
        %v3202 = vand.u32 %v3201, 4294901760
        %3203 = vmatpush.msra.mxu0 %v3202
        %v3204 = vand.u32 %v470, 4294901760
        %v3205 = vsub.f32 %v470, %v3204
        %v3206 = vand.u32 %v3205, 4294901760
        %v3207 = vsub.f32 %v3205, %v3206
        %v3208 = vand.u32 %v3207, 4294901760
        %3209 = vmatpush.msra.mxu0 %v3208
        %v3210 = vand.u32 %v466, 4294901760
        %v3211 = vsub.f32 %v466, %v3210
        %v3212 = vand.u32 %v3211, 4294901760
        %v3213 = vsub.f32 %v3211, %v3212
        %v3214 = vand.u32 %v3213, 4294901760
        %3215 = vmatpush.msra.mxu0 %v3214
        %v3216 = vand.u32 %v462, 4294901760
        %v3217 = vsub.f32 %v462, %v3216
        %v3218 = vand.u32 %v3217, 4294901760
        %v3219 = vsub.f32 %v3217, %v3218
        %v3220 = vand.u32 %v3219, 4294901760
        %3221 = vmatpush.msra.mxu0 %v3220
        %v3222 = vand.u32 %v458, 4294901760
        %v3223 = vsub.f32 %v458, %v3222
        %v3224 = vand.u32 %v3223, 4294901760
        %v3225 = vsub.f32 %v3223, %v3224
        %v3226 = vand.u32 %v3225, 4294901760
        %3227 = vmatpush.msra.mxu0 %v3226
        %v3228 = vand.u32 %v454, 4294901760
        %v3229 = vsub.f32 %v454, %v3228
        %v3230 = vand.u32 %v3229, 4294901760
        %v3231 = vsub.f32 %v3229, %v3230
        %v3232 = vand.u32 %v3231, 4294901760
        %3233 = vmatpush.msra.mxu0 %v3232
        %v3234 = vand.u32 %v450, 4294901760
        %v3235 = vsub.f32 %v450, %v3234
        %v3236 = vand.u32 %v3235, 4294901760
        %v3237 = vsub.f32 %v3235, %v3236
        %v3238 = vand.u32 %v3237, 4294901760
        %3239 = vmatpush.msra.mxu0 %v3238
        %v3240 = vand.u32 %v446, 4294901760
        %v3241 = vsub.f32 %v446, %v3240
        %v3242 = vand.u32 %v3241, 4294901760
        %v3243 = vsub.f32 %v3241, %v3242
        %v3244 = vand.u32 %v3243, 4294901760
        %3245 = vmatpush.msra.mxu0 %v3244
        %v3246 = vand.u32 %v442, 4294901760
        %v3247 = vsub.f32 %v442, %v3246
        %v3248 = vand.u32 %v3247, 4294901760
        %v3249 = vsub.f32 %v3247, %v3248
        %v3250 = vand.u32 %v3249, 4294901760
        %3251 = vmatpush.msra.mxu0 %v3250
        %v3252 = vand.u32 %v438, 4294901760
        %v3253 = vsub.f32 %v438, %v3252
        %v3254 = vand.u32 %v3253, 4294901760
        %v3255 = vsub.f32 %v3253, %v3254
        %v3256 = vand.u32 %v3255, 4294901760
        %3257 = vmatpush.msra.mxu0 %v3256
        %v3258 = vand.u32 %v434, 4294901760
        %v3259 = vsub.f32 %v434, %v3258
        %v3260 = vand.u32 %v3259, 4294901760
        %v3261 = vsub.f32 %v3259, %v3260
        %v3262 = vand.u32 %v3261, 4294901760
        %3263 = vmatpush.msra.mxu0 %v3262
        %v3264 = vand.u32 %v430, 4294901760
        %v3265 = vsub.f32 %v430, %v3264
        %v3266 = vand.u32 %v3265, 4294901760
        %v3267 = vsub.f32 %v3265, %v3266
        %v3268 = vand.u32 %v3267, 4294901760
        %3269 = vmatpush.msra.mxu0 %v3268
        %v3270 = vand.u32 %v426, 4294901760
        %v3271 = vsub.f32 %v426, %v3270
        %v3272 = vand.u32 %v3271, 4294901760
        %v3273 = vsub.f32 %v3271, %v3272
        %v3274 = vand.u32 %v3273, 4294901760
        %3275 = vmatpush.msra.mxu0 %v3274
        %v3276 = vand.u32 %v422, 4294901760
        %v3277 = vsub.f32 %v422, %v3276
        %v3278 = vand.u32 %v3277, 4294901760
        %v3279 = vsub.f32 %v3277, %v3278
        %v3280 = vand.u32 %v3279, 4294901760
        %3281 = vmatpush.msra.mxu0 %v3280
        %v3282 = vand.u32 %v418, 4294901760
        %v3283 = vsub.f32 %v418, %v3282
        %v3284 = vand.u32 %v3283, 4294901760
        %v3285 = vsub.f32 %v3283, %v3284
        %v3286 = vand.u32 %v3285, 4294901760
        %3287 = vmatpush.msra.mxu0 %v3286
        %v3288 = vand.u32 %v223, 4294901760
        %3289 = vmatmul.f32.gmra.mxu0 %v3288
        %v3290 = vpop.f32.mrf.mxu0
        %v3291 = vadd.f32 %v3190, %v3290
        %3292 = vdwg.mxu0
        %v3293 = vand.u32 %v478, 4294901760
        %v3294 = vsub.f32 %v478, %v3293
        %3295 = vmatpush.msra.mxu0 %v3294
        %v3296 = vand.u32 %v474, 4294901760
        %v3297 = vsub.f32 %v474, %v3296
        %3298 = vmatpush.msra.mxu0 %v3297
        %v3299 = vand.u32 %v470, 4294901760
        %v3300 = vsub.f32 %v470, %v3299
        %3301 = vmatpush.msra.mxu0 %v3300
        %v3302 = vand.u32 %v466, 4294901760
        %v3303 = vsub.f32 %v466, %v3302
        %3304 = vmatpush.msra.mxu0 %v3303
        %v3305 = vand.u32 %v462, 4294901760
        %v3306 = vsub.f32 %v462, %v3305
        %3307 = vmatpush.msra.mxu0 %v3306
        %v3308 = vand.u32 %v458, 4294901760
        %v3309 = vsub.f32 %v458, %v3308
        %3310 = vmatpush.msra.mxu0 %v3309
        %v3311 = vand.u32 %v454, 4294901760
        %v3312 = vsub.f32 %v454, %v3311
        %3313 = vmatpush.msra.mxu0 %v3312
        %v3314 = vand.u32 %v450, 4294901760
        %v3315 = vsub.f32 %v450, %v3314
        %3316 = vmatpush.msra.mxu0 %v3315
        %v3317 = vand.u32 %v446, 4294901760
        %v3318 = vsub.f32 %v446, %v3317
        %3319 = vmatpush.msra.mxu0 %v3318
        %v3320 = vand.u32 %v442, 4294901760
        %v3321 = vsub.f32 %v442, %v3320
        %3322 = vmatpush.msra.mxu0 %v3321
        %v3323 = vand.u32 %v438, 4294901760
        %v3324 = vsub.f32 %v438, %v3323
        %3325 = vmatpush.msra.mxu0 %v3324
        %v3326 = vand.u32 %v434, 4294901760
        %v3327 = vsub.f32 %v434, %v3326
        %3328 = vmatpush.msra.mxu0 %v3327
        %v3329 = vand.u32 %v430, 4294901760
        %v3330 = vsub.f32 %v430, %v3329
        %3331 = vmatpush.msra.mxu0 %v3330
        %v3332 = vand.u32 %v426, 4294901760
        %v3333 = vsub.f32 %v426, %v3332
        %3334 = vmatpush.msra.mxu0 %v3333
        %v3335 = vand.u32 %v422, 4294901760
        %v3336 = vsub.f32 %v422, %v3335
        %3337 = vmatpush.msra.mxu0 %v3336
        %v3338 = vand.u32 %v418, 4294901760
        %v3339 = vsub.f32 %v418, %v3338
        %3340 = vmatpush.msra.mxu0 %v3339
        %v3341 = vand.u32 %v223, 4294901760
        %v3342 = vsub.f32 %v223, %v3341
        %3343 = vmatmul.f32.gmra.mxu0 %v3342
        %v3344 = vpop.f32.mrf.mxu0
        %v3345 = vadd.f32 %v3291, %v3344
        %3346 = vdwg.mxu0
        %v3347 = vand.u32 %v478, 4294901760
        %3348 = vmatpush.msra.mxu0 %v3347
        %v3349 = vand.u32 %v474, 4294901760
        %3350 = vmatpush.msra.mxu0 %v3349
        %v3351 = vand.u32 %v470, 4294901760
        %3352 = vmatpush.msra.mxu0 %v3351
        %v3353 = vand.u32 %v466, 4294901760
        %3354 = vmatpush.msra.mxu0 %v3353
        %v3355 = vand.u32 %v462, 4294901760
        %3356 = vmatpush.msra.mxu0 %v3355
        %v3357 = vand.u32 %v458, 4294901760
        %3358 = vmatpush.msra.mxu0 %v3357
        %v3359 = vand.u32 %v454, 4294901760
        %3360 = vmatpush.msra.mxu0 %v3359
        %v3361 = vand.u32 %v450, 4294901760
        %3362 = vmatpush.msra.mxu0 %v3361
        %v3363 = vand.u32 %v446, 4294901760
        %3364 = vmatpush.msra.mxu0 %v3363
        %v3365 = vand.u32 %v442, 4294901760
        %3366 = vmatpush.msra.mxu0 %v3365
        %v3367 = vand.u32 %v438, 4294901760
        %3368 = vmatpush.msra.mxu0 %v3367
        %v3369 = vand.u32 %v434, 4294901760
        %3370 = vmatpush.msra.mxu0 %v3369
        %v3371 = vand.u32 %v430, 4294901760
        %3372 = vmatpush.msra.mxu0 %v3371
        %v3373 = vand.u32 %v426, 4294901760
        %3374 = vmatpush.msra.mxu0 %v3373
        %v3375 = vand.u32 %v422, 4294901760
        %3376 = vmatpush.msra.mxu0 %v3375
        %v3377 = vand.u32 %v418, 4294901760
        %3378 = vmatpush.msra.mxu0 %v3377
        %v3379 = vand.u32 %v223, 4294901760
        %v3380 = vsub.f32 %v223, %v3379
        %v3381 = vand.u32 %v3380, 4294901760
        %3382 = vmatmul.f32.gmra.mxu0 %v3381
        %v3383 = vpop.f32.mrf.mxu0
        %v3384 = vadd.f32 %v3345, %v3383
        %3385 = vdwg.mxu0
        %v3386 = vand.u32 %v478, 4294901760
        %v3387 = vsub.f32 %v478, %v3386
        %v3388 = vand.u32 %v3387, 4294901760
        %3389 = vmatpush.msra.mxu0 %v3388
        %v3390 = vand.u32 %v474, 4294901760
        %v3391 = vsub.f32 %v474, %v3390
        %v3392 = vand.u32 %v3391, 4294901760
        %3393 = vmatpush.msra.mxu0 %v3392
        %v3394 = vand.u32 %v470, 4294901760
        %v3395 = vsub.f32 %v470, %v3394
        %v3396 = vand.u32 %v3395, 4294901760
        %3397 = vmatpush.msra.mxu0 %v3396
        %v3398 = vand.u32 %v466, 4294901760
        %v3399 = vsub.f32 %v466, %v3398
        %v3400 = vand.u32 %v3399, 4294901760
        %3401 = vmatpush.msra.mxu0 %v3400
        %v3402 = vand.u32 %v462, 4294901760
        %v3403 = vsub.f32 %v462, %v3402
        %v3404 = vand.u32 %v3403, 4294901760
        %3405 = vmatpush.msra.mxu0 %v3404
        %v3406 = vand.u32 %v458, 4294901760
        %v3407 = vsub.f32 %v458, %v3406
        %v3408 = vand.u32 %v3407, 4294901760
        %3409 = vmatpush.msra.mxu0 %v3408
        %v3410 = vand.u32 %v454, 4294901760
        %v3411 = vsub.f32 %v454, %v3410
        %v3412 = vand.u32 %v3411, 4294901760
        %3413 = vmatpush.msra.mxu0 %v3412
        %v3414 = vand.u32 %v450, 4294901760
        %v3415 = vsub.f32 %v450, %v3414
        %v3416 = vand.u32 %v3415, 4294901760
        %3417 = vmatpush.msra.mxu0 %v3416
        %v3418 = vand.u32 %v446, 4294901760
        %v3419 = vsub.f32 %v446, %v3418
        %v3420 = vand.u32 %v3419, 4294901760
        %3421 = vmatpush.msra.mxu0 %v3420
        %v3422 = vand.u32 %v442, 4294901760
        %v3423 = vsub.f32 %v442, %v3422
        %v3424 = vand.u32 %v3423, 4294901760
        %3425 = vmatpush.msra.mxu0 %v3424
        %v3426 = vand.u32 %v438, 4294901760
        %v3427 = vsub.f32 %v438, %v3426
        %v3428 = vand.u32 %v3427, 4294901760
        %3429 = vmatpush.msra.mxu0 %v3428
        %v3430 = vand.u32 %v434, 4294901760
        %v3431 = vsub.f32 %v434, %v3430
        %v3432 = vand.u32 %v3431, 4294901760
        %3433 = vmatpush.msra.mxu0 %v3432
        %v3434 = vand.u32 %v430, 4294901760
        %v3435 = vsub.f32 %v430, %v3434
        %v3436 = vand.u32 %v3435, 4294901760
        %3437 = vmatpush.msra.mxu0 %v3436
        %v3438 = vand.u32 %v426, 4294901760
        %v3439 = vsub.f32 %v426, %v3438
        %v3440 = vand.u32 %v3439, 4294901760
        %3441 = vmatpush.msra.mxu0 %v3440
        %v3442 = vand.u32 %v422, 4294901760
        %v3443 = vsub.f32 %v422, %v3442
        %v3444 = vand.u32 %v3443, 4294901760
        %3445 = vmatpush.msra.mxu0 %v3444
        %v3446 = vand.u32 %v418, 4294901760
        %v3447 = vsub.f32 %v418, %v3446
        %v3448 = vand.u32 %v3447, 4294901760
        %3449 = vmatpush.msra.mxu0 %v3448
        %v3450 = vand.u32 %v223, 4294901760
        %3451 = vmatmul.f32.gmra.mxu0 %v3450
        %v3452 = vpop.f32.mrf.mxu0
        %v3453 = vadd.f32 %v3384, %v3452
        %3454 = vdwg.mxu0
        %v3455 = vand.u32 %v478, 4294901760
        %3456 = vmatpush.msra.mxu0 %v3455
        %v3457 = vand.u32 %v474, 4294901760
        %3458 = vmatpush.msra.mxu0 %v3457
        %v3459 = vand.u32 %v470, 4294901760
        %3460 = vmatpush.msra.mxu0 %v3459
        %v3461 = vand.u32 %v466, 4294901760
        %3462 = vmatpush.msra.mxu0 %v3461
        %v3463 = vand.u32 %v462, 4294901760
        %3464 = vmatpush.msra.mxu0 %v3463
        %v3465 = vand.u32 %v458, 4294901760
        %3466 = vmatpush.msra.mxu0 %v3465
        %v3467 = vand.u32 %v454, 4294901760
        %3468 = vmatpush.msra.mxu0 %v3467
        %v3469 = vand.u32 %v450, 4294901760
        %3470 = vmatpush.msra.mxu0 %v3469
        %v3471 = vand.u32 %v446, 4294901760
        %3472 = vmatpush.msra.mxu0 %v3471
        %v3473 = vand.u32 %v442, 4294901760
        %3474 = vmatpush.msra.mxu0 %v3473
        %v3475 = vand.u32 %v438, 4294901760
        %3476 = vmatpush.msra.mxu0 %v3475
        %v3477 = vand.u32 %v434, 4294901760
        %3478 = vmatpush.msra.mxu0 %v3477
        %v3479 = vand.u32 %v430, 4294901760
        %3480 = vmatpush.msra.mxu0 %v3479
        %v3481 = vand.u32 %v426, 4294901760
        %3482 = vmatpush.msra.mxu0 %v3481
        %v3483 = vand.u32 %v422, 4294901760
        %3484 = vmatpush.msra.mxu0 %v3483
        %v3485 = vand.u32 %v418, 4294901760
        %3486 = vmatpush.msra.mxu0 %v3485
        %v3487 = vand.u32 %v223, 4294901760
        %3488 = vmatmul.f32.gmra.mxu0 %v3487
        %v3489 = vpop.f32.mrf.mxu0
        %v3490 = vadd.f32 %v3453, %v3489
        %3491 = vdwg.mxu0
        %3492 = vmatpush.msra.mxu0 0.0
        %3493 = vmatpush.msra.mxu0 0.0
        %3494 = vmatpush.msra.mxu0 0.0
        %3495 = vmatpush.msra.mxu0 0.0
        %3496 = vmatpush.msra.mxu0 0.0
        %3497 = vmatpush.msra.mxu0 0.0
        %3498 = vmatpush.msra.mxu0 0.0
        %3499 = vmatpush.msra.mxu0 0.0
        %v3500 = vand.u32 %v510, 4294901760
        %3501 = vmatpush.msra.mxu0 %v3500
        %v3502 = vand.u32 %v506, 4294901760
        %3503 = vmatpush.msra.mxu0 %v3502
        %v3504 = vand.u32 %v502, 4294901760
        %3505 = vmatpush.msra.mxu0 %v3504
        %v3506 = vand.u32 %v498, 4294901760
        %3507 = vmatpush.msra.mxu0 %v3506
        %v3508 = vand.u32 %v494, 4294901760
        %3509 = vmatpush.msra.mxu0 %v3508
        %v3510 = vand.u32 %v490, 4294901760
        %3511 = vmatpush.msra.mxu0 %v3510
        %v3512 = vand.u32 %v486, 4294901760
        %3513 = vmatpush.msra.mxu0 %v3512
        %v3514 = vand.u32 %v482, 4294901760
        %3515 = vmatpush.msra.mxu0 %v3514
        %v3516 = vand.u32 %v525, 4294901760
        %v3517 = vsub.f32 %v525, %v3516
        %v3518 = vand.u32 %v3517, 4294901760
        %v3519 = vsub.f32 %v3517, %v3518
        %v3520 = vand.u32 %v3519, 4294901760
        %3521 = vmatmul.f32.gmra.mxu0 %v3520
        %v3522 = vpop.f32.mrf.mxu0
        %v3523 = vadd.f32 %v3490, %v3522
        %3524 = vdwg.mxu0
        %3525 = vmatpush.msra.mxu0 0.0
        %3526 = vmatpush.msra.mxu0 0.0
        %3527 = vmatpush.msra.mxu0 0.0
        %3528 = vmatpush.msra.mxu0 0.0
        %3529 = vmatpush.msra.mxu0 0.0
        %3530 = vmatpush.msra.mxu0 0.0
        %3531 = vmatpush.msra.mxu0 0.0
        %3532 = vmatpush.msra.mxu0 0.0
        %v3533 = vand.u32 %v510, 4294901760
        %v3534 = vsub.f32 %v510, %v3533
        %v3535 = vand.u32 %v3534, 4294901760
        %v3536 = vsub.f32 %v3534, %v3535
        %v3537 = vand.u32 %v3536, 4294901760
        %3538 = vmatpush.msra.mxu0 %v3537
        %v3539 = vand.u32 %v506, 4294901760
        %v3540 = vsub.f32 %v506, %v3539
        %v3541 = vand.u32 %v3540, 4294901760
        %v3542 = vsub.f32 %v3540, %v3541
        %v3543 = vand.u32 %v3542, 4294901760
        %3544 = vmatpush.msra.mxu0 %v3543
        %v3545 = vand.u32 %v502, 4294901760
        %v3546 = vsub.f32 %v502, %v3545
        %v3547 = vand.u32 %v3546, 4294901760
        %v3548 = vsub.f32 %v3546, %v3547
        %v3549 = vand.u32 %v3548, 4294901760
        %3550 = vmatpush.msra.mxu0 %v3549
        %v3551 = vand.u32 %v498, 4294901760
        %v3552 = vsub.f32 %v498, %v3551
        %v3553 = vand.u32 %v3552, 4294901760
        %v3554 = vsub.f32 %v3552, %v3553
        %v3555 = vand.u32 %v3554, 4294901760
        %3556 = vmatpush.msra.mxu0 %v3555
        %v3557 = vand.u32 %v494, 4294901760
        %v3558 = vsub.f32 %v494, %v3557
        %v3559 = vand.u32 %v3558, 4294901760
        %v3560 = vsub.f32 %v3558, %v3559
        %v3561 = vand.u32 %v3560, 4294901760
        %3562 = vmatpush.msra.mxu0 %v3561
        %v3563 = vand.u32 %v490, 4294901760
        %v3564 = vsub.f32 %v490, %v3563
        %v3565 = vand.u32 %v3564, 4294901760
        %v3566 = vsub.f32 %v3564, %v3565
        %v3567 = vand.u32 %v3566, 4294901760
        %3568 = vmatpush.msra.mxu0 %v3567
        %v3569 = vand.u32 %v486, 4294901760
        %v3570 = vsub.f32 %v486, %v3569
        %v3571 = vand.u32 %v3570, 4294901760
        %v3572 = vsub.f32 %v3570, %v3571
        %v3573 = vand.u32 %v3572, 4294901760
        %3574 = vmatpush.msra.mxu0 %v3573
        %v3575 = vand.u32 %v482, 4294901760
        %v3576 = vsub.f32 %v482, %v3575
        %v3577 = vand.u32 %v3576, 4294901760
        %v3578 = vsub.f32 %v3576, %v3577
        %v3579 = vand.u32 %v3578, 4294901760
        %3580 = vmatpush.msra.mxu0 %v3579
        %v3581 = vand.u32 %v525, 4294901760
        %3582 = vmatmul.f32.gmra.mxu0 %v3581
        %v3583 = vpop.f32.mrf.mxu0
        %v3584 = vadd.f32 %v3523, %v3583
        %3585 = vdwg.mxu0
        %3586 = vmatpush.msra.mxu0 0.0
        %3587 = vmatpush.msra.mxu0 0.0
        %3588 = vmatpush.msra.mxu0 0.0
        %3589 = vmatpush.msra.mxu0 0.0
        %3590 = vmatpush.msra.mxu0 0.0
        %3591 = vmatpush.msra.mxu0 0.0
        %3592 = vmatpush.msra.mxu0 0.0
        %3593 = vmatpush.msra.mxu0 0.0
        %v3594 = vand.u32 %v510, 4294901760
        %v3595 = vsub.f32 %v510, %v3594
        %3596 = vmatpush.msra.mxu0 %v3595
        %v3597 = vand.u32 %v506, 4294901760
        %v3598 = vsub.f32 %v506, %v3597
        %3599 = vmatpush.msra.mxu0 %v3598
        %v3600 = vand.u32 %v502, 4294901760
        %v3601 = vsub.f32 %v502, %v3600
        %3602 = vmatpush.msra.mxu0 %v3601
        %v3603 = vand.u32 %v498, 4294901760
        %v3604 = vsub.f32 %v498, %v3603
        %3605 = vmatpush.msra.mxu0 %v3604
        %v3606 = vand.u32 %v494, 4294901760
        %v3607 = vsub.f32 %v494, %v3606
        %3608 = vmatpush.msra.mxu0 %v3607
        %v3609 = vand.u32 %v490, 4294901760
        %v3610 = vsub.f32 %v490, %v3609
        %3611 = vmatpush.msra.mxu0 %v3610
        %v3612 = vand.u32 %v486, 4294901760
        %v3613 = vsub.f32 %v486, %v3612
        %3614 = vmatpush.msra.mxu0 %v3613
        %v3615 = vand.u32 %v482, 4294901760
        %v3616 = vsub.f32 %v482, %v3615
        %3617 = vmatpush.msra.mxu0 %v3616
        %v3618 = vand.u32 %v525, 4294901760
        %v3619 = vsub.f32 %v525, %v3618
        %3620 = vmatmul.f32.gmra.mxu0 %v3619
        %v3621 = vpop.f32.mrf.mxu0
        %v3622 = vadd.f32 %v3584, %v3621
        %3623 = vdwg.mxu0
        %3624 = vmatpush.msra.mxu0 0.0
        %3625 = vmatpush.msra.mxu0 0.0
        %3626 = vmatpush.msra.mxu0 0.0
        %3627 = vmatpush.msra.mxu0 0.0
        %3628 = vmatpush.msra.mxu0 0.0
        %3629 = vmatpush.msra.mxu0 0.0
        %3630 = vmatpush.msra.mxu0 0.0
        %3631 = vmatpush.msra.mxu0 0.0
        %v3632 = vand.u32 %v510, 4294901760
        %3633 = vmatpush.msra.mxu0 %v3632
        %v3634 = vand.u32 %v506, 4294901760
        %3635 = vmatpush.msra.mxu0 %v3634
        %v3636 = vand.u32 %v502, 4294901760
        %3637 = vmatpush.msra.mxu0 %v3636
        %v3638 = vand.u32 %v498, 4294901760
        %3639 = vmatpush.msra.mxu0 %v3638
        %v3640 = vand.u32 %v494, 4294901760
        %3641 = vmatpush.msra.mxu0 %v3640
        %v3642 = vand.u32 %v490, 4294901760
        %3643 = vmatpush.msra.mxu0 %v3642
        %v3644 = vand.u32 %v486, 4294901760
        %3645 = vmatpush.msra.mxu0 %v3644
        %v3646 = vand.u32 %v482, 4294901760
        %3647 = vmatpush.msra.mxu0 %v3646
        %v3648 = vand.u32 %v525, 4294901760
        %v3649 = vsub.f32 %v525, %v3648
        %v3650 = vand.u32 %v3649, 4294901760
        %3651 = vmatmul.f32.gmra.mxu0 %v3650
        %v3652 = vpop.f32.mrf.mxu0
        %v3653 = vadd.f32 %v3622, %v3652
        %3654 = vdwg.mxu0
        %3655 = vmatpush.msra.mxu0 0.0
        %3656 = vmatpush.msra.mxu0 0.0
        %3657 = vmatpush.msra.mxu0 0.0
        %3658 = vmatpush.msra.mxu0 0.0
        %3659 = vmatpush.msra.mxu0 0.0
        %3660 = vmatpush.msra.mxu0 0.0
        %3661 = vmatpush.msra.mxu0 0.0
        %3662 = vmatpush.msra.mxu0 0.0
        %v3663 = vand.u32 %v510, 4294901760
        %v3664 = vsub.f32 %v510, %v3663
        %v3665 = vand.u32 %v3664, 4294901760
        %3666 = vmatpush.msra.mxu0 %v3665
        %v3667 = vand.u32 %v506, 4294901760
        %v3668 = vsub.f32 %v506, %v3667
        %v3669 = vand.u32 %v3668, 4294901760
        %3670 = vmatpush.msra.mxu0 %v3669
        %v3671 = vand.u32 %v502, 4294901760
        %v3672 = vsub.f32 %v502, %v3671
        %v3673 = vand.u32 %v3672, 4294901760
        %3674 = vmatpush.msra.mxu0 %v3673
        %v3675 = vand.u32 %v498, 4294901760
        %v3676 = vsub.f32 %v498, %v3675
        %v3677 = vand.u32 %v3676, 4294901760
        %3678 = vmatpush.msra.mxu0 %v3677
        %v3679 = vand.u32 %v494, 4294901760
        %v3680 = vsub.f32 %v494, %v3679
        %v3681 = vand.u32 %v3680, 4294901760
        %3682 = vmatpush.msra.mxu0 %v3681
        %v3683 = vand.u32 %v490, 4294901760
        %v3684 = vsub.f32 %v490, %v3683
        %v3685 = vand.u32 %v3684, 4294901760
        %3686 = vmatpush.msra.mxu0 %v3685
        %v3687 = vand.u32 %v486, 4294901760
        %v3688 = vsub.f32 %v486, %v3687
        %v3689 = vand.u32 %v3688, 4294901760
        %3690 = vmatpush.msra.mxu0 %v3689
        %v3691 = vand.u32 %v482, 4294901760
        %v3692 = vsub.f32 %v482, %v3691
        %v3693 = vand.u32 %v3692, 4294901760
        %3694 = vmatpush.msra.mxu0 %v3693
        %v3695 = vand.u32 %v525, 4294901760
        %3696 = vmatmul.f32.gmra.mxu0 %v3695
        %v3697 = vpop.f32.mrf.mxu0
        %v3698 = vadd.f32 %v3653, %v3697
        %3699 = vdwg.mxu0
        %3700 = vmatpush.msra.mxu0 0.0
        %3701 = vmatpush.msra.mxu0 0.0
        %3702 = vmatpush.msra.mxu0 0.0
        %3703 = vmatpush.msra.mxu0 0.0
        %3704 = vmatpush.msra.mxu0 0.0
        %3705 = vmatpush.msra.mxu0 0.0
        %3706 = vmatpush.msra.mxu0 0.0
        %3707 = vmatpush.msra.mxu0 0.0
        %v3708 = vand.u32 %v510, 4294901760
        %3709 = vmatpush.msra.mxu0 %v3708
        %v3710 = vand.u32 %v506, 4294901760
        %3711 = vmatpush.msra.mxu0 %v3710
        %v3712 = vand.u32 %v502, 4294901760
        %3713 = vmatpush.msra.mxu0 %v3712
        %v3714 = vand.u32 %v498, 4294901760
        %3715 = vmatpush.msra.mxu0 %v3714
        %v3716 = vand.u32 %v494, 4294901760
        %3717 = vmatpush.msra.mxu0 %v3716
        %v3718 = vand.u32 %v490, 4294901760
        %3719 = vmatpush.msra.mxu0 %v3718
        %v3720 = vand.u32 %v486, 4294901760
        %3721 = vmatpush.msra.mxu0 %v3720
        %v3722 = vand.u32 %v482, 4294901760
        %3723 = vmatpush.msra.mxu0 %v3722
        %v3724 = vand.u32 %v525, 4294901760
        %3725 = vmatmul.f32.gmra.mxu0 %v3724
        %v3726 = vpop.f32.mrf.mxu0
        %v3727 = vadd.f32 %v3698, %v3726
        %3728 = vdwg.mxu0
        %v3729 = vand.u32 %v287, 4294901760
        %3730 = vmatpush.msra.mxu0 %v3729
        %v3731 = vand.u32 %v283, 4294901760
        %3732 = vmatpush.msra.mxu0 %v3731
        %v3733 = vand.u32 %v279, 4294901760
        %3734 = vmatpush.msra.mxu0 %v3733
        %v3735 = vand.u32 %v275, 4294901760
        %3736 = vmatpush.msra.mxu0 %v3735
        %v3737 = vand.u32 %v271, 4294901760
        %3738 = vmatpush.msra.mxu0 %v3737
        %v3739 = vand.u32 %v267, 4294901760
        %3740 = vmatpush.msra.mxu0 %v3739
        %v3741 = vand.u32 %v263, 4294901760
        %3742 = vmatpush.msra.mxu0 %v3741
        %v3743 = vand.u32 %v259, 4294901760
        %3744 = vmatpush.msra.mxu0 %v3743
        %v3745 = vand.u32 %v255, 4294901760
        %3746 = vmatpush.msra.mxu0 %v3745
        %v3747 = vand.u32 %v251, 4294901760
        %3748 = vmatpush.msra.mxu0 %v3747
        %v3749 = vand.u32 %v247, 4294901760
        %3750 = vmatpush.msra.mxu0 %v3749
        %v3751 = vand.u32 %v243, 4294901760
        %3752 = vmatpush.msra.mxu0 %v3751
        %v3753 = vand.u32 %v239, 4294901760
        %3754 = vmatpush.msra.mxu0 %v3753
        %v3755 = vand.u32 %v235, 4294901760
        %3756 = vmatpush.msra.mxu0 %v3755
        %v3757 = vand.u32 %v231, 4294901760
        %3758 = vmatpush.msra.mxu0 %v3757
        %v3759 = vand.u32 %v227, 4294901760
        %3760 = vmatpush.msra.mxu0 %v3759
        %v3761 = vand.u32 %v220, 4294901760
        %v3762 = vsub.f32 %v220, %v3761
        %v3763 = vand.u32 %v3762, 4294901760
        %v3764 = vsub.f32 %v3762, %v3763
        %v3765 = vand.u32 %v3764, 4294901760
        %3766 = vmatmul.f32.gmra.mxu0 %v3765
        %v3767 = vpop.f32.mrf.mxu0
        %v3768 = vadd.f32 %v517, %v3767
        %3769 = vdwg.mxu0
        %v3770 = vand.u32 %v287, 4294901760
        %v3771 = vsub.f32 %v287, %v3770
        %v3772 = vand.u32 %v3771, 4294901760
        %v3773 = vsub.f32 %v3771, %v3772
        %v3774 = vand.u32 %v3773, 4294901760
        %3775 = vmatpush.msra.mxu0 %v3774
        %v3776 = vand.u32 %v283, 4294901760
        %v3777 = vsub.f32 %v283, %v3776
        %v3778 = vand.u32 %v3777, 4294901760
        %v3779 = vsub.f32 %v3777, %v3778
        %v3780 = vand.u32 %v3779, 4294901760
        %3781 = vmatpush.msra.mxu0 %v3780
        %v3782 = vand.u32 %v279, 4294901760
        %v3783 = vsub.f32 %v279, %v3782
        %v3784 = vand.u32 %v3783, 4294901760
        %v3785 = vsub.f32 %v3783, %v3784
        %v3786 = vand.u32 %v3785, 4294901760
        %3787 = vmatpush.msra.mxu0 %v3786
        %v3788 = vand.u32 %v275, 4294901760
        %v3789 = vsub.f32 %v275, %v3788
        %v3790 = vand.u32 %v3789, 4294901760
        %v3791 = vsub.f32 %v3789, %v3790
        %v3792 = vand.u32 %v3791, 4294901760
        %3793 = vmatpush.msra.mxu0 %v3792
        %v3794 = vand.u32 %v271, 4294901760
        %v3795 = vsub.f32 %v271, %v3794
        %v3796 = vand.u32 %v3795, 4294901760
        %v3797 = vsub.f32 %v3795, %v3796
        %v3798 = vand.u32 %v3797, 4294901760
        %3799 = vmatpush.msra.mxu0 %v3798
        %v3800 = vand.u32 %v267, 4294901760
        %v3801 = vsub.f32 %v267, %v3800
        %v3802 = vand.u32 %v3801, 4294901760
        %v3803 = vsub.f32 %v3801, %v3802
        %v3804 = vand.u32 %v3803, 4294901760
        %3805 = vmatpush.msra.mxu0 %v3804
        %v3806 = vand.u32 %v263, 4294901760
        %v3807 = vsub.f32 %v263, %v3806
        %v3808 = vand.u32 %v3807, 4294901760
        %v3809 = vsub.f32 %v3807, %v3808
        %v3810 = vand.u32 %v3809, 4294901760
        %3811 = vmatpush.msra.mxu0 %v3810
        %v3812 = vand.u32 %v259, 4294901760
        %v3813 = vsub.f32 %v259, %v3812
        %v3814 = vand.u32 %v3813, 4294901760
        %v3815 = vsub.f32 %v3813, %v3814
        %v3816 = vand.u32 %v3815, 4294901760
        %3817 = vmatpush.msra.mxu0 %v3816
        %v3818 = vand.u32 %v255, 4294901760
        %v3819 = vsub.f32 %v255, %v3818
        %v3820 = vand.u32 %v3819, 4294901760
        %v3821 = vsub.f32 %v3819, %v3820
        %v3822 = vand.u32 %v3821, 4294901760
        %3823 = vmatpush.msra.mxu0 %v3822
        %v3824 = vand.u32 %v251, 4294901760
        %v3825 = vsub.f32 %v251, %v3824
        %v3826 = vand.u32 %v3825, 4294901760
        %v3827 = vsub.f32 %v3825, %v3826
        %v3828 = vand.u32 %v3827, 4294901760
        %3829 = vmatpush.msra.mxu0 %v3828
        %v3830 = vand.u32 %v247, 4294901760
        %v3831 = vsub.f32 %v247, %v3830
        %v3832 = vand.u32 %v3831, 4294901760
        %v3833 = vsub.f32 %v3831, %v3832
        %v3834 = vand.u32 %v3833, 4294901760
        %3835 = vmatpush.msra.mxu0 %v3834
        %v3836 = vand.u32 %v243, 4294901760
        %v3837 = vsub.f32 %v243, %v3836
        %v3838 = vand.u32 %v3837, 4294901760
        %v3839 = vsub.f32 %v3837, %v3838
        %v3840 = vand.u32 %v3839, 4294901760
        %3841 = vmatpush.msra.mxu0 %v3840
        %v3842 = vand.u32 %v239, 4294901760
        %v3843 = vsub.f32 %v239, %v3842
        %v3844 = vand.u32 %v3843, 4294901760
        %v3845 = vsub.f32 %v3843, %v3844
        %v3846 = vand.u32 %v3845, 4294901760
        %3847 = vmatpush.msra.mxu0 %v3846
        %v3848 = vand.u32 %v235, 4294901760
        %v3849 = vsub.f32 %v235, %v3848
        %v3850 = vand.u32 %v3849, 4294901760
        %v3851 = vsub.f32 %v3849, %v3850
        %v3852 = vand.u32 %v3851, 4294901760
        %3853 = vmatpush.msra.mxu0 %v3852
        %v3854 = vand.u32 %v231, 4294901760
        %v3855 = vsub.f32 %v231, %v3854
        %v3856 = vand.u32 %v3855, 4294901760
        %v3857 = vsub.f32 %v3855, %v3856
        %v3858 = vand.u32 %v3857, 4294901760
        %3859 = vmatpush.msra.mxu0 %v3858
        %v3860 = vand.u32 %v227, 4294901760
        %v3861 = vsub.f32 %v227, %v3860
        %v3862 = vand.u32 %v3861, 4294901760
        %v3863 = vsub.f32 %v3861, %v3862
        %v3864 = vand.u32 %v3863, 4294901760
        %3865 = vmatpush.msra.mxu0 %v3864
        %v3866 = vand.u32 %v220, 4294901760
        %3867 = vmatmul.f32.gmra.mxu0 %v3866
        %v3868 = vpop.f32.mrf.mxu0
        %v3869 = vadd.f32 %v3768, %v3868
        %3870 = vdwg.mxu0
        %v3871 = vand.u32 %v287, 4294901760
        %v3872 = vsub.f32 %v287, %v3871
        %3873 = vmatpush.msra.mxu0 %v3872
        %v3874 = vand.u32 %v283, 4294901760
        %v3875 = vsub.f32 %v283, %v3874
        %3876 = vmatpush.msra.mxu0 %v3875
        %v3877 = vand.u32 %v279, 4294901760
        %v3878 = vsub.f32 %v279, %v3877
        %3879 = vmatpush.msra.mxu0 %v3878
        %v3880 = vand.u32 %v275, 4294901760
        %v3881 = vsub.f32 %v275, %v3880
        %3882 = vmatpush.msra.mxu0 %v3881
        %v3883 = vand.u32 %v271, 4294901760
        %v3884 = vsub.f32 %v271, %v3883
        %3885 = vmatpush.msra.mxu0 %v3884
        %v3886 = vand.u32 %v267, 4294901760
        %v3887 = vsub.f32 %v267, %v3886
        %3888 = vmatpush.msra.mxu0 %v3887
        %v3889 = vand.u32 %v263, 4294901760
        %v3890 = vsub.f32 %v263, %v3889
        %3891 = vmatpush.msra.mxu0 %v3890
        %v3892 = vand.u32 %v259, 4294901760
        %v3893 = vsub.f32 %v259, %v3892
        %3894 = vmatpush.msra.mxu0 %v3893
        %v3895 = vand.u32 %v255, 4294901760
        %v3896 = vsub.f32 %v255, %v3895
        %3897 = vmatpush.msra.mxu0 %v3896
        %v3898 = vand.u32 %v251, 4294901760
        %v3899 = vsub.f32 %v251, %v3898
        %3900 = vmatpush.msra.mxu0 %v3899
        %v3901 = vand.u32 %v247, 4294901760
        %v3902 = vsub.f32 %v247, %v3901
        %3903 = vmatpush.msra.mxu0 %v3902
        %v3904 = vand.u32 %v243, 4294901760
        %v3905 = vsub.f32 %v243, %v3904
        %3906 = vmatpush.msra.mxu0 %v3905
        %v3907 = vand.u32 %v239, 4294901760
        %v3908 = vsub.f32 %v239, %v3907
        %3909 = vmatpush.msra.mxu0 %v3908
        %v3910 = vand.u32 %v235, 4294901760
        %v3911 = vsub.f32 %v235, %v3910
        %3912 = vmatpush.msra.mxu0 %v3911
        %v3913 = vand.u32 %v231, 4294901760
        %v3914 = vsub.f32 %v231, %v3913
        %3915 = vmatpush.msra.mxu0 %v3914
        %v3916 = vand.u32 %v227, 4294901760
        %v3917 = vsub.f32 %v227, %v3916
        %3918 = vmatpush.msra.mxu0 %v3917
        %v3919 = vand.u32 %v220, 4294901760
        %v3920 = vsub.f32 %v220, %v3919
        %3921 = vmatmul.f32.gmra.mxu0 %v3920
        %v3922 = vpop.f32.mrf.mxu0
        %v3923 = vadd.f32 %v3869, %v3922
        %3924 = vdwg.mxu0
        %v3925 = vand.u32 %v287, 4294901760
        %3926 = vmatpush.msra.mxu0 %v3925
        %v3927 = vand.u32 %v283, 4294901760
        %3928 = vmatpush.msra.mxu0 %v3927
        %v3929 = vand.u32 %v279, 4294901760
        %3930 = vmatpush.msra.mxu0 %v3929
        %v3931 = vand.u32 %v275, 4294901760
        %3932 = vmatpush.msra.mxu0 %v3931
        %v3933 = vand.u32 %v271, 4294901760
        %3934 = vmatpush.msra.mxu0 %v3933
        %v3935 = vand.u32 %v267, 4294901760
        %3936 = vmatpush.msra.mxu0 %v3935
        %v3937 = vand.u32 %v263, 4294901760
        %3938 = vmatpush.msra.mxu0 %v3937
        %v3939 = vand.u32 %v259, 4294901760
        %3940 = vmatpush.msra.mxu0 %v3939
        %v3941 = vand.u32 %v255, 4294901760
        %3942 = vmatpush.msra.mxu0 %v3941
        %v3943 = vand.u32 %v251, 4294901760
        %3944 = vmatpush.msra.mxu0 %v3943
        %v3945 = vand.u32 %v247, 4294901760
        %3946 = vmatpush.msra.mxu0 %v3945
        %v3947 = vand.u32 %v243, 4294901760
        %3948 = vmatpush.msra.mxu0 %v3947
        %v3949 = vand.u32 %v239, 4294901760
        %3950 = vmatpush.msra.mxu0 %v3949
        %v3951 = vand.u32 %v235, 4294901760
        %3952 = vmatpush.msra.mxu0 %v3951
        %v3953 = vand.u32 %v231, 4294901760
        %3954 = vmatpush.msra.mxu0 %v3953
        %v3955 = vand.u32 %v227, 4294901760
        %3956 = vmatpush.msra.mxu0 %v3955
        %v3957 = vand.u32 %v220, 4294901760
        %v3958 = vsub.f32 %v220, %v3957
        %v3959 = vand.u32 %v3958, 4294901760
        %3960 = vmatmul.f32.gmra.mxu0 %v3959
        %v3961 = vpop.f32.mrf.mxu0
        %v3962 = vadd.f32 %v3923, %v3961
        %3963 = vdwg.mxu0
        %v3964 = vand.u32 %v287, 4294901760
        %v3965 = vsub.f32 %v287, %v3964
        %v3966 = vand.u32 %v3965, 4294901760
        %3967 = vmatpush.msra.mxu0 %v3966
        %v3968 = vand.u32 %v283, 4294901760
        %v3969 = vsub.f32 %v283, %v3968
        %v3970 = vand.u32 %v3969, 4294901760
        %3971 = vmatpush.msra.mxu0 %v3970
        %v3972 = vand.u32 %v279, 4294901760
        %v3973 = vsub.f32 %v279, %v3972
        %v3974 = vand.u32 %v3973, 4294901760
        %3975 = vmatpush.msra.mxu0 %v3974
        %v3976 = vand.u32 %v275, 4294901760
        %v3977 = vsub.f32 %v275, %v3976
        %v3978 = vand.u32 %v3977, 4294901760
        %3979 = vmatpush.msra.mxu0 %v3978
        %v3980 = vand.u32 %v271, 4294901760
        %v3981 = vsub.f32 %v271, %v3980
        %v3982 = vand.u32 %v3981, 4294901760
        %3983 = vmatpush.msra.mxu0 %v3982
        %v3984 = vand.u32 %v267, 4294901760
        %v3985 = vsub.f32 %v267, %v3984
        %v3986 = vand.u32 %v3985, 4294901760
        %3987 = vmatpush.msra.mxu0 %v3986
        %v3988 = vand.u32 %v263, 4294901760
        %v3989 = vsub.f32 %v263, %v3988
        %v3990 = vand.u32 %v3989, 4294901760
        %3991 = vmatpush.msra.mxu0 %v3990
        %v3992 = vand.u32 %v259, 4294901760
        %v3993 = vsub.f32 %v259, %v3992
        %v3994 = vand.u32 %v3993, 4294901760
        %3995 = vmatpush.msra.mxu0 %v3994
        %v3996 = vand.u32 %v255, 4294901760
        %v3997 = vsub.f32 %v255, %v3996
        %v3998 = vand.u32 %v3997, 4294901760
        %3999 = vmatpush.msra.mxu0 %v3998
        %v4000 = vand.u32 %v251, 4294901760
        %v4001 = vsub.f32 %v251, %v4000
        %v4002 = vand.u32 %v4001, 4294901760
        %4003 = vmatpush.msra.mxu0 %v4002
        %v4004 = vand.u32 %v247, 4294901760
        %v4005 = vsub.f32 %v247, %v4004
        %v4006 = vand.u32 %v4005, 4294901760
        %4007 = vmatpush.msra.mxu0 %v4006
        %v4008 = vand.u32 %v243, 4294901760
        %v4009 = vsub.f32 %v243, %v4008
        %v4010 = vand.u32 %v4009, 4294901760
        %4011 = vmatpush.msra.mxu0 %v4010
        %v4012 = vand.u32 %v239, 4294901760
        %v4013 = vsub.f32 %v239, %v4012
        %v4014 = vand.u32 %v4013, 4294901760
        %4015 = vmatpush.msra.mxu0 %v4014
        %v4016 = vand.u32 %v235, 4294901760
        %v4017 = vsub.f32 %v235, %v4016
        %v4018 = vand.u32 %v4017, 4294901760
        %4019 = vmatpush.msra.mxu0 %v4018
        %v4020 = vand.u32 %v231, 4294901760
        %v4021 = vsub.f32 %v231, %v4020
        %v4022 = vand.u32 %v4021, 4294901760
        %4023 = vmatpush.msra.mxu0 %v4022
        %v4024 = vand.u32 %v227, 4294901760
        %v4025 = vsub.f32 %v227, %v4024
        %v4026 = vand.u32 %v4025, 4294901760
        %4027 = vmatpush.msra.mxu0 %v4026
        %v4028 = vand.u32 %v220, 4294901760
        %4029 = vmatmul.f32.gmra.mxu0 %v4028
        %v4030 = vpop.f32.mrf.mxu0
        %v4031 = vadd.f32 %v3962, %v4030
        %4032 = vdwg.mxu0
        %v4033 = vand.u32 %v287, 4294901760
        %4034 = vmatpush.msra.mxu0 %v4033
        %v4035 = vand.u32 %v283, 4294901760
        %4036 = vmatpush.msra.mxu0 %v4035
        %v4037 = vand.u32 %v279, 4294901760
        %4038 = vmatpush.msra.mxu0 %v4037
        %v4039 = vand.u32 %v275, 4294901760
        %4040 = vmatpush.msra.mxu0 %v4039
        %v4041 = vand.u32 %v271, 4294901760
        %4042 = vmatpush.msra.mxu0 %v4041
        %v4043 = vand.u32 %v267, 4294901760
        %4044 = vmatpush.msra.mxu0 %v4043
        %v4045 = vand.u32 %v263, 4294901760
        %4046 = vmatpush.msra.mxu0 %v4045
        %v4047 = vand.u32 %v259, 4294901760
        %4048 = vmatpush.msra.mxu0 %v4047
        %v4049 = vand.u32 %v255, 4294901760
        %4050 = vmatpush.msra.mxu0 %v4049
        %v4051 = vand.u32 %v251, 4294901760
        %4052 = vmatpush.msra.mxu0 %v4051
        %v4053 = vand.u32 %v247, 4294901760
        %4054 = vmatpush.msra.mxu0 %v4053
        %v4055 = vand.u32 %v243, 4294901760
        %4056 = vmatpush.msra.mxu0 %v4055
        %v4057 = vand.u32 %v239, 4294901760
        %4058 = vmatpush.msra.mxu0 %v4057
        %v4059 = vand.u32 %v235, 4294901760
        %4060 = vmatpush.msra.mxu0 %v4059
        %v4061 = vand.u32 %v231, 4294901760
        %4062 = vmatpush.msra.mxu0 %v4061
        %v4063 = vand.u32 %v227, 4294901760
        %4064 = vmatpush.msra.mxu0 %v4063
        %v4065 = vand.u32 %v220, 4294901760
        %4066 = vmatmul.f32.gmra.mxu0 %v4065
        %v4067 = vpop.f32.mrf.mxu0
        %v4068 = vadd.f32 %v4031, %v4067
        %4069 = vdwg.mxu0
        %v4070 = vand.u32 %v351, 4294901760
        %4071 = vmatpush.msra.mxu0 %v4070
        %v4072 = vand.u32 %v347, 4294901760
        %4073 = vmatpush.msra.mxu0 %v4072
        %v4074 = vand.u32 %v343, 4294901760
        %4075 = vmatpush.msra.mxu0 %v4074
        %v4076 = vand.u32 %v339, 4294901760
        %4077 = vmatpush.msra.mxu0 %v4076
        %v4078 = vand.u32 %v335, 4294901760
        %4079 = vmatpush.msra.mxu0 %v4078
        %v4080 = vand.u32 %v331, 4294901760
        %4081 = vmatpush.msra.mxu0 %v4080
        %v4082 = vand.u32 %v327, 4294901760
        %4083 = vmatpush.msra.mxu0 %v4082
        %v4084 = vand.u32 %v323, 4294901760
        %4085 = vmatpush.msra.mxu0 %v4084
        %v4086 = vand.u32 %v319, 4294901760
        %4087 = vmatpush.msra.mxu0 %v4086
        %v4088 = vand.u32 %v315, 4294901760
        %4089 = vmatpush.msra.mxu0 %v4088
        %v4090 = vand.u32 %v311, 4294901760
        %4091 = vmatpush.msra.mxu0 %v4090
        %v4092 = vand.u32 %v307, 4294901760
        %4093 = vmatpush.msra.mxu0 %v4092
        %v4094 = vand.u32 %v303, 4294901760
        %4095 = vmatpush.msra.mxu0 %v4094
        %v4096 = vand.u32 %v299, 4294901760
        %4097 = vmatpush.msra.mxu0 %v4096
        %v4098 = vand.u32 %v295, 4294901760
        %4099 = vmatpush.msra.mxu0 %v4098
        %v4100 = vand.u32 %v291, 4294901760
        %4101 = vmatpush.msra.mxu0 %v4100
        %v4102 = vand.u32 %v221, 4294901760
        %v4103 = vsub.f32 %v221, %v4102
        %v4104 = vand.u32 %v4103, 4294901760
        %v4105 = vsub.f32 %v4103, %v4104
        %v4106 = vand.u32 %v4105, 4294901760
        %4107 = vmatmul.f32.gmra.mxu0 %v4106
        %v4108 = vpop.f32.mrf.mxu0
        %v4109 = vadd.f32 %v4068, %v4108
        %4110 = vdwg.mxu0
        %v4111 = vand.u32 %v351, 4294901760
        %v4112 = vsub.f32 %v351, %v4111
        %v4113 = vand.u32 %v4112, 4294901760
        %v4114 = vsub.f32 %v4112, %v4113
        %v4115 = vand.u32 %v4114, 4294901760
        %4116 = vmatpush.msra.mxu0 %v4115
        %v4117 = vand.u32 %v347, 4294901760
        %v4118 = vsub.f32 %v347, %v4117
        %v4119 = vand.u32 %v4118, 4294901760
        %v4120 = vsub.f32 %v4118, %v4119
        %v4121 = vand.u32 %v4120, 4294901760
        %4122 = vmatpush.msra.mxu0 %v4121
        %v4123 = vand.u32 %v343, 4294901760
        %v4124 = vsub.f32 %v343, %v4123
        %v4125 = vand.u32 %v4124, 4294901760
        %v4126 = vsub.f32 %v4124, %v4125
        %v4127 = vand.u32 %v4126, 4294901760
        %4128 = vmatpush.msra.mxu0 %v4127
        %v4129 = vand.u32 %v339, 4294901760
        %v4130 = vsub.f32 %v339, %v4129
        %v4131 = vand.u32 %v4130, 4294901760
        %v4132 = vsub.f32 %v4130, %v4131
        %v4133 = vand.u32 %v4132, 4294901760
        %4134 = vmatpush.msra.mxu0 %v4133
        %v4135 = vand.u32 %v335, 4294901760
        %v4136 = vsub.f32 %v335, %v4135
        %v4137 = vand.u32 %v4136, 4294901760
        %v4138 = vsub.f32 %v4136, %v4137
        %v4139 = vand.u32 %v4138, 4294901760
        %4140 = vmatpush.msra.mxu0 %v4139
        %v4141 = vand.u32 %v331, 4294901760
        %v4142 = vsub.f32 %v331, %v4141
        %v4143 = vand.u32 %v4142, 4294901760
        %v4144 = vsub.f32 %v4142, %v4143
        %v4145 = vand.u32 %v4144, 4294901760
        %4146 = vmatpush.msra.mxu0 %v4145
        %v4147 = vand.u32 %v327, 4294901760
        %v4148 = vsub.f32 %v327, %v4147
        %v4149 = vand.u32 %v4148, 4294901760
        %v4150 = vsub.f32 %v4148, %v4149
        %v4151 = vand.u32 %v4150, 4294901760
        %4152 = vmatpush.msra.mxu0 %v4151
        %v4153 = vand.u32 %v323, 4294901760
        %v4154 = vsub.f32 %v323, %v4153
        %v4155 = vand.u32 %v4154, 4294901760
        %v4156 = vsub.f32 %v4154, %v4155
        %v4157 = vand.u32 %v4156, 4294901760
        %4158 = vmatpush.msra.mxu0 %v4157
        %v4159 = vand.u32 %v319, 4294901760
        %v4160 = vsub.f32 %v319, %v4159
        %v4161 = vand.u32 %v4160, 4294901760
        %v4162 = vsub.f32 %v4160, %v4161
        %v4163 = vand.u32 %v4162, 4294901760
        %4164 = vmatpush.msra.mxu0 %v4163
        %v4165 = vand.u32 %v315, 4294901760
        %v4166 = vsub.f32 %v315, %v4165
        %v4167 = vand.u32 %v4166, 4294901760
        %v4168 = vsub.f32 %v4166, %v4167
        %v4169 = vand.u32 %v4168, 4294901760
        %4170 = vmatpush.msra.mxu0 %v4169
        %v4171 = vand.u32 %v311, 4294901760
        %v4172 = vsub.f32 %v311, %v4171
        %v4173 = vand.u32 %v4172, 4294901760
        %v4174 = vsub.f32 %v4172, %v4173
        %v4175 = vand.u32 %v4174, 4294901760
        %4176 = vmatpush.msra.mxu0 %v4175
        %v4177 = vand.u32 %v307, 4294901760
        %v4178 = vsub.f32 %v307, %v4177
        %v4179 = vand.u32 %v4178, 4294901760
        %v4180 = vsub.f32 %v4178, %v4179
        %v4181 = vand.u32 %v4180, 4294901760
        %4182 = vmatpush.msra.mxu0 %v4181
        %v4183 = vand.u32 %v303, 4294901760
        %v4184 = vsub.f32 %v303, %v4183
        %v4185 = vand.u32 %v4184, 4294901760
        %v4186 = vsub.f32 %v4184, %v4185
        %v4187 = vand.u32 %v4186, 4294901760
        %4188 = vmatpush.msra.mxu0 %v4187
        %v4189 = vand.u32 %v299, 4294901760
        %v4190 = vsub.f32 %v299, %v4189
        %v4191 = vand.u32 %v4190, 4294901760
        %v4192 = vsub.f32 %v4190, %v4191
        %v4193 = vand.u32 %v4192, 4294901760
        %4194 = vmatpush.msra.mxu0 %v4193
        %v4195 = vand.u32 %v295, 4294901760
        %v4196 = vsub.f32 %v295, %v4195
        %v4197 = vand.u32 %v4196, 4294901760
        %v4198 = vsub.f32 %v4196, %v4197
        %v4199 = vand.u32 %v4198, 4294901760
        %4200 = vmatpush.msra.mxu0 %v4199
        %v4201 = vand.u32 %v291, 4294901760
        %v4202 = vsub.f32 %v291, %v4201
        %v4203 = vand.u32 %v4202, 4294901760
        %v4204 = vsub.f32 %v4202, %v4203
        %v4205 = vand.u32 %v4204, 4294901760
        %4206 = vmatpush.msra.mxu0 %v4205
        %v4207 = vand.u32 %v221, 4294901760
        %4208 = vmatmul.f32.gmra.mxu0 %v4207
        %v4209 = vpop.f32.mrf.mxu0
        %v4210 = vadd.f32 %v4109, %v4209
        %4211 = vdwg.mxu0
        %v4212 = vand.u32 %v351, 4294901760
        %v4213 = vsub.f32 %v351, %v4212
        %4214 = vmatpush.msra.mxu0 %v4213
        %v4215 = vand.u32 %v347, 4294901760
        %v4216 = vsub.f32 %v347, %v4215
        %4217 = vmatpush.msra.mxu0 %v4216
        %v4218 = vand.u32 %v343, 4294901760
        %v4219 = vsub.f32 %v343, %v4218
        %4220 = vmatpush.msra.mxu0 %v4219
        %v4221 = vand.u32 %v339, 4294901760
        %v4222 = vsub.f32 %v339, %v4221
        %4223 = vmatpush.msra.mxu0 %v4222
        %v4224 = vand.u32 %v335, 4294901760
        %v4225 = vsub.f32 %v335, %v4224
        %4226 = vmatpush.msra.mxu0 %v4225
        %v4227 = vand.u32 %v331, 4294901760
        %v4228 = vsub.f32 %v331, %v4227
        %4229 = vmatpush.msra.mxu0 %v4228
        %v4230 = vand.u32 %v327, 4294901760
        %v4231 = vsub.f32 %v327, %v4230
        %4232 = vmatpush.msra.mxu0 %v4231
        %v4233 = vand.u32 %v323, 4294901760
        %v4234 = vsub.f32 %v323, %v4233
        %4235 = vmatpush.msra.mxu0 %v4234
        %v4236 = vand.u32 %v319, 4294901760
        %v4237 = vsub.f32 %v319, %v4236
        %4238 = vmatpush.msra.mxu0 %v4237
        %v4239 = vand.u32 %v315, 4294901760
        %v4240 = vsub.f32 %v315, %v4239
        %4241 = vmatpush.msra.mxu0 %v4240
        %v4242 = vand.u32 %v311, 4294901760
        %v4243 = vsub.f32 %v311, %v4242
        %4244 = vmatpush.msra.mxu0 %v4243
        %v4245 = vand.u32 %v307, 4294901760
        %v4246 = vsub.f32 %v307, %v4245
        %4247 = vmatpush.msra.mxu0 %v4246
        %v4248 = vand.u32 %v303, 4294901760
        %v4249 = vsub.f32 %v303, %v4248
        %4250 = vmatpush.msra.mxu0 %v4249
        %v4251 = vand.u32 %v299, 4294901760
        %v4252 = vsub.f32 %v299, %v4251
        %4253 = vmatpush.msra.mxu0 %v4252
        %v4254 = vand.u32 %v295, 4294901760
        %v4255 = vsub.f32 %v295, %v4254
        %4256 = vmatpush.msra.mxu0 %v4255
        %v4257 = vand.u32 %v291, 4294901760
        %v4258 = vsub.f32 %v291, %v4257
        %4259 = vmatpush.msra.mxu0 %v4258
        %v4260 = vand.u32 %v221, 4294901760
        %v4261 = vsub.f32 %v221, %v4260
        %4262 = vmatmul.f32.gmra.mxu0 %v4261
        %v4263 = vpop.f32.mrf.mxu0
        %v4264 = vadd.f32 %v4210, %v4263
        %4265 = vdwg.mxu0
        %v4266 = vand.u32 %v351, 4294901760
        %4267 = vmatpush.msra.mxu0 %v4266
        %v4268 = vand.u32 %v347, 4294901760
        %4269 = vmatpush.msra.mxu0 %v4268
        %v4270 = vand.u32 %v343, 4294901760
        %4271 = vmatpush.msra.mxu0 %v4270
        %v4272 = vand.u32 %v339, 4294901760
        %4273 = vmatpush.msra.mxu0 %v4272
        %v4274 = vand.u32 %v335, 4294901760
        %4275 = vmatpush.msra.mxu0 %v4274
        %v4276 = vand.u32 %v331, 4294901760
        %4277 = vmatpush.msra.mxu0 %v4276
        %v4278 = vand.u32 %v327, 4294901760
        %4279 = vmatpush.msra.mxu0 %v4278
        %v4280 = vand.u32 %v323, 4294901760
        %4281 = vmatpush.msra.mxu0 %v4280
        %v4282 = vand.u32 %v319, 4294901760
        %4283 = vmatpush.msra.mxu0 %v4282
        %v4284 = vand.u32 %v315, 4294901760
        %4285 = vmatpush.msra.mxu0 %v4284
        %v4286 = vand.u32 %v311, 4294901760
        %4287 = vmatpush.msra.mxu0 %v4286
        %v4288 = vand.u32 %v307, 4294901760
        %4289 = vmatpush.msra.mxu0 %v4288
        %v4290 = vand.u32 %v303, 4294901760
        %4291 = vmatpush.msra.mxu0 %v4290
        %v4292 = vand.u32 %v299, 4294901760
        %4293 = vmatpush.msra.mxu0 %v4292
        %v4294 = vand.u32 %v295, 4294901760
        %4295 = vmatpush.msra.mxu0 %v4294
        %v4296 = vand.u32 %v291, 4294901760
        %4297 = vmatpush.msra.mxu0 %v4296
        %v4298 = vand.u32 %v221, 4294901760
        %v4299 = vsub.f32 %v221, %v4298
        %v4300 = vand.u32 %v4299, 4294901760
        %4301 = vmatmul.f32.gmra.mxu0 %v4300
        %v4302 = vpop.f32.mrf.mxu0
        %v4303 = vadd.f32 %v4264, %v4302
        %4304 = vdwg.mxu0
        %v4305 = vand.u32 %v351, 4294901760
        %v4306 = vsub.f32 %v351, %v4305
        %v4307 = vand.u32 %v4306, 4294901760
        %4308 = vmatpush.msra.mxu0 %v4307
        %v4309 = vand.u32 %v347, 4294901760
        %v4310 = vsub.f32 %v347, %v4309
        %v4311 = vand.u32 %v4310, 4294901760
        %4312 = vmatpush.msra.mxu0 %v4311
        %v4313 = vand.u32 %v343, 4294901760
        %v4314 = vsub.f32 %v343, %v4313
        %v4315 = vand.u32 %v4314, 4294901760
        %4316 = vmatpush.msra.mxu0 %v4315
        %v4317 = vand.u32 %v339, 4294901760
        %v4318 = vsub.f32 %v339, %v4317
        %v4319 = vand.u32 %v4318, 4294901760
        %4320 = vmatpush.msra.mxu0 %v4319
        %v4321 = vand.u32 %v335, 4294901760
        %v4322 = vsub.f32 %v335, %v4321
        %v4323 = vand.u32 %v4322, 4294901760
        %4324 = vmatpush.msra.mxu0 %v4323
        %v4325 = vand.u32 %v331, 4294901760
        %v4326 = vsub.f32 %v331, %v4325
        %v4327 = vand.u32 %v4326, 4294901760
        %4328 = vmatpush.msra.mxu0 %v4327
        %v4329 = vand.u32 %v327, 4294901760
        %v4330 = vsub.f32 %v327, %v4329
        %v4331 = vand.u32 %v4330, 4294901760
        %4332 = vmatpush.msra.mxu0 %v4331
        %v4333 = vand.u32 %v323, 4294901760
        %v4334 = vsub.f32 %v323, %v4333
        %v4335 = vand.u32 %v4334, 4294901760
        %4336 = vmatpush.msra.mxu0 %v4335
        %v4337 = vand.u32 %v319, 4294901760
        %v4338 = vsub.f32 %v319, %v4337
        %v4339 = vand.u32 %v4338, 4294901760
        %4340 = vmatpush.msra.mxu0 %v4339
        %v4341 = vand.u32 %v315, 4294901760
        %v4342 = vsub.f32 %v315, %v4341
        %v4343 = vand.u32 %v4342, 4294901760
        %4344 = vmatpush.msra.mxu0 %v4343
        %v4345 = vand.u32 %v311, 4294901760
        %v4346 = vsub.f32 %v311, %v4345
        %v4347 = vand.u32 %v4346, 4294901760
        %4348 = vmatpush.msra.mxu0 %v4347
        %v4349 = vand.u32 %v307, 4294901760
        %v4350 = vsub.f32 %v307, %v4349
        %v4351 = vand.u32 %v4350, 4294901760
        %4352 = vmatpush.msra.mxu0 %v4351
        %v4353 = vand.u32 %v303, 4294901760
        %v4354 = vsub.f32 %v303, %v4353
        %v4355 = vand.u32 %v4354, 4294901760
        %4356 = vmatpush.msra.mxu0 %v4355
        %v4357 = vand.u32 %v299, 4294901760
        %v4358 = vsub.f32 %v299, %v4357
        %v4359 = vand.u32 %v4358, 4294901760
        %4360 = vmatpush.msra.mxu0 %v4359
        %v4361 = vand.u32 %v295, 4294901760
        %v4362 = vsub.f32 %v295, %v4361
        %v4363 = vand.u32 %v4362, 4294901760
        %4364 = vmatpush.msra.mxu0 %v4363
        %v4365 = vand.u32 %v291, 4294901760
        %v4366 = vsub.f32 %v291, %v4365
        %v4367 = vand.u32 %v4366, 4294901760
        %4368 = vmatpush.msra.mxu0 %v4367
        %v4369 = vand.u32 %v221, 4294901760
        %4370 = vmatmul.f32.gmra.mxu0 %v4369
        %v4371 = vpop.f32.mrf.mxu0
        %v4372 = vadd.f32 %v4303, %v4371
        %4373 = vdwg.mxu0
        %v4374 = vand.u32 %v351, 4294901760
        %4375 = vmatpush.msra.mxu0 %v4374
        %v4376 = vand.u32 %v347, 4294901760
        %4377 = vmatpush.msra.mxu0 %v4376
        %v4378 = vand.u32 %v343, 4294901760
        %4379 = vmatpush.msra.mxu0 %v4378
        %v4380 = vand.u32 %v339, 4294901760
        %4381 = vmatpush.msra.mxu0 %v4380
        %v4382 = vand.u32 %v335, 4294901760
        %4383 = vmatpush.msra.mxu0 %v4382
        %v4384 = vand.u32 %v331, 4294901760
        %4385 = vmatpush.msra.mxu0 %v4384
        %v4386 = vand.u32 %v327, 4294901760
        %4387 = vmatpush.msra.mxu0 %v4386
        %v4388 = vand.u32 %v323, 4294901760
        %4389 = vmatpush.msra.mxu0 %v4388
        %v4390 = vand.u32 %v319, 4294901760
        %4391 = vmatpush.msra.mxu0 %v4390
        %v4392 = vand.u32 %v315, 4294901760
        %4393 = vmatpush.msra.mxu0 %v4392
        %v4394 = vand.u32 %v311, 4294901760
        %4395 = vmatpush.msra.mxu0 %v4394
        %v4396 = vand.u32 %v307, 4294901760
        %4397 = vmatpush.msra.mxu0 %v4396
        %v4398 = vand.u32 %v303, 4294901760
        %4399 = vmatpush.msra.mxu0 %v4398
        %v4400 = vand.u32 %v299, 4294901760
        %4401 = vmatpush.msra.mxu0 %v4400
        %v4402 = vand.u32 %v295, 4294901760
        %4403 = vmatpush.msra.mxu0 %v4402
        %v4404 = vand.u32 %v291, 4294901760
        %4405 = vmatpush.msra.mxu0 %v4404
        %v4406 = vand.u32 %v221, 4294901760
        %4407 = vmatmul.f32.gmra.mxu0 %v4406
        %v4408 = vpop.f32.mrf.mxu0
        %v4409 = vadd.f32 %v4372, %v4408
        %4410 = vdwg.mxu0
        %v4411 = vand.u32 %v415, 4294901760
        %4412 = vmatpush.msra.mxu0 %v4411
        %v4413 = vand.u32 %v411, 4294901760
        %4414 = vmatpush.msra.mxu0 %v4413
        %v4415 = vand.u32 %v407, 4294901760
        %4416 = vmatpush.msra.mxu0 %v4415
        %v4417 = vand.u32 %v403, 4294901760
        %4418 = vmatpush.msra.mxu0 %v4417
        %v4419 = vand.u32 %v399, 4294901760
        %4420 = vmatpush.msra.mxu0 %v4419
        %v4421 = vand.u32 %v395, 4294901760
        %4422 = vmatpush.msra.mxu0 %v4421
        %v4423 = vand.u32 %v391, 4294901760
        %4424 = vmatpush.msra.mxu0 %v4423
        %v4425 = vand.u32 %v387, 4294901760
        %4426 = vmatpush.msra.mxu0 %v4425
        %v4427 = vand.u32 %v383, 4294901760
        %4428 = vmatpush.msra.mxu0 %v4427
        %v4429 = vand.u32 %v379, 4294901760
        %4430 = vmatpush.msra.mxu0 %v4429
        %v4431 = vand.u32 %v375, 4294901760
        %4432 = vmatpush.msra.mxu0 %v4431
        %v4433 = vand.u32 %v371, 4294901760
        %4434 = vmatpush.msra.mxu0 %v4433
        %v4435 = vand.u32 %v367, 4294901760
        %4436 = vmatpush.msra.mxu0 %v4435
        %v4437 = vand.u32 %v363, 4294901760
        %4438 = vmatpush.msra.mxu0 %v4437
        %v4439 = vand.u32 %v359, 4294901760
        %4440 = vmatpush.msra.mxu0 %v4439
        %v4441 = vand.u32 %v355, 4294901760
        %4442 = vmatpush.msra.mxu0 %v4441
        %v4443 = vand.u32 %v222, 4294901760
        %v4444 = vsub.f32 %v222, %v4443
        %v4445 = vand.u32 %v4444, 4294901760
        %v4446 = vsub.f32 %v4444, %v4445
        %v4447 = vand.u32 %v4446, 4294901760
        %4448 = vmatmul.f32.gmra.mxu0 %v4447
        %v4449 = vpop.f32.mrf.mxu0
        %v4450 = vadd.f32 %v4409, %v4449
        %4451 = vdwg.mxu0
        %v4452 = vand.u32 %v415, 4294901760
        %v4453 = vsub.f32 %v415, %v4452
        %v4454 = vand.u32 %v4453, 4294901760
        %v4455 = vsub.f32 %v4453, %v4454
        %v4456 = vand.u32 %v4455, 4294901760
        %4457 = vmatpush.msra.mxu0 %v4456
        %v4458 = vand.u32 %v411, 4294901760
        %v4459 = vsub.f32 %v411, %v4458
        %v4460 = vand.u32 %v4459, 4294901760
        %v4461 = vsub.f32 %v4459, %v4460
        %v4462 = vand.u32 %v4461, 4294901760
        %4463 = vmatpush.msra.mxu0 %v4462
        %v4464 = vand.u32 %v407, 4294901760
        %v4465 = vsub.f32 %v407, %v4464
        %v4466 = vand.u32 %v4465, 4294901760
        %v4467 = vsub.f32 %v4465, %v4466
        %v4468 = vand.u32 %v4467, 4294901760
        %4469 = vmatpush.msra.mxu0 %v4468
        %v4470 = vand.u32 %v403, 4294901760
        %v4471 = vsub.f32 %v403, %v4470
        %v4472 = vand.u32 %v4471, 4294901760
        %v4473 = vsub.f32 %v4471, %v4472
        %v4474 = vand.u32 %v4473, 4294901760
        %4475 = vmatpush.msra.mxu0 %v4474
        %v4476 = vand.u32 %v399, 4294901760
        %v4477 = vsub.f32 %v399, %v4476
        %v4478 = vand.u32 %v4477, 4294901760
        %v4479 = vsub.f32 %v4477, %v4478
        %v4480 = vand.u32 %v4479, 4294901760
        %4481 = vmatpush.msra.mxu0 %v4480
        %v4482 = vand.u32 %v395, 4294901760
        %v4483 = vsub.f32 %v395, %v4482
        %v4484 = vand.u32 %v4483, 4294901760
        %v4485 = vsub.f32 %v4483, %v4484
        %v4486 = vand.u32 %v4485, 4294901760
        %4487 = vmatpush.msra.mxu0 %v4486
        %v4488 = vand.u32 %v391, 4294901760
        %v4489 = vsub.f32 %v391, %v4488
        %v4490 = vand.u32 %v4489, 4294901760
        %v4491 = vsub.f32 %v4489, %v4490
        %v4492 = vand.u32 %v4491, 4294901760
        %4493 = vmatpush.msra.mxu0 %v4492
        %v4494 = vand.u32 %v387, 4294901760
        %v4495 = vsub.f32 %v387, %v4494
        %v4496 = vand.u32 %v4495, 4294901760
        %v4497 = vsub.f32 %v4495, %v4496
        %v4498 = vand.u32 %v4497, 4294901760
        %4499 = vmatpush.msra.mxu0 %v4498
        %v4500 = vand.u32 %v383, 4294901760
        %v4501 = vsub.f32 %v383, %v4500
        %v4502 = vand.u32 %v4501, 4294901760
        %v4503 = vsub.f32 %v4501, %v4502
        %v4504 = vand.u32 %v4503, 4294901760
        %4505 = vmatpush.msra.mxu0 %v4504
        %v4506 = vand.u32 %v379, 4294901760
        %v4507 = vsub.f32 %v379, %v4506
        %v4508 = vand.u32 %v4507, 4294901760
        %v4509 = vsub.f32 %v4507, %v4508
        %v4510 = vand.u32 %v4509, 4294901760
        %4511 = vmatpush.msra.mxu0 %v4510
        %v4512 = vand.u32 %v375, 4294901760
        %v4513 = vsub.f32 %v375, %v4512
        %v4514 = vand.u32 %v4513, 4294901760
        %v4515 = vsub.f32 %v4513, %v4514
        %v4516 = vand.u32 %v4515, 4294901760
        %4517 = vmatpush.msra.mxu0 %v4516
        %v4518 = vand.u32 %v371, 4294901760
        %v4519 = vsub.f32 %v371, %v4518
        %v4520 = vand.u32 %v4519, 4294901760
        %v4521 = vsub.f32 %v4519, %v4520
        %v4522 = vand.u32 %v4521, 4294901760
        %4523 = vmatpush.msra.mxu0 %v4522
        %v4524 = vand.u32 %v367, 4294901760
        %v4525 = vsub.f32 %v367, %v4524
        %v4526 = vand.u32 %v4525, 4294901760
        %v4527 = vsub.f32 %v4525, %v4526
        %v4528 = vand.u32 %v4527, 4294901760
        %4529 = vmatpush.msra.mxu0 %v4528
        %v4530 = vand.u32 %v363, 4294901760
        %v4531 = vsub.f32 %v363, %v4530
        %v4532 = vand.u32 %v4531, 4294901760
        %v4533 = vsub.f32 %v4531, %v4532
        %v4534 = vand.u32 %v4533, 4294901760
        %4535 = vmatpush.msra.mxu0 %v4534
        %v4536 = vand.u32 %v359, 4294901760
        %v4537 = vsub.f32 %v359, %v4536
        %v4538 = vand.u32 %v4537, 4294901760
        %v4539 = vsub.f32 %v4537, %v4538
        %v4540 = vand.u32 %v4539, 4294901760
        %4541 = vmatpush.msra.mxu0 %v4540
        %v4542 = vand.u32 %v355, 4294901760
        %v4543 = vsub.f32 %v355, %v4542
        %v4544 = vand.u32 %v4543, 4294901760
        %v4545 = vsub.f32 %v4543, %v4544
        %v4546 = vand.u32 %v4545, 4294901760
        %4547 = vmatpush.msra.mxu0 %v4546
        %v4548 = vand.u32 %v222, 4294901760
        %4549 = vmatmul.f32.gmra.mxu0 %v4548
        %v4550 = vpop.f32.mrf.mxu0
        %v4551 = vadd.f32 %v4450, %v4550
        %4552 = vdwg.mxu0
        %v4553 = vand.u32 %v415, 4294901760
        %v4554 = vsub.f32 %v415, %v4553
        %4555 = vmatpush.msra.mxu0 %v4554
        %v4556 = vand.u32 %v411, 4294901760
        %v4557 = vsub.f32 %v411, %v4556
        %4558 = vmatpush.msra.mxu0 %v4557
        %v4559 = vand.u32 %v407, 4294901760
        %v4560 = vsub.f32 %v407, %v4559
        %4561 = vmatpush.msra.mxu0 %v4560
        %v4562 = vand.u32 %v403, 4294901760
        %v4563 = vsub.f32 %v403, %v4562
        %4564 = vmatpush.msra.mxu0 %v4563
        %v4565 = vand.u32 %v399, 4294901760
        %v4566 = vsub.f32 %v399, %v4565
        %4567 = vmatpush.msra.mxu0 %v4566
        %v4568 = vand.u32 %v395, 4294901760
        %v4569 = vsub.f32 %v395, %v4568
        %4570 = vmatpush.msra.mxu0 %v4569
        %v4571 = vand.u32 %v391, 4294901760
        %v4572 = vsub.f32 %v391, %v4571
        %4573 = vmatpush.msra.mxu0 %v4572
        %v4574 = vand.u32 %v387, 4294901760
        %v4575 = vsub.f32 %v387, %v4574
        %4576 = vmatpush.msra.mxu0 %v4575
        %v4577 = vand.u32 %v383, 4294901760
        %v4578 = vsub.f32 %v383, %v4577
        %4579 = vmatpush.msra.mxu0 %v4578
        %v4580 = vand.u32 %v379, 4294901760
        %v4581 = vsub.f32 %v379, %v4580
        %4582 = vmatpush.msra.mxu0 %v4581
        %v4583 = vand.u32 %v375, 4294901760
        %v4584 = vsub.f32 %v375, %v4583
        %4585 = vmatpush.msra.mxu0 %v4584
        %v4586 = vand.u32 %v371, 4294901760
        %v4587 = vsub.f32 %v371, %v4586
        %4588 = vmatpush.msra.mxu0 %v4587
        %v4589 = vand.u32 %v367, 4294901760
        %v4590 = vsub.f32 %v367, %v4589
        %4591 = vmatpush.msra.mxu0 %v4590
        %v4592 = vand.u32 %v363, 4294901760
        %v4593 = vsub.f32 %v363, %v4592
        %4594 = vmatpush.msra.mxu0 %v4593
        %v4595 = vand.u32 %v359, 4294901760
        %v4596 = vsub.f32 %v359, %v4595
        %4597 = vmatpush.msra.mxu0 %v4596
        %v4598 = vand.u32 %v355, 4294901760
        %v4599 = vsub.f32 %v355, %v4598
        %4600 = vmatpush.msra.mxu0 %v4599
        %v4601 = vand.u32 %v222, 4294901760
        %v4602 = vsub.f32 %v222, %v4601
        %4603 = vmatmul.f32.gmra.mxu0 %v4602
        %v4604 = vpop.f32.mrf.mxu0
        %v4605 = vadd.f32 %v4551, %v4604
        %4606 = vdwg.mxu0
        %v4607 = vand.u32 %v415, 4294901760
        %4608 = vmatpush.msra.mxu0 %v4607
        %v4609 = vand.u32 %v411, 4294901760
        %4610 = vmatpush.msra.mxu0 %v4609
        %v4611 = vand.u32 %v407, 4294901760
        %4612 = vmatpush.msra.mxu0 %v4611
        %v4613 = vand.u32 %v403, 4294901760
        %4614 = vmatpush.msra.mxu0 %v4613
        %v4615 = vand.u32 %v399, 4294901760
        %4616 = vmatpush.msra.mxu0 %v4615
        %v4617 = vand.u32 %v395, 4294901760
        %4618 = vmatpush.msra.mxu0 %v4617
        %v4619 = vand.u32 %v391, 4294901760
        %4620 = vmatpush.msra.mxu0 %v4619
        %v4621 = vand.u32 %v387, 4294901760
        %4622 = vmatpush.msra.mxu0 %v4621
        %v4623 = vand.u32 %v383, 4294901760
        %4624 = vmatpush.msra.mxu0 %v4623
        %v4625 = vand.u32 %v379, 4294901760
        %4626 = vmatpush.msra.mxu0 %v4625
        %v4627 = vand.u32 %v375, 4294901760
        %4628 = vmatpush.msra.mxu0 %v4627
        %v4629 = vand.u32 %v371, 4294901760
        %4630 = vmatpush.msra.mxu0 %v4629
        %v4631 = vand.u32 %v367, 4294901760
        %4632 = vmatpush.msra.mxu0 %v4631
        %v4633 = vand.u32 %v363, 4294901760
        %4634 = vmatpush.msra.mxu0 %v4633
        %v4635 = vand.u32 %v359, 4294901760
        %4636 = vmatpush.msra.mxu0 %v4635
        %v4637 = vand.u32 %v355, 4294901760
        %4638 = vmatpush.msra.mxu0 %v4637
        %v4639 = vand.u32 %v222, 4294901760
        %v4640 = vsub.f32 %v222, %v4639
        %v4641 = vand.u32 %v4640, 4294901760
        %4642 = vmatmul.f32.gmra.mxu0 %v4641
        %v4643 = vpop.f32.mrf.mxu0
        %v4644 = vadd.f32 %v4605, %v4643
        %4645 = vdwg.mxu0
        %v4646 = vand.u32 %v415, 4294901760
        %v4647 = vsub.f32 %v415, %v4646
        %v4648 = vand.u32 %v4647, 4294901760
        %4649 = vmatpush.msra.mxu0 %v4648
        %v4650 = vand.u32 %v411, 4294901760
        %v4651 = vsub.f32 %v411, %v4650
        %v4652 = vand.u32 %v4651, 4294901760
        %4653 = vmatpush.msra.mxu0 %v4652
        %v4654 = vand.u32 %v407, 4294901760
        %v4655 = vsub.f32 %v407, %v4654
        %v4656 = vand.u32 %v4655, 4294901760
        %4657 = vmatpush.msra.mxu0 %v4656
        %v4658 = vand.u32 %v403, 4294901760
        %v4659 = vsub.f32 %v403, %v4658
        %v4660 = vand.u32 %v4659, 4294901760
        %4661 = vmatpush.msra.mxu0 %v4660
        %v4662 = vand.u32 %v399, 4294901760
        %v4663 = vsub.f32 %v399, %v4662
        %v4664 = vand.u32 %v4663, 4294901760
        %4665 = vmatpush.msra.mxu0 %v4664
        %v4666 = vand.u32 %v395, 4294901760
        %v4667 = vsub.f32 %v395, %v4666
        %v4668 = vand.u32 %v4667, 4294901760
        %4669 = vmatpush.msra.mxu0 %v4668
        %v4670 = vand.u32 %v391, 4294901760
        %v4671 = vsub.f32 %v391, %v4670
        %v4672 = vand.u32 %v4671, 4294901760
        %4673 = vmatpush.msra.mxu0 %v4672
        %v4674 = vand.u32 %v387, 4294901760
        %v4675 = vsub.f32 %v387, %v4674
        %v4676 = vand.u32 %v4675, 4294901760
        %4677 = vmatpush.msra.mxu0 %v4676
        %v4678 = vand.u32 %v383, 4294901760
        %v4679 = vsub.f32 %v383, %v4678
        %v4680 = vand.u32 %v4679, 4294901760
        %4681 = vmatpush.msra.mxu0 %v4680
        %v4682 = vand.u32 %v379, 4294901760
        %v4683 = vsub.f32 %v379, %v4682
        %v4684 = vand.u32 %v4683, 4294901760
        %4685 = vmatpush.msra.mxu0 %v4684
        %v4686 = vand.u32 %v375, 4294901760
        %v4687 = vsub.f32 %v375, %v4686
        %v4688 = vand.u32 %v4687, 4294901760
        %4689 = vmatpush.msra.mxu0 %v4688
        %v4690 = vand.u32 %v371, 4294901760
        %v4691 = vsub.f32 %v371, %v4690
        %v4692 = vand.u32 %v4691, 4294901760
        %4693 = vmatpush.msra.mxu0 %v4692
        %v4694 = vand.u32 %v367, 4294901760
        %v4695 = vsub.f32 %v367, %v4694
        %v4696 = vand.u32 %v4695, 4294901760
        %4697 = vmatpush.msra.mxu0 %v4696
        %v4698 = vand.u32 %v363, 4294901760
        %v4699 = vsub.f32 %v363, %v4698
        %v4700 = vand.u32 %v4699, 4294901760
        %4701 = vmatpush.msra.mxu0 %v4700
        %v4702 = vand.u32 %v359, 4294901760
        %v4703 = vsub.f32 %v359, %v4702
        %v4704 = vand.u32 %v4703, 4294901760
        %4705 = vmatpush.msra.mxu0 %v4704
        %v4706 = vand.u32 %v355, 4294901760
        %v4707 = vsub.f32 %v355, %v4706
        %v4708 = vand.u32 %v4707, 4294901760
        %4709 = vmatpush.msra.mxu0 %v4708
        %v4710 = vand.u32 %v222, 4294901760
        %4711 = vmatmul.f32.gmra.mxu0 %v4710
        %v4712 = vpop.f32.mrf.mxu0
        %v4713 = vadd.f32 %v4644, %v4712
        %4714 = vdwg.mxu0
        %v4715 = vand.u32 %v415, 4294901760
        %4716 = vmatpush.msra.mxu0 %v4715
        %v4717 = vand.u32 %v411, 4294901760
        %4718 = vmatpush.msra.mxu0 %v4717
        %v4719 = vand.u32 %v407, 4294901760
        %4720 = vmatpush.msra.mxu0 %v4719
        %v4721 = vand.u32 %v403, 4294901760
        %4722 = vmatpush.msra.mxu0 %v4721
        %v4723 = vand.u32 %v399, 4294901760
        %4724 = vmatpush.msra.mxu0 %v4723
        %v4725 = vand.u32 %v395, 4294901760
        %4726 = vmatpush.msra.mxu0 %v4725
        %v4727 = vand.u32 %v391, 4294901760
        %4728 = vmatpush.msra.mxu0 %v4727
        %v4729 = vand.u32 %v387, 4294901760
        %4730 = vmatpush.msra.mxu0 %v4729
        %v4731 = vand.u32 %v383, 4294901760
        %4732 = vmatpush.msra.mxu0 %v4731
        %v4733 = vand.u32 %v379, 4294901760
        %4734 = vmatpush.msra.mxu0 %v4733
        %v4735 = vand.u32 %v375, 4294901760
        %4736 = vmatpush.msra.mxu0 %v4735
        %v4737 = vand.u32 %v371, 4294901760
        %4738 = vmatpush.msra.mxu0 %v4737
        %v4739 = vand.u32 %v367, 4294901760
        %4740 = vmatpush.msra.mxu0 %v4739
        %v4741 = vand.u32 %v363, 4294901760
        %4742 = vmatpush.msra.mxu0 %v4741
        %v4743 = vand.u32 %v359, 4294901760
        %4744 = vmatpush.msra.mxu0 %v4743
        %v4745 = vand.u32 %v355, 4294901760
        %4746 = vmatpush.msra.mxu0 %v4745
        %v4747 = vand.u32 %v222, 4294901760
        %4748 = vmatmul.f32.gmra.mxu0 %v4747
        %v4749 = vpop.f32.mrf.mxu0
        %v4750 = vadd.f32 %v4713, %v4749
        %4751 = vdwg.mxu0
        %v4752 = vand.u32 %v479, 4294901760
        %4753 = vmatpush.msra.mxu0 %v4752
        %v4754 = vand.u32 %v475, 4294901760
        %4755 = vmatpush.msra.mxu0 %v4754
        %v4756 = vand.u32 %v471, 4294901760
        %4757 = vmatpush.msra.mxu0 %v4756
        %v4758 = vand.u32 %v467, 4294901760
        %4759 = vmatpush.msra.mxu0 %v4758
        %v4760 = vand.u32 %v463, 4294901760
        %4761 = vmatpush.msra.mxu0 %v4760
        %v4762 = vand.u32 %v459, 4294901760
        %4763 = vmatpush.msra.mxu0 %v4762
        %v4764 = vand.u32 %v455, 4294901760
        %4765 = vmatpush.msra.mxu0 %v4764
        %v4766 = vand.u32 %v451, 4294901760
        %4767 = vmatpush.msra.mxu0 %v4766
        %v4768 = vand.u32 %v447, 4294901760
        %4769 = vmatpush.msra.mxu0 %v4768
        %v4770 = vand.u32 %v443, 4294901760
        %4771 = vmatpush.msra.mxu0 %v4770
        %v4772 = vand.u32 %v439, 4294901760
        %4773 = vmatpush.msra.mxu0 %v4772
        %v4774 = vand.u32 %v435, 4294901760
        %4775 = vmatpush.msra.mxu0 %v4774
        %v4776 = vand.u32 %v431, 4294901760
        %4777 = vmatpush.msra.mxu0 %v4776
        %v4778 = vand.u32 %v427, 4294901760
        %4779 = vmatpush.msra.mxu0 %v4778
        %v4780 = vand.u32 %v423, 4294901760
        %4781 = vmatpush.msra.mxu0 %v4780
        %v4782 = vand.u32 %v419, 4294901760
        %4783 = vmatpush.msra.mxu0 %v4782
        %v4784 = vand.u32 %v223, 4294901760
        %v4785 = vsub.f32 %v223, %v4784
        %v4786 = vand.u32 %v4785, 4294901760
        %v4787 = vsub.f32 %v4785, %v4786
        %v4788 = vand.u32 %v4787, 4294901760
        %4789 = vmatmul.f32.gmra.mxu0 %v4788
        %v4790 = vpop.f32.mrf.mxu0
        %v4791 = vadd.f32 %v4750, %v4790
        %4792 = vdwg.mxu0
        %v4793 = vand.u32 %v479, 4294901760
        %v4794 = vsub.f32 %v479, %v4793
        %v4795 = vand.u32 %v4794, 4294901760
        %v4796 = vsub.f32 %v4794, %v4795
        %v4797 = vand.u32 %v4796, 4294901760
        %4798 = vmatpush.msra.mxu0 %v4797
        %v4799 = vand.u32 %v475, 4294901760
        %v4800 = vsub.f32 %v475, %v4799
        %v4801 = vand.u32 %v4800, 4294901760
        %v4802 = vsub.f32 %v4800, %v4801
        %v4803 = vand.u32 %v4802, 4294901760
        %4804 = vmatpush.msra.mxu0 %v4803
        %v4805 = vand.u32 %v471, 4294901760
        %v4806 = vsub.f32 %v471, %v4805
        %v4807 = vand.u32 %v4806, 4294901760
        %v4808 = vsub.f32 %v4806, %v4807
        %v4809 = vand.u32 %v4808, 4294901760
        %4810 = vmatpush.msra.mxu0 %v4809
        %v4811 = vand.u32 %v467, 4294901760
        %v4812 = vsub.f32 %v467, %v4811
        %v4813 = vand.u32 %v4812, 4294901760
        %v4814 = vsub.f32 %v4812, %v4813
        %v4815 = vand.u32 %v4814, 4294901760
        %4816 = vmatpush.msra.mxu0 %v4815
        %v4817 = vand.u32 %v463, 4294901760
        %v4818 = vsub.f32 %v463, %v4817
        %v4819 = vand.u32 %v4818, 4294901760
        %v4820 = vsub.f32 %v4818, %v4819
        %v4821 = vand.u32 %v4820, 4294901760
        %4822 = vmatpush.msra.mxu0 %v4821
        %v4823 = vand.u32 %v459, 4294901760
        %v4824 = vsub.f32 %v459, %v4823
        %v4825 = vand.u32 %v4824, 4294901760
        %v4826 = vsub.f32 %v4824, %v4825
        %v4827 = vand.u32 %v4826, 4294901760
        %4828 = vmatpush.msra.mxu0 %v4827
        %v4829 = vand.u32 %v455, 4294901760
        %v4830 = vsub.f32 %v455, %v4829
        %v4831 = vand.u32 %v4830, 4294901760
        %v4832 = vsub.f32 %v4830, %v4831
        %v4833 = vand.u32 %v4832, 4294901760
        %4834 = vmatpush.msra.mxu0 %v4833
        %v4835 = vand.u32 %v451, 4294901760
        %v4836 = vsub.f32 %v451, %v4835
        %v4837 = vand.u32 %v4836, 4294901760
        %v4838 = vsub.f32 %v4836, %v4837
        %v4839 = vand.u32 %v4838, 4294901760
        %4840 = vmatpush.msra.mxu0 %v4839
        %v4841 = vand.u32 %v447, 4294901760
        %v4842 = vsub.f32 %v447, %v4841
        %v4843 = vand.u32 %v4842, 4294901760
        %v4844 = vsub.f32 %v4842, %v4843
        %v4845 = vand.u32 %v4844, 4294901760
        %4846 = vmatpush.msra.mxu0 %v4845
        %v4847 = vand.u32 %v443, 4294901760
        %v4848 = vsub.f32 %v443, %v4847
        %v4849 = vand.u32 %v4848, 4294901760
        %v4850 = vsub.f32 %v4848, %v4849
        %v4851 = vand.u32 %v4850, 4294901760
        %4852 = vmatpush.msra.mxu0 %v4851
        %v4853 = vand.u32 %v439, 4294901760
        %v4854 = vsub.f32 %v439, %v4853
        %v4855 = vand.u32 %v4854, 4294901760
        %v4856 = vsub.f32 %v4854, %v4855
        %v4857 = vand.u32 %v4856, 4294901760
        %4858 = vmatpush.msra.mxu0 %v4857
        %v4859 = vand.u32 %v435, 4294901760
        %v4860 = vsub.f32 %v435, %v4859
        %v4861 = vand.u32 %v4860, 4294901760
        %v4862 = vsub.f32 %v4860, %v4861
        %v4863 = vand.u32 %v4862, 4294901760
        %4864 = vmatpush.msra.mxu0 %v4863
        %v4865 = vand.u32 %v431, 4294901760
        %v4866 = vsub.f32 %v431, %v4865
        %v4867 = vand.u32 %v4866, 4294901760
        %v4868 = vsub.f32 %v4866, %v4867
        %v4869 = vand.u32 %v4868, 4294901760
        %4870 = vmatpush.msra.mxu0 %v4869
        %v4871 = vand.u32 %v427, 4294901760
        %v4872 = vsub.f32 %v427, %v4871
        %v4873 = vand.u32 %v4872, 4294901760
        %v4874 = vsub.f32 %v4872, %v4873
        %v4875 = vand.u32 %v4874, 4294901760
        %4876 = vmatpush.msra.mxu0 %v4875
        %v4877 = vand.u32 %v423, 4294901760
        %v4878 = vsub.f32 %v423, %v4877
        %v4879 = vand.u32 %v4878, 4294901760
        %v4880 = vsub.f32 %v4878, %v4879
        %v4881 = vand.u32 %v4880, 4294901760
        %4882 = vmatpush.msra.mxu0 %v4881
        %v4883 = vand.u32 %v419, 4294901760
        %v4884 = vsub.f32 %v419, %v4883
        %v4885 = vand.u32 %v4884, 4294901760
        %v4886 = vsub.f32 %v4884, %v4885
        %v4887 = vand.u32 %v4886, 4294901760
        %4888 = vmatpush.msra.mxu0 %v4887
        %v4889 = vand.u32 %v223, 4294901760
        %4890 = vmatmul.f32.gmra.mxu0 %v4889
        %v4891 = vpop.f32.mrf.mxu0
        %v4892 = vadd.f32 %v4791, %v4891
        %4893 = vdwg.mxu0
        %v4894 = vand.u32 %v479, 4294901760
        %v4895 = vsub.f32 %v479, %v4894
        %4896 = vmatpush.msra.mxu0 %v4895
        %v4897 = vand.u32 %v475, 4294901760
        %v4898 = vsub.f32 %v475, %v4897
        %4899 = vmatpush.msra.mxu0 %v4898
        %v4900 = vand.u32 %v471, 4294901760
        %v4901 = vsub.f32 %v471, %v4900
        %4902 = vmatpush.msra.mxu0 %v4901
        %v4903 = vand.u32 %v467, 4294901760
        %v4904 = vsub.f32 %v467, %v4903
        %4905 = vmatpush.msra.mxu0 %v4904
        %v4906 = vand.u32 %v463, 4294901760
        %v4907 = vsub.f32 %v463, %v4906
        %4908 = vmatpush.msra.mxu0 %v4907
        %v4909 = vand.u32 %v459, 4294901760
        %v4910 = vsub.f32 %v459, %v4909
        %4911 = vmatpush.msra.mxu0 %v4910
        %v4912 = vand.u32 %v455, 4294901760
        %v4913 = vsub.f32 %v455, %v4912
        %4914 = vmatpush.msra.mxu0 %v4913
        %v4915 = vand.u32 %v451, 4294901760
        %v4916 = vsub.f32 %v451, %v4915
        %4917 = vmatpush.msra.mxu0 %v4916
        %v4918 = vand.u32 %v447, 4294901760
        %v4919 = vsub.f32 %v447, %v4918
        %4920 = vmatpush.msra.mxu0 %v4919
        %v4921 = vand.u32 %v443, 4294901760
        %v4922 = vsub.f32 %v443, %v4921
        %4923 = vmatpush.msra.mxu0 %v4922
        %v4924 = vand.u32 %v439, 4294901760
        %v4925 = vsub.f32 %v439, %v4924
        %4926 = vmatpush.msra.mxu0 %v4925
        %v4927 = vand.u32 %v435, 4294901760
        %v4928 = vsub.f32 %v435, %v4927
        %4929 = vmatpush.msra.mxu0 %v4928
        %v4930 = vand.u32 %v431, 4294901760
        %v4931 = vsub.f32 %v431, %v4930
        %4932 = vmatpush.msra.mxu0 %v4931
        %v4933 = vand.u32 %v427, 4294901760
        %v4934 = vsub.f32 %v427, %v4933
        %4935 = vmatpush.msra.mxu0 %v4934
        %v4936 = vand.u32 %v423, 4294901760
        %v4937 = vsub.f32 %v423, %v4936
        %4938 = vmatpush.msra.mxu0 %v4937
        %v4939 = vand.u32 %v419, 4294901760
        %v4940 = vsub.f32 %v419, %v4939
        %4941 = vmatpush.msra.mxu0 %v4940
        %v4942 = vand.u32 %v223, 4294901760
        %v4943 = vsub.f32 %v223, %v4942
        %4944 = vmatmul.f32.gmra.mxu0 %v4943
        %v4945 = vpop.f32.mrf.mxu0
        %v4946 = vadd.f32 %v4892, %v4945
        %4947 = vdwg.mxu0
        %v4948 = vand.u32 %v479, 4294901760
        %4949 = vmatpush.msra.mxu0 %v4948
        %v4950 = vand.u32 %v475, 4294901760
        %4951 = vmatpush.msra.mxu0 %v4950
        %v4952 = vand.u32 %v471, 4294901760
        %4953 = vmatpush.msra.mxu0 %v4952
        %v4954 = vand.u32 %v467, 4294901760
        %4955 = vmatpush.msra.mxu0 %v4954
        %v4956 = vand.u32 %v463, 4294901760
        %4957 = vmatpush.msra.mxu0 %v4956
        %v4958 = vand.u32 %v459, 4294901760
        %4959 = vmatpush.msra.mxu0 %v4958
        %v4960 = vand.u32 %v455, 4294901760
        %4961 = vmatpush.msra.mxu0 %v4960
        %v4962 = vand.u32 %v451, 4294901760
        %4963 = vmatpush.msra.mxu0 %v4962
        %v4964 = vand.u32 %v447, 4294901760
        %4965 = vmatpush.msra.mxu0 %v4964
        %v4966 = vand.u32 %v443, 4294901760
        %4967 = vmatpush.msra.mxu0 %v4966
        %v4968 = vand.u32 %v439, 4294901760
        %4969 = vmatpush.msra.mxu0 %v4968
        %v4970 = vand.u32 %v435, 4294901760
        %4971 = vmatpush.msra.mxu0 %v4970
        %v4972 = vand.u32 %v431, 4294901760
        %4973 = vmatpush.msra.mxu0 %v4972
        %v4974 = vand.u32 %v427, 4294901760
        %4975 = vmatpush.msra.mxu0 %v4974
        %v4976 = vand.u32 %v423, 4294901760
        %4977 = vmatpush.msra.mxu0 %v4976
        %v4978 = vand.u32 %v419, 4294901760
        %4979 = vmatpush.msra.mxu0 %v4978
        %v4980 = vand.u32 %v223, 4294901760
        %v4981 = vsub.f32 %v223, %v4980
        %v4982 = vand.u32 %v4981, 4294901760
        %4983 = vmatmul.f32.gmra.mxu0 %v4982
        %v4984 = vpop.f32.mrf.mxu0
        %v4985 = vadd.f32 %v4946, %v4984
        %4986 = vdwg.mxu0
        %v4987 = vand.u32 %v479, 4294901760
        %v4988 = vsub.f32 %v479, %v4987
        %v4989 = vand.u32 %v4988, 4294901760
        %4990 = vmatpush.msra.mxu0 %v4989
        %v4991 = vand.u32 %v475, 4294901760
        %v4992 = vsub.f32 %v475, %v4991
        %v4993 = vand.u32 %v4992, 4294901760
        %4994 = vmatpush.msra.mxu0 %v4993
        %v4995 = vand.u32 %v471, 4294901760
        %v4996 = vsub.f32 %v471, %v4995
        %v4997 = vand.u32 %v4996, 4294901760
        %4998 = vmatpush.msra.mxu0 %v4997
        %v4999 = vand.u32 %v467, 4294901760
        %v5000 = vsub.f32 %v467, %v4999
        %v5001 = vand.u32 %v5000, 4294901760
        %5002 = vmatpush.msra.mxu0 %v5001
        %v5003 = vand.u32 %v463, 4294901760
        %v5004 = vsub.f32 %v463, %v5003
        %v5005 = vand.u32 %v5004, 4294901760
        %5006 = vmatpush.msra.mxu0 %v5005
        %v5007 = vand.u32 %v459, 4294901760
        %v5008 = vsub.f32 %v459, %v5007
        %v5009 = vand.u32 %v5008, 4294901760
        %5010 = vmatpush.msra.mxu0 %v5009
        %v5011 = vand.u32 %v455, 4294901760
        %v5012 = vsub.f32 %v455, %v5011
        %v5013 = vand.u32 %v5012, 4294901760
        %5014 = vmatpush.msra.mxu0 %v5013
        %v5015 = vand.u32 %v451, 4294901760
        %v5016 = vsub.f32 %v451, %v5015
        %v5017 = vand.u32 %v5016, 4294901760
        %5018 = vmatpush.msra.mxu0 %v5017
        %v5019 = vand.u32 %v447, 4294901760
        %v5020 = vsub.f32 %v447, %v5019
        %v5021 = vand.u32 %v5020, 4294901760
        %5022 = vmatpush.msra.mxu0 %v5021
        %v5023 = vand.u32 %v443, 4294901760
        %v5024 = vsub.f32 %v443, %v5023
        %v5025 = vand.u32 %v5024, 4294901760
        %5026 = vmatpush.msra.mxu0 %v5025
        %v5027 = vand.u32 %v439, 4294901760
        %v5028 = vsub.f32 %v439, %v5027
        %v5029 = vand.u32 %v5028, 4294901760
        %5030 = vmatpush.msra.mxu0 %v5029
        %v5031 = vand.u32 %v435, 4294901760
        %v5032 = vsub.f32 %v435, %v5031
        %v5033 = vand.u32 %v5032, 4294901760
        %5034 = vmatpush.msra.mxu0 %v5033
        %v5035 = vand.u32 %v431, 4294901760
        %v5036 = vsub.f32 %v431, %v5035
        %v5037 = vand.u32 %v5036, 4294901760
        %5038 = vmatpush.msra.mxu0 %v5037
        %v5039 = vand.u32 %v427, 4294901760
        %v5040 = vsub.f32 %v427, %v5039
        %v5041 = vand.u32 %v5040, 4294901760
        %5042 = vmatpush.msra.mxu0 %v5041
        %v5043 = vand.u32 %v423, 4294901760
        %v5044 = vsub.f32 %v423, %v5043
        %v5045 = vand.u32 %v5044, 4294901760
        %5046 = vmatpush.msra.mxu0 %v5045
        %v5047 = vand.u32 %v419, 4294901760
        %v5048 = vsub.f32 %v419, %v5047
        %v5049 = vand.u32 %v5048, 4294901760
        %5050 = vmatpush.msra.mxu0 %v5049
        %v5051 = vand.u32 %v223, 4294901760
        %5052 = vmatmul.f32.gmra.mxu0 %v5051
        %v5053 = vpop.f32.mrf.mxu0
        %v5054 = vadd.f32 %v4985, %v5053
        %5055 = vdwg.mxu0
        %v5056 = vand.u32 %v479, 4294901760
        %5057 = vmatpush.msra.mxu0 %v5056
        %v5058 = vand.u32 %v475, 4294901760
        %5059 = vmatpush.msra.mxu0 %v5058
        %v5060 = vand.u32 %v471, 4294901760
        %5061 = vmatpush.msra.mxu0 %v5060
        %v5062 = vand.u32 %v467, 4294901760
        %5063 = vmatpush.msra.mxu0 %v5062
        %v5064 = vand.u32 %v463, 4294901760
        %5065 = vmatpush.msra.mxu0 %v5064
        %v5066 = vand.u32 %v459, 4294901760
        %5067 = vmatpush.msra.mxu0 %v5066
        %v5068 = vand.u32 %v455, 4294901760
        %5069 = vmatpush.msra.mxu0 %v5068
        %v5070 = vand.u32 %v451, 4294901760
        %5071 = vmatpush.msra.mxu0 %v5070
        %v5072 = vand.u32 %v447, 4294901760
        %5073 = vmatpush.msra.mxu0 %v5072
        %v5074 = vand.u32 %v443, 4294901760
        %5075 = vmatpush.msra.mxu0 %v5074
        %v5076 = vand.u32 %v439, 4294901760
        %5077 = vmatpush.msra.mxu0 %v5076
        %v5078 = vand.u32 %v435, 4294901760
        %5079 = vmatpush.msra.mxu0 %v5078
        %v5080 = vand.u32 %v431, 4294901760
        %5081 = vmatpush.msra.mxu0 %v5080
        %v5082 = vand.u32 %v427, 4294901760
        %5083 = vmatpush.msra.mxu0 %v5082
        %v5084 = vand.u32 %v423, 4294901760
        %5085 = vmatpush.msra.mxu0 %v5084
        %v5086 = vand.u32 %v419, 4294901760
        %5087 = vmatpush.msra.mxu0 %v5086
        %v5088 = vand.u32 %v223, 4294901760
        %5089 = vmatmul.f32.gmra.mxu0 %v5088
        %v5090 = vpop.f32.mrf.mxu0
        %v5091 = vadd.f32 %v5054, %v5090
        %5092 = vdwg.mxu0
        %5093 = vmatpush.msra.mxu0 0.0
        %5094 = vmatpush.msra.mxu0 0.0
        %5095 = vmatpush.msra.mxu0 0.0
        %5096 = vmatpush.msra.mxu0 0.0
        %5097 = vmatpush.msra.mxu0 0.0
        %5098 = vmatpush.msra.mxu0 0.0
        %5099 = vmatpush.msra.mxu0 0.0
        %5100 = vmatpush.msra.mxu0 0.0
        %v5101 = vand.u32 %v511, 4294901760
        %5102 = vmatpush.msra.mxu0 %v5101
        %v5103 = vand.u32 %v507, 4294901760
        %5104 = vmatpush.msra.mxu0 %v5103
        %v5105 = vand.u32 %v503, 4294901760
        %5106 = vmatpush.msra.mxu0 %v5105
        %v5107 = vand.u32 %v499, 4294901760
        %5108 = vmatpush.msra.mxu0 %v5107
        %v5109 = vand.u32 %v495, 4294901760
        %5110 = vmatpush.msra.mxu0 %v5109
        %v5111 = vand.u32 %v491, 4294901760
        %5112 = vmatpush.msra.mxu0 %v5111
        %v5113 = vand.u32 %v487, 4294901760
        %5114 = vmatpush.msra.mxu0 %v5113
        %v5115 = vand.u32 %v483, 4294901760
        %5116 = vmatpush.msra.mxu0 %v5115
        %v5117 = vand.u32 %v525, 4294901760
        %v5118 = vsub.f32 %v525, %v5117
        %v5119 = vand.u32 %v5118, 4294901760
        %v5120 = vsub.f32 %v5118, %v5119
        %v5121 = vand.u32 %v5120, 4294901760
        %5122 = vmatmul.f32.gmra.mxu0 %v5121
        %v5123 = vpop.f32.mrf.mxu0
        %v5124 = vadd.f32 %v5091, %v5123
        %5125 = vdwg.mxu0
        %5126 = vmatpush.msra.mxu0 0.0
        %5127 = vmatpush.msra.mxu0 0.0
        %5128 = vmatpush.msra.mxu0 0.0
        %5129 = vmatpush.msra.mxu0 0.0
        %5130 = vmatpush.msra.mxu0 0.0
        %5131 = vmatpush.msra.mxu0 0.0
        %5132 = vmatpush.msra.mxu0 0.0
        %5133 = vmatpush.msra.mxu0 0.0
        %v5134 = vand.u32 %v511, 4294901760
        %v5135 = vsub.f32 %v511, %v5134
        %v5136 = vand.u32 %v5135, 4294901760
        %v5137 = vsub.f32 %v5135, %v5136
        %v5138 = vand.u32 %v5137, 4294901760
        %5139 = vmatpush.msra.mxu0 %v5138
        %v5140 = vand.u32 %v507, 4294901760
        %v5141 = vsub.f32 %v507, %v5140
        %v5142 = vand.u32 %v5141, 4294901760
        %v5143 = vsub.f32 %v5141, %v5142
        %v5144 = vand.u32 %v5143, 4294901760
        %5145 = vmatpush.msra.mxu0 %v5144
        %v5146 = vand.u32 %v503, 4294901760
        %v5147 = vsub.f32 %v503, %v5146
        %v5148 = vand.u32 %v5147, 4294901760
        %v5149 = vsub.f32 %v5147, %v5148
        %v5150 = vand.u32 %v5149, 4294901760
        %5151 = vmatpush.msra.mxu0 %v5150
        %v5152 = vand.u32 %v499, 4294901760
        %v5153 = vsub.f32 %v499, %v5152
        %v5154 = vand.u32 %v5153, 4294901760
        %v5155 = vsub.f32 %v5153, %v5154
        %v5156 = vand.u32 %v5155, 4294901760
        %5157 = vmatpush.msra.mxu0 %v5156
        %v5158 = vand.u32 %v495, 4294901760
        %v5159 = vsub.f32 %v495, %v5158
        %v5160 = vand.u32 %v5159, 4294901760
        %v5161 = vsub.f32 %v5159, %v5160
        %v5162 = vand.u32 %v5161, 4294901760
        %5163 = vmatpush.msra.mxu0 %v5162
        %v5164 = vand.u32 %v491, 4294901760
        %v5165 = vsub.f32 %v491, %v5164
        %v5166 = vand.u32 %v5165, 4294901760
        %v5167 = vsub.f32 %v5165, %v5166
        %v5168 = vand.u32 %v5167, 4294901760
        %5169 = vmatpush.msra.mxu0 %v5168
        %v5170 = vand.u32 %v487, 4294901760
        %v5171 = vsub.f32 %v487, %v5170
        %v5172 = vand.u32 %v5171, 4294901760
        %v5173 = vsub.f32 %v5171, %v5172
        %v5174 = vand.u32 %v5173, 4294901760
        %5175 = vmatpush.msra.mxu0 %v5174
        %v5176 = vand.u32 %v483, 4294901760
        %v5177 = vsub.f32 %v483, %v5176
        %v5178 = vand.u32 %v5177, 4294901760
        %v5179 = vsub.f32 %v5177, %v5178
        %v5180 = vand.u32 %v5179, 4294901760
        %5181 = vmatpush.msra.mxu0 %v5180
        %v5182 = vand.u32 %v525, 4294901760
        %5183 = vmatmul.f32.gmra.mxu0 %v5182
        %v5184 = vpop.f32.mrf.mxu0
        %v5185 = vadd.f32 %v5124, %v5184
        %5186 = vdwg.mxu0
        %5187 = vmatpush.msra.mxu0 0.0
        %5188 = vmatpush.msra.mxu0 0.0
        %5189 = vmatpush.msra.mxu0 0.0
        %5190 = vmatpush.msra.mxu0 0.0
        %5191 = vmatpush.msra.mxu0 0.0
        %5192 = vmatpush.msra.mxu0 0.0
        %5193 = vmatpush.msra.mxu0 0.0
        %5194 = vmatpush.msra.mxu0 0.0
        %v5195 = vand.u32 %v511, 4294901760
        %v5196 = vsub.f32 %v511, %v5195
        %5197 = vmatpush.msra.mxu0 %v5196
        %v5198 = vand.u32 %v507, 4294901760
        %v5199 = vsub.f32 %v507, %v5198
        %5200 = vmatpush.msra.mxu0 %v5199
        %v5201 = vand.u32 %v503, 4294901760
        %v5202 = vsub.f32 %v503, %v5201
        %5203 = vmatpush.msra.mxu0 %v5202
        %v5204 = vand.u32 %v499, 4294901760
        %v5205 = vsub.f32 %v499, %v5204
        %5206 = vmatpush.msra.mxu0 %v5205
        %v5207 = vand.u32 %v495, 4294901760
        %v5208 = vsub.f32 %v495, %v5207
        %5209 = vmatpush.msra.mxu0 %v5208
        %v5210 = vand.u32 %v491, 4294901760
        %v5211 = vsub.f32 %v491, %v5210
        %5212 = vmatpush.msra.mxu0 %v5211
        %v5213 = vand.u32 %v487, 4294901760
        %v5214 = vsub.f32 %v487, %v5213
        %5215 = vmatpush.msra.mxu0 %v5214
        %v5216 = vand.u32 %v483, 4294901760
        %v5217 = vsub.f32 %v483, %v5216
        %5218 = vmatpush.msra.mxu0 %v5217
        %v5219 = vand.u32 %v525, 4294901760
        %v5220 = vsub.f32 %v525, %v5219
        %5221 = vmatmul.f32.gmra.mxu0 %v5220
        %v5222 = vpop.f32.mrf.mxu0
        %v5223 = vadd.f32 %v5185, %v5222
        %5224 = vdwg.mxu0
        %5225 = vmatpush.msra.mxu0 0.0
        %5226 = vmatpush.msra.mxu0 0.0
        %5227 = vmatpush.msra.mxu0 0.0
        %5228 = vmatpush.msra.mxu0 0.0
        %5229 = vmatpush.msra.mxu0 0.0
        %5230 = vmatpush.msra.mxu0 0.0
        %5231 = vmatpush.msra.mxu0 0.0
        %5232 = vmatpush.msra.mxu0 0.0
        %v5233 = vand.u32 %v511, 4294901760
        %5234 = vmatpush.msra.mxu0 %v5233
        %v5235 = vand.u32 %v507, 4294901760
        %5236 = vmatpush.msra.mxu0 %v5235
        %v5237 = vand.u32 %v503, 4294901760
        %5238 = vmatpush.msra.mxu0 %v5237
        %v5239 = vand.u32 %v499, 4294901760
        %5240 = vmatpush.msra.mxu0 %v5239
        %v5241 = vand.u32 %v495, 4294901760
        %5242 = vmatpush.msra.mxu0 %v5241
        %v5243 = vand.u32 %v491, 4294901760
        %5244 = vmatpush.msra.mxu0 %v5243
        %v5245 = vand.u32 %v487, 4294901760
        %5246 = vmatpush.msra.mxu0 %v5245
        %v5247 = vand.u32 %v483, 4294901760
        %5248 = vmatpush.msra.mxu0 %v5247
        %v5249 = vand.u32 %v525, 4294901760
        %v5250 = vsub.f32 %v525, %v5249
        %v5251 = vand.u32 %v5250, 4294901760
        %5252 = vmatmul.f32.gmra.mxu0 %v5251
        %v5253 = vpop.f32.mrf.mxu0
        %v5254 = vadd.f32 %v5223, %v5253
        %5255 = vdwg.mxu0
        %5256 = vmatpush.msra.mxu0 0.0
        %5257 = vmatpush.msra.mxu0 0.0
        %5258 = vmatpush.msra.mxu0 0.0
        %5259 = vmatpush.msra.mxu0 0.0
        %5260 = vmatpush.msra.mxu0 0.0
        %5261 = vmatpush.msra.mxu0 0.0
        %5262 = vmatpush.msra.mxu0 0.0
        %5263 = vmatpush.msra.mxu0 0.0
        %v5264 = vand.u32 %v511, 4294901760
        %v5265 = vsub.f32 %v511, %v5264
        %v5266 = vand.u32 %v5265, 4294901760
        %5267 = vmatpush.msra.mxu0 %v5266
        %v5268 = vand.u32 %v507, 4294901760
        %v5269 = vsub.f32 %v507, %v5268
        %v5270 = vand.u32 %v5269, 4294901760
        %5271 = vmatpush.msra.mxu0 %v5270
        %v5272 = vand.u32 %v503, 4294901760
        %v5273 = vsub.f32 %v503, %v5272
        %v5274 = vand.u32 %v5273, 4294901760
        %5275 = vmatpush.msra.mxu0 %v5274
        %v5276 = vand.u32 %v499, 4294901760
        %v5277 = vsub.f32 %v499, %v5276
        %v5278 = vand.u32 %v5277, 4294901760
        %5279 = vmatpush.msra.mxu0 %v5278
        %v5280 = vand.u32 %v495, 4294901760
        %v5281 = vsub.f32 %v495, %v5280
        %v5282 = vand.u32 %v5281, 4294901760
        %5283 = vmatpush.msra.mxu0 %v5282
        %v5284 = vand.u32 %v491, 4294901760
        %v5285 = vsub.f32 %v491, %v5284
        %v5286 = vand.u32 %v5285, 4294901760
        %5287 = vmatpush.msra.mxu0 %v5286
        %v5288 = vand.u32 %v487, 4294901760
        %v5289 = vsub.f32 %v487, %v5288
        %v5290 = vand.u32 %v5289, 4294901760
        %5291 = vmatpush.msra.mxu0 %v5290
        %v5292 = vand.u32 %v483, 4294901760
        %v5293 = vsub.f32 %v483, %v5292
        %v5294 = vand.u32 %v5293, 4294901760
        %5295 = vmatpush.msra.mxu0 %v5294
        %v5296 = vand.u32 %v525, 4294901760
        %5297 = vmatmul.f32.gmra.mxu0 %v5296
        %v5298 = vpop.f32.mrf.mxu0
        %v5299 = vadd.f32 %v5254, %v5298
        %5300 = vdwg.mxu0
        %5301 = vmatpush.msra.mxu0 0.0
        %5302 = vmatpush.msra.mxu0 0.0
        %5303 = vmatpush.msra.mxu0 0.0
        %5304 = vmatpush.msra.mxu0 0.0
        %5305 = vmatpush.msra.mxu0 0.0
        %5306 = vmatpush.msra.mxu0 0.0
        %5307 = vmatpush.msra.mxu0 0.0
        %5308 = vmatpush.msra.mxu0 0.0
        %v5309 = vand.u32 %v511, 4294901760
        %5310 = vmatpush.msra.mxu0 %v5309
        %v5311 = vand.u32 %v507, 4294901760
        %5312 = vmatpush.msra.mxu0 %v5311
        %v5313 = vand.u32 %v503, 4294901760
        %5314 = vmatpush.msra.mxu0 %v5313
        %v5315 = vand.u32 %v499, 4294901760
        %5316 = vmatpush.msra.mxu0 %v5315
        %v5317 = vand.u32 %v495, 4294901760
        %5318 = vmatpush.msra.mxu0 %v5317
        %v5319 = vand.u32 %v491, 4294901760
        %5320 = vmatpush.msra.mxu0 %v5319
        %v5321 = vand.u32 %v487, 4294901760
        %5322 = vmatpush.msra.mxu0 %v5321
        %v5323 = vand.u32 %v483, 4294901760
        %5324 = vmatpush.msra.mxu0 %v5323
        %v5325 = vand.u32 %v525, 4294901760
        %5326 = vmatmul.f32.gmra.mxu0 %v5325
        %v5327 = vpop.f32.mrf.mxu0
        %v5328 = vadd.f32 %v5299, %v5327
        %5329 = vdwg.mxu0
        %v5330 = vand.u32 %v288, 4294901760
        %5331 = vmatpush.msra.mxu0 %v5330
        %v5332 = vand.u32 %v284, 4294901760
        %5333 = vmatpush.msra.mxu0 %v5332
        %v5334 = vand.u32 %v280, 4294901760
        %5335 = vmatpush.msra.mxu0 %v5334
        %v5336 = vand.u32 %v276, 4294901760
        %5337 = vmatpush.msra.mxu0 %v5336
        %v5338 = vand.u32 %v272, 4294901760
        %5339 = vmatpush.msra.mxu0 %v5338
        %v5340 = vand.u32 %v268, 4294901760
        %5341 = vmatpush.msra.mxu0 %v5340
        %v5342 = vand.u32 %v264, 4294901760
        %5343 = vmatpush.msra.mxu0 %v5342
        %v5344 = vand.u32 %v260, 4294901760
        %5345 = vmatpush.msra.mxu0 %v5344
        %v5346 = vand.u32 %v256, 4294901760
        %5347 = vmatpush.msra.mxu0 %v5346
        %v5348 = vand.u32 %v252, 4294901760
        %5349 = vmatpush.msra.mxu0 %v5348
        %v5350 = vand.u32 %v248, 4294901760
        %5351 = vmatpush.msra.mxu0 %v5350
        %v5352 = vand.u32 %v244, 4294901760
        %5353 = vmatpush.msra.mxu0 %v5352
        %v5354 = vand.u32 %v240, 4294901760
        %5355 = vmatpush.msra.mxu0 %v5354
        %v5356 = vand.u32 %v236, 4294901760
        %5357 = vmatpush.msra.mxu0 %v5356
        %v5358 = vand.u32 %v232, 4294901760
        %5359 = vmatpush.msra.mxu0 %v5358
        %v5360 = vand.u32 %v228, 4294901760
        %5361 = vmatpush.msra.mxu0 %v5360
        %v5362 = vand.u32 %v220, 4294901760
        %v5363 = vsub.f32 %v220, %v5362
        %v5364 = vand.u32 %v5363, 4294901760
        %v5365 = vsub.f32 %v5363, %v5364
        %v5366 = vand.u32 %v5365, 4294901760
        %5367 = vmatmul.f32.gmra.mxu0 %v5366
        %v5368 = vpop.f32.mrf.mxu0
        %v5369 = vadd.f32 %v518, %v5368
        %5370 = vdwg.mxu0
        %v5371 = vand.u32 %v288, 4294901760
        %v5372 = vsub.f32 %v288, %v5371
        %v5373 = vand.u32 %v5372, 4294901760
        %v5374 = vsub.f32 %v5372, %v5373
        %v5375 = vand.u32 %v5374, 4294901760
        %5376 = vmatpush.msra.mxu0 %v5375
        %v5377 = vand.u32 %v284, 4294901760
        %v5378 = vsub.f32 %v284, %v5377
        %v5379 = vand.u32 %v5378, 4294901760
        %v5380 = vsub.f32 %v5378, %v5379
        %v5381 = vand.u32 %v5380, 4294901760
        %5382 = vmatpush.msra.mxu0 %v5381
        %v5383 = vand.u32 %v280, 4294901760
        %v5384 = vsub.f32 %v280, %v5383
        %v5385 = vand.u32 %v5384, 4294901760
        %v5386 = vsub.f32 %v5384, %v5385
        %v5387 = vand.u32 %v5386, 4294901760
        %5388 = vmatpush.msra.mxu0 %v5387
        %v5389 = vand.u32 %v276, 4294901760
        %v5390 = vsub.f32 %v276, %v5389
        %v5391 = vand.u32 %v5390, 4294901760
        %v5392 = vsub.f32 %v5390, %v5391
        %v5393 = vand.u32 %v5392, 4294901760
        %5394 = vmatpush.msra.mxu0 %v5393
        %v5395 = vand.u32 %v272, 4294901760
        %v5396 = vsub.f32 %v272, %v5395
        %v5397 = vand.u32 %v5396, 4294901760
        %v5398 = vsub.f32 %v5396, %v5397
        %v5399 = vand.u32 %v5398, 4294901760
        %5400 = vmatpush.msra.mxu0 %v5399
        %v5401 = vand.u32 %v268, 4294901760
        %v5402 = vsub.f32 %v268, %v5401
        %v5403 = vand.u32 %v5402, 4294901760
        %v5404 = vsub.f32 %v5402, %v5403
        %v5405 = vand.u32 %v5404, 4294901760
        %5406 = vmatpush.msra.mxu0 %v5405
        %v5407 = vand.u32 %v264, 4294901760
        %v5408 = vsub.f32 %v264, %v5407
        %v5409 = vand.u32 %v5408, 4294901760
        %v5410 = vsub.f32 %v5408, %v5409
        %v5411 = vand.u32 %v5410, 4294901760
        %5412 = vmatpush.msra.mxu0 %v5411
        %v5413 = vand.u32 %v260, 4294901760
        %v5414 = vsub.f32 %v260, %v5413
        %v5415 = vand.u32 %v5414, 4294901760
        %v5416 = vsub.f32 %v5414, %v5415
        %v5417 = vand.u32 %v5416, 4294901760
        %5418 = vmatpush.msra.mxu0 %v5417
        %v5419 = vand.u32 %v256, 4294901760
        %v5420 = vsub.f32 %v256, %v5419
        %v5421 = vand.u32 %v5420, 4294901760
        %v5422 = vsub.f32 %v5420, %v5421
        %v5423 = vand.u32 %v5422, 4294901760
        %5424 = vmatpush.msra.mxu0 %v5423
        %v5425 = vand.u32 %v252, 4294901760
        %v5426 = vsub.f32 %v252, %v5425
        %v5427 = vand.u32 %v5426, 4294901760
        %v5428 = vsub.f32 %v5426, %v5427
        %v5429 = vand.u32 %v5428, 4294901760
        %5430 = vmatpush.msra.mxu0 %v5429
        %v5431 = vand.u32 %v248, 4294901760
        %v5432 = vsub.f32 %v248, %v5431
        %v5433 = vand.u32 %v5432, 4294901760
        %v5434 = vsub.f32 %v5432, %v5433
        %v5435 = vand.u32 %v5434, 4294901760
        %5436 = vmatpush.msra.mxu0 %v5435
        %v5437 = vand.u32 %v244, 4294901760
        %v5438 = vsub.f32 %v244, %v5437
        %v5439 = vand.u32 %v5438, 4294901760
        %v5440 = vsub.f32 %v5438, %v5439
        %v5441 = vand.u32 %v5440, 4294901760
        %5442 = vmatpush.msra.mxu0 %v5441
        %v5443 = vand.u32 %v240, 4294901760
        %v5444 = vsub.f32 %v240, %v5443
        %v5445 = vand.u32 %v5444, 4294901760
        %v5446 = vsub.f32 %v5444, %v5445
        %v5447 = vand.u32 %v5446, 4294901760
        %5448 = vmatpush.msra.mxu0 %v5447
        %v5449 = vand.u32 %v236, 4294901760
        %v5450 = vsub.f32 %v236, %v5449
        %v5451 = vand.u32 %v5450, 4294901760
        %v5452 = vsub.f32 %v5450, %v5451
        %v5453 = vand.u32 %v5452, 4294901760
        %5454 = vmatpush.msra.mxu0 %v5453
        %v5455 = vand.u32 %v232, 4294901760
        %v5456 = vsub.f32 %v232, %v5455
        %v5457 = vand.u32 %v5456, 4294901760
        %v5458 = vsub.f32 %v5456, %v5457
        %v5459 = vand.u32 %v5458, 4294901760
        %5460 = vmatpush.msra.mxu0 %v5459
        %v5461 = vand.u32 %v228, 4294901760
        %v5462 = vsub.f32 %v228, %v5461
        %v5463 = vand.u32 %v5462, 4294901760
        %v5464 = vsub.f32 %v5462, %v5463
        %v5465 = vand.u32 %v5464, 4294901760
        %5466 = vmatpush.msra.mxu0 %v5465
        %v5467 = vand.u32 %v220, 4294901760
        %5468 = vmatmul.f32.gmra.mxu0 %v5467
        %v5469 = vpop.f32.mrf.mxu0
        %v5470 = vadd.f32 %v5369, %v5469
        %5471 = vdwg.mxu0
        %v5472 = vand.u32 %v288, 4294901760
        %v5473 = vsub.f32 %v288, %v5472
        %5474 = vmatpush.msra.mxu0 %v5473
        %v5475 = vand.u32 %v284, 4294901760
        %v5476 = vsub.f32 %v284, %v5475
        %5477 = vmatpush.msra.mxu0 %v5476
        %v5478 = vand.u32 %v280, 4294901760
        %v5479 = vsub.f32 %v280, %v5478
        %5480 = vmatpush.msra.mxu0 %v5479
        %v5481 = vand.u32 %v276, 4294901760
        %v5482 = vsub.f32 %v276, %v5481
        %5483 = vmatpush.msra.mxu0 %v5482
        %v5484 = vand.u32 %v272, 4294901760
        %v5485 = vsub.f32 %v272, %v5484
        %5486 = vmatpush.msra.mxu0 %v5485
        %v5487 = vand.u32 %v268, 4294901760
        %v5488 = vsub.f32 %v268, %v5487
        %5489 = vmatpush.msra.mxu0 %v5488
        %v5490 = vand.u32 %v264, 4294901760
        %v5491 = vsub.f32 %v264, %v5490
        %5492 = vmatpush.msra.mxu0 %v5491
        %v5493 = vand.u32 %v260, 4294901760
        %v5494 = vsub.f32 %v260, %v5493
        %5495 = vmatpush.msra.mxu0 %v5494
        %v5496 = vand.u32 %v256, 4294901760
        %v5497 = vsub.f32 %v256, %v5496
        %5498 = vmatpush.msra.mxu0 %v5497
        %v5499 = vand.u32 %v252, 4294901760
        %v5500 = vsub.f32 %v252, %v5499
        %5501 = vmatpush.msra.mxu0 %v5500
        %v5502 = vand.u32 %v248, 4294901760
        %v5503 = vsub.f32 %v248, %v5502
        %5504 = vmatpush.msra.mxu0 %v5503
        %v5505 = vand.u32 %v244, 4294901760
        %v5506 = vsub.f32 %v244, %v5505
        %5507 = vmatpush.msra.mxu0 %v5506
        %v5508 = vand.u32 %v240, 4294901760
        %v5509 = vsub.f32 %v240, %v5508
        %5510 = vmatpush.msra.mxu0 %v5509
        %v5511 = vand.u32 %v236, 4294901760
        %v5512 = vsub.f32 %v236, %v5511
        %5513 = vmatpush.msra.mxu0 %v5512
        %v5514 = vand.u32 %v232, 4294901760
        %v5515 = vsub.f32 %v232, %v5514
        %5516 = vmatpush.msra.mxu0 %v5515
        %v5517 = vand.u32 %v228, 4294901760
        %v5518 = vsub.f32 %v228, %v5517
        %5519 = vmatpush.msra.mxu0 %v5518
        %v5520 = vand.u32 %v220, 4294901760
        %v5521 = vsub.f32 %v220, %v5520
        %5522 = vmatmul.f32.gmra.mxu0 %v5521
        %v5523 = vpop.f32.mrf.mxu0
        %v5524 = vadd.f32 %v5470, %v5523
        %5525 = vdwg.mxu0
        %v5526 = vand.u32 %v288, 4294901760
        %5527 = vmatpush.msra.mxu0 %v5526
        %v5528 = vand.u32 %v284, 4294901760
        %5529 = vmatpush.msra.mxu0 %v5528
        %v5530 = vand.u32 %v280, 4294901760
        %5531 = vmatpush.msra.mxu0 %v5530
        %v5532 = vand.u32 %v276, 4294901760
        %5533 = vmatpush.msra.mxu0 %v5532
        %v5534 = vand.u32 %v272, 4294901760
        %5535 = vmatpush.msra.mxu0 %v5534
        %v5536 = vand.u32 %v268, 4294901760
        %5537 = vmatpush.msra.mxu0 %v5536
        %v5538 = vand.u32 %v264, 4294901760
        %5539 = vmatpush.msra.mxu0 %v5538
        %v5540 = vand.u32 %v260, 4294901760
        %5541 = vmatpush.msra.mxu0 %v5540
        %v5542 = vand.u32 %v256, 4294901760
        %5543 = vmatpush.msra.mxu0 %v5542
        %v5544 = vand.u32 %v252, 4294901760
        %5545 = vmatpush.msra.mxu0 %v5544
        %v5546 = vand.u32 %v248, 4294901760
        %5547 = vmatpush.msra.mxu0 %v5546
        %v5548 = vand.u32 %v244, 4294901760
        %5549 = vmatpush.msra.mxu0 %v5548
        %v5550 = vand.u32 %v240, 4294901760
        %5551 = vmatpush.msra.mxu0 %v5550
        %v5552 = vand.u32 %v236, 4294901760
        %5553 = vmatpush.msra.mxu0 %v5552
        %v5554 = vand.u32 %v232, 4294901760
        %5555 = vmatpush.msra.mxu0 %v5554
        %v5556 = vand.u32 %v228, 4294901760
        %5557 = vmatpush.msra.mxu0 %v5556
        %v5558 = vand.u32 %v220, 4294901760
        %v5559 = vsub.f32 %v220, %v5558
        %v5560 = vand.u32 %v5559, 4294901760
        %5561 = vmatmul.f32.gmra.mxu0 %v5560
        %v5562 = vpop.f32.mrf.mxu0
        %v5563 = vadd.f32 %v5524, %v5562
        %5564 = vdwg.mxu0
        %v5565 = vand.u32 %v288, 4294901760
        %v5566 = vsub.f32 %v288, %v5565
        %v5567 = vand.u32 %v5566, 4294901760
        %5568 = vmatpush.msra.mxu0 %v5567
        %v5569 = vand.u32 %v284, 4294901760
        %v5570 = vsub.f32 %v284, %v5569
        %v5571 = vand.u32 %v5570, 4294901760
        %5572 = vmatpush.msra.mxu0 %v5571
        %v5573 = vand.u32 %v280, 4294901760
        %v5574 = vsub.f32 %v280, %v5573
        %v5575 = vand.u32 %v5574, 4294901760
        %5576 = vmatpush.msra.mxu0 %v5575
        %v5577 = vand.u32 %v276, 4294901760
        %v5578 = vsub.f32 %v276, %v5577
        %v5579 = vand.u32 %v5578, 4294901760
        %5580 = vmatpush.msra.mxu0 %v5579
        %v5581 = vand.u32 %v272, 4294901760
        %v5582 = vsub.f32 %v272, %v5581
        %v5583 = vand.u32 %v5582, 4294901760
        %5584 = vmatpush.msra.mxu0 %v5583
        %v5585 = vand.u32 %v268, 4294901760
        %v5586 = vsub.f32 %v268, %v5585
        %v5587 = vand.u32 %v5586, 4294901760
        %5588 = vmatpush.msra.mxu0 %v5587
        %v5589 = vand.u32 %v264, 4294901760
        %v5590 = vsub.f32 %v264, %v5589
        %v5591 = vand.u32 %v5590, 4294901760
        %5592 = vmatpush.msra.mxu0 %v5591
        %v5593 = vand.u32 %v260, 4294901760
        %v5594 = vsub.f32 %v260, %v5593
        %v5595 = vand.u32 %v5594, 4294901760
        %5596 = vmatpush.msra.mxu0 %v5595
        %v5597 = vand.u32 %v256, 4294901760
        %v5598 = vsub.f32 %v256, %v5597
        %v5599 = vand.u32 %v5598, 4294901760
        %5600 = vmatpush.msra.mxu0 %v5599
        %v5601 = vand.u32 %v252, 4294901760
        %v5602 = vsub.f32 %v252, %v5601
        %v5603 = vand.u32 %v5602, 4294901760
        %5604 = vmatpush.msra.mxu0 %v5603
        %v5605 = vand.u32 %v248, 4294901760
        %v5606 = vsub.f32 %v248, %v5605
        %v5607 = vand.u32 %v5606, 4294901760
        %5608 = vmatpush.msra.mxu0 %v5607
        %v5609 = vand.u32 %v244, 4294901760
        %v5610 = vsub.f32 %v244, %v5609
        %v5611 = vand.u32 %v5610, 4294901760
        %5612 = vmatpush.msra.mxu0 %v5611
        %v5613 = vand.u32 %v240, 4294901760
        %v5614 = vsub.f32 %v240, %v5613
        %v5615 = vand.u32 %v5614, 4294901760
        %5616 = vmatpush.msra.mxu0 %v5615
        %v5617 = vand.u32 %v236, 4294901760
        %v5618 = vsub.f32 %v236, %v5617
        %v5619 = vand.u32 %v5618, 4294901760
        %5620 = vmatpush.msra.mxu0 %v5619
        %v5621 = vand.u32 %v232, 4294901760
        %v5622 = vsub.f32 %v232, %v5621
        %v5623 = vand.u32 %v5622, 4294901760
        %5624 = vmatpush.msra.mxu0 %v5623
        %v5625 = vand.u32 %v228, 4294901760
        %v5626 = vsub.f32 %v228, %v5625
        %v5627 = vand.u32 %v5626, 4294901760
        %5628 = vmatpush.msra.mxu0 %v5627
        %v5629 = vand.u32 %v220, 4294901760
        %5630 = vmatmul.f32.gmra.mxu0 %v5629
        %v5631 = vpop.f32.mrf.mxu0
        %v5632 = vadd.f32 %v5563, %v5631
        %5633 = vdwg.mxu0
        %v5634 = vand.u32 %v288, 4294901760
        %5635 = vmatpush.msra.mxu0 %v5634
        %v5636 = vand.u32 %v284, 4294901760
        %5637 = vmatpush.msra.mxu0 %v5636
        %v5638 = vand.u32 %v280, 4294901760
        %5639 = vmatpush.msra.mxu0 %v5638
        %v5640 = vand.u32 %v276, 4294901760
        %5641 = vmatpush.msra.mxu0 %v5640
        %v5642 = vand.u32 %v272, 4294901760
        %5643 = vmatpush.msra.mxu0 %v5642
        %v5644 = vand.u32 %v268, 4294901760
        %5645 = vmatpush.msra.mxu0 %v5644
        %v5646 = vand.u32 %v264, 4294901760
        %5647 = vmatpush.msra.mxu0 %v5646
        %v5648 = vand.u32 %v260, 4294901760
        %5649 = vmatpush.msra.mxu0 %v5648
        %v5650 = vand.u32 %v256, 4294901760
        %5651 = vmatpush.msra.mxu0 %v5650
        %v5652 = vand.u32 %v252, 4294901760
        %5653 = vmatpush.msra.mxu0 %v5652
        %v5654 = vand.u32 %v248, 4294901760
        %5655 = vmatpush.msra.mxu0 %v5654
        %v5656 = vand.u32 %v244, 4294901760
        %5657 = vmatpush.msra.mxu0 %v5656
        %v5658 = vand.u32 %v240, 4294901760
        %5659 = vmatpush.msra.mxu0 %v5658
        %v5660 = vand.u32 %v236, 4294901760
        %5661 = vmatpush.msra.mxu0 %v5660
        %v5662 = vand.u32 %v232, 4294901760
        %5663 = vmatpush.msra.mxu0 %v5662
        %v5664 = vand.u32 %v228, 4294901760
        %5665 = vmatpush.msra.mxu0 %v5664
        %v5666 = vand.u32 %v220, 4294901760
        %5667 = vmatmul.f32.gmra.mxu0 %v5666
        %v5668 = vpop.f32.mrf.mxu0
        %v5669 = vadd.f32 %v5632, %v5668
        %5670 = vdwg.mxu0
        %v5671 = vand.u32 %v352, 4294901760
        %5672 = vmatpush.msra.mxu0 %v5671
        %v5673 = vand.u32 %v348, 4294901760
        %5674 = vmatpush.msra.mxu0 %v5673
        %v5675 = vand.u32 %v344, 4294901760
        %5676 = vmatpush.msra.mxu0 %v5675
        %v5677 = vand.u32 %v340, 4294901760
        %5678 = vmatpush.msra.mxu0 %v5677
        %v5679 = vand.u32 %v336, 4294901760
        %5680 = vmatpush.msra.mxu0 %v5679
        %v5681 = vand.u32 %v332, 4294901760
        %5682 = vmatpush.msra.mxu0 %v5681
        %v5683 = vand.u32 %v328, 4294901760
        %5684 = vmatpush.msra.mxu0 %v5683
        %v5685 = vand.u32 %v324, 4294901760
        %5686 = vmatpush.msra.mxu0 %v5685
        %v5687 = vand.u32 %v320, 4294901760
        %5688 = vmatpush.msra.mxu0 %v5687
        %v5689 = vand.u32 %v316, 4294901760
        %5690 = vmatpush.msra.mxu0 %v5689
        %v5691 = vand.u32 %v312, 4294901760
        %5692 = vmatpush.msra.mxu0 %v5691
        %v5693 = vand.u32 %v308, 4294901760
        %5694 = vmatpush.msra.mxu0 %v5693
        %v5695 = vand.u32 %v304, 4294901760
        %5696 = vmatpush.msra.mxu0 %v5695
        %v5697 = vand.u32 %v300, 4294901760
        %5698 = vmatpush.msra.mxu0 %v5697
        %v5699 = vand.u32 %v296, 4294901760
        %5700 = vmatpush.msra.mxu0 %v5699
        %v5701 = vand.u32 %v292, 4294901760
        %5702 = vmatpush.msra.mxu0 %v5701
        %v5703 = vand.u32 %v221, 4294901760
        %v5704 = vsub.f32 %v221, %v5703
        %v5705 = vand.u32 %v5704, 4294901760
        %v5706 = vsub.f32 %v5704, %v5705
        %v5707 = vand.u32 %v5706, 4294901760
        %5708 = vmatmul.f32.gmra.mxu0 %v5707
        %v5709 = vpop.f32.mrf.mxu0
        %v5710 = vadd.f32 %v5669, %v5709
        %5711 = vdwg.mxu0
        %v5712 = vand.u32 %v352, 4294901760
        %v5713 = vsub.f32 %v352, %v5712
        %v5714 = vand.u32 %v5713, 4294901760
        %v5715 = vsub.f32 %v5713, %v5714
        %v5716 = vand.u32 %v5715, 4294901760
        %5717 = vmatpush.msra.mxu0 %v5716
        %v5718 = vand.u32 %v348, 4294901760
        %v5719 = vsub.f32 %v348, %v5718
        %v5720 = vand.u32 %v5719, 4294901760
        %v5721 = vsub.f32 %v5719, %v5720
        %v5722 = vand.u32 %v5721, 4294901760
        %5723 = vmatpush.msra.mxu0 %v5722
        %v5724 = vand.u32 %v344, 4294901760
        %v5725 = vsub.f32 %v344, %v5724
        %v5726 = vand.u32 %v5725, 4294901760
        %v5727 = vsub.f32 %v5725, %v5726
        %v5728 = vand.u32 %v5727, 4294901760
        %5729 = vmatpush.msra.mxu0 %v5728
        %v5730 = vand.u32 %v340, 4294901760
        %v5731 = vsub.f32 %v340, %v5730
        %v5732 = vand.u32 %v5731, 4294901760
        %v5733 = vsub.f32 %v5731, %v5732
        %v5734 = vand.u32 %v5733, 4294901760
        %5735 = vmatpush.msra.mxu0 %v5734
        %v5736 = vand.u32 %v336, 4294901760
        %v5737 = vsub.f32 %v336, %v5736
        %v5738 = vand.u32 %v5737, 4294901760
        %v5739 = vsub.f32 %v5737, %v5738
        %v5740 = vand.u32 %v5739, 4294901760
        %5741 = vmatpush.msra.mxu0 %v5740
        %v5742 = vand.u32 %v332, 4294901760
        %v5743 = vsub.f32 %v332, %v5742
        %v5744 = vand.u32 %v5743, 4294901760
        %v5745 = vsub.f32 %v5743, %v5744
        %v5746 = vand.u32 %v5745, 4294901760
        %5747 = vmatpush.msra.mxu0 %v5746
        %v5748 = vand.u32 %v328, 4294901760
        %v5749 = vsub.f32 %v328, %v5748
        %v5750 = vand.u32 %v5749, 4294901760
        %v5751 = vsub.f32 %v5749, %v5750
        %v5752 = vand.u32 %v5751, 4294901760
        %5753 = vmatpush.msra.mxu0 %v5752
        %v5754 = vand.u32 %v324, 4294901760
        %v5755 = vsub.f32 %v324, %v5754
        %v5756 = vand.u32 %v5755, 4294901760
        %v5757 = vsub.f32 %v5755, %v5756
        %v5758 = vand.u32 %v5757, 4294901760
        %5759 = vmatpush.msra.mxu0 %v5758
        %v5760 = vand.u32 %v320, 4294901760
        %v5761 = vsub.f32 %v320, %v5760
        %v5762 = vand.u32 %v5761, 4294901760
        %v5763 = vsub.f32 %v5761, %v5762
        %v5764 = vand.u32 %v5763, 4294901760
        %5765 = vmatpush.msra.mxu0 %v5764
        %v5766 = vand.u32 %v316, 4294901760
        %v5767 = vsub.f32 %v316, %v5766
        %v5768 = vand.u32 %v5767, 4294901760
        %v5769 = vsub.f32 %v5767, %v5768
        %v5770 = vand.u32 %v5769, 4294901760
        %5771 = vmatpush.msra.mxu0 %v5770
        %v5772 = vand.u32 %v312, 4294901760
        %v5773 = vsub.f32 %v312, %v5772
        %v5774 = vand.u32 %v5773, 4294901760
        %v5775 = vsub.f32 %v5773, %v5774
        %v5776 = vand.u32 %v5775, 4294901760
        %5777 = vmatpush.msra.mxu0 %v5776
        %v5778 = vand.u32 %v308, 4294901760
        %v5779 = vsub.f32 %v308, %v5778
        %v5780 = vand.u32 %v5779, 4294901760
        %v5781 = vsub.f32 %v5779, %v5780
        %v5782 = vand.u32 %v5781, 4294901760
        %5783 = vmatpush.msra.mxu0 %v5782
        %v5784 = vand.u32 %v304, 4294901760
        %v5785 = vsub.f32 %v304, %v5784
        %v5786 = vand.u32 %v5785, 4294901760
        %v5787 = vsub.f32 %v5785, %v5786
        %v5788 = vand.u32 %v5787, 4294901760
        %5789 = vmatpush.msra.mxu0 %v5788
        %v5790 = vand.u32 %v300, 4294901760
        %v5791 = vsub.f32 %v300, %v5790
        %v5792 = vand.u32 %v5791, 4294901760
        %v5793 = vsub.f32 %v5791, %v5792
        %v5794 = vand.u32 %v5793, 4294901760
        %5795 = vmatpush.msra.mxu0 %v5794
        %v5796 = vand.u32 %v296, 4294901760
        %v5797 = vsub.f32 %v296, %v5796
        %v5798 = vand.u32 %v5797, 4294901760
        %v5799 = vsub.f32 %v5797, %v5798
        %v5800 = vand.u32 %v5799, 4294901760
        %5801 = vmatpush.msra.mxu0 %v5800
        %v5802 = vand.u32 %v292, 4294901760
        %v5803 = vsub.f32 %v292, %v5802
        %v5804 = vand.u32 %v5803, 4294901760
        %v5805 = vsub.f32 %v5803, %v5804
        %v5806 = vand.u32 %v5805, 4294901760
        %5807 = vmatpush.msra.mxu0 %v5806
        %v5808 = vand.u32 %v221, 4294901760
        %5809 = vmatmul.f32.gmra.mxu0 %v5808
        %v5810 = vpop.f32.mrf.mxu0
        %v5811 = vadd.f32 %v5710, %v5810
        %5812 = vdwg.mxu0
        %v5813 = vand.u32 %v352, 4294901760
        %v5814 = vsub.f32 %v352, %v5813
        %5815 = vmatpush.msra.mxu0 %v5814
        %v5816 = vand.u32 %v348, 4294901760
        %v5817 = vsub.f32 %v348, %v5816
        %5818 = vmatpush.msra.mxu0 %v5817
        %v5819 = vand.u32 %v344, 4294901760
        %v5820 = vsub.f32 %v344, %v5819
        %5821 = vmatpush.msra.mxu0 %v5820
        %v5822 = vand.u32 %v340, 4294901760
        %v5823 = vsub.f32 %v340, %v5822
        %5824 = vmatpush.msra.mxu0 %v5823
        %v5825 = vand.u32 %v336, 4294901760
        %v5826 = vsub.f32 %v336, %v5825
        %5827 = vmatpush.msra.mxu0 %v5826
        %v5828 = vand.u32 %v332, 4294901760
        %v5829 = vsub.f32 %v332, %v5828
        %5830 = vmatpush.msra.mxu0 %v5829
        %v5831 = vand.u32 %v328, 4294901760
        %v5832 = vsub.f32 %v328, %v5831
        %5833 = vmatpush.msra.mxu0 %v5832
        %v5834 = vand.u32 %v324, 4294901760
        %v5835 = vsub.f32 %v324, %v5834
        %5836 = vmatpush.msra.mxu0 %v5835
        %v5837 = vand.u32 %v320, 4294901760
        %v5838 = vsub.f32 %v320, %v5837
        %5839 = vmatpush.msra.mxu0 %v5838
        %v5840 = vand.u32 %v316, 4294901760
        %v5841 = vsub.f32 %v316, %v5840
        %5842 = vmatpush.msra.mxu0 %v5841
        %v5843 = vand.u32 %v312, 4294901760
        %v5844 = vsub.f32 %v312, %v5843
        %5845 = vmatpush.msra.mxu0 %v5844
        %v5846 = vand.u32 %v308, 4294901760
        %v5847 = vsub.f32 %v308, %v5846
        %5848 = vmatpush.msra.mxu0 %v5847
        %v5849 = vand.u32 %v304, 4294901760
        %v5850 = vsub.f32 %v304, %v5849
        %5851 = vmatpush.msra.mxu0 %v5850
        %v5852 = vand.u32 %v300, 4294901760
        %v5853 = vsub.f32 %v300, %v5852
        %5854 = vmatpush.msra.mxu0 %v5853
        %v5855 = vand.u32 %v296, 4294901760
        %v5856 = vsub.f32 %v296, %v5855
        %5857 = vmatpush.msra.mxu0 %v5856
        %v5858 = vand.u32 %v292, 4294901760
        %v5859 = vsub.f32 %v292, %v5858
        %5860 = vmatpush.msra.mxu0 %v5859
        %v5861 = vand.u32 %v221, 4294901760
        %v5862 = vsub.f32 %v221, %v5861
        %5863 = vmatmul.f32.gmra.mxu0 %v5862
        %v5864 = vpop.f32.mrf.mxu0
        %v5865 = vadd.f32 %v5811, %v5864
        %5866 = vdwg.mxu0
        %v5867 = vand.u32 %v352, 4294901760
        %5868 = vmatpush.msra.mxu0 %v5867
        %v5869 = vand.u32 %v348, 4294901760
        %5870 = vmatpush.msra.mxu0 %v5869
        %v5871 = vand.u32 %v344, 4294901760
        %5872 = vmatpush.msra.mxu0 %v5871
        %v5873 = vand.u32 %v340, 4294901760
        %5874 = vmatpush.msra.mxu0 %v5873
        %v5875 = vand.u32 %v336, 4294901760
        %5876 = vmatpush.msra.mxu0 %v5875
        %v5877 = vand.u32 %v332, 4294901760
        %5878 = vmatpush.msra.mxu0 %v5877
        %v5879 = vand.u32 %v328, 4294901760
        %5880 = vmatpush.msra.mxu0 %v5879
        %v5881 = vand.u32 %v324, 4294901760
        %5882 = vmatpush.msra.mxu0 %v5881
        %v5883 = vand.u32 %v320, 4294901760
        %5884 = vmatpush.msra.mxu0 %v5883
        %v5885 = vand.u32 %v316, 4294901760
        %5886 = vmatpush.msra.mxu0 %v5885
        %v5887 = vand.u32 %v312, 4294901760
        %5888 = vmatpush.msra.mxu0 %v5887
        %v5889 = vand.u32 %v308, 4294901760
        %5890 = vmatpush.msra.mxu0 %v5889
        %v5891 = vand.u32 %v304, 4294901760
        %5892 = vmatpush.msra.mxu0 %v5891
        %v5893 = vand.u32 %v300, 4294901760
        %5894 = vmatpush.msra.mxu0 %v5893
        %v5895 = vand.u32 %v296, 4294901760
        %5896 = vmatpush.msra.mxu0 %v5895
        %v5897 = vand.u32 %v292, 4294901760
        %5898 = vmatpush.msra.mxu0 %v5897
        %v5899 = vand.u32 %v221, 4294901760
        %v5900 = vsub.f32 %v221, %v5899
        %v5901 = vand.u32 %v5900, 4294901760
        %5902 = vmatmul.f32.gmra.mxu0 %v5901
        %v5903 = vpop.f32.mrf.mxu0
        %v5904 = vadd.f32 %v5865, %v5903
        %5905 = vdwg.mxu0
        %v5906 = vand.u32 %v352, 4294901760
        %v5907 = vsub.f32 %v352, %v5906
        %v5908 = vand.u32 %v5907, 4294901760
        %5909 = vmatpush.msra.mxu0 %v5908
        %v5910 = vand.u32 %v348, 4294901760
        %v5911 = vsub.f32 %v348, %v5910
        %v5912 = vand.u32 %v5911, 4294901760
        %5913 = vmatpush.msra.mxu0 %v5912
        %v5914 = vand.u32 %v344, 4294901760
        %v5915 = vsub.f32 %v344, %v5914
        %v5916 = vand.u32 %v5915, 4294901760
        %5917 = vmatpush.msra.mxu0 %v5916
        %v5918 = vand.u32 %v340, 4294901760
        %v5919 = vsub.f32 %v340, %v5918
        %v5920 = vand.u32 %v5919, 4294901760
        %5921 = vmatpush.msra.mxu0 %v5920
        %v5922 = vand.u32 %v336, 4294901760
        %v5923 = vsub.f32 %v336, %v5922
        %v5924 = vand.u32 %v5923, 4294901760
        %5925 = vmatpush.msra.mxu0 %v5924
        %v5926 = vand.u32 %v332, 4294901760
        %v5927 = vsub.f32 %v332, %v5926
        %v5928 = vand.u32 %v5927, 4294901760
        %5929 = vmatpush.msra.mxu0 %v5928
        %v5930 = vand.u32 %v328, 4294901760
        %v5931 = vsub.f32 %v328, %v5930
        %v5932 = vand.u32 %v5931, 4294901760
        %5933 = vmatpush.msra.mxu0 %v5932
        %v5934 = vand.u32 %v324, 4294901760
        %v5935 = vsub.f32 %v324, %v5934
        %v5936 = vand.u32 %v5935, 4294901760
        %5937 = vmatpush.msra.mxu0 %v5936
        %v5938 = vand.u32 %v320, 4294901760
        %v5939 = vsub.f32 %v320, %v5938
        %v5940 = vand.u32 %v5939, 4294901760
        %5941 = vmatpush.msra.mxu0 %v5940
        %v5942 = vand.u32 %v316, 4294901760
        %v5943 = vsub.f32 %v316, %v5942
        %v5944 = vand.u32 %v5943, 4294901760
        %5945 = vmatpush.msra.mxu0 %v5944
        %v5946 = vand.u32 %v312, 4294901760
        %v5947 = vsub.f32 %v312, %v5946
        %v5948 = vand.u32 %v5947, 4294901760
        %5949 = vmatpush.msra.mxu0 %v5948
        %v5950 = vand.u32 %v308, 4294901760
        %v5951 = vsub.f32 %v308, %v5950
        %v5952 = vand.u32 %v5951, 4294901760
        %5953 = vmatpush.msra.mxu0 %v5952
        %v5954 = vand.u32 %v304, 4294901760
        %v5955 = vsub.f32 %v304, %v5954
        %v5956 = vand.u32 %v5955, 4294901760
        %5957 = vmatpush.msra.mxu0 %v5956
        %v5958 = vand.u32 %v300, 4294901760
        %v5959 = vsub.f32 %v300, %v5958
        %v5960 = vand.u32 %v5959, 4294901760
        %5961 = vmatpush.msra.mxu0 %v5960
        %v5962 = vand.u32 %v296, 4294901760
        %v5963 = vsub.f32 %v296, %v5962
        %v5964 = vand.u32 %v5963, 4294901760
        %5965 = vmatpush.msra.mxu0 %v5964
        %v5966 = vand.u32 %v292, 4294901760
        %v5967 = vsub.f32 %v292, %v5966
        %v5968 = vand.u32 %v5967, 4294901760
        %5969 = vmatpush.msra.mxu0 %v5968
        %v5970 = vand.u32 %v221, 4294901760
        %5971 = vmatmul.f32.gmra.mxu0 %v5970
        %v5972 = vpop.f32.mrf.mxu0
        %v5973 = vadd.f32 %v5904, %v5972
        %5974 = vdwg.mxu0
        %v5975 = vand.u32 %v352, 4294901760
        %5976 = vmatpush.msra.mxu0 %v5975
        %v5977 = vand.u32 %v348, 4294901760
        %5978 = vmatpush.msra.mxu0 %v5977
        %v5979 = vand.u32 %v344, 4294901760
        %5980 = vmatpush.msra.mxu0 %v5979
        %v5981 = vand.u32 %v340, 4294901760
        %5982 = vmatpush.msra.mxu0 %v5981
        %v5983 = vand.u32 %v336, 4294901760
        %5984 = vmatpush.msra.mxu0 %v5983
        %v5985 = vand.u32 %v332, 4294901760
        %5986 = vmatpush.msra.mxu0 %v5985
        %v5987 = vand.u32 %v328, 4294901760
        %5988 = vmatpush.msra.mxu0 %v5987
        %v5989 = vand.u32 %v324, 4294901760
        %5990 = vmatpush.msra.mxu0 %v5989
        %v5991 = vand.u32 %v320, 4294901760
        %5992 = vmatpush.msra.mxu0 %v5991
        %v5993 = vand.u32 %v316, 4294901760
        %5994 = vmatpush.msra.mxu0 %v5993
        %v5995 = vand.u32 %v312, 4294901760
        %5996 = vmatpush.msra.mxu0 %v5995
        %v5997 = vand.u32 %v308, 4294901760
        %5998 = vmatpush.msra.mxu0 %v5997
        %v5999 = vand.u32 %v304, 4294901760
        %6000 = vmatpush.msra.mxu0 %v5999
        %v6001 = vand.u32 %v300, 4294901760
        %6002 = vmatpush.msra.mxu0 %v6001
        %v6003 = vand.u32 %v296, 4294901760
        %6004 = vmatpush.msra.mxu0 %v6003
        %v6005 = vand.u32 %v292, 4294901760
        %6006 = vmatpush.msra.mxu0 %v6005
        %v6007 = vand.u32 %v221, 4294901760
        %6008 = vmatmul.f32.gmra.mxu0 %v6007
        %v6009 = vpop.f32.mrf.mxu0
        %v6010 = vadd.f32 %v5973, %v6009
        %6011 = vdwg.mxu0
        %v6012 = vand.u32 %v416, 4294901760
        %6013 = vmatpush.msra.mxu0 %v6012
        %v6014 = vand.u32 %v412, 4294901760
        %6015 = vmatpush.msra.mxu0 %v6014
        %v6016 = vand.u32 %v408, 4294901760
        %6017 = vmatpush.msra.mxu0 %v6016
        %v6018 = vand.u32 %v404, 4294901760
        %6019 = vmatpush.msra.mxu0 %v6018
        %v6020 = vand.u32 %v400, 4294901760
        %6021 = vmatpush.msra.mxu0 %v6020
        %v6022 = vand.u32 %v396, 4294901760
        %6023 = vmatpush.msra.mxu0 %v6022
        %v6024 = vand.u32 %v392, 4294901760
        %6025 = vmatpush.msra.mxu0 %v6024
        %v6026 = vand.u32 %v388, 4294901760
        %6027 = vmatpush.msra.mxu0 %v6026
        %v6028 = vand.u32 %v384, 4294901760
        %6029 = vmatpush.msra.mxu0 %v6028
        %v6030 = vand.u32 %v380, 4294901760
        %6031 = vmatpush.msra.mxu0 %v6030
        %v6032 = vand.u32 %v376, 4294901760
        %6033 = vmatpush.msra.mxu0 %v6032
        %v6034 = vand.u32 %v372, 4294901760
        %6035 = vmatpush.msra.mxu0 %v6034
        %v6036 = vand.u32 %v368, 4294901760
        %6037 = vmatpush.msra.mxu0 %v6036
        %v6038 = vand.u32 %v364, 4294901760
        %6039 = vmatpush.msra.mxu0 %v6038
        %v6040 = vand.u32 %v360, 4294901760
        %6041 = vmatpush.msra.mxu0 %v6040
        %v6042 = vand.u32 %v356, 4294901760
        %6043 = vmatpush.msra.mxu0 %v6042
        %v6044 = vand.u32 %v222, 4294901760
        %v6045 = vsub.f32 %v222, %v6044
        %v6046 = vand.u32 %v6045, 4294901760
        %v6047 = vsub.f32 %v6045, %v6046
        %v6048 = vand.u32 %v6047, 4294901760
        %6049 = vmatmul.f32.gmra.mxu0 %v6048
        %v6050 = vpop.f32.mrf.mxu0
        %v6051 = vadd.f32 %v6010, %v6050
        %6052 = vdwg.mxu0
        %v6053 = vand.u32 %v416, 4294901760
        %v6054 = vsub.f32 %v416, %v6053
        %v6055 = vand.u32 %v6054, 4294901760
        %v6056 = vsub.f32 %v6054, %v6055
        %v6057 = vand.u32 %v6056, 4294901760
        %6058 = vmatpush.msra.mxu0 %v6057
        %v6059 = vand.u32 %v412, 4294901760
        %v6060 = vsub.f32 %v412, %v6059
        %v6061 = vand.u32 %v6060, 4294901760
        %v6062 = vsub.f32 %v6060, %v6061
        %v6063 = vand.u32 %v6062, 4294901760
        %6064 = vmatpush.msra.mxu0 %v6063
        %v6065 = vand.u32 %v408, 4294901760
        %v6066 = vsub.f32 %v408, %v6065
        %v6067 = vand.u32 %v6066, 4294901760
        %v6068 = vsub.f32 %v6066, %v6067
        %v6069 = vand.u32 %v6068, 4294901760
        %6070 = vmatpush.msra.mxu0 %v6069
        %v6071 = vand.u32 %v404, 4294901760
        %v6072 = vsub.f32 %v404, %v6071
        %v6073 = vand.u32 %v6072, 4294901760
        %v6074 = vsub.f32 %v6072, %v6073
        %v6075 = vand.u32 %v6074, 4294901760
        %6076 = vmatpush.msra.mxu0 %v6075
        %v6077 = vand.u32 %v400, 4294901760
        %v6078 = vsub.f32 %v400, %v6077
        %v6079 = vand.u32 %v6078, 4294901760
        %v6080 = vsub.f32 %v6078, %v6079
        %v6081 = vand.u32 %v6080, 4294901760
        %6082 = vmatpush.msra.mxu0 %v6081
        %v6083 = vand.u32 %v396, 4294901760
        %v6084 = vsub.f32 %v396, %v6083
        %v6085 = vand.u32 %v6084, 4294901760
        %v6086 = vsub.f32 %v6084, %v6085
        %v6087 = vand.u32 %v6086, 4294901760
        %6088 = vmatpush.msra.mxu0 %v6087
        %v6089 = vand.u32 %v392, 4294901760
        %v6090 = vsub.f32 %v392, %v6089
        %v6091 = vand.u32 %v6090, 4294901760
        %v6092 = vsub.f32 %v6090, %v6091
        %v6093 = vand.u32 %v6092, 4294901760
        %6094 = vmatpush.msra.mxu0 %v6093
        %v6095 = vand.u32 %v388, 4294901760
        %v6096 = vsub.f32 %v388, %v6095
        %v6097 = vand.u32 %v6096, 4294901760
        %v6098 = vsub.f32 %v6096, %v6097
        %v6099 = vand.u32 %v6098, 4294901760
        %6100 = vmatpush.msra.mxu0 %v6099
        %v6101 = vand.u32 %v384, 4294901760
        %v6102 = vsub.f32 %v384, %v6101
        %v6103 = vand.u32 %v6102, 4294901760
        %v6104 = vsub.f32 %v6102, %v6103
        %v6105 = vand.u32 %v6104, 4294901760
        %6106 = vmatpush.msra.mxu0 %v6105
        %v6107 = vand.u32 %v380, 4294901760
        %v6108 = vsub.f32 %v380, %v6107
        %v6109 = vand.u32 %v6108, 4294901760
        %v6110 = vsub.f32 %v6108, %v6109
        %v6111 = vand.u32 %v6110, 4294901760
        %6112 = vmatpush.msra.mxu0 %v6111
        %v6113 = vand.u32 %v376, 4294901760
        %v6114 = vsub.f32 %v376, %v6113
        %v6115 = vand.u32 %v6114, 4294901760
        %v6116 = vsub.f32 %v6114, %v6115
        %v6117 = vand.u32 %v6116, 4294901760
        %6118 = vmatpush.msra.mxu0 %v6117
        %v6119 = vand.u32 %v372, 4294901760
        %v6120 = vsub.f32 %v372, %v6119
        %v6121 = vand.u32 %v6120, 4294901760
        %v6122 = vsub.f32 %v6120, %v6121
        %v6123 = vand.u32 %v6122, 4294901760
        %6124 = vmatpush.msra.mxu0 %v6123
        %v6125 = vand.u32 %v368, 4294901760
        %v6126 = vsub.f32 %v368, %v6125
        %v6127 = vand.u32 %v6126, 4294901760
        %v6128 = vsub.f32 %v6126, %v6127
        %v6129 = vand.u32 %v6128, 4294901760
        %6130 = vmatpush.msra.mxu0 %v6129
        %v6131 = vand.u32 %v364, 4294901760
        %v6132 = vsub.f32 %v364, %v6131
        %v6133 = vand.u32 %v6132, 4294901760
        %v6134 = vsub.f32 %v6132, %v6133
        %v6135 = vand.u32 %v6134, 4294901760
        %6136 = vmatpush.msra.mxu0 %v6135
        %v6137 = vand.u32 %v360, 4294901760
        %v6138 = vsub.f32 %v360, %v6137
        %v6139 = vand.u32 %v6138, 4294901760
        %v6140 = vsub.f32 %v6138, %v6139
        %v6141 = vand.u32 %v6140, 4294901760
        %6142 = vmatpush.msra.mxu0 %v6141
        %v6143 = vand.u32 %v356, 4294901760
        %v6144 = vsub.f32 %v356, %v6143
        %v6145 = vand.u32 %v6144, 4294901760
        %v6146 = vsub.f32 %v6144, %v6145
        %v6147 = vand.u32 %v6146, 4294901760
        %6148 = vmatpush.msra.mxu0 %v6147
        %v6149 = vand.u32 %v222, 4294901760
        %6150 = vmatmul.f32.gmra.mxu0 %v6149
        %v6151 = vpop.f32.mrf.mxu0
        %v6152 = vadd.f32 %v6051, %v6151
        %6153 = vdwg.mxu0
        %v6154 = vand.u32 %v416, 4294901760
        %v6155 = vsub.f32 %v416, %v6154
        %6156 = vmatpush.msra.mxu0 %v6155
        %v6157 = vand.u32 %v412, 4294901760
        %v6158 = vsub.f32 %v412, %v6157
        %6159 = vmatpush.msra.mxu0 %v6158
        %v6160 = vand.u32 %v408, 4294901760
        %v6161 = vsub.f32 %v408, %v6160
        %6162 = vmatpush.msra.mxu0 %v6161
        %v6163 = vand.u32 %v404, 4294901760
        %v6164 = vsub.f32 %v404, %v6163
        %6165 = vmatpush.msra.mxu0 %v6164
        %v6166 = vand.u32 %v400, 4294901760
        %v6167 = vsub.f32 %v400, %v6166
        %6168 = vmatpush.msra.mxu0 %v6167
        %v6169 = vand.u32 %v396, 4294901760
        %v6170 = vsub.f32 %v396, %v6169
        %6171 = vmatpush.msra.mxu0 %v6170
        %v6172 = vand.u32 %v392, 4294901760
        %v6173 = vsub.f32 %v392, %v6172
        %6174 = vmatpush.msra.mxu0 %v6173
        %v6175 = vand.u32 %v388, 4294901760
        %v6176 = vsub.f32 %v388, %v6175
        %6177 = vmatpush.msra.mxu0 %v6176
        %v6178 = vand.u32 %v384, 4294901760
        %v6179 = vsub.f32 %v384, %v6178
        %6180 = vmatpush.msra.mxu0 %v6179
        %v6181 = vand.u32 %v380, 4294901760
        %v6182 = vsub.f32 %v380, %v6181
        %6183 = vmatpush.msra.mxu0 %v6182
        %v6184 = vand.u32 %v376, 4294901760
        %v6185 = vsub.f32 %v376, %v6184
        %6186 = vmatpush.msra.mxu0 %v6185
        %v6187 = vand.u32 %v372, 4294901760
        %v6188 = vsub.f32 %v372, %v6187
        %6189 = vmatpush.msra.mxu0 %v6188
        %v6190 = vand.u32 %v368, 4294901760
        %v6191 = vsub.f32 %v368, %v6190
        %6192 = vmatpush.msra.mxu0 %v6191
        %v6193 = vand.u32 %v364, 4294901760
        %v6194 = vsub.f32 %v364, %v6193
        %6195 = vmatpush.msra.mxu0 %v6194
        %v6196 = vand.u32 %v360, 4294901760
        %v6197 = vsub.f32 %v360, %v6196
        %6198 = vmatpush.msra.mxu0 %v6197
        %v6199 = vand.u32 %v356, 4294901760
        %v6200 = vsub.f32 %v356, %v6199
        %6201 = vmatpush.msra.mxu0 %v6200
        %v6202 = vand.u32 %v222, 4294901760
        %v6203 = vsub.f32 %v222, %v6202
        %6204 = vmatmul.f32.gmra.mxu0 %v6203
        %v6205 = vpop.f32.mrf.mxu0
        %v6206 = vadd.f32 %v6152, %v6205
        %6207 = vdwg.mxu0
        %v6208 = vand.u32 %v416, 4294901760
        %6209 = vmatpush.msra.mxu0 %v6208
        %v6210 = vand.u32 %v412, 4294901760
        %6211 = vmatpush.msra.mxu0 %v6210
        %v6212 = vand.u32 %v408, 4294901760
        %6213 = vmatpush.msra.mxu0 %v6212
        %v6214 = vand.u32 %v404, 4294901760
        %6215 = vmatpush.msra.mxu0 %v6214
        %v6216 = vand.u32 %v400, 4294901760
        %6217 = vmatpush.msra.mxu0 %v6216
        %v6218 = vand.u32 %v396, 4294901760
        %6219 = vmatpush.msra.mxu0 %v6218
        %v6220 = vand.u32 %v392, 4294901760
        %6221 = vmatpush.msra.mxu0 %v6220
        %v6222 = vand.u32 %v388, 4294901760
        %6223 = vmatpush.msra.mxu0 %v6222
        %v6224 = vand.u32 %v384, 4294901760
        %6225 = vmatpush.msra.mxu0 %v6224
        %v6226 = vand.u32 %v380, 4294901760
        %6227 = vmatpush.msra.mxu0 %v6226
        %v6228 = vand.u32 %v376, 4294901760
        %6229 = vmatpush.msra.mxu0 %v6228
        %v6230 = vand.u32 %v372, 4294901760
        %6231 = vmatpush.msra.mxu0 %v6230
        %v6232 = vand.u32 %v368, 4294901760
        %6233 = vmatpush.msra.mxu0 %v6232
        %v6234 = vand.u32 %v364, 4294901760
        %6235 = vmatpush.msra.mxu0 %v6234
        %v6236 = vand.u32 %v360, 4294901760
        %6237 = vmatpush.msra.mxu0 %v6236
        %v6238 = vand.u32 %v356, 4294901760
        %6239 = vmatpush.msra.mxu0 %v6238
        %v6240 = vand.u32 %v222, 4294901760
        %v6241 = vsub.f32 %v222, %v6240
        %v6242 = vand.u32 %v6241, 4294901760
        %6243 = vmatmul.f32.gmra.mxu0 %v6242
        %v6244 = vpop.f32.mrf.mxu0
        %v6245 = vadd.f32 %v6206, %v6244
        %6246 = vdwg.mxu0
        %v6247 = vand.u32 %v416, 4294901760
        %v6248 = vsub.f32 %v416, %v6247
        %v6249 = vand.u32 %v6248, 4294901760
        %6250 = vmatpush.msra.mxu0 %v6249
        %v6251 = vand.u32 %v412, 4294901760
        %v6252 = vsub.f32 %v412, %v6251
        %v6253 = vand.u32 %v6252, 4294901760
        %6254 = vmatpush.msra.mxu0 %v6253
        %v6255 = vand.u32 %v408, 4294901760
        %v6256 = vsub.f32 %v408, %v6255
        %v6257 = vand.u32 %v6256, 4294901760
        %6258 = vmatpush.msra.mxu0 %v6257
        %v6259 = vand.u32 %v404, 4294901760
        %v6260 = vsub.f32 %v404, %v6259
        %v6261 = vand.u32 %v6260, 4294901760
        %6262 = vmatpush.msra.mxu0 %v6261
        %v6263 = vand.u32 %v400, 4294901760
        %v6264 = vsub.f32 %v400, %v6263
        %v6265 = vand.u32 %v6264, 4294901760
        %6266 = vmatpush.msra.mxu0 %v6265
        %v6267 = vand.u32 %v396, 4294901760
        %v6268 = vsub.f32 %v396, %v6267
        %v6269 = vand.u32 %v6268, 4294901760
        %6270 = vmatpush.msra.mxu0 %v6269
        %v6271 = vand.u32 %v392, 4294901760
        %v6272 = vsub.f32 %v392, %v6271
        %v6273 = vand.u32 %v6272, 4294901760
        %6274 = vmatpush.msra.mxu0 %v6273
        %v6275 = vand.u32 %v388, 4294901760
        %v6276 = vsub.f32 %v388, %v6275
        %v6277 = vand.u32 %v6276, 4294901760
        %6278 = vmatpush.msra.mxu0 %v6277
        %v6279 = vand.u32 %v384, 4294901760
        %v6280 = vsub.f32 %v384, %v6279
        %v6281 = vand.u32 %v6280, 4294901760
        %6282 = vmatpush.msra.mxu0 %v6281
        %v6283 = vand.u32 %v380, 4294901760
        %v6284 = vsub.f32 %v380, %v6283
        %v6285 = vand.u32 %v6284, 4294901760
        %6286 = vmatpush.msra.mxu0 %v6285
        %v6287 = vand.u32 %v376, 4294901760
        %v6288 = vsub.f32 %v376, %v6287
        %v6289 = vand.u32 %v6288, 4294901760
        %6290 = vmatpush.msra.mxu0 %v6289
        %v6291 = vand.u32 %v372, 4294901760
        %v6292 = vsub.f32 %v372, %v6291
        %v6293 = vand.u32 %v6292, 4294901760
        %6294 = vmatpush.msra.mxu0 %v6293
        %v6295 = vand.u32 %v368, 4294901760
        %v6296 = vsub.f32 %v368, %v6295
        %v6297 = vand.u32 %v6296, 4294901760
        %6298 = vmatpush.msra.mxu0 %v6297
        %v6299 = vand.u32 %v364, 4294901760
        %v6300 = vsub.f32 %v364, %v6299
        %v6301 = vand.u32 %v6300, 4294901760
        %6302 = vmatpush.msra.mxu0 %v6301
        %v6303 = vand.u32 %v360, 4294901760
        %v6304 = vsub.f32 %v360, %v6303
        %v6305 = vand.u32 %v6304, 4294901760
        %6306 = vmatpush.msra.mxu0 %v6305
        %v6307 = vand.u32 %v356, 4294901760
        %v6308 = vsub.f32 %v356, %v6307
        %v6309 = vand.u32 %v6308, 4294901760
        %6310 = vmatpush.msra.mxu0 %v6309
        %v6311 = vand.u32 %v222, 4294901760
        %6312 = vmatmul.f32.gmra.mxu0 %v6311
        %v6313 = vpop.f32.mrf.mxu0
        %v6314 = vadd.f32 %v6245, %v6313
        %6315 = vdwg.mxu0
        %v6316 = vand.u32 %v416, 4294901760
        %6317 = vmatpush.msra.mxu0 %v6316
        %v6318 = vand.u32 %v412, 4294901760
        %6319 = vmatpush.msra.mxu0 %v6318
        %v6320 = vand.u32 %v408, 4294901760
        %6321 = vmatpush.msra.mxu0 %v6320
        %v6322 = vand.u32 %v404, 4294901760
        %6323 = vmatpush.msra.mxu0 %v6322
        %v6324 = vand.u32 %v400, 4294901760
        %6325 = vmatpush.msra.mxu0 %v6324
        %v6326 = vand.u32 %v396, 4294901760
        %6327 = vmatpush.msra.mxu0 %v6326
        %v6328 = vand.u32 %v392, 4294901760
        %6329 = vmatpush.msra.mxu0 %v6328
        %v6330 = vand.u32 %v388, 4294901760
        %6331 = vmatpush.msra.mxu0 %v6330
        %v6332 = vand.u32 %v384, 4294901760
        %6333 = vmatpush.msra.mxu0 %v6332
        %v6334 = vand.u32 %v380, 4294901760
        %6335 = vmatpush.msra.mxu0 %v6334
        %v6336 = vand.u32 %v376, 4294901760
        %6337 = vmatpush.msra.mxu0 %v6336
        %v6338 = vand.u32 %v372, 4294901760
        %6339 = vmatpush.msra.mxu0 %v6338
        %v6340 = vand.u32 %v368, 4294901760
        %6341 = vmatpush.msra.mxu0 %v6340
        %v6342 = vand.u32 %v364, 4294901760
        %6343 = vmatpush.msra.mxu0 %v6342
        %v6344 = vand.u32 %v360, 4294901760
        %6345 = vmatpush.msra.mxu0 %v6344
        %v6346 = vand.u32 %v356, 4294901760
        %6347 = vmatpush.msra.mxu0 %v6346
        %v6348 = vand.u32 %v222, 4294901760
        %6349 = vmatmul.f32.gmra.mxu0 %v6348
        %v6350 = vpop.f32.mrf.mxu0
        %v6351 = vadd.f32 %v6314, %v6350
        %6352 = vdwg.mxu0
        %v6353 = vand.u32 %v480, 4294901760
        %6354 = vmatpush.msra.mxu0 %v6353
        %v6355 = vand.u32 %v476, 4294901760
        %6356 = vmatpush.msra.mxu0 %v6355
        %v6357 = vand.u32 %v472, 4294901760
        %6358 = vmatpush.msra.mxu0 %v6357
        %v6359 = vand.u32 %v468, 4294901760
        %6360 = vmatpush.msra.mxu0 %v6359
        %v6361 = vand.u32 %v464, 4294901760
        %6362 = vmatpush.msra.mxu0 %v6361
        %v6363 = vand.u32 %v460, 4294901760
        %6364 = vmatpush.msra.mxu0 %v6363
        %v6365 = vand.u32 %v456, 4294901760
        %6366 = vmatpush.msra.mxu0 %v6365
        %v6367 = vand.u32 %v452, 4294901760
        %6368 = vmatpush.msra.mxu0 %v6367
        %v6369 = vand.u32 %v448, 4294901760
        %6370 = vmatpush.msra.mxu0 %v6369
        %v6371 = vand.u32 %v444, 4294901760
        %6372 = vmatpush.msra.mxu0 %v6371
        %v6373 = vand.u32 %v440, 4294901760
        %6374 = vmatpush.msra.mxu0 %v6373
        %v6375 = vand.u32 %v436, 4294901760
        %6376 = vmatpush.msra.mxu0 %v6375
        %v6377 = vand.u32 %v432, 4294901760
        %6378 = vmatpush.msra.mxu0 %v6377
        %v6379 = vand.u32 %v428, 4294901760
        %6380 = vmatpush.msra.mxu0 %v6379
        %v6381 = vand.u32 %v424, 4294901760
        %6382 = vmatpush.msra.mxu0 %v6381
        %v6383 = vand.u32 %v420, 4294901760
        %6384 = vmatpush.msra.mxu0 %v6383
        %v6385 = vand.u32 %v223, 4294901760
        %v6386 = vsub.f32 %v223, %v6385
        %v6387 = vand.u32 %v6386, 4294901760
        %v6388 = vsub.f32 %v6386, %v6387
        %v6389 = vand.u32 %v6388, 4294901760
        %6390 = vmatmul.f32.gmra.mxu0 %v6389
        %v6391 = vpop.f32.mrf.mxu0
        %v6392 = vadd.f32 %v6351, %v6391
        %6393 = vdwg.mxu0
        %v6394 = vand.u32 %v480, 4294901760
        %v6395 = vsub.f32 %v480, %v6394
        %v6396 = vand.u32 %v6395, 4294901760
        %v6397 = vsub.f32 %v6395, %v6396
        %v6398 = vand.u32 %v6397, 4294901760
        %6399 = vmatpush.msra.mxu0 %v6398
        %v6400 = vand.u32 %v476, 4294901760
        %v6401 = vsub.f32 %v476, %v6400
        %v6402 = vand.u32 %v6401, 4294901760
        %v6403 = vsub.f32 %v6401, %v6402
        %v6404 = vand.u32 %v6403, 4294901760
        %6405 = vmatpush.msra.mxu0 %v6404
        %v6406 = vand.u32 %v472, 4294901760
        %v6407 = vsub.f32 %v472, %v6406
        %v6408 = vand.u32 %v6407, 4294901760
        %v6409 = vsub.f32 %v6407, %v6408
        %v6410 = vand.u32 %v6409, 4294901760
        %6411 = vmatpush.msra.mxu0 %v6410
        %v6412 = vand.u32 %v468, 4294901760
        %v6413 = vsub.f32 %v468, %v6412
        %v6414 = vand.u32 %v6413, 4294901760
        %v6415 = vsub.f32 %v6413, %v6414
        %v6416 = vand.u32 %v6415, 4294901760
        %6417 = vmatpush.msra.mxu0 %v6416
        %v6418 = vand.u32 %v464, 4294901760
        %v6419 = vsub.f32 %v464, %v6418
        %v6420 = vand.u32 %v6419, 4294901760
        %v6421 = vsub.f32 %v6419, %v6420
        %v6422 = vand.u32 %v6421, 4294901760
        %6423 = vmatpush.msra.mxu0 %v6422
        %v6424 = vand.u32 %v460, 4294901760
        %v6425 = vsub.f32 %v460, %v6424
        %v6426 = vand.u32 %v6425, 4294901760
        %v6427 = vsub.f32 %v6425, %v6426
        %v6428 = vand.u32 %v6427, 4294901760
        %6429 = vmatpush.msra.mxu0 %v6428
        %v6430 = vand.u32 %v456, 4294901760
        %v6431 = vsub.f32 %v456, %v6430
        %v6432 = vand.u32 %v6431, 4294901760
        %v6433 = vsub.f32 %v6431, %v6432
        %v6434 = vand.u32 %v6433, 4294901760
        %6435 = vmatpush.msra.mxu0 %v6434
        %v6436 = vand.u32 %v452, 4294901760
        %v6437 = vsub.f32 %v452, %v6436
        %v6438 = vand.u32 %v6437, 4294901760
        %v6439 = vsub.f32 %v6437, %v6438
        %v6440 = vand.u32 %v6439, 4294901760
        %6441 = vmatpush.msra.mxu0 %v6440
        %v6442 = vand.u32 %v448, 4294901760
        %v6443 = vsub.f32 %v448, %v6442
        %v6444 = vand.u32 %v6443, 4294901760
        %v6445 = vsub.f32 %v6443, %v6444
        %v6446 = vand.u32 %v6445, 4294901760
        %6447 = vmatpush.msra.mxu0 %v6446
        %v6448 = vand.u32 %v444, 4294901760
        %v6449 = vsub.f32 %v444, %v6448
        %v6450 = vand.u32 %v6449, 4294901760
        %v6451 = vsub.f32 %v6449, %v6450
        %v6452 = vand.u32 %v6451, 4294901760
        %6453 = vmatpush.msra.mxu0 %v6452
        %v6454 = vand.u32 %v440, 4294901760
        %v6455 = vsub.f32 %v440, %v6454
        %v6456 = vand.u32 %v6455, 4294901760
        %v6457 = vsub.f32 %v6455, %v6456
        %v6458 = vand.u32 %v6457, 4294901760
        %6459 = vmatpush.msra.mxu0 %v6458
        %v6460 = vand.u32 %v436, 4294901760
        %v6461 = vsub.f32 %v436, %v6460
        %v6462 = vand.u32 %v6461, 4294901760
        %v6463 = vsub.f32 %v6461, %v6462
        %v6464 = vand.u32 %v6463, 4294901760
        %6465 = vmatpush.msra.mxu0 %v6464
        %v6466 = vand.u32 %v432, 4294901760
        %v6467 = vsub.f32 %v432, %v6466
        %v6468 = vand.u32 %v6467, 4294901760
        %v6469 = vsub.f32 %v6467, %v6468
        %v6470 = vand.u32 %v6469, 4294901760
        %6471 = vmatpush.msra.mxu0 %v6470
        %v6472 = vand.u32 %v428, 4294901760
        %v6473 = vsub.f32 %v428, %v6472
        %v6474 = vand.u32 %v6473, 4294901760
        %v6475 = vsub.f32 %v6473, %v6474
        %v6476 = vand.u32 %v6475, 4294901760
        %6477 = vmatpush.msra.mxu0 %v6476
        %v6478 = vand.u32 %v424, 4294901760
        %v6479 = vsub.f32 %v424, %v6478
        %v6480 = vand.u32 %v6479, 4294901760
        %v6481 = vsub.f32 %v6479, %v6480
        %v6482 = vand.u32 %v6481, 4294901760
        %6483 = vmatpush.msra.mxu0 %v6482
        %v6484 = vand.u32 %v420, 4294901760
        %v6485 = vsub.f32 %v420, %v6484
        %v6486 = vand.u32 %v6485, 4294901760
        %v6487 = vsub.f32 %v6485, %v6486
        %v6488 = vand.u32 %v6487, 4294901760
        %6489 = vmatpush.msra.mxu0 %v6488
        %v6490 = vand.u32 %v223, 4294901760
        %6491 = vmatmul.f32.gmra.mxu0 %v6490
        %v6492 = vpop.f32.mrf.mxu0
        %v6493 = vadd.f32 %v6392, %v6492
        %6494 = vdwg.mxu0
        %v6495 = vand.u32 %v480, 4294901760
        %v6496 = vsub.f32 %v480, %v6495
        %6497 = vmatpush.msra.mxu0 %v6496
        %v6498 = vand.u32 %v476, 4294901760
        %v6499 = vsub.f32 %v476, %v6498
        %6500 = vmatpush.msra.mxu0 %v6499
        %v6501 = vand.u32 %v472, 4294901760
        %v6502 = vsub.f32 %v472, %v6501
        %6503 = vmatpush.msra.mxu0 %v6502
        %v6504 = vand.u32 %v468, 4294901760
        %v6505 = vsub.f32 %v468, %v6504
        %6506 = vmatpush.msra.mxu0 %v6505
        %v6507 = vand.u32 %v464, 4294901760
        %v6508 = vsub.f32 %v464, %v6507
        %6509 = vmatpush.msra.mxu0 %v6508
        %v6510 = vand.u32 %v460, 4294901760
        %v6511 = vsub.f32 %v460, %v6510
        %6512 = vmatpush.msra.mxu0 %v6511
        %v6513 = vand.u32 %v456, 4294901760
        %v6514 = vsub.f32 %v456, %v6513
        %6515 = vmatpush.msra.mxu0 %v6514
        %v6516 = vand.u32 %v452, 4294901760
        %v6517 = vsub.f32 %v452, %v6516
        %6518 = vmatpush.msra.mxu0 %v6517
        %v6519 = vand.u32 %v448, 4294901760
        %v6520 = vsub.f32 %v448, %v6519
        %6521 = vmatpush.msra.mxu0 %v6520
        %v6522 = vand.u32 %v444, 4294901760
        %v6523 = vsub.f32 %v444, %v6522
        %6524 = vmatpush.msra.mxu0 %v6523
        %v6525 = vand.u32 %v440, 4294901760
        %v6526 = vsub.f32 %v440, %v6525
        %6527 = vmatpush.msra.mxu0 %v6526
        %v6528 = vand.u32 %v436, 4294901760
        %v6529 = vsub.f32 %v436, %v6528
        %6530 = vmatpush.msra.mxu0 %v6529
        %v6531 = vand.u32 %v432, 4294901760
        %v6532 = vsub.f32 %v432, %v6531
        %6533 = vmatpush.msra.mxu0 %v6532
        %v6534 = vand.u32 %v428, 4294901760
        %v6535 = vsub.f32 %v428, %v6534
        %6536 = vmatpush.msra.mxu0 %v6535
        %v6537 = vand.u32 %v424, 4294901760
        %v6538 = vsub.f32 %v424, %v6537
        %6539 = vmatpush.msra.mxu0 %v6538
        %v6540 = vand.u32 %v420, 4294901760
        %v6541 = vsub.f32 %v420, %v6540
        %6542 = vmatpush.msra.mxu0 %v6541
        %v6543 = vand.u32 %v223, 4294901760
        %v6544 = vsub.f32 %v223, %v6543
        %6545 = vmatmul.f32.gmra.mxu0 %v6544
        %v6546 = vpop.f32.mrf.mxu0
        %v6547 = vadd.f32 %v6493, %v6546
        %6548 = vdwg.mxu0
        %v6549 = vand.u32 %v480, 4294901760
        %6550 = vmatpush.msra.mxu0 %v6549
        %v6551 = vand.u32 %v476, 4294901760
        %6552 = vmatpush.msra.mxu0 %v6551
        %v6553 = vand.u32 %v472, 4294901760
        %6554 = vmatpush.msra.mxu0 %v6553
        %v6555 = vand.u32 %v468, 4294901760
        %6556 = vmatpush.msra.mxu0 %v6555
        %v6557 = vand.u32 %v464, 4294901760
        %6558 = vmatpush.msra.mxu0 %v6557
        %v6559 = vand.u32 %v460, 4294901760
        %6560 = vmatpush.msra.mxu0 %v6559
        %v6561 = vand.u32 %v456, 4294901760
        %6562 = vmatpush.msra.mxu0 %v6561
        %v6563 = vand.u32 %v452, 4294901760
        %6564 = vmatpush.msra.mxu0 %v6563
        %v6565 = vand.u32 %v448, 4294901760
        %6566 = vmatpush.msra.mxu0 %v6565
        %v6567 = vand.u32 %v444, 4294901760
        %6568 = vmatpush.msra.mxu0 %v6567
        %v6569 = vand.u32 %v440, 4294901760
        %6570 = vmatpush.msra.mxu0 %v6569
        %v6571 = vand.u32 %v436, 4294901760
        %6572 = vmatpush.msra.mxu0 %v6571
        %v6573 = vand.u32 %v432, 4294901760
        %6574 = vmatpush.msra.mxu0 %v6573
        %v6575 = vand.u32 %v428, 4294901760
        %6576 = vmatpush.msra.mxu0 %v6575
        %v6577 = vand.u32 %v424, 4294901760
        %6578 = vmatpush.msra.mxu0 %v6577
        %v6579 = vand.u32 %v420, 4294901760
        %6580 = vmatpush.msra.mxu0 %v6579
        %v6581 = vand.u32 %v223, 4294901760
        %v6582 = vsub.f32 %v223, %v6581
        %v6583 = vand.u32 %v6582, 4294901760
        %6584 = vmatmul.f32.gmra.mxu0 %v6583
        %v6585 = vpop.f32.mrf.mxu0
        %v6586 = vadd.f32 %v6547, %v6585
        %6587 = vdwg.mxu0
        %v6588 = vand.u32 %v480, 4294901760
        %v6589 = vsub.f32 %v480, %v6588
        %v6590 = vand.u32 %v6589, 4294901760
        %6591 = vmatpush.msra.mxu0 %v6590
        %v6592 = vand.u32 %v476, 4294901760
        %v6593 = vsub.f32 %v476, %v6592
        %v6594 = vand.u32 %v6593, 4294901760
        %6595 = vmatpush.msra.mxu0 %v6594
        %v6596 = vand.u32 %v472, 4294901760
        %v6597 = vsub.f32 %v472, %v6596
        %v6598 = vand.u32 %v6597, 4294901760
        %6599 = vmatpush.msra.mxu0 %v6598
        %v6600 = vand.u32 %v468, 4294901760
        %v6601 = vsub.f32 %v468, %v6600
        %v6602 = vand.u32 %v6601, 4294901760
        %6603 = vmatpush.msra.mxu0 %v6602
        %v6604 = vand.u32 %v464, 4294901760
        %v6605 = vsub.f32 %v464, %v6604
        %v6606 = vand.u32 %v6605, 4294901760
        %6607 = vmatpush.msra.mxu0 %v6606
        %v6608 = vand.u32 %v460, 4294901760
        %v6609 = vsub.f32 %v460, %v6608
        %v6610 = vand.u32 %v6609, 4294901760
        %6611 = vmatpush.msra.mxu0 %v6610
        %v6612 = vand.u32 %v456, 4294901760
        %v6613 = vsub.f32 %v456, %v6612
        %v6614 = vand.u32 %v6613, 4294901760
        %6615 = vmatpush.msra.mxu0 %v6614
        %v6616 = vand.u32 %v452, 4294901760
        %v6617 = vsub.f32 %v452, %v6616
        %v6618 = vand.u32 %v6617, 4294901760
        %6619 = vmatpush.msra.mxu0 %v6618
        %v6620 = vand.u32 %v448, 4294901760
        %v6621 = vsub.f32 %v448, %v6620
        %v6622 = vand.u32 %v6621, 4294901760
        %6623 = vmatpush.msra.mxu0 %v6622
        %v6624 = vand.u32 %v444, 4294901760
        %v6625 = vsub.f32 %v444, %v6624
        %v6626 = vand.u32 %v6625, 4294901760
        %6627 = vmatpush.msra.mxu0 %v6626
        %v6628 = vand.u32 %v440, 4294901760
        %v6629 = vsub.f32 %v440, %v6628
        %v6630 = vand.u32 %v6629, 4294901760
        %6631 = vmatpush.msra.mxu0 %v6630
        %v6632 = vand.u32 %v436, 4294901760
        %v6633 = vsub.f32 %v436, %v6632
        %v6634 = vand.u32 %v6633, 4294901760
        %6635 = vmatpush.msra.mxu0 %v6634
        %v6636 = vand.u32 %v432, 4294901760
        %v6637 = vsub.f32 %v432, %v6636
        %v6638 = vand.u32 %v6637, 4294901760
        %6639 = vmatpush.msra.mxu0 %v6638
        %v6640 = vand.u32 %v428, 4294901760
        %v6641 = vsub.f32 %v428, %v6640
        %v6642 = vand.u32 %v6641, 4294901760
        %6643 = vmatpush.msra.mxu0 %v6642
        %v6644 = vand.u32 %v424, 4294901760
        %v6645 = vsub.f32 %v424, %v6644
        %v6646 = vand.u32 %v6645, 4294901760
        %6647 = vmatpush.msra.mxu0 %v6646
        %v6648 = vand.u32 %v420, 4294901760
        %v6649 = vsub.f32 %v420, %v6648
        %v6650 = vand.u32 %v6649, 4294901760
        %6651 = vmatpush.msra.mxu0 %v6650
        %v6652 = vand.u32 %v223, 4294901760
        %6653 = vmatmul.f32.gmra.mxu0 %v6652
        %v6654 = vpop.f32.mrf.mxu0
        %v6655 = vadd.f32 %v6586, %v6654
        %6656 = vdwg.mxu0
        %v6657 = vand.u32 %v480, 4294901760
        %6658 = vmatpush.msra.mxu0 %v6657
        %v6659 = vand.u32 %v476, 4294901760
        %6660 = vmatpush.msra.mxu0 %v6659
        %v6661 = vand.u32 %v472, 4294901760
        %6662 = vmatpush.msra.mxu0 %v6661
        %v6663 = vand.u32 %v468, 4294901760
        %6664 = vmatpush.msra.mxu0 %v6663
        %v6665 = vand.u32 %v464, 4294901760
        %6666 = vmatpush.msra.mxu0 %v6665
        %v6667 = vand.u32 %v460, 4294901760
        %6668 = vmatpush.msra.mxu0 %v6667
        %v6669 = vand.u32 %v456, 4294901760
        %6670 = vmatpush.msra.mxu0 %v6669
        %v6671 = vand.u32 %v452, 4294901760
        %6672 = vmatpush.msra.mxu0 %v6671
        %v6673 = vand.u32 %v448, 4294901760
        %6674 = vmatpush.msra.mxu0 %v6673
        %v6675 = vand.u32 %v444, 4294901760
        %6676 = vmatpush.msra.mxu0 %v6675
        %v6677 = vand.u32 %v440, 4294901760
        %6678 = vmatpush.msra.mxu0 %v6677
        %v6679 = vand.u32 %v436, 4294901760
        %6680 = vmatpush.msra.mxu0 %v6679
        %v6681 = vand.u32 %v432, 4294901760
        %6682 = vmatpush.msra.mxu0 %v6681
        %v6683 = vand.u32 %v428, 4294901760
        %6684 = vmatpush.msra.mxu0 %v6683
        %v6685 = vand.u32 %v424, 4294901760
        %6686 = vmatpush.msra.mxu0 %v6685
        %v6687 = vand.u32 %v420, 4294901760
        %6688 = vmatpush.msra.mxu0 %v6687
        %v6689 = vand.u32 %v223, 4294901760
        %6690 = vmatmul.f32.gmra.mxu0 %v6689
        %v6691 = vpop.f32.mrf.mxu0
        %v6692 = vadd.f32 %v6655, %v6691
        %6693 = vdwg.mxu0
        %6694 = vmatpush.msra.mxu0 0.0
        %6695 = vmatpush.msra.mxu0 0.0
        %6696 = vmatpush.msra.mxu0 0.0
        %6697 = vmatpush.msra.mxu0 0.0
        %6698 = vmatpush.msra.mxu0 0.0
        %6699 = vmatpush.msra.mxu0 0.0
        %6700 = vmatpush.msra.mxu0 0.0
        %6701 = vmatpush.msra.mxu0 0.0
        %v6702 = vand.u32 %v512, 4294901760
        %6703 = vmatpush.msra.mxu0 %v6702
        %v6704 = vand.u32 %v508, 4294901760
        %6705 = vmatpush.msra.mxu0 %v6704
        %v6706 = vand.u32 %v504, 4294901760
        %6707 = vmatpush.msra.mxu0 %v6706
        %v6708 = vand.u32 %v500, 4294901760
        %6709 = vmatpush.msra.mxu0 %v6708
        %v6710 = vand.u32 %v496, 4294901760
        %6711 = vmatpush.msra.mxu0 %v6710
        %v6712 = vand.u32 %v492, 4294901760
        %6713 = vmatpush.msra.mxu0 %v6712
        %v6714 = vand.u32 %v488, 4294901760
        %6715 = vmatpush.msra.mxu0 %v6714
        %v6716 = vand.u32 %v484, 4294901760
        %6717 = vmatpush.msra.mxu0 %v6716
        %v6718 = vand.u32 %v525, 4294901760
        %v6719 = vsub.f32 %v525, %v6718
        %v6720 = vand.u32 %v6719, 4294901760
        %v6721 = vsub.f32 %v6719, %v6720
        %v6722 = vand.u32 %v6721, 4294901760
        %6723 = vmatmul.f32.gmra.mxu0 %v6722
        %v6724 = vpop.f32.mrf.mxu0
        %v6725 = vadd.f32 %v6692, %v6724
        %6726 = vdwg.mxu0
        %6727 = vmatpush.msra.mxu0 0.0
        %6728 = vmatpush.msra.mxu0 0.0
        %6729 = vmatpush.msra.mxu0 0.0
        %6730 = vmatpush.msra.mxu0 0.0
        %6731 = vmatpush.msra.mxu0 0.0
        %6732 = vmatpush.msra.mxu0 0.0
        %6733 = vmatpush.msra.mxu0 0.0
        %6734 = vmatpush.msra.mxu0 0.0
        %v6735 = vand.u32 %v512, 4294901760
        %v6736 = vsub.f32 %v512, %v6735
        %v6737 = vand.u32 %v6736, 4294901760
        %v6738 = vsub.f32 %v6736, %v6737
        %v6739 = vand.u32 %v6738, 4294901760
        %6740 = vmatpush.msra.mxu0 %v6739
        %v6741 = vand.u32 %v508, 4294901760
        %v6742 = vsub.f32 %v508, %v6741
        %v6743 = vand.u32 %v6742, 4294901760
        %v6744 = vsub.f32 %v6742, %v6743
        %v6745 = vand.u32 %v6744, 4294901760
        %6746 = vmatpush.msra.mxu0 %v6745
        %v6747 = vand.u32 %v504, 4294901760
        %v6748 = vsub.f32 %v504, %v6747
        %v6749 = vand.u32 %v6748, 4294901760
        %v6750 = vsub.f32 %v6748, %v6749
        %v6751 = vand.u32 %v6750, 4294901760
        %6752 = vmatpush.msra.mxu0 %v6751
        %v6753 = vand.u32 %v500, 4294901760
        %v6754 = vsub.f32 %v500, %v6753
        %v6755 = vand.u32 %v6754, 4294901760
        %v6756 = vsub.f32 %v6754, %v6755
        %v6757 = vand.u32 %v6756, 4294901760
        %6758 = vmatpush.msra.mxu0 %v6757
        %v6759 = vand.u32 %v496, 4294901760
        %v6760 = vsub.f32 %v496, %v6759
        %v6761 = vand.u32 %v6760, 4294901760
        %v6762 = vsub.f32 %v6760, %v6761
        %v6763 = vand.u32 %v6762, 4294901760
        %6764 = vmatpush.msra.mxu0 %v6763
        %v6765 = vand.u32 %v492, 4294901760
        %v6766 = vsub.f32 %v492, %v6765
        %v6767 = vand.u32 %v6766, 4294901760
        %v6768 = vsub.f32 %v6766, %v6767
        %v6769 = vand.u32 %v6768, 4294901760
        %6770 = vmatpush.msra.mxu0 %v6769
        %v6771 = vand.u32 %v488, 4294901760
        %v6772 = vsub.f32 %v488, %v6771
        %v6773 = vand.u32 %v6772, 4294901760
        %v6774 = vsub.f32 %v6772, %v6773
        %v6775 = vand.u32 %v6774, 4294901760
        %6776 = vmatpush.msra.mxu0 %v6775
        %v6777 = vand.u32 %v484, 4294901760
        %v6778 = vsub.f32 %v484, %v6777
        %v6779 = vand.u32 %v6778, 4294901760
        %v6780 = vsub.f32 %v6778, %v6779
        %v6781 = vand.u32 %v6780, 4294901760
        %6782 = vmatpush.msra.mxu0 %v6781
        %v6783 = vand.u32 %v525, 4294901760
        %6784 = vmatmul.f32.gmra.mxu0 %v6783
        %v6785 = vpop.f32.mrf.mxu0
        %v6786 = vadd.f32 %v6725, %v6785
        %6787 = vdwg.mxu0
        %6788 = vmatpush.msra.mxu0 0.0
        %6789 = vmatpush.msra.mxu0 0.0
        %6790 = vmatpush.msra.mxu0 0.0
        %6791 = vmatpush.msra.mxu0 0.0
        %6792 = vmatpush.msra.mxu0 0.0
        %6793 = vmatpush.msra.mxu0 0.0
        %6794 = vmatpush.msra.mxu0 0.0
        %6795 = vmatpush.msra.mxu0 0.0
        %v6796 = vand.u32 %v512, 4294901760
        %v6797 = vsub.f32 %v512, %v6796
        %6798 = vmatpush.msra.mxu0 %v6797
        %v6799 = vand.u32 %v508, 4294901760
        %v6800 = vsub.f32 %v508, %v6799
        %6801 = vmatpush.msra.mxu0 %v6800
        %v6802 = vand.u32 %v504, 4294901760
        %v6803 = vsub.f32 %v504, %v6802
        %6804 = vmatpush.msra.mxu0 %v6803
        %v6805 = vand.u32 %v500, 4294901760
        %v6806 = vsub.f32 %v500, %v6805
        %6807 = vmatpush.msra.mxu0 %v6806
        %v6808 = vand.u32 %v496, 4294901760
        %v6809 = vsub.f32 %v496, %v6808
        %6810 = vmatpush.msra.mxu0 %v6809
        %v6811 = vand.u32 %v492, 4294901760
        %v6812 = vsub.f32 %v492, %v6811
        %6813 = vmatpush.msra.mxu0 %v6812
        %v6814 = vand.u32 %v488, 4294901760
        %v6815 = vsub.f32 %v488, %v6814
        %6816 = vmatpush.msra.mxu0 %v6815
        %v6817 = vand.u32 %v484, 4294901760
        %v6818 = vsub.f32 %v484, %v6817
        %6819 = vmatpush.msra.mxu0 %v6818
        %v6820 = vand.u32 %v525, 4294901760
        %v6821 = vsub.f32 %v525, %v6820
        %6822 = vmatmul.f32.gmra.mxu0 %v6821
        %v6823 = vpop.f32.mrf.mxu0
        %v6824 = vadd.f32 %v6786, %v6823
        %6825 = vdwg.mxu0
        %6826 = vmatpush.msra.mxu0 0.0
        %6827 = vmatpush.msra.mxu0 0.0
        %6828 = vmatpush.msra.mxu0 0.0
        %6829 = vmatpush.msra.mxu0 0.0
        %6830 = vmatpush.msra.mxu0 0.0
        %6831 = vmatpush.msra.mxu0 0.0
        %6832 = vmatpush.msra.mxu0 0.0
        %6833 = vmatpush.msra.mxu0 0.0
        %v6834 = vand.u32 %v512, 4294901760
        %6835 = vmatpush.msra.mxu0 %v6834
        %v6836 = vand.u32 %v508, 4294901760
        %6837 = vmatpush.msra.mxu0 %v6836
        %v6838 = vand.u32 %v504, 4294901760
        %6839 = vmatpush.msra.mxu0 %v6838
        %v6840 = vand.u32 %v500, 4294901760
        %6841 = vmatpush.msra.mxu0 %v6840
        %v6842 = vand.u32 %v496, 4294901760
        %6843 = vmatpush.msra.mxu0 %v6842
        %v6844 = vand.u32 %v492, 4294901760
        %6845 = vmatpush.msra.mxu0 %v6844
        %v6846 = vand.u32 %v488, 4294901760
        %6847 = vmatpush.msra.mxu0 %v6846
        %v6848 = vand.u32 %v484, 4294901760
        %6849 = vmatpush.msra.mxu0 %v6848
        %v6850 = vand.u32 %v525, 4294901760
        %v6851 = vsub.f32 %v525, %v6850
        %v6852 = vand.u32 %v6851, 4294901760
        %6853 = vmatmul.f32.gmra.mxu0 %v6852
        %v6854 = vpop.f32.mrf.mxu0
        %v6855 = vadd.f32 %v6824, %v6854
        %6856 = vdwg.mxu0
        %6857 = vmatpush.msra.mxu0 0.0
        %6858 = vmatpush.msra.mxu0 0.0
        %6859 = vmatpush.msra.mxu0 0.0
        %6860 = vmatpush.msra.mxu0 0.0
        %6861 = vmatpush.msra.mxu0 0.0
        %6862 = vmatpush.msra.mxu0 0.0
        %6863 = vmatpush.msra.mxu0 0.0
        %6864 = vmatpush.msra.mxu0 0.0
        %v6865 = vand.u32 %v512, 4294901760
        %v6866 = vsub.f32 %v512, %v6865
        %v6867 = vand.u32 %v6866, 4294901760
        %6868 = vmatpush.msra.mxu0 %v6867
        %v6869 = vand.u32 %v508, 4294901760
        %v6870 = vsub.f32 %v508, %v6869
        %v6871 = vand.u32 %v6870, 4294901760
        %6872 = vmatpush.msra.mxu0 %v6871
        %v6873 = vand.u32 %v504, 4294901760
        %v6874 = vsub.f32 %v504, %v6873
        %v6875 = vand.u32 %v6874, 4294901760
        %6876 = vmatpush.msra.mxu0 %v6875
        %v6877 = vand.u32 %v500, 4294901760
        %v6878 = vsub.f32 %v500, %v6877
        %v6879 = vand.u32 %v6878, 4294901760
        %6880 = vmatpush.msra.mxu0 %v6879
        %v6881 = vand.u32 %v496, 4294901760
        %v6882 = vsub.f32 %v496, %v6881
        %v6883 = vand.u32 %v6882, 4294901760
        %6884 = vmatpush.msra.mxu0 %v6883
        %v6885 = vand.u32 %v492, 4294901760
        %v6886 = vsub.f32 %v492, %v6885
        %v6887 = vand.u32 %v6886, 4294901760
        %6888 = vmatpush.msra.mxu0 %v6887
        %v6889 = vand.u32 %v488, 4294901760
        %v6890 = vsub.f32 %v488, %v6889
        %v6891 = vand.u32 %v6890, 4294901760
        %6892 = vmatpush.msra.mxu0 %v6891
        %v6893 = vand.u32 %v484, 4294901760
        %v6894 = vsub.f32 %v484, %v6893
        %v6895 = vand.u32 %v6894, 4294901760
        %6896 = vmatpush.msra.mxu0 %v6895
        %v6897 = vand.u32 %v525, 4294901760
        %6898 = vmatmul.f32.gmra.mxu0 %v6897
        %v6899 = vpop.f32.mrf.mxu0
        %v6900 = vadd.f32 %v6855, %v6899
        %6901 = vdwg.mxu0
        %6902 = vmatpush.msra.mxu0 0.0
        %6903 = vmatpush.msra.mxu0 0.0
        %6904 = vmatpush.msra.mxu0 0.0
        %6905 = vmatpush.msra.mxu0 0.0
        %6906 = vmatpush.msra.mxu0 0.0
        %6907 = vmatpush.msra.mxu0 0.0
        %6908 = vmatpush.msra.mxu0 0.0
        %6909 = vmatpush.msra.mxu0 0.0
        %v6910 = vand.u32 %v512, 4294901760
        %6911 = vmatpush.msra.mxu0 %v6910
        %v6912 = vand.u32 %v508, 4294901760
        %6913 = vmatpush.msra.mxu0 %v6912
        %v6914 = vand.u32 %v504, 4294901760
        %6915 = vmatpush.msra.mxu0 %v6914
        %v6916 = vand.u32 %v500, 4294901760
        %6917 = vmatpush.msra.mxu0 %v6916
        %v6918 = vand.u32 %v496, 4294901760
        %6919 = vmatpush.msra.mxu0 %v6918
        %v6920 = vand.u32 %v492, 4294901760
        %6921 = vmatpush.msra.mxu0 %v6920
        %v6922 = vand.u32 %v488, 4294901760
        %6923 = vmatpush.msra.mxu0 %v6922
        %v6924 = vand.u32 %v484, 4294901760
        %6925 = vmatpush.msra.mxu0 %v6924
        %v6926 = vand.u32 %v525, 4294901760
        %6927 = vmatmul.f32.gmra.mxu0 %v6926
        %v6928 = vpop.f32.mrf.mxu0
        %v6929 = vadd.f32 %v6900, %v6928
        %6930 = vdwg.mxu0
        %6931 = vst [vmem:[%s219] sm:$0xff] %v2126
        %6932 = vst [vmem:[%s219 + $0x8] sm:$0xff] %v3727
        %6933 = vst [vmem:[%s219 + $0x10] sm:$0xff] %v5328
        %6934 = vst [vmem:[%s219 + $0x18] sm:$0xff] %v6929
        %s6935 = sand.u32 %s97, 1
        %s6936 = scalar_lea.sflag [#allocation4], %s6935
        %s6937 = sand.u32 %s97, 1
        %s6938 = smul.addr %s6937, 32
        %s6939 = scalar_lea.vmem [#allocation8], %s6938
        // Predicated region
        $region45: #{tpu_custom_call.1} parent=31 // pred_check
          %p6940 = pneg %p107
        $region46: #{tpu_custom_call.1} parent=31 // pred_check_branch
          %6942 = sbr.rel (%p6940) target = $region48
        $region47: #{tpu_custom_call.1} parent=31 // pred_region
          %6944 = vsyncadd %s6936, 0
          %s6945 = smul.addr %s21, 4
          %s6946 = smul.addr %s6945, 8
          %s6947 = scalar_lea.hbm %s3, %s6946
          %s6949 = sshll.u32 %s6939, 4
          %s6950 = int_to_ptr.vmem [resolvable:$true] %s6949
          %s6951 = sshll.u32 %s6947, 4
          %s6952 = int_to_ptr.hbm [resolvable:$true] %s6951
          %6954 = dma.vmem_to_hbm [thread:$0]  %s6950, 512, %s6952, %s6936
        $region48: #{tpu_custom_call.1} parent=31 // pred_fallthru
          _
      $region32: #{tpu_custom_call.1} parent=5 // pred_fallthru
        _
      %p6955 = scmp.le.s32.totalorder 2, %s16
      // Predicated region
      $region49: #{tpu_custom_call.1} parent=5 // pred_check
        %p6956 = pneg %p6955
      $region50: #{tpu_custom_call.1} parent=5 // pred_check_branch
        %6958 = sbr.rel (%p6956) target = $region52
      $region51: #{tpu_custom_call.1} parent=5 // pred_region
        %s6959 = ssub.s32 %s16, 2
        // Predicated region
        $region53: #{tpu_custom_call.1} parent=51 // pred_check
          %p6960 = pneg %p113
        $region54: #{tpu_custom_call.1} parent=51 // pred_check_branch
          %6962 = sbr.rel (%p6960) target = $region56
        $region55: #{tpu_custom_call.1} parent=51 // pred_region
          %s6963 = sand.u32 %s98, 1
          %s6964 = scalar_lea.sflag [#allocation4], %s6963
          %s6965 = sand.u32 %s98, 1
          %s6966 = smul.addr %s6965, 32
          %s6967 = scalar_lea.vmem [#allocation8], %s6966
          %6969 = dma.done %s6964, 512
        $region56: #{tpu_custom_call.1} parent=51 // pred_fallthru
          _
      $region52: #{tpu_custom_call.1} parent=5 // pred_fallthru
        _
    $region6: #{tpu_custom_call.1} parent=1 // loop_footer
      %s20 = sadd.s32 1, %s16
    $region7: #{tpu_custom_call.1} parent=1 // loop_footer_branch
      %15 = sbr.rel target = $region3
    $region8: #{tpu_custom_call.1} parent=1 // loop_exit
      _
    %6970 = vsyncpa [#allocation3], 1
    %s6971 = scalar_lea.sflag [#allocation3], 1
    %6972 = vsyncpa %s6971, 1
    %6973 = vsyncpa [#allocation6], 1
    %6974 = vsyncpa [#allocation4], 1
    %s6975 = scalar_lea.sflag [#allocation4], 1
    %6976 = vsyncpa %s6975, 1

</llo_original>
